<compile_context>
chip_gen: v7x
topology: tpu7x:2x2x1
jax: 0.10.0
libtpu: 0.0.40
codegen_flags: <defaults>
</compile_context>

<pallas_src>
import jax
import jax.numpy as jnp
from jax.experimental import pallas as pl
from jax.experimental.pallas import tpu as pltpu


def _att_pool_kernel(x_ref, w1_ref, w2_ref, b2_ref, wh_ref, bh_ref, att_ref):
    # x  : (KP, TCOL) bf16  im2col patches + ones bias row + zero pad,
    #                       spatial positions (frame-major) in lanes
    # w1 : (512, KP)  bf16  conv1 weight, bias folded into column K1, zero pad
    # w2 : (256, 512) bf16     b2: (256, 1) f32
    # wh : (8, 256)   bf16  rows 0/1 = bottom_up / top_down, rows 2..7 zero
    # bh : (8, 1)     f32
    # att: (1, TCOL)  f32   lane-dense output (bottom_up * top_down)
    h1 = jnp.dot(w1_ref[...], x_ref[...], preferred_element_type=jnp.float32)
    h1 = jnp.maximum(h1, 0.0)                                   # ReLU(pre_conv1 + b1)

    h2 = jnp.dot(w2_ref[...], h1.astype(jnp.bfloat16),
                 preferred_element_type=jnp.float32)
    h2 = jnp.maximum(h2 + b2_ref[...], 0.0)                     # ReLU(pre_conv2)

    heads = jnp.dot(wh_ref[...], h2.astype(jnp.bfloat16),       # bf16 operands,
                    preferred_element_type=jnp.float32)         # f32 accumulation
    heads = heads + bh_ref[...]                                 # (8, TCOL)
    att_ref[...] = heads[0:1, :] * heads[1:2, :]                # bottom_up * top_down


def prepare_params(params):
    """One-time conversion of PyTorch-layout conv params into kernel operands.

    Call this ONCE (outside the per-step forward): weights are static, so the
    reshape / zero-pad / bf16 casts must not be re-dispatched every call.
    """
    out1, c, kh, kw = params['w1'].shape                  # (512, C, 2, 2)
    k1 = c * kh * kw
    k_pad = max(128, ((k1 + 1 + 127) // 128) * 128)       # full-lane contraction depth

    # conv1 -> matmul form, contraction padded to k_pad; column k1 carries b1
    # (matched by the all-ones im2col row), remaining columns are zero.
    w1 = params['w1'].reshape(out1, k1).astype(jnp.float32)
    w1p = jnp.zeros((out1, k_pad), jnp.float32)
    w1p = w1p.at[:, :k1].set(w1).at[:, k1].set(params['b1'])

    out2 = params['w2'].shape[0]                          # 256
    w2 = params['w2'].reshape(out2, out1)

    # head weights padded to 8 sublanes (zeros) so the head matmul is unmasked
    wh = jnp.zeros((8, out2), jnp.float32)
    wh = wh.at[0].set(params['wbu'].reshape(out2)).at[1].set(params['wtd'].reshape(out2))
    bh = jnp.zeros((8, 1), jnp.float32)
    bh = bh.at[0, 0].set(params['bbu'][0]).at[1, 0].set(params['btd'][0])

    return {
        'w1': w1p.astype(jnp.bfloat16),                   # (512, k_pad) bf16, bias folded
        'w2': w2.astype(jnp.bfloat16),                    # (256, 512)  bf16
        'b2': params['b2'].reshape(out2, 1).astype(jnp.float32),
        'wh': wh.astype(jnp.bfloat16),                    # (8, 256) bf16
        'bh': bh,                                         # (8, 1)  f32
        'k1': k1,
    }


def _choose_grid(ncol):
    """Lane-tile selection.

    Small problems (like this one, NCOL=512) run as a single grid step: v5e/v6e
    are single-TC so a split is pure ~0.35 us/step overhead, and even on v7x the
    duplicated weight DMA outweighs ~0.1 us of compute. For large NCOL, split
    into 256-aligned tiles so f32 temporaries (h1 ~ 2 KiB/column) stay a few MiB
    and v7x can shard the "parallel" axis across its 2 TCs.
    """
    if ncol < 4096 or ncol % 512 != 0:
        return 1, ncol
    tcol = 2048
    while ncol % tcol != 0:
        tcol //= 2                    # ncol is a multiple of 512 -> terminates >= 512
    return ncol // tcol, tcol


def att_pool_forward(video, kp, input_fusion=True):
    B, S, C, H, W = video.shape
    H2, W2 = H // 2, W // 2
    P = H2 * W2
    N = B * S
    NCOL = N * P
    K1 = C * 4
    KP = kp['w1'].shape[1]

    # im2col for the 2x2 / stride-2 conv, feature-major with spatial in lanes:
    #   X[k, n*P + py*W2 + px],  k = c*4 + ky*2 + kx  (matches OIHW flattening).
    # Row K1 is all-ones (bias fold); rows K1+1..KP-1 are zeros so the conv1
    # contraction is a full 128-deep, unmasked MXU operand.
    xp = video.reshape(N, C, H2, 2, W2, 2)
    xp = jnp.transpose(xp, (1, 3, 5, 0, 2, 4)).reshape(K1, NCOL)
    xp = jnp.concatenate(
        [xp, jnp.ones((1, NCOL), xp.dtype), jnp.zeros((KP - K1 - 1, NCOL), xp.dtype)],
        axis=0).astype(jnp.bfloat16)

    n_steps, tcol = _choose_grid(NCOL)

    cost = pl.CostEstimate(
        flops=2 * NCOL * (512 * KP + 256 * 512 + 8 * 256),
        transcendentals=0,
        bytes_accessed=int((xp.size + kp['w1'].size + kp['w2'].size + kp['wh'].size) * 2
                           + (kp['b2'].size + kp['bh'].size + NCOL) * 4),
    )

    att = pl.pallas_call(
        _att_pool_kernel,
        out_shape=jax.ShapeDtypeStruct((1, NCOL), jnp.float32),
        grid=(n_steps,),
        in_specs=[
            pl.BlockSpec((KP, tcol), lambda j: (0, j)),
            pl.BlockSpec((512, KP), lambda j: (0, 0)),       # weights: constant maps,
            pl.BlockSpec((256, 512), lambda j: (0, 0)),      # stay resident across steps
            pl.BlockSpec((256, 1), lambda j: (0, 0)),
            pl.BlockSpec((8, 256), lambda j: (0, 0)),
            pl.BlockSpec((8, 1), lambda j: (0, 0)),
        ],
        out_specs=pl.BlockSpec((1, tcol), lambda j: (0, j)),
        compiler_params=pltpu.CompilerParams(
            dimension_semantics=("parallel",),
            # Let XLA fuse the im2col transpose/pad/bf16-cast into this call's
            # first operand (avoids a separate producer kernel + HBM roundtrip).
            allow_input_fusion=([True, False, False, False, False, False]
                                if input_fusion else None),
        ),
        cost_estimate=cost,
    )(xp, kp['w1'], kp['w2'], kp['b2'], kp['wh'], kp['bh'])

    att = att.reshape(B, S, H2, W2)
    video_score = jnp.sum(att, axis=(2, 3))                 # (B, S) f32 — 2 KiB, XLA
    final_score = jnp.mean(video_score, axis=1)             # (B,)
    video_soft_att = att[:, :, None, :, :]                  # (B, S, 1, H2, W2)
    return final_score, video_soft_att


def reference_forward(video, params):
    # Pure-JAX f32 reference reproducing the PyTorch forward (NCHW convs).
    B, S, C, H, W = video.shape
    x = video.reshape(B * S, C, H, W).astype(jnp.float32)
    dn = ('NCHW', 'OIHW', 'NCHW')
    y = jax.lax.conv_general_dilated(x, params['w1'], (2, 2), 'VALID', dimension_numbers=dn)
    y = jax.nn.relu(y + params['b1'][None, :, None, None])
    y = jax.lax.conv_general_dilated(y, params['w2'], (1, 1), 'VALID', dimension_numbers=dn)
    y = jax.nn.relu(y + params['b2'][None, :, None, None])
    bu = jax.lax.conv_general_dilated(y, params['wbu'], (1, 1), 'VALID',
                                      dimension_numbers=dn) + params['bbu'][None, :, None, None]
    td = jax.lax.conv_general_dilated(y, params['wtd'], (1, 1), 'VALID',
                                      dimension_numbers=dn) + params['btd'][None, :, None, None]
    att = bu * td
    score = jnp.sum(att.reshape(B * S, -1), axis=1).reshape(B, S)
    final = jnp.mean(score, axis=1)
    return final, att.reshape(B, S, 1, H // 2, W // 2)


if __name__ == "__main__":
    # module: model(feature_size=4, num_seg=4) -> in_channels = 2*feature_size = 8
    B, S, f_size, H, W = 2, 4, 4, 16, 16
    C = 2 * f_size

    key = jax.random.PRNGKey(0)
    kx, k1, k2, k3, k4, k5, k6, k7, k8 = jax.random.split(key, 9)
    video = jax.random.normal(kx, (B, S, C, H, W), dtype=jnp.float32)

    def init_conv(k, out_c, in_c, kh, kw):
        fan_in = in_c * kh * kw
        return jax.random.normal(k, (out_c, in_c, kh, kw), dtype=jnp.float32) / jnp.sqrt(fan_in)

    params = {
        'w1': init_conv(k1, 512, C, 2, 2),       # pre_conv1
        'b1': jax.random.normal(k2, (512,), dtype=jnp.float32) * 0.01,
        'w2': init_conv(k3, 256, 512, 1, 1),     # pre_conv2 (x_size = 256)
        'b2': jax.random.normal(k4, (256,), dtype=jnp.float32) * 0.01,
        'wbu': init_conv(k5, 1, 256, 1, 1),      # bottom_up
        'bbu': jax.random.normal(k6, (1,), dtype=jnp.float32) * 0.01,
        'wtd': init_conv(k7, 1, 256, 1, 1),      # top_down
        'btd': jax.random.normal(k8, (1,), dtype=jnp.float32) * 0.01,
    }
    # NOTE: avgpool/maxpool/tanh/sigmoid/softmax/dropout from __init__ are unused in forward().

    # One-time weight prep (outside the per-call forward path).
    kparams = prepare_params(params)
    jax.block_until_ready(kparams)

    fwd = jax.jit(att_pool_forward, static_argnames=("input_fusion",))
    try:
        final_score, video_soft_att = fwd(video, kparams, input_fusion=True)
        jax.block_until_ready((final_score, video_soft_att))
    except Exception:
        # allow_input_fusion is a hint; fall back cleanly if this XLA build rejects it.
        final_score, video_soft_att = fwd(video, kparams, input_fusion=False)
        jax.block_until_ready((final_score, video_soft_att))

    ref_final, ref_att = reference_forward(video, params)
    assert final_score.shape == (B,)
    assert video_soft_att.shape == (B, S, 1, H // 2, W // 2)
    # bf16 MXU operands (f32 accumulation) through three stacked contractions;
    # the attention map itself is tight, but the per-frame 64-way cancelling sum
    # amplifies relative error, hence the looser final-score tolerance.
    assert jnp.allclose(video_soft_att, ref_att, rtol=3e-2, atol=3e-2)
    assert jnp.allclose(final_score, ref_final, rtol=1e-1, atol=1e-1)
    print("KERNEL_OK")
</pallas_src>

<mosaic_0001>
module attributes {stable_mosaic.version = 11 : i64} {
  func.func @_att_pool_kernel(%arg0: i32, %arg1: memref<128x512xbf16, #tpu.memory_space<vmem>>, %arg2: memref<512x128xbf16, #tpu.memory_space<vmem>>, %arg3: memref<256x512xbf16, #tpu.memory_space<vmem>>, %arg4: memref<256x1xf32, #tpu.memory_space<vmem>>, %arg5: memref<8x256xbf16, #tpu.memory_space<vmem>>, %arg6: memref<8x1xf32, #tpu.memory_space<vmem>>, %arg7: memref<1x512xf32, #tpu.memory_space<vmem>>) attributes {dimension_semantics = [#tpu.dimension_semantics<parallel>], iteration_bounds = array<i64: 1>, scalar_prefetch = 0 : i64, scratch_operands = 0 : i64, tpu.core_type = #tpu.core_type<tc>, window_params = [{transform_indices = @transform_0, window_bounds = array<i64: 128, 512>}, {pipeline_mode = #tpu.pipeline_mode<synchronous>, transform_indices = @transform_1, window_bounds = array<i64: 512, 128>}, {pipeline_mode = #tpu.pipeline_mode<synchronous>, transform_indices = @transform_2, window_bounds = array<i64: 256, 512>}, {pipeline_mode = #tpu.pipeline_mode<synchronous>, transform_indices = @transform_3, window_bounds = array<i64: 256, 1>}, {pipeline_mode = #tpu.pipeline_mode<synchronous>, transform_indices = @transform_4, window_bounds = array<i64: 8, 256>}, {pipeline_mode = #tpu.pipeline_mode<synchronous>, transform_indices = @transform_5, window_bounds = array<i64: 8, 1>}, {transform_indices = @transform_6, window_bounds = array<i64: 1, 512>}]} {
    %c0 = arith.constant 0 : index
    %c0_0 = arith.constant 0 : index
    %0 = vector.load %arg2[%c0, %c0_0] : memref<512x128xbf16, #tpu.memory_space<vmem>>, vector<512x128xbf16>
    %c0_1 = arith.constant 0 : index
    %c0_2 = arith.constant 0 : index
    %1 = vector.load %arg1[%c0_1, %c0_2] : memref<128x512xbf16, #tpu.memory_space<vmem>>, vector<128x512xbf16>
    %cst = arith.constant dense<0.000000e+00> : vector<512x512xf32>
    %2 = tpu.matmul %0, %1, %cst {dimension_numbers = #tpu.dot_dimension_numbers<[1], [0], [0], [1], [0, 0, 1, 1], [], []>} : vector<512x128xbf16>, vector<128x512xbf16>, vector<512x512xf32> -> vector<512x512xf32>
    %cst_3 = arith.constant 0.000000e+00 : f32
    %3 = vector.broadcast %cst_3 : f32 to vector<512x512xf32>
    %4 = arith.maximumf %2, %3 : vector<512x512xf32>
    %c0_4 = arith.constant 0 : index
    %c0_5 = arith.constant 0 : index
    %5 = vector.load %arg3[%c0_4, %c0_5] : memref<256x512xbf16, #tpu.memory_space<vmem>>, vector<256x512xbf16>
    %6 = arith.truncf %4 : vector<512x512xf32> to vector<512x512xbf16>
    %cst_6 = arith.constant dense<0.000000e+00> : vector<256x512xf32>
    %7 = tpu.matmul %5, %6, %cst_6 {dimension_numbers = #tpu.dot_dimension_numbers<[1], [0], [0], [1], [0, 0, 1, 1], [], []>} : vector<256x512xbf16>, vector<512x512xbf16>, vector<256x512xf32> -> vector<256x512xf32>
    %c0_7 = arith.constant 0 : index
    %c0_8 = arith.constant 0 : index
    %8 = vector.load %arg4[%c0_7, %c0_8] : memref<256x1xf32, #tpu.memory_space<vmem>>, vector<256x1xf32>
    %9 = vector.broadcast %8 : vector<256x1xf32> to vector<256x512xf32>
    %10 = arith.addf %7, %9 : vector<256x512xf32>
    %cst_9 = arith.constant 0.000000e+00 : f32
    %11 = vector.broadcast %cst_9 : f32 to vector<256x512xf32>
    %12 = arith.maximumf %10, %11 : vector<256x512xf32>
    %c0_10 = arith.constant 0 : index
    %c0_11 = arith.constant 0 : index
    %13 = vector.load %arg5[%c0_10, %c0_11] : memref<8x256xbf16, #tpu.memory_space<vmem>>, vector<8x256xbf16>
    %14 = arith.truncf %12 : vector<256x512xf32> to vector<256x512xbf16>
    %cst_12 = arith.constant dense<0.000000e+00> : vector<8x512xf32>
    %15 = tpu.matmul %13, %14, %cst_12 {dimension_numbers = #tpu.dot_dimension_numbers<[1], [0], [0], [1], [0, 0, 1, 1], [], []>} : vector<8x256xbf16>, vector<256x512xbf16>, vector<8x512xf32> -> vector<8x512xf32>
    %c0_13 = arith.constant 0 : index
    %c0_14 = arith.constant 0 : index
    %16 = vector.load %arg6[%c0_13, %c0_14] : memref<8x1xf32, #tpu.memory_space<vmem>>, vector<8x1xf32>
    %17 = vector.broadcast %16 : vector<8x1xf32> to vector<8x512xf32>
    %18 = arith.addf %15, %17 : vector<8x512xf32>
    %19 = vector.extract_strided_slice %18 {offsets = [0, 0], sizes = [1, 512], strides = [1, 1]} : vector<8x512xf32> to vector<1x512xf32>
    %20 = vector.extract_strided_slice %18 {offsets = [1, 0], sizes = [1, 512], strides = [1, 1]} : vector<8x512xf32> to vector<1x512xf32>
    %21 = arith.mulf %19, %20 : vector<1x512xf32>
    %c0_15 = arith.constant 0 : index
    %c0_16 = arith.constant 0 : index
    %22 = vector.load %arg7[%c0_15, %c0_16] : memref<1x512xf32, #tpu.memory_space<vmem>>, vector<1x512xf32>
    tpu.vector_store %arg7[%c0_15, %c0_16], %21 {strides = array<i32>} : memref<1x512xf32, #tpu.memory_space<vmem>>, vector<1x512xf32>,
    return
  }
  func.func @transform_0(%arg0: i32) -> (i32, i32) {
    %c0_i32 = arith.constant 0 : i32
    %c0_i32_0 = arith.constant 0 : i32
    return %c0_i32, %arg0 : i32, i32
  }
  func.func @transform_1(%arg0: i32) -> (i32, i32) {
    %c0_i32 = arith.constant 0 : i32
    %c0_i32_0 = arith.constant 0 : i32
    %c0_i32_1 = arith.constant 0 : i32
    return %c0_i32, %c0_i32_0 : i32, i32
  }
  func.func @transform_2(%arg0: i32) -> (i32, i32) {
    %c0_i32 = arith.constant 0 : i32
    %c0_i32_0 = arith.constant 0 : i32
    %c0_i32_1 = arith.constant 0 : i32
    return %c0_i32, %c0_i32_0 : i32, i32
  }
  func.func @transform_3(%arg0: i32) -> (i32, i32) {
    %c0_i32 = arith.constant 0 : i32
    %c0_i32_0 = arith.constant 0 : i32
    %c0_i32_1 = arith.constant 0 : i32
    return %c0_i32, %c0_i32_0 : i32, i32
  }
  func.func @transform_4(%arg0: i32) -> (i32, i32) {
    %c0_i32 = arith.constant 0 : i32
    %c0_i32_0 = arith.constant 0 : i32
    %c0_i32_1 = arith.constant 0 : i32
    return %c0_i32, %c0_i32_0 : i32, i32
  }
  func.func @transform_5(%arg0: i32) -> (i32, i32) {
    %c0_i32 = arith.constant 0 : i32
    %c0_i32_0 = arith.constant 0 : i32
    %c0_i32_1 = arith.constant 0 : i32
    return %c0_i32, %c0_i32_0 : i32, i32
  }
  func.func @transform_6(%arg0: i32) -> (i32, i32) {
    %c0_i32 = arith.constant 0 : i32
    %c0_i32_0 = arith.constant 0 : i32
    return %c0_i32, %arg0 : i32, i32
  }
}

module attributes {stable_mosaic.version = 11 : i64} {
  func.func @_att_pool_kernel(%arg0: i32, %arg1: memref<128x512xbf16, #tpu.memory_space<vmem>>, %arg2: memref<512x128xbf16, #tpu.memory_space<vmem>>, %arg3: memref<256x512xbf16, #tpu.memory_space<vmem>>, %arg4: memref<256x1xf32, #tpu.memory_space<vmem>>, %arg5: memref<8x256xbf16, #tpu.memory_space<vmem>>, %arg6: memref<8x1xf32, #tpu.memory_space<vmem>>, %arg7: memref<1x512xf32, #tpu.memory_space<vmem>>) attributes {dimension_semantics = [#tpu.dimension_semantics<parallel>], iteration_bounds = array<i64: 1>, scalar_prefetch = 0 : i64, scratch_operands = 0 : i64, tpu.core_type = #tpu.core_type<tc>, window_params = [{transform_indices = @transform_0, window_bounds = array<i64: 128, 512>}, {pipeline_mode = #tpu.pipeline_mode<synchronous>, transform_indices = @transform_1, window_bounds = array<i64: 512, 128>}, {pipeline_mode = #tpu.pipeline_mode<synchronous>, transform_indices = @transform_2, window_bounds = array<i64: 256, 512>}, {pipeline_mode = #tpu.pipeline_mode<synchronous>, transform_indices = @transform_3, window_bounds = array<i64: 256, 1>}, {pipeline_mode = #tpu.pipeline_mode<synchronous>, transform_indices = @transform_4, window_bounds = array<i64: 8, 256>}, {pipeline_mode = #tpu.pipeline_mode<synchronous>, transform_indices = @transform_5, window_bounds = array<i64: 8, 1>}, {transform_indices = @transform_6, window_bounds = array<i64: 1, 512>}]} {
    %c0 = arith.constant 0 : index
    %c0_0 = arith.constant 0 : index
    %0 = vector.load %arg2[%c0, %c0_0] : memref<512x128xbf16, #tpu.memory_space<vmem>>, vector<512x128xbf16>
    %c0_1 = arith.constant 0 : index
    %c0_2 = arith.constant 0 : index
    %1 = vector.load %arg1[%c0_1, %c0_2] : memref<128x512xbf16, #tpu.memory_space<vmem>>, vector<128x512xbf16>
    %cst = arith.constant dense<0.000000e+00> : vector<512x512xf32>
    %2 = tpu.matmul %0, %1, %cst {dimension_numbers = #tpu.dot_dimension_numbers<[1], [0], [0], [1], [0, 0, 1, 1], [], []>} : vector<512x128xbf16>, vector<128x512xbf16>, vector<512x512xf32> -> vector<512x512xf32>
    %cst_3 = arith.constant 0.000000e+00 : f32
    %3 = vector.broadcast %cst_3 : f32 to vector<512x512xf32>
    %4 = arith.maximumf %2, %3 : vector<512x512xf32>
    %c0_4 = arith.constant 0 : index
    %c0_5 = arith.constant 0 : index
    %5 = vector.load %arg3[%c0_4, %c0_5] : memref<256x512xbf16, #tpu.memory_space<vmem>>, vector<256x512xbf16>
    %6 = arith.truncf %4 : vector<512x512xf32> to vector<512x512xbf16>
    %cst_6 = arith.constant dense<0.000000e+00> : vector<256x512xf32>
    %7 = tpu.matmul %5, %6, %cst_6 {dimension_numbers = #tpu.dot_dimension_numbers<[1], [0], [0], [1], [0, 0, 1, 1], [], []>} : vector<256x512xbf16>, vector<512x512xbf16>, vector<256x512xf32> -> vector<256x512xf32>
    %c0_7 = arith.constant 0 : index
    %c0_8 = arith.constant 0 : index
    %8 = vector.load %arg4[%c0_7, %c0_8] : memref<256x1xf32, #tpu.memory_space<vmem>>, vector<256x1xf32>
    %9 = vector.broadcast %8 : vector<256x1xf32> to vector<256x512xf32>
    %10 = arith.addf %7, %9 : vector<256x512xf32>
    %cst_9 = arith.constant 0.000000e+00 : f32
    %11 = vector.broadcast %cst_9 : f32 to vector<256x512xf32>
    %12 = arith.maximumf %10, %11 : vector<256x512xf32>
    %c0_10 = arith.constant 0 : index
    %c0_11 = arith.constant 0 : index
    %13 = vector.load %arg5[%c0_10, %c0_11] : memref<8x256xbf16, #tpu.memory_space<vmem>>, vector<8x256xbf16>
    %14 = arith.truncf %12 : vector<256x512xf32> to vector<256x512xbf16>
    %cst_12 = arith.constant dense<0.000000e+00> : vector<8x512xf32>
    %15 = tpu.matmul %13, %14, %cst_12 {dimension_numbers = #tpu.dot_dimension_numbers<[1], [0], [0], [1], [0, 0, 1, 1], [], []>} : vector<8x256xbf16>, vector<256x512xbf16>, vector<8x512xf32> -> vector<8x512xf32>
    %c0_13 = arith.constant 0 : index
    %c0_14 = arith.constant 0 : index
    %16 = vector.load %arg6[%c0_13, %c0_14] : memref<8x1xf32, #tpu.memory_space<vmem>>, vector<8x1xf32>
    %17 = vector.broadcast %16 : vector<8x1xf32> to vector<8x512xf32>
    %18 = arith.addf %15, %17 : vector<8x512xf32>
    %19 = vector.extract_strided_slice %18 {offsets = [0, 0], sizes = [1, 512], strides = [1, 1]} : vector<8x512xf32> to vector<1x512xf32>
    %20 = vector.extract_strided_slice %18 {offsets = [1, 0], sizes = [1, 512], strides = [1, 1]} : vector<8x512xf32> to vector<1x512xf32>
    %21 = arith.mulf %19, %20 : vector<1x512xf32>
    %c0_15 = arith.constant 0 : index
    %c0_16 = arith.constant 0 : index
    %22 = vector.load %arg7[%c0_15, %c0_16] : memref<1x512xf32, #tpu.memory_space<vmem>>, vector<1x512xf32>
    tpu.vector_store %arg7[%c0_15, %c0_16], %21 {strides = array<i32>} : memref<1x512xf32, #tpu.memory_space<vmem>>, vector<1x512xf32>,
    return
  }
  func.func @transform_0(%arg0: i32) -> (i32, i32) {
    %c0_i32 = arith.constant 0 : i32
    %c0_i32_0 = arith.constant 0 : i32
    return %c0_i32, %arg0 : i32, i32
  }
  func.func @transform_1(%arg0: i32) -> (i32, i32) {
    %c0_i32 = arith.constant 0 : i32
    %c0_i32_0 = arith.constant 0 : i32
    %c0_i32_1 = arith.constant 0 : i32
    return %c0_i32, %c0_i32_0 : i32, i32
  }
  func.func @transform_2(%arg0: i32) -> (i32, i32) {
    %c0_i32 = arith.constant 0 : i32
    %c0_i32_0 = arith.constant 0 : i32
    %c0_i32_1 = arith.constant 0 : i32
    return %c0_i32, %c0_i32_0 : i32, i32
  }
  func.func @transform_3(%arg0: i32) -> (i32, i32) {
    %c0_i32 = arith.constant 0 : i32
    %c0_i32_0 = arith.constant 0 : i32
    %c0_i32_1 = arith.constant 0 : i32
    return %c0_i32, %c0_i32_0 : i32, i32
  }
  func.func @transform_4(%arg0: i32) -> (i32, i32) {
    %c0_i32 = arith.constant 0 : i32
    %c0_i32_0 = arith.constant 0 : i32
    %c0_i32_1 = arith.constant 0 : i32
    return %c0_i32, %c0_i32_0 : i32, i32
  }
  func.func @transform_5(%arg0: i32) -> (i32, i32) {
    %c0_i32 = arith.constant 0 : i32
    %c0_i32_0 = arith.constant 0 : i32
    %c0_i32_1 = arith.constant 0 : i32
    return %c0_i32, %c0_i32_0 : i32, i32
  }
  func.func @transform_6(%arg0: i32) -> (i32, i32) {
    %c0_i32 = arith.constant 0 : i32
    %c0_i32_0 = arith.constant 0 : i32
    return %c0_i32, %arg0 : i32, i32
  }
}

</mosaic_0001>

<llo_original>
// kernel: att_pool_forward.2
$region0: #{att_pool_forward.2}
  #allocation0 [shape = 'u32[]', space=smem, size = 0x4, offset = 0x4, fixed_abs, tag = 'smem constant byte address 0x4 - core index']
  #allocation1 [shape = 'u32[144,128]{1,0:T(1,128)}', space=vmem, size = 0x12000, scoped, tag = 'internal scratch']
  #allocation2 [shape = 'u32[2048]{0}', space=vmem, size = 0x2000, scoped, tag = 'scoped memory for att_pool_forward.2']
  #allocation3 [shape = 'u32[2048]{0}', space=vmem, size = 0x2000, scoped, tag = 'scoped memory for att_pool_forward.2']
  #allocation4 [shape = 'u32[2048]{0}', space=vmem, size = 0x2000, scoped, tag = 'scoped memory for att_pool_forward.2']
  #allocation5 [shape = 'u32[2048]{0}', space=vmem, size = 0x2000, scoped, tag = 'scoped memory for att_pool_forward.2']
  #allocation6 [shape = 'u32[2048]{0}', space=vmem, size = 0x2000, scoped, tag = 'scoped memory for att_pool_forward.2']
  %s0 = inlined_call_operand.vmem [shape: bf16[512,128], index: 0, kind: input, shape index: {}]
  %s1 = inlined_call_operand.vmem [shape: bf16[256,512], index: 1, kind: input, shape index: {}]
  %s2 = inlined_call_operand.vmem [shape: f32[256,1], index: 2, kind: input, shape index: {}]
  %s3 = inlined_call_operand.vmem [shape: bf16[8,256], index: 3, kind: input, shape index: {}]
  %s4 = inlined_call_operand.vmem [shape: f32[8,1], index: 4, kind: input, shape index: {}]
  %s5 = inlined_call_operand.vmem [shape: bf16[32,512], index: 5, kind: input, shape index: {}]
  %s6 = inlined_call_operand.<no memory space> [shape: bf16[], index: 6, kind: input, shape index: {}]
  %s7 = inlined_call_operand.vmem [shape: bf16[128], index: 7, kind: input, shape index: {}]
  %s8 = inlined_call_operand.vmem [shape: bf16[128], index: 8, kind: input, shape index: {}]
  %s9 = inlined_call_operand.vmem [shape: f32[1,512], index: 9, kind: output, shape index: {}]
  %s10 = sld [smem:[#allocation0]]
  $region42: #{att_pool_forward.2} parent=0
    _
  %s12 = ssub.s32 1, %s10
  %s13 = scalar_select 0, %s12, %s10
  %v14 = vstv %s6
  %v15 = vunpack.i.l.bf16 %v14
  %v17 = vunpack.i.h.bf16 %v14
  $region1: #{att_pool_forward.2} parent=0
    #allocation7 [shape = 'u8[131072]{0}', space=vmem, size = 0x20000, dematerialized = true, scoped, tag = 'FusionAdapter Buffer %fusion.1 = bf16[128,512]{1,0:T(8,128)(2,1)} fusion(%param_5.4, %param_6.4, %param_7.3, %param_8.2), kind=kLoop, calls=%fused_computation.1.clone, metadata={op_name="jit(att_pool_forward)/concatenate" stack_frame_id=13}']
    // Predicated region
    $region2: #{att_pool_forward.2} parent=1 // pred_check
      _
    $region3: #{att_pool_forward.2} parent=1 // pred_check_branch
      %20 = sbr.rel (0) target = $region5
    $region4: #{att_pool_forward.2} parent=1 // pred_region
      _
    $region5: #{att_pool_forward.2} parent=1 // pred_fallthru
      _
    // Predicated region
    $region6: #{att_pool_forward.2} parent=1 // pred_check
      _
    $region7: #{att_pool_forward.2} parent=1 // pred_check_branch
      %22 = sbr.rel (0) target = $region9
    $region8: #{att_pool_forward.2} parent=1 // pred_region
      _
    $region9: #{att_pool_forward.2} parent=1 // pred_fallthru
      _
    // Predicated region
    $region10: #{att_pool_forward.2} parent=1 // pred_check
      _
    $region11: #{att_pool_forward.2} parent=1 // pred_check_branch
      %24 = sbr.rel (0) target = $region13
    $region12: #{att_pool_forward.2} parent=1 // pred_region
      _
    $region13: #{att_pool_forward.2} parent=1 // pred_fallthru
      _
    // Predicated region
    $region14: #{att_pool_forward.2} parent=1 // pred_check
      _
    $region15: #{att_pool_forward.2} parent=1 // pred_check_branch
      %26 = sbr.rel (0) target = $region17
    $region16: #{att_pool_forward.2} parent=1 // pred_region
      _
    $region17: #{att_pool_forward.2} parent=1 // pred_fallthru
      _
    // Predicated region
    $region18: #{att_pool_forward.2} parent=1 // pred_check
      _
    $region19: #{att_pool_forward.2} parent=1 // pred_check_branch
      %28 = sbr.rel (0) target = $region21
    $region20: #{att_pool_forward.2} parent=1 // pred_region
      _
    $region21: #{att_pool_forward.2} parent=1 // pred_fallthru
      _
    // Predicated region
    $region22: #{att_pool_forward.2} parent=1 // pred_check
      _
    $region23: #{att_pool_forward.2} parent=1 // pred_check_branch
      %30 = sbr.rel (0) target = $region25
    $region24: #{att_pool_forward.2} parent=1 // pred_region
      _
    $region25: #{att_pool_forward.2} parent=1 // pred_fallthru
      _
    // Predicated region
    $region26: #{att_pool_forward.2} parent=1 // pred_check
      _
    $region27: #{att_pool_forward.2} parent=1 // pred_check_branch
      %32 = sbr.rel (0) target = $region29
    $region28: #{att_pool_forward.2} parent=1 // pred_region
      _
    $region29: #{att_pool_forward.2} parent=1 // pred_fallthru
      _
    // Predicated region
    $region30: #{att_pool_forward.2} parent=1 // pred_check
      _
    $region31: #{att_pool_forward.2} parent=1 // pred_check_branch
      %34 = sbr.rel (0) target = $region33
    $region32: #{att_pool_forward.2} parent=1 // pred_region
      _
    $region33: #{att_pool_forward.2} parent=1 // pred_fallthru
      _
    %s36 = sor.u32 255, 127
    %s37 = sand.u32 %s36, 85
    %s38 = sshrl.u32 %s37, 1
    %s39 = sor.u32 %s37, %s38
    %s40 = sand.u32 51, %s39
    %s41 = sshrl.u32 %s40, 2
    %s42 = sor.u32 %s40, %s41
    %s43 = sand.u32 15, %s42
    %v44 = vld [vmem:[%s5] sm:%s43]
    %v45 = vunpack.c.l.bf16 %v44
    %v46 = vunpack.c.h.bf16 %v44
    %v47 = vld [vmem:[%s7] ss:$0 sm:$0xff]
    %v48 = vunpack.i.l.bf16 %v47
    %v50 = vunpack.i.h.bf16 %v47
    %53 = vbcast.lane.b32.xlu0 %v48, 256
    %v54 = vpop.permute.xlu0 %53
    %v55 = vld [vmem:[%s8] ss:$0 sm:$0xff]
    %v56 = vunpack.i.l.bf16 %v55
    %v58 = vunpack.i.h.bf16 %v55
    %61 = vbcast.lane.b32.xlu0 %v56, 256
    %v62 = vpop.permute.xlu0 %61
    %63 = xla_tuple %v45, %v62
    %64 = xla_tuple %63
    %v65 = vmax.f32 %v45, %v62
    %66 = xla_tuple %v65
    %67 = xla_tuple %v65, %v54
    %68 = xla_tuple %67
    %v69 = vmax.f32 %v65, %v54
    %70 = xla_tuple %v69
    %v71 = vpack.c.bf16 0.0, %v69
    %73 = vst [vmem:[#allocation7] sm:$0xf] %v71
    %s74 = scalar_lea.vmem %s5, 4
    %s76 = sor.u32 255, 127
    %s77 = sand.u32 %s76, 85
    %s78 = sshrl.u32 %s77, 1
    %s79 = sor.u32 %s77, %s78
    %s80 = sand.u32 51, %s79
    %s81 = sshrl.u32 %s80, 2
    %s82 = sor.u32 %s80, %s81
    %s83 = sand.u32 15, %s82
    %v84 = vld [vmem:[%s74] sm:%s83]
    %v85 = vunpack.c.l.bf16 %v84
    %v86 = vunpack.c.h.bf16 %v84
    %87 = xla_tuple %v85, %v62
    %88 = xla_tuple %87
    %v89 = vmax.f32 %v85, %v62
    %90 = xla_tuple %v89
    %91 = xla_tuple %v89, %v54
    %92 = xla_tuple %91
    %v93 = vmax.f32 %v89, %v54
    %94 = xla_tuple %v93
    %s95 = scalar_lea.vmem [#allocation7], 4
    %v96 = vpack.c.bf16 0.0, %v93
    %98 = vst [vmem:[%s95] sm:$0xf] %v96
    %s99 = scalar_lea.vmem %s5, 8
    %s101 = sor.u32 255, 127
    %s102 = sand.u32 %s101, 85
    %s103 = sshrl.u32 %s102, 1
    %s104 = sor.u32 %s102, %s103
    %s105 = sand.u32 51, %s104
    %s106 = sshrl.u32 %s105, 2
    %s107 = sor.u32 %s105, %s106
    %s108 = sand.u32 15, %s107
    %v109 = vld [vmem:[%s99] sm:%s108]
    %v110 = vunpack.c.l.bf16 %v109
    %v111 = vunpack.c.h.bf16 %v109
    %112 = xla_tuple %v110, %v62
    %113 = xla_tuple %112
    %v114 = vmax.f32 %v110, %v62
    %115 = xla_tuple %v114
    %116 = xla_tuple %v114, %v54
    %117 = xla_tuple %116
    %v118 = vmax.f32 %v114, %v54
    %119 = xla_tuple %v118
    %s120 = scalar_lea.vmem [#allocation7], 8
    %v121 = vpack.c.bf16 0.0, %v118
    %123 = vst [vmem:[%s120] sm:$0xf] %v121
    %s124 = scalar_lea.vmem %s5, 12
    %s126 = sor.u32 255, 127
    %s127 = sand.u32 %s126, 85
    %s128 = sshrl.u32 %s127, 1
    %s129 = sor.u32 %s127, %s128
    %s130 = sand.u32 51, %s129
    %s131 = sshrl.u32 %s130, 2
    %s132 = sor.u32 %s130, %s131
    %s133 = sand.u32 15, %s132
    %v134 = vld [vmem:[%s124] sm:%s133]
    %v135 = vunpack.c.l.bf16 %v134
    %v136 = vunpack.c.h.bf16 %v134
    %137 = xla_tuple %v135, %v62
    %138 = xla_tuple %137
    %v139 = vmax.f32 %v135, %v62
    %140 = xla_tuple %v139
    %141 = xla_tuple %v139, %v54
    %142 = xla_tuple %141
    %v143 = vmax.f32 %v139, %v54
    %144 = xla_tuple %v143
    %s145 = scalar_lea.vmem [#allocation7], 12
    %v146 = vpack.c.bf16 0.0, %v143
    %148 = vst [vmem:[%s145] sm:$0xf] %v146
    %s149 = scalar_lea.vmem %s5, 16
    %s151 = sor.u32 255, 127
    %s152 = sand.u32 %s151, 85
    %s153 = sshrl.u32 %s152, 1
    %s154 = sor.u32 %s152, %s153
    %s155 = sand.u32 51, %s154
    %s156 = sshrl.u32 %s155, 2
    %s157 = sor.u32 %s155, %s156
    %s158 = sand.u32 15, %s157
    %v159 = vld [vmem:[%s149] sm:%s158]
    %v160 = vunpack.c.l.bf16 %v159
    %v161 = vunpack.c.h.bf16 %v159
    %v162 = vld [vmem:[%s7] ss:$0 sm:$0xff]
    %v163 = vunpack.i.l.bf16 %v162
    %v165 = vunpack.i.h.bf16 %v162
    %s168 = sor.u32 256, 8
    %169 = vbcast.lane.b32.xlu0 %v163, %s168
    %v170 = vpop.permute.xlu0 %169
    %v171 = vld [vmem:[%s8] ss:$0 sm:$0xff]
    %v172 = vunpack.i.l.bf16 %v171
    %v174 = vunpack.i.h.bf16 %v171
    %s177 = sor.u32 256, 8
    %178 = vbcast.lane.b32.xlu0 %v172, %s177
    %v179 = vpop.permute.xlu0 %178
    %180 = xla_tuple %v160, %v179
    %181 = xla_tuple %180
    %v182 = vmax.f32 %v160, %v179
    %183 = xla_tuple %v182
    %184 = xla_tuple %v182, %v170
    %185 = xla_tuple %184
    %v186 = vmax.f32 %v182, %v170
    %187 = xla_tuple %v186
    %s188 = scalar_lea.vmem [#allocation7], 16
    %v189 = vpack.c.bf16 0.0, %v186
    %191 = vst [vmem:[%s188] sm:$0xf] %v189
    %s192 = scalar_lea.vmem %s5, 20
    %s194 = sor.u32 255, 127
    %s195 = sand.u32 %s194, 85
    %s196 = sshrl.u32 %s195, 1
    %s197 = sor.u32 %s195, %s196
    %s198 = sand.u32 51, %s197
    %s199 = sshrl.u32 %s198, 2
    %s200 = sor.u32 %s198, %s199
    %s201 = sand.u32 15, %s200
    %v202 = vld [vmem:[%s192] sm:%s201]
    %v203 = vunpack.c.l.bf16 %v202
    %v204 = vunpack.c.h.bf16 %v202
    %205 = xla_tuple %v203, %v179
    %206 = xla_tuple %205
    %v207 = vmax.f32 %v203, %v179
    %208 = xla_tuple %v207
    %209 = xla_tuple %v207, %v170
    %210 = xla_tuple %209
    %v211 = vmax.f32 %v207, %v170
    %212 = xla_tuple %v211
    %s213 = scalar_lea.vmem [#allocation7], 20
    %v214 = vpack.c.bf16 0.0, %v211
    %216 = vst [vmem:[%s213] sm:$0xf] %v214
    %s217 = scalar_lea.vmem %s5, 24
    %s219 = sor.u32 255, 127
    %s220 = sand.u32 %s219, 85
    %s221 = sshrl.u32 %s220, 1
    %s222 = sor.u32 %s220, %s221
    %s223 = sand.u32 51, %s222
    %s224 = sshrl.u32 %s223, 2
    %s225 = sor.u32 %s223, %s224
    %s226 = sand.u32 15, %s225
    %v227 = vld [vmem:[%s217] sm:%s226]
    %v228 = vunpack.c.l.bf16 %v227
    %v229 = vunpack.c.h.bf16 %v227
    %230 = xla_tuple %v228, %v179
    %231 = xla_tuple %230
    %v232 = vmax.f32 %v228, %v179
    %233 = xla_tuple %v232
    %234 = xla_tuple %v232, %v170
    %235 = xla_tuple %234
    %v236 = vmax.f32 %v232, %v170
    %237 = xla_tuple %v236
    %s238 = scalar_lea.vmem [#allocation7], 24
    %v239 = vpack.c.bf16 0.0, %v236
    %241 = vst [vmem:[%s238] sm:$0xf] %v239
    %s242 = scalar_lea.vmem %s5, 28
    %s244 = sor.u32 255, 127
    %s245 = sand.u32 %s244, 85
    %s246 = sshrl.u32 %s245, 1
    %s247 = sor.u32 %s245, %s246
    %s248 = sand.u32 51, %s247
    %s249 = sshrl.u32 %s248, 2
    %s250 = sor.u32 %s248, %s249
    %s251 = sand.u32 15, %s250
    %v252 = vld [vmem:[%s242] sm:%s251]
    %v253 = vunpack.c.l.bf16 %v252
    %v254 = vunpack.c.h.bf16 %v252
    %255 = xla_tuple %v253, %v179
    %256 = xla_tuple %255
    %v257 = vmax.f32 %v253, %v179
    %258 = xla_tuple %v257
    %259 = xla_tuple %v257, %v170
    %260 = xla_tuple %259
    %v261 = vmax.f32 %v257, %v170
    %262 = xla_tuple %v261
    %s263 = scalar_lea.vmem [#allocation7], 28
    %v264 = vpack.c.bf16 0.0, %v261
    %266 = vst [vmem:[%s263] sm:$0xf] %v264
    %s267 = scalar_lea.vmem %s5, 32
    %s269 = sor.u32 255, 127
    %s270 = sand.u32 %s269, 85
    %s271 = sshrl.u32 %s270, 1
    %s272 = sor.u32 %s270, %s271
    %s273 = sand.u32 51, %s272
    %s274 = sshrl.u32 %s273, 2
    %s275 = sor.u32 %s273, %s274
    %s276 = sand.u32 15, %s275
    %v277 = vld [vmem:[%s267] sm:%s276]
    %v278 = vunpack.c.l.bf16 %v277
    %v279 = vunpack.c.h.bf16 %v277
    %v280 = vld [vmem:[%s7] ss:$0 sm:$0xff]
    %v281 = vunpack.i.l.bf16 %v280
    %v283 = vunpack.i.h.bf16 %v280
    %s286 = sor.u32 256, 16
    %287 = vbcast.lane.b32.xlu0 %v281, %s286
    %v288 = vpop.permute.xlu0 %287
    %v289 = vld [vmem:[%s8] ss:$0 sm:$0xff]
    %v290 = vunpack.i.l.bf16 %v289
    %v292 = vunpack.i.h.bf16 %v289
    %s295 = sor.u32 256, 16
    %296 = vbcast.lane.b32.xlu0 %v290, %s295
    %v297 = vpop.permute.xlu0 %296
    %298 = xla_tuple %v278, %v297
    %299 = xla_tuple %298
    %v300 = vmax.f32 %v278, %v297
    %301 = xla_tuple %v300
    %302 = xla_tuple %v300, %v288
    %303 = xla_tuple %302
    %v304 = vmax.f32 %v300, %v288
    %305 = xla_tuple %v304
    %s306 = scalar_lea.vmem [#allocation7], 32
    %v307 = vpack.c.bf16 0.0, %v304
    %309 = vst [vmem:[%s306] sm:$0xf] %v307
    %s310 = scalar_lea.vmem %s5, 36
    %s312 = sor.u32 255, 127
    %s313 = sand.u32 %s312, 85
    %s314 = sshrl.u32 %s313, 1
    %s315 = sor.u32 %s313, %s314
    %s316 = sand.u32 51, %s315
    %s317 = sshrl.u32 %s316, 2
    %s318 = sor.u32 %s316, %s317
    %s319 = sand.u32 15, %s318
    %v320 = vld [vmem:[%s310] sm:%s319]
    %v321 = vunpack.c.l.bf16 %v320
    %v322 = vunpack.c.h.bf16 %v320
    %323 = xla_tuple %v321, %v297
    %324 = xla_tuple %323
    %v325 = vmax.f32 %v321, %v297
    %326 = xla_tuple %v325
    %327 = xla_tuple %v325, %v288
    %328 = xla_tuple %327
    %v329 = vmax.f32 %v325, %v288
    %330 = xla_tuple %v329
    %s331 = scalar_lea.vmem [#allocation7], 36
    %v332 = vpack.c.bf16 0.0, %v329
    %334 = vst [vmem:[%s331] sm:$0xf] %v332
    %s335 = scalar_lea.vmem %s5, 40
    %s337 = sor.u32 255, 127
    %s338 = sand.u32 %s337, 85
    %s339 = sshrl.u32 %s338, 1
    %s340 = sor.u32 %s338, %s339
    %s341 = sand.u32 51, %s340
    %s342 = sshrl.u32 %s341, 2
    %s343 = sor.u32 %s341, %s342
    %s344 = sand.u32 15, %s343
    %v345 = vld [vmem:[%s335] sm:%s344]
    %v346 = vunpack.c.l.bf16 %v345
    %v347 = vunpack.c.h.bf16 %v345
    %348 = xla_tuple %v346, %v297
    %349 = xla_tuple %348
    %v350 = vmax.f32 %v346, %v297
    %351 = xla_tuple %v350
    %352 = xla_tuple %v350, %v288
    %353 = xla_tuple %352
    %v354 = vmax.f32 %v350, %v288
    %355 = xla_tuple %v354
    %s356 = scalar_lea.vmem [#allocation7], 40
    %v357 = vpack.c.bf16 0.0, %v354
    %359 = vst [vmem:[%s356] sm:$0xf] %v357
    %s360 = scalar_lea.vmem %s5, 44
    %s362 = sor.u32 255, 127
    %s363 = sand.u32 %s362, 85
    %s364 = sshrl.u32 %s363, 1
    %s365 = sor.u32 %s363, %s364
    %s366 = sand.u32 51, %s365
    %s367 = sshrl.u32 %s366, 2
    %s368 = sor.u32 %s366, %s367
    %s369 = sand.u32 15, %s368
    %v370 = vld [vmem:[%s360] sm:%s369]
    %v371 = vunpack.c.l.bf16 %v370
    %v372 = vunpack.c.h.bf16 %v370
    %373 = xla_tuple %v371, %v297
    %374 = xla_tuple %373
    %v375 = vmax.f32 %v371, %v297
    %376 = xla_tuple %v375
    %377 = xla_tuple %v375, %v288
    %378 = xla_tuple %377
    %v379 = vmax.f32 %v375, %v288
    %380 = xla_tuple %v379
    %s381 = scalar_lea.vmem [#allocation7], 44
    %v382 = vpack.c.bf16 0.0, %v379
    %384 = vst [vmem:[%s381] sm:$0xf] %v382
    %s385 = scalar_lea.vmem %s5, 48
    %s387 = sor.u32 255, 127
    %s388 = sand.u32 %s387, 85
    %s389 = sshrl.u32 %s388, 1
    %s390 = sor.u32 %s388, %s389
    %s391 = sand.u32 51, %s390
    %s392 = sshrl.u32 %s391, 2
    %s393 = sor.u32 %s391, %s392
    %s394 = sand.u32 15, %s393
    %v395 = vld [vmem:[%s385] sm:%s394]
    %v396 = vunpack.c.l.bf16 %v395
    %v397 = vunpack.c.h.bf16 %v395
    %v398 = vld [vmem:[%s7] ss:$0 sm:$0xff]
    %v399 = vunpack.i.l.bf16 %v398
    %v401 = vunpack.i.h.bf16 %v398
    %s404 = sor.u32 256, 24
    %405 = vbcast.lane.b32.xlu0 %v399, %s404
    %v406 = vpop.permute.xlu0 %405
    %v407 = vld [vmem:[%s8] ss:$0 sm:$0xff]
    %v408 = vunpack.i.l.bf16 %v407
    %v410 = vunpack.i.h.bf16 %v407
    %s413 = sor.u32 256, 24
    %414 = vbcast.lane.b32.xlu0 %v408, %s413
    %v415 = vpop.permute.xlu0 %414
    %416 = xla_tuple %v396, %v415
    %417 = xla_tuple %416
    %v418 = vmax.f32 %v396, %v415
    %419 = xla_tuple %v418
    %420 = xla_tuple %v418, %v406
    %421 = xla_tuple %420
    %v422 = vmax.f32 %v418, %v406
    %423 = xla_tuple %v422
    %s424 = scalar_lea.vmem [#allocation7], 48
    %v425 = vpack.c.bf16 0.0, %v422
    %427 = vst [vmem:[%s424] sm:$0xf] %v425
    %s428 = scalar_lea.vmem %s5, 52
    %s430 = sor.u32 255, 127
    %s431 = sand.u32 %s430, 85
    %s432 = sshrl.u32 %s431, 1
    %s433 = sor.u32 %s431, %s432
    %s434 = sand.u32 51, %s433
    %s435 = sshrl.u32 %s434, 2
    %s436 = sor.u32 %s434, %s435
    %s437 = sand.u32 15, %s436
    %v438 = vld [vmem:[%s428] sm:%s437]
    %v439 = vunpack.c.l.bf16 %v438
    %v440 = vunpack.c.h.bf16 %v438
    %441 = xla_tuple %v439, %v415
    %442 = xla_tuple %441
    %v443 = vmax.f32 %v439, %v415
    %444 = xla_tuple %v443
    %445 = xla_tuple %v443, %v406
    %446 = xla_tuple %445
    %v447 = vmax.f32 %v443, %v406
    %448 = xla_tuple %v447
    %s449 = scalar_lea.vmem [#allocation7], 52
    %v450 = vpack.c.bf16 0.0, %v447
    %452 = vst [vmem:[%s449] sm:$0xf] %v450
    %s453 = scalar_lea.vmem %s5, 56
    %s455 = sor.u32 255, 127
    %s456 = sand.u32 %s455, 85
    %s457 = sshrl.u32 %s456, 1
    %s458 = sor.u32 %s456, %s457
    %s459 = sand.u32 51, %s458
    %s460 = sshrl.u32 %s459, 2
    %s461 = sor.u32 %s459, %s460
    %s462 = sand.u32 15, %s461
    %v463 = vld [vmem:[%s453] sm:%s462]
    %v464 = vunpack.c.l.bf16 %v463
    %v465 = vunpack.c.h.bf16 %v463
    %466 = xla_tuple %v464, %v415
    %467 = xla_tuple %466
    %v468 = vmax.f32 %v464, %v415
    %469 = xla_tuple %v468
    %470 = xla_tuple %v468, %v406
    %471 = xla_tuple %470
    %v472 = vmax.f32 %v468, %v406
    %473 = xla_tuple %v472
    %s474 = scalar_lea.vmem [#allocation7], 56
    %v475 = vpack.c.bf16 0.0, %v472
    %477 = vst [vmem:[%s474] sm:$0xf] %v475
    %s478 = scalar_lea.vmem %s5, 60
    %s480 = sor.u32 255, 127
    %s481 = sand.u32 %s480, 85
    %s482 = sshrl.u32 %s481, 1
    %s483 = sor.u32 %s481, %s482
    %s484 = sand.u32 51, %s483
    %s485 = sshrl.u32 %s484, 2
    %s486 = sor.u32 %s484, %s485
    %s487 = sand.u32 15, %s486
    %v488 = vld [vmem:[%s478] sm:%s487]
    %v489 = vunpack.c.l.bf16 %v488
    %v490 = vunpack.c.h.bf16 %v488
    %491 = xla_tuple %v489, %v415
    %492 = xla_tuple %491
    %v493 = vmax.f32 %v489, %v415
    %494 = xla_tuple %v493
    %495 = xla_tuple %v493, %v406
    %496 = xla_tuple %495
    %v497 = vmax.f32 %v493, %v406
    %498 = xla_tuple %v497
    %s499 = scalar_lea.vmem [#allocation7], 60
    %v500 = vpack.c.bf16 0.0, %v497
    %502 = vst [vmem:[%s499] sm:$0xf] %v500
    %v503 = vld [vmem:[%s7] ss:$0 sm:$0xff]
    %v504 = vunpack.i.l.bf16 %v503
    %v506 = vunpack.i.h.bf16 %v503
    %s509 = sor.u32 256, 32
    %510 = vbcast.lane.b32.xlu0 %v504, %s509
    %v511 = vpop.permute.xlu0 %510
    %v512 = vld [vmem:[%s8] ss:$0 sm:$0xff]
    %v513 = vunpack.i.l.bf16 %v512
    %v515 = vunpack.i.h.bf16 %v512
    %s518 = sor.u32 256, 32
    %519 = vbcast.lane.b32.xlu0 %v513, %s518
    %v520 = vpop.permute.xlu0 %519
    %521 = xla_tuple %v15, %v520
    %522 = xla_tuple %521
    %v523 = vmax.f32 %v15, %v520
    %524 = xla_tuple %v523
    %525 = xla_tuple %v523, %v511
    %526 = xla_tuple %525
    %v527 = vmax.f32 %v523, %v511
    %528 = xla_tuple %v527
    %s529 = scalar_lea.vmem [#allocation7], 64
    %v530 = vpack.c.bf16 0.0, %v527
    %532 = vst [vmem:[%s529] sm:$0xf] %v530
    %533 = xla_tuple %v15, %v520
    %534 = xla_tuple %533
    %v535 = vmax.f32 %v15, %v520
    %536 = xla_tuple %v535
    %537 = xla_tuple %v535, %v511
    %538 = xla_tuple %537
    %v539 = vmax.f32 %v535, %v511
    %540 = xla_tuple %v539
    %s541 = scalar_lea.vmem [#allocation7], 68
    %v542 = vpack.c.bf16 0.0, %v539
    %544 = vst [vmem:[%s541] sm:$0xf] %v542
    %545 = xla_tuple %v15, %v520
    %546 = xla_tuple %545
    %v547 = vmax.f32 %v15, %v520
    %548 = xla_tuple %v547
    %549 = xla_tuple %v547, %v511
    %550 = xla_tuple %549
    %v551 = vmax.f32 %v547, %v511
    %552 = xla_tuple %v551
    %s553 = scalar_lea.vmem [#allocation7], 72
    %v554 = vpack.c.bf16 0.0, %v551
    %556 = vst [vmem:[%s553] sm:$0xf] %v554
    %557 = xla_tuple %v15, %v520
    %558 = xla_tuple %557
    %v559 = vmax.f32 %v15, %v520
    %560 = xla_tuple %v559
    %561 = xla_tuple %v559, %v511
    %562 = xla_tuple %561
    %v563 = vmax.f32 %v559, %v511
    %564 = xla_tuple %v563
    %s565 = scalar_lea.vmem [#allocation7], 76
    %v566 = vpack.c.bf16 0.0, %v563
    %568 = vst [vmem:[%s565] sm:$0xf] %v566
    %v569 = vld [vmem:[%s7] ss:$0 sm:$0xff]
    %v570 = vunpack.i.l.bf16 %v569
    %v572 = vunpack.i.h.bf16 %v569
    %s575 = sor.u32 256, 40
    %576 = vbcast.lane.b32.xlu0 %v570, %s575
    %v577 = vpop.permute.xlu0 %576
    %v578 = vld [vmem:[%s8] ss:$0 sm:$0xff]
    %v579 = vunpack.i.l.bf16 %v578
    %v581 = vunpack.i.h.bf16 %v578
    %s584 = sor.u32 256, 40
    %585 = vbcast.lane.b32.xlu0 %v579, %s584
    %v586 = vpop.permute.xlu0 %585
    %587 = xla_tuple %v15, %v586
    %588 = xla_tuple %587
    %v589 = vmax.f32 %v15, %v586
    %590 = xla_tuple %v589
    %591 = xla_tuple %v589, %v577
    %592 = xla_tuple %591
    %v593 = vmax.f32 %v589, %v577
    %594 = xla_tuple %v593
    %s595 = scalar_lea.vmem [#allocation7], 80
    %v596 = vpack.c.bf16 0.0, %v593
    %598 = vst [vmem:[%s595] sm:$0xf] %v596
    %599 = xla_tuple %v15, %v586
    %600 = xla_tuple %599
    %v601 = vmax.f32 %v15, %v586
    %602 = xla_tuple %v601
    %603 = xla_tuple %v601, %v577
    %604 = xla_tuple %603
    %v605 = vmax.f32 %v601, %v577
    %606 = xla_tuple %v605
    %s607 = scalar_lea.vmem [#allocation7], 84
    %v608 = vpack.c.bf16 0.0, %v605
    %610 = vst [vmem:[%s607] sm:$0xf] %v608
    %611 = xla_tuple %v15, %v586
    %612 = xla_tuple %611
    %v613 = vmax.f32 %v15, %v586
    %614 = xla_tuple %v613
    %615 = xla_tuple %v613, %v577
    %616 = xla_tuple %615
    %v617 = vmax.f32 %v613, %v577
    %618 = xla_tuple %v617
    %s619 = scalar_lea.vmem [#allocation7], 88
    %v620 = vpack.c.bf16 0.0, %v617
    %622 = vst [vmem:[%s619] sm:$0xf] %v620
    %623 = xla_tuple %v15, %v586
    %624 = xla_tuple %623
    %v625 = vmax.f32 %v15, %v586
    %626 = xla_tuple %v625
    %627 = xla_tuple %v625, %v577
    %628 = xla_tuple %627
    %v629 = vmax.f32 %v625, %v577
    %630 = xla_tuple %v629
    %s631 = scalar_lea.vmem [#allocation7], 92
    %v632 = vpack.c.bf16 0.0, %v629
    %634 = vst [vmem:[%s631] sm:$0xf] %v632
    %v635 = vld [vmem:[%s7] ss:$0 sm:$0xff]
    %v636 = vunpack.i.l.bf16 %v635
    %v638 = vunpack.i.h.bf16 %v635
    %s641 = sor.u32 256, 48
    %642 = vbcast.lane.b32.xlu0 %v636, %s641
    %v643 = vpop.permute.xlu0 %642
    %v644 = vld [vmem:[%s8] ss:$0 sm:$0xff]
    %v645 = vunpack.i.l.bf16 %v644
    %v647 = vunpack.i.h.bf16 %v644
    %s650 = sor.u32 256, 48
    %651 = vbcast.lane.b32.xlu0 %v645, %s650
    %v652 = vpop.permute.xlu0 %651
    %653 = xla_tuple %v15, %v652
    %654 = xla_tuple %653
    %v655 = vmax.f32 %v15, %v652
    %656 = xla_tuple %v655
    %657 = xla_tuple %v655, %v643
    %658 = xla_tuple %657
    %v659 = vmax.f32 %v655, %v643
    %660 = xla_tuple %v659
    %s661 = scalar_lea.vmem [#allocation7], 96
    %v662 = vpack.c.bf16 0.0, %v659
    %664 = vst [vmem:[%s661] sm:$0xf] %v662
    %665 = xla_tuple %v15, %v652
    %666 = xla_tuple %665
    %v667 = vmax.f32 %v15, %v652
    %668 = xla_tuple %v667
    %669 = xla_tuple %v667, %v643
    %670 = xla_tuple %669
    %v671 = vmax.f32 %v667, %v643
    %672 = xla_tuple %v671
    %s673 = scalar_lea.vmem [#allocation7], 100
    %v674 = vpack.c.bf16 0.0, %v671
    %676 = vst [vmem:[%s673] sm:$0xf] %v674
    %677 = xla_tuple %v15, %v652
    %678 = xla_tuple %677
    %v679 = vmax.f32 %v15, %v652
    %680 = xla_tuple %v679
    %681 = xla_tuple %v679, %v643
    %682 = xla_tuple %681
    %v683 = vmax.f32 %v679, %v643
    %684 = xla_tuple %v683
    %s685 = scalar_lea.vmem [#allocation7], 104
    %v686 = vpack.c.bf16 0.0, %v683
    %688 = vst [vmem:[%s685] sm:$0xf] %v686
    %689 = xla_tuple %v15, %v652
    %690 = xla_tuple %689
    %v691 = vmax.f32 %v15, %v652
    %692 = xla_tuple %v691
    %693 = xla_tuple %v691, %v643
    %694 = xla_tuple %693
    %v695 = vmax.f32 %v691, %v643
    %696 = xla_tuple %v695
    %s697 = scalar_lea.vmem [#allocation7], 108
    %v698 = vpack.c.bf16 0.0, %v695
    %700 = vst [vmem:[%s697] sm:$0xf] %v698
    %v701 = vld [vmem:[%s7] ss:$0 sm:$0xff]
    %v702 = vunpack.i.l.bf16 %v701
    %v704 = vunpack.i.h.bf16 %v701
    %s707 = sor.u32 256, 56
    %708 = vbcast.lane.b32.xlu0 %v702, %s707
    %v709 = vpop.permute.xlu0 %708
    %v710 = vld [vmem:[%s8] ss:$0 sm:$0xff]
    %v711 = vunpack.i.l.bf16 %v710
    %v713 = vunpack.i.h.bf16 %v710
    %s716 = sor.u32 256, 56
    %717 = vbcast.lane.b32.xlu0 %v711, %s716
    %v718 = vpop.permute.xlu0 %717
    %719 = xla_tuple %v15, %v718
    %720 = xla_tuple %719
    %v721 = vmax.f32 %v15, %v718
    %722 = xla_tuple %v721
    %723 = xla_tuple %v721, %v709
    %724 = xla_tuple %723
    %v725 = vmax.f32 %v721, %v709
    %726 = xla_tuple %v725
    %s727 = scalar_lea.vmem [#allocation7], 112
    %v728 = vpack.c.bf16 0.0, %v725
    %730 = vst [vmem:[%s727] sm:$0xf] %v728
    %731 = xla_tuple %v15, %v718
    %732 = xla_tuple %731
    %v733 = vmax.f32 %v15, %v718
    %734 = xla_tuple %v733
    %735 = xla_tuple %v733, %v709
    %736 = xla_tuple %735
    %v737 = vmax.f32 %v733, %v709
    %738 = xla_tuple %v737
    %s739 = scalar_lea.vmem [#allocation7], 116
    %v740 = vpack.c.bf16 0.0, %v737
    %742 = vst [vmem:[%s739] sm:$0xf] %v740
    %743 = xla_tuple %v15, %v718
    %744 = xla_tuple %743
    %v745 = vmax.f32 %v15, %v718
    %746 = xla_tuple %v745
    %747 = xla_tuple %v745, %v709
    %748 = xla_tuple %747
    %v749 = vmax.f32 %v745, %v709
    %750 = xla_tuple %v749
    %s751 = scalar_lea.vmem [#allocation7], 120
    %v752 = vpack.c.bf16 0.0, %v749
    %754 = vst [vmem:[%s751] sm:$0xf] %v752
    %755 = xla_tuple %v15, %v718
    %756 = xla_tuple %755
    %v757 = vmax.f32 %v15, %v718
    %758 = xla_tuple %v757
    %759 = xla_tuple %v757, %v709
    %760 = xla_tuple %759
    %v761 = vmax.f32 %v757, %v709
    %762 = xla_tuple %v761
    %s763 = scalar_lea.vmem [#allocation7], 124
    %v764 = vpack.c.bf16 0.0, %v761
    %766 = vst [vmem:[%s763] sm:$0xf] %v764
    %v767 = vld [vmem:[%s7] ss:$0 sm:$0xff]
    %v768 = vunpack.i.l.bf16 %v767
    %v770 = vunpack.i.h.bf16 %v767
    %s773 = sor.u32 256, 64
    %774 = vbcast.lane.b32.xlu0 %v768, %s773
    %v775 = vpop.permute.xlu0 %774
    %v776 = vld [vmem:[%s8] ss:$0 sm:$0xff]
    %v777 = vunpack.i.l.bf16 %v776
    %v779 = vunpack.i.h.bf16 %v776
    %s782 = sor.u32 256, 64
    %783 = vbcast.lane.b32.xlu0 %v777, %s782
    %v784 = vpop.permute.xlu0 %783
    %785 = xla_tuple %v15, %v784
    %786 = xla_tuple %785
    %v787 = vmax.f32 %v15, %v784
    %788 = xla_tuple %v787
    %789 = xla_tuple %v787, %v775
    %790 = xla_tuple %789
    %v791 = vmax.f32 %v787, %v775
    %792 = xla_tuple %v791
    %s793 = scalar_lea.vmem [#allocation7], 128
    %v794 = vpack.c.bf16 0.0, %v791
    %796 = vst [vmem:[%s793] sm:$0xf] %v794
    %797 = xla_tuple %v15, %v784
    %798 = xla_tuple %797
    %v799 = vmax.f32 %v15, %v784
    %800 = xla_tuple %v799
    %801 = xla_tuple %v799, %v775
    %802 = xla_tuple %801
    %v803 = vmax.f32 %v799, %v775
    %804 = xla_tuple %v803
    %s805 = scalar_lea.vmem [#allocation7], 132
    %v806 = vpack.c.bf16 0.0, %v803
    %808 = vst [vmem:[%s805] sm:$0xf] %v806
    %809 = xla_tuple %v15, %v784
    %810 = xla_tuple %809
    %v811 = vmax.f32 %v15, %v784
    %812 = xla_tuple %v811
    %813 = xla_tuple %v811, %v775
    %814 = xla_tuple %813
    %v815 = vmax.f32 %v811, %v775
    %816 = xla_tuple %v815
    %s817 = scalar_lea.vmem [#allocation7], 136
    %v818 = vpack.c.bf16 0.0, %v815
    %820 = vst [vmem:[%s817] sm:$0xf] %v818
    %821 = xla_tuple %v15, %v784
    %822 = xla_tuple %821
    %v823 = vmax.f32 %v15, %v784
    %824 = xla_tuple %v823
    %825 = xla_tuple %v823, %v775
    %826 = xla_tuple %825
    %v827 = vmax.f32 %v823, %v775
    %828 = xla_tuple %v827
    %s829 = scalar_lea.vmem [#allocation7], 140
    %v830 = vpack.c.bf16 0.0, %v827
    %832 = vst [vmem:[%s829] sm:$0xf] %v830
    %v833 = vld [vmem:[%s7] ss:$0 sm:$0xff]
    %v834 = vunpack.i.l.bf16 %v833
    %v836 = vunpack.i.h.bf16 %v833
    %s839 = sor.u32 256, 72
    %840 = vbcast.lane.b32.xlu0 %v834, %s839
    %v841 = vpop.permute.xlu0 %840
    %v842 = vld [vmem:[%s8] ss:$0 sm:$0xff]
    %v843 = vunpack.i.l.bf16 %v842
    %v845 = vunpack.i.h.bf16 %v842
    %s848 = sor.u32 256, 72
    %849 = vbcast.lane.b32.xlu0 %v843, %s848
    %v850 = vpop.permute.xlu0 %849
    %851 = xla_tuple %v15, %v850
    %852 = xla_tuple %851
    %v853 = vmax.f32 %v15, %v850
    %854 = xla_tuple %v853
    %855 = xla_tuple %v853, %v841
    %856 = xla_tuple %855
    %v857 = vmax.f32 %v853, %v841
    %858 = xla_tuple %v857
    %s859 = scalar_lea.vmem [#allocation7], 144
    %v860 = vpack.c.bf16 0.0, %v857
    %862 = vst [vmem:[%s859] sm:$0xf] %v860
    %863 = xla_tuple %v15, %v850
    %864 = xla_tuple %863
    %v865 = vmax.f32 %v15, %v850
    %866 = xla_tuple %v865
    %867 = xla_tuple %v865, %v841
    %868 = xla_tuple %867
    %v869 = vmax.f32 %v865, %v841
    %870 = xla_tuple %v869
    %s871 = scalar_lea.vmem [#allocation7], 148
    %v872 = vpack.c.bf16 0.0, %v869
    %874 = vst [vmem:[%s871] sm:$0xf] %v872
    %875 = xla_tuple %v15, %v850
    %876 = xla_tuple %875
    %v877 = vmax.f32 %v15, %v850
    %878 = xla_tuple %v877
    %879 = xla_tuple %v877, %v841
    %880 = xla_tuple %879
    %v881 = vmax.f32 %v877, %v841
    %882 = xla_tuple %v881
    %s883 = scalar_lea.vmem [#allocation7], 152
    %v884 = vpack.c.bf16 0.0, %v881
    %886 = vst [vmem:[%s883] sm:$0xf] %v884
    %887 = xla_tuple %v15, %v850
    %888 = xla_tuple %887
    %v889 = vmax.f32 %v15, %v850
    %890 = xla_tuple %v889
    %891 = xla_tuple %v889, %v841
    %892 = xla_tuple %891
    %v893 = vmax.f32 %v889, %v841
    %894 = xla_tuple %v893
    %s895 = scalar_lea.vmem [#allocation7], 156
    %v896 = vpack.c.bf16 0.0, %v893
    %898 = vst [vmem:[%s895] sm:$0xf] %v896
    %v899 = vld [vmem:[%s7] ss:$0 sm:$0xff]
    %v900 = vunpack.i.l.bf16 %v899
    %v902 = vunpack.i.h.bf16 %v899
    %s905 = sor.u32 256, 80
    %906 = vbcast.lane.b32.xlu0 %v900, %s905
    %v907 = vpop.permute.xlu0 %906
    %v908 = vld [vmem:[%s8] ss:$0 sm:$0xff]
    %v909 = vunpack.i.l.bf16 %v908
    %v911 = vunpack.i.h.bf16 %v908
    %s914 = sor.u32 256, 80
    %915 = vbcast.lane.b32.xlu0 %v909, %s914
    %v916 = vpop.permute.xlu0 %915
    %917 = xla_tuple %v15, %v916
    %918 = xla_tuple %917
    %v919 = vmax.f32 %v15, %v916
    %920 = xla_tuple %v919
    %921 = xla_tuple %v919, %v907
    %922 = xla_tuple %921
    %v923 = vmax.f32 %v919, %v907
    %924 = xla_tuple %v923
    %s925 = scalar_lea.vmem [#allocation7], 160
    %v926 = vpack.c.bf16 0.0, %v923
    %928 = vst [vmem:[%s925] sm:$0xf] %v926
    %929 = xla_tuple %v15, %v916
    %930 = xla_tuple %929
    %v931 = vmax.f32 %v15, %v916
    %932 = xla_tuple %v931
    %933 = xla_tuple %v931, %v907
    %934 = xla_tuple %933
    %v935 = vmax.f32 %v931, %v907
    %936 = xla_tuple %v935
    %s937 = scalar_lea.vmem [#allocation7], 164
    %v938 = vpack.c.bf16 0.0, %v935
    %940 = vst [vmem:[%s937] sm:$0xf] %v938
    %941 = xla_tuple %v15, %v916
    %942 = xla_tuple %941
    %v943 = vmax.f32 %v15, %v916
    %944 = xla_tuple %v943
    %945 = xla_tuple %v943, %v907
    %946 = xla_tuple %945
    %v947 = vmax.f32 %v943, %v907
    %948 = xla_tuple %v947
    %s949 = scalar_lea.vmem [#allocation7], 168
    %v950 = vpack.c.bf16 0.0, %v947
    %952 = vst [vmem:[%s949] sm:$0xf] %v950
    %953 = xla_tuple %v15, %v916
    %954 = xla_tuple %953
    %v955 = vmax.f32 %v15, %v916
    %956 = xla_tuple %v955
    %957 = xla_tuple %v955, %v907
    %958 = xla_tuple %957
    %v959 = vmax.f32 %v955, %v907
    %960 = xla_tuple %v959
    %s961 = scalar_lea.vmem [#allocation7], 172
    %v962 = vpack.c.bf16 0.0, %v959
    %964 = vst [vmem:[%s961] sm:$0xf] %v962
    %v965 = vld [vmem:[%s7] ss:$0 sm:$0xff]
    %v966 = vunpack.i.l.bf16 %v965
    %v968 = vunpack.i.h.bf16 %v965
    %s971 = sor.u32 256, 88
    %972 = vbcast.lane.b32.xlu0 %v966, %s971
    %v973 = vpop.permute.xlu0 %972
    %v974 = vld [vmem:[%s8] ss:$0 sm:$0xff]
    %v975 = vunpack.i.l.bf16 %v974
    %v977 = vunpack.i.h.bf16 %v974
    %s980 = sor.u32 256, 88
    %981 = vbcast.lane.b32.xlu0 %v975, %s980
    %v982 = vpop.permute.xlu0 %981
    %983 = xla_tuple %v15, %v982
    %984 = xla_tuple %983
    %v985 = vmax.f32 %v15, %v982
    %986 = xla_tuple %v985
    %987 = xla_tuple %v985, %v973
    %988 = xla_tuple %987
    %v989 = vmax.f32 %v985, %v973
    %990 = xla_tuple %v989
    %s991 = scalar_lea.vmem [#allocation7], 176
    %v992 = vpack.c.bf16 0.0, %v989
    %994 = vst [vmem:[%s991] sm:$0xf] %v992
    %995 = xla_tuple %v15, %v982
    %996 = xla_tuple %995
    %v997 = vmax.f32 %v15, %v982
    %998 = xla_tuple %v997
    %999 = xla_tuple %v997, %v973
    %1000 = xla_tuple %999
    %v1001 = vmax.f32 %v997, %v973
    %1002 = xla_tuple %v1001
    %s1003 = scalar_lea.vmem [#allocation7], 180
    %v1004 = vpack.c.bf16 0.0, %v1001
    %1006 = vst [vmem:[%s1003] sm:$0xf] %v1004
    %1007 = xla_tuple %v15, %v982
    %1008 = xla_tuple %1007
    %v1009 = vmax.f32 %v15, %v982
    %1010 = xla_tuple %v1009
    %1011 = xla_tuple %v1009, %v973
    %1012 = xla_tuple %1011
    %v1013 = vmax.f32 %v1009, %v973
    %1014 = xla_tuple %v1013
    %s1015 = scalar_lea.vmem [#allocation7], 184
    %v1016 = vpack.c.bf16 0.0, %v1013
    %1018 = vst [vmem:[%s1015] sm:$0xf] %v1016
    %1019 = xla_tuple %v15, %v982
    %1020 = xla_tuple %1019
    %v1021 = vmax.f32 %v15, %v982
    %1022 = xla_tuple %v1021
    %1023 = xla_tuple %v1021, %v973
    %1024 = xla_tuple %1023
    %v1025 = vmax.f32 %v1021, %v973
    %1026 = xla_tuple %v1025
    %s1027 = scalar_lea.vmem [#allocation7], 188
    %v1028 = vpack.c.bf16 0.0, %v1025
    %1030 = vst [vmem:[%s1027] sm:$0xf] %v1028
    %v1031 = vld [vmem:[%s7] ss:$0 sm:$0xff]
    %v1032 = vunpack.i.l.bf16 %v1031
    %v1034 = vunpack.i.h.bf16 %v1031
    %s1037 = sor.u32 256, 96
    %1038 = vbcast.lane.b32.xlu0 %v1032, %s1037
    %v1039 = vpop.permute.xlu0 %1038
    %v1040 = vld [vmem:[%s8] ss:$0 sm:$0xff]
    %v1041 = vunpack.i.l.bf16 %v1040
    %v1043 = vunpack.i.h.bf16 %v1040
    %s1046 = sor.u32 256, 96
    %1047 = vbcast.lane.b32.xlu0 %v1041, %s1046
    %v1048 = vpop.permute.xlu0 %1047
    %1049 = xla_tuple %v15, %v1048
    %1050 = xla_tuple %1049
    %v1051 = vmax.f32 %v15, %v1048
    %1052 = xla_tuple %v1051
    %1053 = xla_tuple %v1051, %v1039
    %1054 = xla_tuple %1053
    %v1055 = vmax.f32 %v1051, %v1039
    %1056 = xla_tuple %v1055
    %s1057 = scalar_lea.vmem [#allocation7], 192
    %v1058 = vpack.c.bf16 0.0, %v1055
    %1060 = vst [vmem:[%s1057] sm:$0xf] %v1058
    %1061 = xla_tuple %v15, %v1048
    %1062 = xla_tuple %1061
    %v1063 = vmax.f32 %v15, %v1048
    %1064 = xla_tuple %v1063
    %1065 = xla_tuple %v1063, %v1039
    %1066 = xla_tuple %1065
    %v1067 = vmax.f32 %v1063, %v1039
    %1068 = xla_tuple %v1067
    %s1069 = scalar_lea.vmem [#allocation7], 196
    %v1070 = vpack.c.bf16 0.0, %v1067
    %1072 = vst [vmem:[%s1069] sm:$0xf] %v1070
    %1073 = xla_tuple %v15, %v1048
    %1074 = xla_tuple %1073
    %v1075 = vmax.f32 %v15, %v1048
    %1076 = xla_tuple %v1075
    %1077 = xla_tuple %v1075, %v1039
    %1078 = xla_tuple %1077
    %v1079 = vmax.f32 %v1075, %v1039
    %1080 = xla_tuple %v1079
    %s1081 = scalar_lea.vmem [#allocation7], 200
    %v1082 = vpack.c.bf16 0.0, %v1079
    %1084 = vst [vmem:[%s1081] sm:$0xf] %v1082
    %1085 = xla_tuple %v15, %v1048
    %1086 = xla_tuple %1085
    %v1087 = vmax.f32 %v15, %v1048
    %1088 = xla_tuple %v1087
    %1089 = xla_tuple %v1087, %v1039
    %1090 = xla_tuple %1089
    %v1091 = vmax.f32 %v1087, %v1039
    %1092 = xla_tuple %v1091
    %s1093 = scalar_lea.vmem [#allocation7], 204
    %v1094 = vpack.c.bf16 0.0, %v1091
    %1096 = vst [vmem:[%s1093] sm:$0xf] %v1094
    %v1097 = vld [vmem:[%s7] ss:$0 sm:$0xff]
    %v1098 = vunpack.i.l.bf16 %v1097
    %v1100 = vunpack.i.h.bf16 %v1097
    %s1103 = sor.u32 256, 104
    %1104 = vbcast.lane.b32.xlu0 %v1098, %s1103
    %v1105 = vpop.permute.xlu0 %1104
    %v1106 = vld [vmem:[%s8] ss:$0 sm:$0xff]
    %v1107 = vunpack.i.l.bf16 %v1106
    %v1109 = vunpack.i.h.bf16 %v1106
    %s1112 = sor.u32 256, 104
    %1113 = vbcast.lane.b32.xlu0 %v1107, %s1112
    %v1114 = vpop.permute.xlu0 %1113
    %1115 = xla_tuple %v15, %v1114
    %1116 = xla_tuple %1115
    %v1117 = vmax.f32 %v15, %v1114
    %1118 = xla_tuple %v1117
    %1119 = xla_tuple %v1117, %v1105
    %1120 = xla_tuple %1119
    %v1121 = vmax.f32 %v1117, %v1105
    %1122 = xla_tuple %v1121
    %s1123 = scalar_lea.vmem [#allocation7], 208
    %v1124 = vpack.c.bf16 0.0, %v1121
    %1126 = vst [vmem:[%s1123] sm:$0xf] %v1124
    %1127 = xla_tuple %v15, %v1114
    %1128 = xla_tuple %1127
    %v1129 = vmax.f32 %v15, %v1114
    %1130 = xla_tuple %v1129
    %1131 = xla_tuple %v1129, %v1105
    %1132 = xla_tuple %1131
    %v1133 = vmax.f32 %v1129, %v1105
    %1134 = xla_tuple %v1133
    %s1135 = scalar_lea.vmem [#allocation7], 212
    %v1136 = vpack.c.bf16 0.0, %v1133
    %1138 = vst [vmem:[%s1135] sm:$0xf] %v1136
    %1139 = xla_tuple %v15, %v1114
    %1140 = xla_tuple %1139
    %v1141 = vmax.f32 %v15, %v1114
    %1142 = xla_tuple %v1141
    %1143 = xla_tuple %v1141, %v1105
    %1144 = xla_tuple %1143
    %v1145 = vmax.f32 %v1141, %v1105
    %1146 = xla_tuple %v1145
    %s1147 = scalar_lea.vmem [#allocation7], 216
    %v1148 = vpack.c.bf16 0.0, %v1145
    %1150 = vst [vmem:[%s1147] sm:$0xf] %v1148
    %1151 = xla_tuple %v15, %v1114
    %1152 = xla_tuple %1151
    %v1153 = vmax.f32 %v15, %v1114
    %1154 = xla_tuple %v1153
    %1155 = xla_tuple %v1153, %v1105
    %1156 = xla_tuple %1155
    %v1157 = vmax.f32 %v1153, %v1105
    %1158 = xla_tuple %v1157
    %s1159 = scalar_lea.vmem [#allocation7], 220
    %v1160 = vpack.c.bf16 0.0, %v1157
    %1162 = vst [vmem:[%s1159] sm:$0xf] %v1160
    %v1163 = vld [vmem:[%s7] ss:$0 sm:$0xff]
    %v1164 = vunpack.i.l.bf16 %v1163
    %v1166 = vunpack.i.h.bf16 %v1163
    %s1169 = sor.u32 256, 112
    %1170 = vbcast.lane.b32.xlu0 %v1164, %s1169
    %v1171 = vpop.permute.xlu0 %1170
    %v1172 = vld [vmem:[%s8] ss:$0 sm:$0xff]
    %v1173 = vunpack.i.l.bf16 %v1172
    %v1175 = vunpack.i.h.bf16 %v1172
    %s1178 = sor.u32 256, 112
    %1179 = vbcast.lane.b32.xlu0 %v1173, %s1178
    %v1180 = vpop.permute.xlu0 %1179
    %1181 = xla_tuple %v15, %v1180
    %1182 = xla_tuple %1181
    %v1183 = vmax.f32 %v15, %v1180
    %1184 = xla_tuple %v1183
    %1185 = xla_tuple %v1183, %v1171
    %1186 = xla_tuple %1185
    %v1187 = vmax.f32 %v1183, %v1171
    %1188 = xla_tuple %v1187
    %s1189 = scalar_lea.vmem [#allocation7], 224
    %v1190 = vpack.c.bf16 0.0, %v1187
    %1192 = vst [vmem:[%s1189] sm:$0xf] %v1190
    %1193 = xla_tuple %v15, %v1180
    %1194 = xla_tuple %1193
    %v1195 = vmax.f32 %v15, %v1180
    %1196 = xla_tuple %v1195
    %1197 = xla_tuple %v1195, %v1171
    %1198 = xla_tuple %1197
    %v1199 = vmax.f32 %v1195, %v1171
    %1200 = xla_tuple %v1199
    %s1201 = scalar_lea.vmem [#allocation7], 228
    %v1202 = vpack.c.bf16 0.0, %v1199
    %1204 = vst [vmem:[%s1201] sm:$0xf] %v1202
    %1205 = xla_tuple %v15, %v1180
    %1206 = xla_tuple %1205
    %v1207 = vmax.f32 %v15, %v1180
    %1208 = xla_tuple %v1207
    %1209 = xla_tuple %v1207, %v1171
    %1210 = xla_tuple %1209
    %v1211 = vmax.f32 %v1207, %v1171
    %1212 = xla_tuple %v1211
    %s1213 = scalar_lea.vmem [#allocation7], 232
    %v1214 = vpack.c.bf16 0.0, %v1211
    %1216 = vst [vmem:[%s1213] sm:$0xf] %v1214
    %1217 = xla_tuple %v15, %v1180
    %1218 = xla_tuple %1217
    %v1219 = vmax.f32 %v15, %v1180
    %1220 = xla_tuple %v1219
    %1221 = xla_tuple %v1219, %v1171
    %1222 = xla_tuple %1221
    %v1223 = vmax.f32 %v1219, %v1171
    %1224 = xla_tuple %v1223
    %s1225 = scalar_lea.vmem [#allocation7], 236
    %v1226 = vpack.c.bf16 0.0, %v1223
    %1228 = vst [vmem:[%s1225] sm:$0xf] %v1226
    %v1229 = vld [vmem:[%s7] ss:$0 sm:$0xff]
    %v1230 = vunpack.i.l.bf16 %v1229
    %v1232 = vunpack.i.h.bf16 %v1229
    %s1235 = sor.u32 256, 120
    %1236 = vbcast.lane.b32.xlu0 %v1230, %s1235
    %v1237 = vpop.permute.xlu0 %1236
    %v1238 = vld [vmem:[%s8] ss:$0 sm:$0xff]
    %v1239 = vunpack.i.l.bf16 %v1238
    %v1241 = vunpack.i.h.bf16 %v1238
    %s1244 = sor.u32 256, 120
    %1245 = vbcast.lane.b32.xlu0 %v1239, %s1244
    %v1246 = vpop.permute.xlu0 %1245
    %1247 = xla_tuple %v15, %v1246
    %1248 = xla_tuple %1247
    %v1249 = vmax.f32 %v15, %v1246
    %1250 = xla_tuple %v1249
    %1251 = xla_tuple %v1249, %v1237
    %1252 = xla_tuple %1251
    %v1253 = vmax.f32 %v1249, %v1237
    %1254 = xla_tuple %v1253
    %s1255 = scalar_lea.vmem [#allocation7], 240
    %v1256 = vpack.c.bf16 0.0, %v1253
    %1258 = vst [vmem:[%s1255] sm:$0xf] %v1256
    %1259 = xla_tuple %v15, %v1246
    %1260 = xla_tuple %1259
    %v1261 = vmax.f32 %v15, %v1246
    %1262 = xla_tuple %v1261
    %1263 = xla_tuple %v1261, %v1237
    %1264 = xla_tuple %1263
    %v1265 = vmax.f32 %v1261, %v1237
    %1266 = xla_tuple %v1265
    %s1267 = scalar_lea.vmem [#allocation7], 244
    %v1268 = vpack.c.bf16 0.0, %v1265
    %1270 = vst [vmem:[%s1267] sm:$0xf] %v1268
    %1271 = xla_tuple %v15, %v1246
    %1272 = xla_tuple %1271
    %v1273 = vmax.f32 %v15, %v1246
    %1274 = xla_tuple %v1273
    %1275 = xla_tuple %v1273, %v1237
    %1276 = xla_tuple %1275
    %v1277 = vmax.f32 %v1273, %v1237
    %1278 = xla_tuple %v1277
    %s1279 = scalar_lea.vmem [#allocation7], 248
    %v1280 = vpack.c.bf16 0.0, %v1277
    %1282 = vst [vmem:[%s1279] sm:$0xf] %v1280
    %1283 = xla_tuple %v15, %v1246
    %1284 = xla_tuple %1283
    %v1285 = vmax.f32 %v15, %v1246
    %1286 = xla_tuple %v1285
    %1287 = xla_tuple %v1285, %v1237
    %1288 = xla_tuple %1287
    %v1289 = vmax.f32 %v1285, %v1237
    %1290 = xla_tuple %v1289
    %s1291 = scalar_lea.vmem [#allocation7], 252
    %v1292 = vpack.c.bf16 0.0, %v1289
    %1294 = vst [vmem:[%s1291] sm:$0xf] %v1292
    %v1296 = vld [vmem:[%s0] sm:$0xf]
    %v1297 = vld [vmem:[%s0 + $0x4] sm:$0xf]
    %v1298 = vld [vmem:[%s0 + $0x8] sm:$0xf]
    %v1299 = vld [vmem:[%s0 + $0xc] sm:$0xf]
    %v1300 = vld [vmem:[%s0 + $0x10] sm:$0xf]
    %v1301 = vld [vmem:[%s0 + $0x14] sm:$0xf]
    %v1302 = vld [vmem:[%s0 + $0x18] sm:$0xf]
    %v1303 = vld [vmem:[%s0 + $0x1c] sm:$0xf]
    %v1304 = vld [vmem:[%s0 + $0x20] sm:$0xf]
    %v1305 = vld [vmem:[%s0 + $0x24] sm:$0xf]
    %v1306 = vld [vmem:[%s0 + $0x28] sm:$0xf]
    %v1307 = vld [vmem:[%s0 + $0x2c] sm:$0xf]
    %v1308 = vld [vmem:[%s0 + $0x30] sm:$0xf]
    %v1309 = vld [vmem:[%s0 + $0x34] sm:$0xf]
    %v1310 = vld [vmem:[%s0 + $0x38] sm:$0xf]
    %v1311 = vld [vmem:[%s0 + $0x3c] sm:$0xf]
    %v1312 = vld [vmem:[%s0 + $0x40] sm:$0xf]
    %v1313 = vld [vmem:[%s0 + $0x44] sm:$0xf]
    %v1314 = vld [vmem:[%s0 + $0x48] sm:$0xf]
    %v1315 = vld [vmem:[%s0 + $0x4c] sm:$0xf]
    %v1316 = vld [vmem:[%s0 + $0x50] sm:$0xf]
    %v1317 = vld [vmem:[%s0 + $0x54] sm:$0xf]
    %v1318 = vld [vmem:[%s0 + $0x58] sm:$0xf]
    %v1319 = vld [vmem:[%s0 + $0x5c] sm:$0xf]
    %v1320 = vld [vmem:[%s0 + $0x60] sm:$0xf]
    %v1321 = vld [vmem:[%s0 + $0x64] sm:$0xf]
    %v1322 = vld [vmem:[%s0 + $0x68] sm:$0xf]
    %v1323 = vld [vmem:[%s0 + $0x6c] sm:$0xf]
    %v1324 = vld [vmem:[%s0 + $0x70] sm:$0xf]
    %v1325 = vld [vmem:[%s0 + $0x74] sm:$0xf]
    %v1326 = vld [vmem:[%s0 + $0x78] sm:$0xf]
    %v1327 = vld [vmem:[%s0 + $0x7c] sm:$0xf]
    %v1328 = vld [vmem:[%s0 + $0x80] sm:$0xf]
    %v1329 = vld [vmem:[%s0 + $0x84] sm:$0xf]
    %v1330 = vld [vmem:[%s0 + $0x88] sm:$0xf]
    %v1331 = vld [vmem:[%s0 + $0x8c] sm:$0xf]
    %v1332 = vld [vmem:[%s0 + $0x90] sm:$0xf]
    %v1333 = vld [vmem:[%s0 + $0x94] sm:$0xf]
    %v1334 = vld [vmem:[%s0 + $0x98] sm:$0xf]
    %v1335 = vld [vmem:[%s0 + $0x9c] sm:$0xf]
    %v1336 = vld [vmem:[%s0 + $0xa0] sm:$0xf]
    %v1337 = vld [vmem:[%s0 + $0xa4] sm:$0xf]
    %v1338 = vld [vmem:[%s0 + $0xa8] sm:$0xf]
    %v1339 = vld [vmem:[%s0 + $0xac] sm:$0xf]
    %v1340 = vld [vmem:[%s0 + $0xb0] sm:$0xf]
    %v1341 = vld [vmem:[%s0 + $0xb4] sm:$0xf]
    %v1342 = vld [vmem:[%s0 + $0xb8] sm:$0xf]
    %v1343 = vld [vmem:[%s0 + $0xbc] sm:$0xf]
    %v1344 = vld [vmem:[%s0 + $0xc0] sm:$0xf]
    %v1345 = vld [vmem:[%s0 + $0xc4] sm:$0xf]
    %v1346 = vld [vmem:[%s0 + $0xc8] sm:$0xf]
    %v1347 = vld [vmem:[%s0 + $0xcc] sm:$0xf]
    %v1348 = vld [vmem:[%s0 + $0xd0] sm:$0xf]
    %v1349 = vld [vmem:[%s0 + $0xd4] sm:$0xf]
    %v1350 = vld [vmem:[%s0 + $0xd8] sm:$0xf]
    %v1351 = vld [vmem:[%s0 + $0xdc] sm:$0xf]
    %v1352 = vld [vmem:[%s0 + $0xe0] sm:$0xf]
    %v1353 = vld [vmem:[%s0 + $0xe4] sm:$0xf]
    %v1354 = vld [vmem:[%s0 + $0xe8] sm:$0xf]
    %v1355 = vld [vmem:[%s0 + $0xec] sm:$0xf]
    %v1356 = vld [vmem:[%s0 + $0xf0] sm:$0xf]
    %v1357 = vld [vmem:[%s0 + $0xf4] sm:$0xf]
    %v1358 = vld [vmem:[%s0 + $0xf8] sm:$0xf]
    %v1359 = vld [vmem:[%s0 + $0xfc] sm:$0xf]
    %v1360 = vld [vmem:[#allocation7] sm:$0xff]
    %v1361 = vld [vmem:[#allocation7 + $0x8] sm:$0xff]
    %v1362 = vld [vmem:[#allocation7 + $0x10] sm:$0xff]
    %v1363 = vld [vmem:[#allocation7 + $0x18] sm:$0xff]
    %v1364 = vld [vmem:[#allocation7 + $0x20] sm:$0xff]
    %v1365 = vld [vmem:[#allocation7 + $0x28] sm:$0xff]
    %v1366 = vld [vmem:[#allocation7 + $0x30] sm:$0xff]
    %v1367 = vld [vmem:[#allocation7 + $0x38] sm:$0xff]
    %v1368 = vld [vmem:[#allocation7 + $0x40] sm:$0xff]
    %v1369 = vld [vmem:[#allocation7 + $0x48] sm:$0xff]
    %v1370 = vld [vmem:[#allocation7 + $0x50] sm:$0xff]
    %v1371 = vld [vmem:[#allocation7 + $0x58] sm:$0xff]
    %v1372 = vld [vmem:[#allocation7 + $0x60] sm:$0xff]
    %v1373 = vld [vmem:[#allocation7 + $0x68] sm:$0xff]
    %v1374 = vld [vmem:[#allocation7 + $0x70] sm:$0xff]
    %v1375 = vld [vmem:[#allocation7 + $0x78] sm:$0xff]
    %v1376 = vld [vmem:[#allocation7 + $0x80] sm:$0xff]
    %v1377 = vld [vmem:[#allocation7 + $0x88] sm:$0xff]
    %v1378 = vld [vmem:[#allocation7 + $0x90] sm:$0xff]
    %v1379 = vld [vmem:[#allocation7 + $0x98] sm:$0xff]
    %v1380 = vld [vmem:[#allocation7 + $0xa0] sm:$0xff]
    %v1381 = vld [vmem:[#allocation7 + $0xa8] sm:$0xff]
    %v1382 = vld [vmem:[#allocation7 + $0xb0] sm:$0xff]
    %v1383 = vld [vmem:[#allocation7 + $0xb8] sm:$0xff]
    %v1384 = vld [vmem:[#allocation7 + $0xc0] sm:$0xff]
    %v1385 = vld [vmem:[#allocation7 + $0xc8] sm:$0xff]
    %v1386 = vld [vmem:[#allocation7 + $0xd0] sm:$0xff]
    %v1387 = vld [vmem:[#allocation7 + $0xd8] sm:$0xff]
    %v1388 = vld [vmem:[#allocation7 + $0xe0] sm:$0xff]
    %v1389 = vld [vmem:[#allocation7 + $0xe8] sm:$0xff]
    %v1390 = vld [vmem:[#allocation7 + $0xf0] sm:$0xff]
    %v1391 = vld [vmem:[#allocation7 + $0xf8] sm:$0xff]
    %v1456 = vunpack.c.l.b16 %v1296
    %v1457 = vunpack.c.l.b16 %v1297
    %v1458 = vunpack.c.l.b16 %v1298
    %v1459 = vunpack.c.l.b16 %v1299
    %v1460 = vunpack.c.l.b16 %v1300
    %v1461 = vunpack.c.l.b16 %v1301
    %v1462 = vunpack.c.l.b16 %v1302
    %v1463 = vunpack.c.l.b16 %v1303
    %v1464 = vunpack.c.l.b16 %v1304
    %v1465 = vunpack.c.l.b16 %v1305
    %v1466 = vunpack.c.l.b16 %v1306
    %v1467 = vunpack.c.l.b16 %v1307
    %v1468 = vunpack.c.l.b16 %v1308
    %v1469 = vunpack.c.l.b16 %v1309
    %v1470 = vunpack.c.l.b16 %v1310
    %v1471 = vunpack.c.l.b16 %v1311
    %v1472 = vunpack.c.l.b16 %v1312
    %v1473 = vunpack.c.l.b16 %v1313
    %v1474 = vunpack.c.l.b16 %v1314
    %v1475 = vunpack.c.l.b16 %v1315
    %v1476 = vunpack.c.l.b16 %v1316
    %v1477 = vunpack.c.l.b16 %v1317
    %v1478 = vunpack.c.l.b16 %v1318
    %v1479 = vunpack.c.l.b16 %v1319
    %v1480 = vunpack.c.l.b16 %v1320
    %v1481 = vunpack.c.l.b16 %v1321
    %v1482 = vunpack.c.l.b16 %v1322
    %v1483 = vunpack.c.l.b16 %v1323
    %v1484 = vunpack.c.l.b16 %v1324
    %v1485 = vunpack.c.l.b16 %v1325
    %v1486 = vunpack.c.l.b16 %v1326
    %v1487 = vunpack.c.l.b16 %v1327
    %v1488 = vunpack.c.l.b16 %v1328
    %v1489 = vunpack.c.l.b16 %v1329
    %v1490 = vunpack.c.l.b16 %v1330
    %v1491 = vunpack.c.l.b16 %v1331
    %v1492 = vunpack.c.l.b16 %v1332
    %v1493 = vunpack.c.l.b16 %v1333
    %v1494 = vunpack.c.l.b16 %v1334
    %v1495 = vunpack.c.l.b16 %v1335
    %v1496 = vunpack.c.l.b16 %v1336
    %v1497 = vunpack.c.l.b16 %v1337
    %v1498 = vunpack.c.l.b16 %v1338
    %v1499 = vunpack.c.l.b16 %v1339
    %v1500 = vunpack.c.l.b16 %v1340
    %v1501 = vunpack.c.l.b16 %v1341
    %v1502 = vunpack.c.l.b16 %v1342
    %v1503 = vunpack.c.l.b16 %v1343
    %v1504 = vunpack.c.l.b16 %v1344
    %v1505 = vunpack.c.l.b16 %v1345
    %v1506 = vunpack.c.l.b16 %v1346
    %v1507 = vunpack.c.l.b16 %v1347
    %v1508 = vunpack.c.l.b16 %v1348
    %v1509 = vunpack.c.l.b16 %v1349
    %v1510 = vunpack.c.l.b16 %v1350
    %v1511 = vunpack.c.l.b16 %v1351
    %v1512 = vunpack.c.l.b16 %v1352
    %v1513 = vunpack.c.l.b16 %v1353
    %v1514 = vunpack.c.l.b16 %v1354
    %v1515 = vunpack.c.l.b16 %v1355
    %v1516 = vunpack.c.l.b16 %v1356
    %v1517 = vunpack.c.l.b16 %v1357
    %v1518 = vunpack.c.l.b16 %v1358
    %v1519 = vunpack.c.l.b16 %v1359
    %v1520 = vpack.c.b16 %v1457, %v1456
    %v1521 = vpack.c.b16 %v1459, %v1458
    %v1522 = vpack.c.b16 %v1461, %v1460
    %v1523 = vpack.c.b16 %v1463, %v1462
    %v1524 = vpack.c.b16 %v1465, %v1464
    %v1525 = vpack.c.b16 %v1467, %v1466
    %v1526 = vpack.c.b16 %v1469, %v1468
    %v1527 = vpack.c.b16 %v1471, %v1470
    %v1528 = vpack.c.b16 %v1473, %v1472
    %v1529 = vpack.c.b16 %v1475, %v1474
    %v1530 = vpack.c.b16 %v1477, %v1476
    %v1531 = vpack.c.b16 %v1479, %v1478
    %v1532 = vpack.c.b16 %v1481, %v1480
    %v1533 = vpack.c.b16 %v1483, %v1482
    %v1534 = vpack.c.b16 %v1485, %v1484
    %v1535 = vpack.c.b16 %v1487, %v1486
    %v1536 = vpack.c.b16 %v1489, %v1488
    %v1537 = vpack.c.b16 %v1491, %v1490
    %v1538 = vpack.c.b16 %v1493, %v1492
    %v1539 = vpack.c.b16 %v1495, %v1494
    %v1540 = vpack.c.b16 %v1497, %v1496
    %v1541 = vpack.c.b16 %v1499, %v1498
    %v1542 = vpack.c.b16 %v1501, %v1500
    %v1543 = vpack.c.b16 %v1503, %v1502
    %v1544 = vpack.c.b16 %v1505, %v1504
    %v1545 = vpack.c.b16 %v1507, %v1506
    %v1546 = vpack.c.b16 %v1509, %v1508
    %v1547 = vpack.c.b16 %v1511, %v1510
    %v1548 = vpack.c.b16 %v1513, %v1512
    %v1549 = vpack.c.b16 %v1515, %v1514
    %v1550 = vpack.c.b16 %v1517, %v1516
    %v1551 = vpack.c.b16 %v1519, %v1518
    %v1616 = vunpack.c.l.b16 %v1360
    %v1617 = vunpack.c.h.b16 %v1360
    %v1618 = vunpack.c.l.b16 %v1361
    %v1619 = vunpack.c.h.b16 %v1361
    %v1620 = vunpack.c.l.b16 %v1362
    %v1621 = vunpack.c.h.b16 %v1362
    %v1622 = vunpack.c.l.b16 %v1363
    %v1623 = vunpack.c.h.b16 %v1363
    %v1624 = vunpack.c.l.b16 %v1364
    %v1625 = vunpack.c.h.b16 %v1364
    %v1626 = vunpack.c.l.b16 %v1365
    %v1627 = vunpack.c.h.b16 %v1365
    %v1628 = vunpack.c.l.b16 %v1366
    %v1629 = vunpack.c.h.b16 %v1366
    %v1630 = vunpack.c.l.b16 %v1367
    %v1631 = vunpack.c.h.b16 %v1367
    %v1632 = vunpack.c.l.b16 %v1368
    %v1633 = vunpack.c.h.b16 %v1368
    %v1634 = vunpack.c.l.b16 %v1369
    %v1635 = vunpack.c.h.b16 %v1369
    %v1636 = vunpack.c.l.b16 %v1370
    %v1637 = vunpack.c.h.b16 %v1370
    %v1638 = vunpack.c.l.b16 %v1371
    %v1639 = vunpack.c.h.b16 %v1371
    %v1640 = vunpack.c.l.b16 %v1372
    %v1641 = vunpack.c.h.b16 %v1372
    %v1642 = vunpack.c.l.b16 %v1373
    %v1643 = vunpack.c.h.b16 %v1373
    %v1644 = vunpack.c.l.b16 %v1374
    %v1645 = vunpack.c.h.b16 %v1374
    %v1646 = vunpack.c.l.b16 %v1375
    %v1647 = vunpack.c.h.b16 %v1375
    %v1648 = vunpack.c.l.b16 %v1376
    %v1649 = vunpack.c.h.b16 %v1376
    %v1650 = vunpack.c.l.b16 %v1377
    %v1651 = vunpack.c.h.b16 %v1377
    %v1652 = vunpack.c.l.b16 %v1378
    %v1653 = vunpack.c.h.b16 %v1378
    %v1654 = vunpack.c.l.b16 %v1379
    %v1655 = vunpack.c.h.b16 %v1379
    %v1656 = vunpack.c.l.b16 %v1380
    %v1657 = vunpack.c.h.b16 %v1380
    %v1658 = vunpack.c.l.b16 %v1381
    %v1659 = vunpack.c.h.b16 %v1381
    %v1660 = vunpack.c.l.b16 %v1382
    %v1661 = vunpack.c.h.b16 %v1382
    %v1662 = vunpack.c.l.b16 %v1383
    %v1663 = vunpack.c.h.b16 %v1383
    %v1664 = vunpack.c.l.b16 %v1384
    %v1665 = vunpack.c.h.b16 %v1384
    %v1666 = vunpack.c.l.b16 %v1385
    %v1667 = vunpack.c.h.b16 %v1385
    %v1668 = vunpack.c.l.b16 %v1386
    %v1669 = vunpack.c.h.b16 %v1386
    %v1670 = vunpack.c.l.b16 %v1387
    %v1671 = vunpack.c.h.b16 %v1387
    %v1672 = vunpack.c.l.b16 %v1388
    %v1673 = vunpack.c.h.b16 %v1388
    %v1674 = vunpack.c.l.b16 %v1389
    %v1675 = vunpack.c.h.b16 %v1389
    %v1676 = vunpack.c.l.b16 %v1390
    %v1677 = vunpack.c.h.b16 %v1390
    %v1678 = vunpack.c.l.b16 %v1391
    %v1679 = vunpack.c.h.b16 %v1391
    %v1680 = vpack.c.b16 %v1620, %v1616
    %v1681 = vpack.c.b16 %v1621, %v1617
    %v1682 = vpack.c.b16 %v1622, %v1618
    %v1683 = vpack.c.b16 %v1623, %v1619
    %v1684 = vpack.c.b16 %v1628, %v1624
    %v1685 = vpack.c.b16 %v1629, %v1625
    %v1686 = vpack.c.b16 %v1630, %v1626
    %v1687 = vpack.c.b16 %v1631, %v1627
    %v1688 = vpack.c.b16 %v1636, %v1632
    %v1689 = vpack.c.b16 %v1637, %v1633
    %v1690 = vpack.c.b16 %v1638, %v1634
    %v1691 = vpack.c.b16 %v1639, %v1635
    %v1692 = vpack.c.b16 %v1644, %v1640
    %v1693 = vpack.c.b16 %v1645, %v1641
    %v1694 = vpack.c.b16 %v1646, %v1642
    %v1695 = vpack.c.b16 %v1647, %v1643
    %v1696 = vpack.c.b16 %v1652, %v1648
    %v1697 = vpack.c.b16 %v1653, %v1649
    %v1698 = vpack.c.b16 %v1654, %v1650
    %v1699 = vpack.c.b16 %v1655, %v1651
    %v1700 = vpack.c.b16 %v1660, %v1656
    %v1701 = vpack.c.b16 %v1661, %v1657
    %v1702 = vpack.c.b16 %v1662, %v1658
    %v1703 = vpack.c.b16 %v1663, %v1659
    %v1704 = vpack.c.b16 %v1668, %v1664
    %v1705 = vpack.c.b16 %v1669, %v1665
    %v1706 = vpack.c.b16 %v1670, %v1666
    %v1707 = vpack.c.b16 %v1671, %v1667
    %v1708 = vpack.c.b16 %v1676, %v1672
    %v1709 = vpack.c.b16 %v1677, %v1673
    %v1710 = vpack.c.b16 %v1678, %v1674
    %v1711 = vpack.c.b16 %v1679, %v1675
    %1744 = vmatprep.subr.bf16.mxu0 %v1681
    %1745 = vmatpush1.bf16.msra.mxu0 %v1680
    %1746 = vmatprep.subr.bf16.mxu0 %v1685
    %1747 = vmatpush1.bf16.msra.mxu0 %v1684
    %1748 = vmatprep.subr.bf16.mxu0 %v1689
    %1749 = vmatpush1.bf16.msra.mxu0 %v1688
    %1750 = vmatprep.subr.bf16.mxu0 %v1693
    %1751 = vmatpush1.bf16.msra.mxu0 %v1692
    %1752 = vmatprep.subr.bf16.mxu0 %v1697
    %1753 = vmatpush1.bf16.msra.mxu0 %v1696
    %1754 = vmatprep.subr.bf16.mxu0 %v1701
    %1755 = vmatpush1.bf16.msra.mxu0 %v1700
    %1756 = vmatprep.subr.bf16.mxu0 %v1705
    %1757 = vmatpush1.bf16.msra.mxu0 %v1704
    %1758 = vmatprep.subr.bf16.mxu0 %v1709
    %1759 = vmatpush1.bf16.msra.mxu0 %v1708
    %1760 = vmatprep.subr.bf16.mxu0 0
    %1761 = vmatpush1.bf16.msra.mxu0 0
    %1762 = vmatprep.subr.bf16.mxu0 0
    %1763 = vmatpush1.bf16.msra.mxu0 0
    %1764 = vmatprep.subr.bf16.mxu0 0
    %1765 = vmatpush1.bf16.msra.mxu0 0
    %1766 = vmatprep.subr.bf16.mxu0 0
    %1767 = vmatpush1.bf16.msra.mxu0 0
    %1768 = vmatprep.subr.bf16.mxu0 0
    %1769 = vmatpush1.bf16.msra.mxu0 0
    %1770 = vmatprep.subr.bf16.mxu0 0
    %1771 = vmatpush1.bf16.msra.mxu0 0
    %1772 = vmatprep.subr.bf16.mxu0 0
    %1773 = vmatpush1.bf16.msra.mxu0 0
    %1774 = vmatprep.subr.bf16.mxu0 0
    %1775 = vmatpush1.bf16.msra.mxu0 0
    %1776 = vmatprep.mubr.bf16.mxu0 0
    %1777 = vmatmul.mubr.bf16.gmra.mrb[0].mxu0 %v1520
    %v1778 = vpop.f32.mrb[0].mxu0
    %v1779 = vadd.f32 0.0, %v1778
    %v1780 = vpop.f32.mrb[0].mxu0
    %v1781 = vadd.f32 0.0, %v1780
    %v1782 = vpop.f32.mrb[0].mxu0
    %v1783 = vadd.f32 0.0, %v1782
    %v1784 = vpop.f32.mrb[0].mxu0
    %v1785 = vadd.f32 0.0, %v1784
    %1786 = vmatprep.mubr.bf16.mxu0 0
    %1787 = vmatmul.mubr.bf16.gmra.mrb[0].mxu0 %v1521
    %v1788 = vpop.f32.mrb[0].mxu0
    %v1789 = vadd.f32 0.0, %v1788
    %v1790 = vpop.f32.mrb[0].mxu0
    %v1791 = vadd.f32 0.0, %v1790
    %v1792 = vpop.f32.mrb[0].mxu0
    %v1793 = vadd.f32 0.0, %v1792
    %v1794 = vpop.f32.mrb[0].mxu0
    %v1795 = vadd.f32 0.0, %v1794
    %1796 = vmatprep.mubr.bf16.mxu0 0
    %1797 = vmatmul.mubr.bf16.gmra.mrb[0].mxu0 %v1522
    %v1798 = vpop.f32.mrb[0].mxu0
    %v1799 = vadd.f32 0.0, %v1798
    %v1800 = vpop.f32.mrb[0].mxu0
    %v1801 = vadd.f32 0.0, %v1800
    %v1802 = vpop.f32.mrb[0].mxu0
    %v1803 = vadd.f32 0.0, %v1802
    %v1804 = vpop.f32.mrb[0].mxu0
    %v1805 = vadd.f32 0.0, %v1804
    %1806 = vmatprep.mubr.bf16.mxu0 0
    %1807 = vmatmul.mubr.bf16.gmra.mrb[0].mxu0 %v1523
    %v1808 = vpop.f32.mrb[0].mxu0
    %v1809 = vadd.f32 0.0, %v1808
    %v1810 = vpop.f32.mrb[0].mxu0
    %v1811 = vadd.f32 0.0, %v1810
    %v1812 = vpop.f32.mrb[0].mxu0
    %v1813 = vadd.f32 0.0, %v1812
    %v1814 = vpop.f32.mrb[0].mxu0
    %v1815 = vadd.f32 0.0, %v1814
    %1816 = vmatprep.mubr.bf16.mxu0 0
    %1817 = vmatmul.mubr.bf16.gmra.mrb[0].mxu0 %v1524
    %v1818 = vpop.f32.mrb[0].mxu0
    %v1819 = vadd.f32 0.0, %v1818
    %v1820 = vpop.f32.mrb[0].mxu0
    %v1821 = vadd.f32 0.0, %v1820
    %v1822 = vpop.f32.mrb[0].mxu0
    %v1823 = vadd.f32 0.0, %v1822
    %v1824 = vpop.f32.mrb[0].mxu0
    %v1825 = vadd.f32 0.0, %v1824
    %1826 = vmatprep.mubr.bf16.mxu0 0
    %1827 = vmatmul.mubr.bf16.gmra.mrb[0].mxu0 %v1525
    %v1828 = vpop.f32.mrb[0].mxu0
    %v1829 = vadd.f32 0.0, %v1828
    %v1830 = vpop.f32.mrb[0].mxu0
    %v1831 = vadd.f32 0.0, %v1830
    %v1832 = vpop.f32.mrb[0].mxu0
    %v1833 = vadd.f32 0.0, %v1832
    %v1834 = vpop.f32.mrb[0].mxu0
    %v1835 = vadd.f32 0.0, %v1834
    %1836 = vmatprep.mubr.bf16.mxu0 0
    %1837 = vmatmul.mubr.bf16.gmra.mrb[0].mxu0 %v1526
    %v1838 = vpop.f32.mrb[0].mxu0
    %v1839 = vadd.f32 0.0, %v1838
    %v1840 = vpop.f32.mrb[0].mxu0
    %v1841 = vadd.f32 0.0, %v1840
    %v1842 = vpop.f32.mrb[0].mxu0
    %v1843 = vadd.f32 0.0, %v1842
    %v1844 = vpop.f32.mrb[0].mxu0
    %v1845 = vadd.f32 0.0, %v1844
    %1846 = vmatprep.mubr.bf16.mxu0 0
    %1847 = vmatmul.mubr.bf16.gmra.mrb[0].mxu0 %v1527
    %v1848 = vpop.f32.mrb[0].mxu0
    %v1849 = vadd.f32 0.0, %v1848
    %v1850 = vpop.f32.mrb[0].mxu0
    %v1851 = vadd.f32 0.0, %v1850
    %v1852 = vpop.f32.mrb[0].mxu0
    %v1853 = vadd.f32 0.0, %v1852
    %v1854 = vpop.f32.mrb[0].mxu0
    %v1855 = vadd.f32 0.0, %v1854
    %1856 = vmatprep.mubr.bf16.mxu0 0
    %1857 = vmatmul.mubr.bf16.gmra.mrb[0].mxu0 %v1528
    %v1858 = vpop.f32.mrb[0].mxu0
    %v1859 = vadd.f32 0.0, %v1858
    %v1860 = vpop.f32.mrb[0].mxu0
    %v1861 = vadd.f32 0.0, %v1860
    %v1862 = vpop.f32.mrb[0].mxu0
    %v1863 = vadd.f32 0.0, %v1862
    %v1864 = vpop.f32.mrb[0].mxu0
    %v1865 = vadd.f32 0.0, %v1864
    %1866 = vmatprep.mubr.bf16.mxu0 0
    %1867 = vmatmul.mubr.bf16.gmra.mrb[0].mxu0 %v1529
    %v1868 = vpop.f32.mrb[0].mxu0
    %v1869 = vadd.f32 0.0, %v1868
    %v1870 = vpop.f32.mrb[0].mxu0
    %v1871 = vadd.f32 0.0, %v1870
    %v1872 = vpop.f32.mrb[0].mxu0
    %v1873 = vadd.f32 0.0, %v1872
    %v1874 = vpop.f32.mrb[0].mxu0
    %v1875 = vadd.f32 0.0, %v1874
    %1876 = vmatprep.mubr.bf16.mxu0 0
    %1877 = vmatmul.mubr.bf16.gmra.mrb[0].mxu0 %v1530
    %v1878 = vpop.f32.mrb[0].mxu0
    %v1879 = vadd.f32 0.0, %v1878
    %v1880 = vpop.f32.mrb[0].mxu0
    %v1881 = vadd.f32 0.0, %v1880
    %v1882 = vpop.f32.mrb[0].mxu0
    %v1883 = vadd.f32 0.0, %v1882
    %v1884 = vpop.f32.mrb[0].mxu0
    %v1885 = vadd.f32 0.0, %v1884
    %1886 = vmatprep.mubr.bf16.mxu0 0
    %1887 = vmatmul.mubr.bf16.gmra.mrb[0].mxu0 %v1531
    %v1888 = vpop.f32.mrb[0].mxu0
    %v1889 = vadd.f32 0.0, %v1888
    %v1890 = vpop.f32.mrb[0].mxu0
    %v1891 = vadd.f32 0.0, %v1890
    %v1892 = vpop.f32.mrb[0].mxu0
    %v1893 = vadd.f32 0.0, %v1892
    %v1894 = vpop.f32.mrb[0].mxu0
    %v1895 = vadd.f32 0.0, %v1894
    %1896 = vmatprep.mubr.bf16.mxu0 0
    %1897 = vmatmul.mubr.bf16.gmra.mrb[0].mxu0 %v1532
    %v1898 = vpop.f32.mrb[0].mxu0
    %v1899 = vadd.f32 0.0, %v1898
    %v1900 = vpop.f32.mrb[0].mxu0
    %v1901 = vadd.f32 0.0, %v1900
    %v1902 = vpop.f32.mrb[0].mxu0
    %v1903 = vadd.f32 0.0, %v1902
    %v1904 = vpop.f32.mrb[0].mxu0
    %v1905 = vadd.f32 0.0, %v1904
    %1906 = vmatprep.mubr.bf16.mxu0 0
    %1907 = vmatmul.mubr.bf16.gmra.mrb[0].mxu0 %v1533
    %v1908 = vpop.f32.mrb[0].mxu0
    %v1909 = vadd.f32 0.0, %v1908
    %v1910 = vpop.f32.mrb[0].mxu0
    %v1911 = vadd.f32 0.0, %v1910
    %v1912 = vpop.f32.mrb[0].mxu0
    %v1913 = vadd.f32 0.0, %v1912
    %v1914 = vpop.f32.mrb[0].mxu0
    %v1915 = vadd.f32 0.0, %v1914
    %1916 = vmatprep.mubr.bf16.mxu0 0
    %1917 = vmatmul.mubr.bf16.gmra.mrb[0].mxu0 %v1534
    %v1918 = vpop.f32.mrb[0].mxu0
    %v1919 = vadd.f32 0.0, %v1918
    %v1920 = vpop.f32.mrb[0].mxu0
    %v1921 = vadd.f32 0.0, %v1920
    %v1922 = vpop.f32.mrb[0].mxu0
    %v1923 = vadd.f32 0.0, %v1922
    %v1924 = vpop.f32.mrb[0].mxu0
    %v1925 = vadd.f32 0.0, %v1924
    %1926 = vmatprep.mubr.bf16.mxu0 0
    %1927 = vmatmul.mubr.bf16.gmra.mrb[0].mxu0 %v1535
    %v1928 = vpop.f32.mrb[0].mxu0
    %v1929 = vadd.f32 0.0, %v1928
    %v1930 = vpop.f32.mrb[0].mxu0
    %v1931 = vadd.f32 0.0, %v1930
    %v1932 = vpop.f32.mrb[0].mxu0
    %v1933 = vadd.f32 0.0, %v1932
    %v1934 = vpop.f32.mrb[0].mxu0
    %v1935 = vadd.f32 0.0, %v1934
    %1936 = vmatprep.mubr.bf16.mxu0 0
    %1937 = vmatmul.mubr.bf16.gmra.mrb[0].mxu0 %v1536
    %v1938 = vpop.f32.mrb[0].mxu0
    %v1939 = vadd.f32 0.0, %v1938
    %v1940 = vpop.f32.mrb[0].mxu0
    %v1941 = vadd.f32 0.0, %v1940
    %v1942 = vpop.f32.mrb[0].mxu0
    %v1943 = vadd.f32 0.0, %v1942
    %v1944 = vpop.f32.mrb[0].mxu0
    %v1945 = vadd.f32 0.0, %v1944
    %1946 = vmatprep.mubr.bf16.mxu0 0
    %1947 = vmatmul.mubr.bf16.gmra.mrb[0].mxu0 %v1537
    %v1948 = vpop.f32.mrb[0].mxu0
    %v1949 = vadd.f32 0.0, %v1948
    %v1950 = vpop.f32.mrb[0].mxu0
    %v1951 = vadd.f32 0.0, %v1950
    %v1952 = vpop.f32.mrb[0].mxu0
    %v1953 = vadd.f32 0.0, %v1952
    %v1954 = vpop.f32.mrb[0].mxu0
    %v1955 = vadd.f32 0.0, %v1954
    %1956 = vmatprep.mubr.bf16.mxu0 0
    %1957 = vmatmul.mubr.bf16.gmra.mrb[0].mxu0 %v1538
    %v1958 = vpop.f32.mrb[0].mxu0
    %v1959 = vadd.f32 0.0, %v1958
    %v1960 = vpop.f32.mrb[0].mxu0
    %v1961 = vadd.f32 0.0, %v1960
    %v1962 = vpop.f32.mrb[0].mxu0
    %v1963 = vadd.f32 0.0, %v1962
    %v1964 = vpop.f32.mrb[0].mxu0
    %v1965 = vadd.f32 0.0, %v1964
    %1966 = vmatprep.mubr.bf16.mxu0 0
    %1967 = vmatmul.mubr.bf16.gmra.mrb[0].mxu0 %v1539
    %v1968 = vpop.f32.mrb[0].mxu0
    %v1969 = vadd.f32 0.0, %v1968
    %v1970 = vpop.f32.mrb[0].mxu0
    %v1971 = vadd.f32 0.0, %v1970
    %v1972 = vpop.f32.mrb[0].mxu0
    %v1973 = vadd.f32 0.0, %v1972
    %v1974 = vpop.f32.mrb[0].mxu0
    %v1975 = vadd.f32 0.0, %v1974
    %1976 = vmatprep.mubr.bf16.mxu0 0
    %1977 = vmatmul.mubr.bf16.gmra.mrb[0].mxu0 %v1540
    %v1978 = vpop.f32.mrb[0].mxu0
    %v1979 = vadd.f32 0.0, %v1978
    %v1980 = vpop.f32.mrb[0].mxu0
    %v1981 = vadd.f32 0.0, %v1980
    %v1982 = vpop.f32.mrb[0].mxu0
    %v1983 = vadd.f32 0.0, %v1982
    %v1984 = vpop.f32.mrb[0].mxu0
    %v1985 = vadd.f32 0.0, %v1984
    %1986 = vmatprep.mubr.bf16.mxu0 0
    %1987 = vmatmul.mubr.bf16.gmra.mrb[0].mxu0 %v1541
    %v1988 = vpop.f32.mrb[0].mxu0
    %v1989 = vadd.f32 0.0, %v1988
    %v1990 = vpop.f32.mrb[0].mxu0
    %v1991 = vadd.f32 0.0, %v1990
    %v1992 = vpop.f32.mrb[0].mxu0
    %v1993 = vadd.f32 0.0, %v1992
    %v1994 = vpop.f32.mrb[0].mxu0
    %v1995 = vadd.f32 0.0, %v1994
    %1996 = vmatprep.mubr.bf16.mxu0 0
    %1997 = vmatmul.mubr.bf16.gmra.mrb[0].mxu0 %v1542
    %v1998 = vpop.f32.mrb[0].mxu0
    %v1999 = vadd.f32 0.0, %v1998
    %v2000 = vpop.f32.mrb[0].mxu0
    %v2001 = vadd.f32 0.0, %v2000
    %v2002 = vpop.f32.mrb[0].mxu0
    %v2003 = vadd.f32 0.0, %v2002
    %v2004 = vpop.f32.mrb[0].mxu0
    %v2005 = vadd.f32 0.0, %v2004
    %2006 = vmatprep.mubr.bf16.mxu0 0
    %2007 = vmatmul.mubr.bf16.gmra.mrb[0].mxu0 %v1543
    %v2008 = vpop.f32.mrb[0].mxu0
    %v2009 = vadd.f32 0.0, %v2008
    %v2010 = vpop.f32.mrb[0].mxu0
    %v2011 = vadd.f32 0.0, %v2010
    %v2012 = vpop.f32.mrb[0].mxu0
    %v2013 = vadd.f32 0.0, %v2012
    %v2014 = vpop.f32.mrb[0].mxu0
    %v2015 = vadd.f32 0.0, %v2014
    %2016 = vmatprep.mubr.bf16.mxu0 0
    %2017 = vmatmul.mubr.bf16.gmra.mrb[0].mxu0 %v1544
    %v2018 = vpop.f32.mrb[0].mxu0
    %v2019 = vadd.f32 0.0, %v2018
    %v2020 = vpop.f32.mrb[0].mxu0
    %v2021 = vadd.f32 0.0, %v2020
    %v2022 = vpop.f32.mrb[0].mxu0
    %v2023 = vadd.f32 0.0, %v2022
    %v2024 = vpop.f32.mrb[0].mxu0
    %v2025 = vadd.f32 0.0, %v2024
    %2026 = vmatprep.mubr.bf16.mxu0 0
    %2027 = vmatmul.mubr.bf16.gmra.mrb[0].mxu0 %v1545
    %v2028 = vpop.f32.mrb[0].mxu0
    %v2029 = vadd.f32 0.0, %v2028
    %v2030 = vpop.f32.mrb[0].mxu0
    %v2031 = vadd.f32 0.0, %v2030
    %v2032 = vpop.f32.mrb[0].mxu0
    %v2033 = vadd.f32 0.0, %v2032
    %v2034 = vpop.f32.mrb[0].mxu0
    %v2035 = vadd.f32 0.0, %v2034
    %2036 = vmatprep.mubr.bf16.mxu0 0
    %2037 = vmatmul.mubr.bf16.gmra.mrb[0].mxu0 %v1546
    %v2038 = vpop.f32.mrb[0].mxu0
    %v2039 = vadd.f32 0.0, %v2038
    %v2040 = vpop.f32.mrb[0].mxu0
    %v2041 = vadd.f32 0.0, %v2040
    %v2042 = vpop.f32.mrb[0].mxu0
    %v2043 = vadd.f32 0.0, %v2042
    %v2044 = vpop.f32.mrb[0].mxu0
    %v2045 = vadd.f32 0.0, %v2044
    %2046 = vmatprep.mubr.bf16.mxu0 0
    %2047 = vmatmul.mubr.bf16.gmra.mrb[0].mxu0 %v1547
    %v2048 = vpop.f32.mrb[0].mxu0
    %v2049 = vadd.f32 0.0, %v2048
    %v2050 = vpop.f32.mrb[0].mxu0
    %v2051 = vadd.f32 0.0, %v2050
    %v2052 = vpop.f32.mrb[0].mxu0
    %v2053 = vadd.f32 0.0, %v2052
    %v2054 = vpop.f32.mrb[0].mxu0
    %v2055 = vadd.f32 0.0, %v2054
    %2056 = vmatprep.mubr.bf16.mxu0 0
    %2057 = vmatmul.mubr.bf16.gmra.mrb[0].mxu0 %v1548
    %v2058 = vpop.f32.mrb[0].mxu0
    %v2059 = vadd.f32 0.0, %v2058
    %v2060 = vpop.f32.mrb[0].mxu0
    %v2061 = vadd.f32 0.0, %v2060
    %v2062 = vpop.f32.mrb[0].mxu0
    %v2063 = vadd.f32 0.0, %v2062
    %v2064 = vpop.f32.mrb[0].mxu0
    %v2065 = vadd.f32 0.0, %v2064
    %2066 = vmatprep.mubr.bf16.mxu0 0
    %2067 = vmatmul.mubr.bf16.gmra.mrb[0].mxu0 %v1549
    %v2068 = vpop.f32.mrb[0].mxu0
    %v2069 = vadd.f32 0.0, %v2068
    %v2070 = vpop.f32.mrb[0].mxu0
    %v2071 = vadd.f32 0.0, %v2070
    %v2072 = vpop.f32.mrb[0].mxu0
    %v2073 = vadd.f32 0.0, %v2072
    %v2074 = vpop.f32.mrb[0].mxu0
    %v2075 = vadd.f32 0.0, %v2074
    %2076 = vmatprep.mubr.bf16.mxu0 0
    %2077 = vmatmul.mubr.bf16.gmra.mrb[0].mxu0 %v1550
    %v2078 = vpop.f32.mrb[0].mxu0
    %v2079 = vadd.f32 0.0, %v2078
    %v2080 = vpop.f32.mrb[0].mxu0
    %v2081 = vadd.f32 0.0, %v2080
    %v2082 = vpop.f32.mrb[0].mxu0
    %v2083 = vadd.f32 0.0, %v2082
    %v2084 = vpop.f32.mrb[0].mxu0
    %v2085 = vadd.f32 0.0, %v2084
    %2086 = vmatprep.mubr.bf16.mxu0 0
    %2087 = vmatmul.mubr.bf16.gmra.mrb[0].mxu0 %v1551
    %v2088 = vpop.f32.mrb[0].mxu0
    %v2089 = vadd.f32 0.0, %v2088
    %v2090 = vpop.f32.mrb[0].mxu0
    %v2091 = vadd.f32 0.0, %v2090
    %v2092 = vpop.f32.mrb[0].mxu0
    %v2093 = vadd.f32 0.0, %v2092
    %v2094 = vpop.f32.mrb[0].mxu0
    %v2095 = vadd.f32 0.0, %v2094
    %2096 = vdwg.mxu0
    %2097 = vmatprep.subr.bf16.mxu0 %v1683
    %2098 = vmatpush1.bf16.msra.mxu0 %v1682
    %2099 = vmatprep.subr.bf16.mxu0 %v1687
    %2100 = vmatpush1.bf16.msra.mxu0 %v1686
    %2101 = vmatprep.subr.bf16.mxu0 %v1691
    %2102 = vmatpush1.bf16.msra.mxu0 %v1690
    %2103 = vmatprep.subr.bf16.mxu0 %v1695
    %2104 = vmatpush1.bf16.msra.mxu0 %v1694
    %2105 = vmatprep.subr.bf16.mxu0 %v1699
    %2106 = vmatpush1.bf16.msra.mxu0 %v1698
    %2107 = vmatprep.subr.bf16.mxu0 %v1703
    %2108 = vmatpush1.bf16.msra.mxu0 %v1702
    %2109 = vmatprep.subr.bf16.mxu0 %v1707
    %2110 = vmatpush1.bf16.msra.mxu0 %v1706
    %2111 = vmatprep.subr.bf16.mxu0 %v1711
    %2112 = vmatpush1.bf16.msra.mxu0 %v1710
    %2113 = vmatprep.subr.bf16.mxu0 0
    %2114 = vmatpush1.bf16.msra.mxu0 0
    %2115 = vmatprep.subr.bf16.mxu0 0
    %2116 = vmatpush1.bf16.msra.mxu0 0
    %2117 = vmatprep.subr.bf16.mxu0 0
    %2118 = vmatpush1.bf16.msra.mxu0 0
    %2119 = vmatprep.subr.bf16.mxu0 0
    %2120 = vmatpush1.bf16.msra.mxu0 0
    %2121 = vmatprep.subr.bf16.mxu0 0
    %2122 = vmatpush1.bf16.msra.mxu0 0
    %2123 = vmatprep.subr.bf16.mxu0 0
    %2124 = vmatpush1.bf16.msra.mxu0 0
    %2125 = vmatprep.subr.bf16.mxu0 0
    %2126 = vmatpush1.bf16.msra.mxu0 0
    %2127 = vmatprep.subr.bf16.mxu0 0
    %2128 = vmatpush1.bf16.msra.mxu0 0
    %2129 = vmatprep.mubr.bf16.mxu0 0
    %2130 = vmatmul.mubr.bf16.gmra.mrb[0].mxu0 %v1520
    %v2131 = vpop.f32.mrb[0].mxu0
    %v2132 = vadd.f32 0.0, %v2131
    %v2133 = vpop.f32.mrb[0].mxu0
    %v2134 = vadd.f32 0.0, %v2133
    %v2135 = vpop.f32.mrb[0].mxu0
    %v2136 = vadd.f32 0.0, %v2135
    %v2137 = vpop.f32.mrb[0].mxu0
    %v2138 = vadd.f32 0.0, %v2137
    %2139 = vmatprep.mubr.bf16.mxu0 0
    %2140 = vmatmul.mubr.bf16.gmra.mrb[0].mxu0 %v1521
    %v2141 = vpop.f32.mrb[0].mxu0
    %v2142 = vadd.f32 0.0, %v2141
    %v2143 = vpop.f32.mrb[0].mxu0
    %v2144 = vadd.f32 0.0, %v2143
    %v2145 = vpop.f32.mrb[0].mxu0
    %v2146 = vadd.f32 0.0, %v2145
    %v2147 = vpop.f32.mrb[0].mxu0
    %v2148 = vadd.f32 0.0, %v2147
    %2149 = vmatprep.mubr.bf16.mxu0 0
    %2150 = vmatmul.mubr.bf16.gmra.mrb[0].mxu0 %v1522
    %v2151 = vpop.f32.mrb[0].mxu0
    %v2152 = vadd.f32 0.0, %v2151
    %v2153 = vpop.f32.mrb[0].mxu0
    %v2154 = vadd.f32 0.0, %v2153
    %v2155 = vpop.f32.mrb[0].mxu0
    %v2156 = vadd.f32 0.0, %v2155
    %v2157 = vpop.f32.mrb[0].mxu0
    %v2158 = vadd.f32 0.0, %v2157
    %2159 = vmatprep.mubr.bf16.mxu0 0
    %2160 = vmatmul.mubr.bf16.gmra.mrb[0].mxu0 %v1523
    %v2161 = vpop.f32.mrb[0].mxu0
    %v2162 = vadd.f32 0.0, %v2161
    %v2163 = vpop.f32.mrb[0].mxu0
    %v2164 = vadd.f32 0.0, %v2163
    %v2165 = vpop.f32.mrb[0].mxu0
    %v2166 = vadd.f32 0.0, %v2165
    %v2167 = vpop.f32.mrb[0].mxu0
    %v2168 = vadd.f32 0.0, %v2167
    %2169 = vmatprep.mubr.bf16.mxu0 0
    %2170 = vmatmul.mubr.bf16.gmra.mrb[0].mxu0 %v1524
    %v2171 = vpop.f32.mrb[0].mxu0
    %v2172 = vadd.f32 0.0, %v2171
    %v2173 = vpop.f32.mrb[0].mxu0
    %v2174 = vadd.f32 0.0, %v2173
    %v2175 = vpop.f32.mrb[0].mxu0
    %v2176 = vadd.f32 0.0, %v2175
    %v2177 = vpop.f32.mrb[0].mxu0
    %v2178 = vadd.f32 0.0, %v2177
    %2179 = vmatprep.mubr.bf16.mxu0 0
    %2180 = vmatmul.mubr.bf16.gmra.mrb[0].mxu0 %v1525
    %v2181 = vpop.f32.mrb[0].mxu0
    %v2182 = vadd.f32 0.0, %v2181
    %v2183 = vpop.f32.mrb[0].mxu0
    %v2184 = vadd.f32 0.0, %v2183
    %v2185 = vpop.f32.mrb[0].mxu0
    %v2186 = vadd.f32 0.0, %v2185
    %v2187 = vpop.f32.mrb[0].mxu0
    %v2188 = vadd.f32 0.0, %v2187
    %2189 = vmatprep.mubr.bf16.mxu0 0
    %2190 = vmatmul.mubr.bf16.gmra.mrb[0].mxu0 %v1526
    %v2191 = vpop.f32.mrb[0].mxu0
    %v2192 = vadd.f32 0.0, %v2191
    %v2193 = vpop.f32.mrb[0].mxu0
    %v2194 = vadd.f32 0.0, %v2193
    %v2195 = vpop.f32.mrb[0].mxu0
    %v2196 = vadd.f32 0.0, %v2195
    %v2197 = vpop.f32.mrb[0].mxu0
    %v2198 = vadd.f32 0.0, %v2197
    %2199 = vmatprep.mubr.bf16.mxu0 0
    %2200 = vmatmul.mubr.bf16.gmra.mrb[0].mxu0 %v1527
    %v2201 = vpop.f32.mrb[0].mxu0
    %v2202 = vadd.f32 0.0, %v2201
    %v2203 = vpop.f32.mrb[0].mxu0
    %v2204 = vadd.f32 0.0, %v2203
    %v2205 = vpop.f32.mrb[0].mxu0
    %v2206 = vadd.f32 0.0, %v2205
    %v2207 = vpop.f32.mrb[0].mxu0
    %v2208 = vadd.f32 0.0, %v2207
    %2209 = vmatprep.mubr.bf16.mxu0 0
    %2210 = vmatmul.mubr.bf16.gmra.mrb[0].mxu0 %v1528
    %v2211 = vpop.f32.mrb[0].mxu0
    %v2212 = vadd.f32 0.0, %v2211
    %v2213 = vpop.f32.mrb[0].mxu0
    %v2214 = vadd.f32 0.0, %v2213
    %v2215 = vpop.f32.mrb[0].mxu0
    %v2216 = vadd.f32 0.0, %v2215
    %v2217 = vpop.f32.mrb[0].mxu0
    %v2218 = vadd.f32 0.0, %v2217
    %2219 = vmatprep.mubr.bf16.mxu0 0
    %2220 = vmatmul.mubr.bf16.gmra.mrb[0].mxu0 %v1529
    %v2221 = vpop.f32.mrb[0].mxu0
    %v2222 = vadd.f32 0.0, %v2221
    %v2223 = vpop.f32.mrb[0].mxu0
    %v2224 = vadd.f32 0.0, %v2223
    %v2225 = vpop.f32.mrb[0].mxu0
    %v2226 = vadd.f32 0.0, %v2225
    %v2227 = vpop.f32.mrb[0].mxu0
    %v2228 = vadd.f32 0.0, %v2227
    %2229 = vmatprep.mubr.bf16.mxu0 0
    %2230 = vmatmul.mubr.bf16.gmra.mrb[0].mxu0 %v1530
    %v2231 = vpop.f32.mrb[0].mxu0
    %v2232 = vadd.f32 0.0, %v2231
    %v2233 = vpop.f32.mrb[0].mxu0
    %v2234 = vadd.f32 0.0, %v2233
    %v2235 = vpop.f32.mrb[0].mxu0
    %v2236 = vadd.f32 0.0, %v2235
    %v2237 = vpop.f32.mrb[0].mxu0
    %v2238 = vadd.f32 0.0, %v2237
    %2239 = vmatprep.mubr.bf16.mxu0 0
    %2240 = vmatmul.mubr.bf16.gmra.mrb[0].mxu0 %v1531
    %v2241 = vpop.f32.mrb[0].mxu0
    %v2242 = vadd.f32 0.0, %v2241
    %v2243 = vpop.f32.mrb[0].mxu0
    %v2244 = vadd.f32 0.0, %v2243
    %v2245 = vpop.f32.mrb[0].mxu0
    %v2246 = vadd.f32 0.0, %v2245
    %v2247 = vpop.f32.mrb[0].mxu0
    %v2248 = vadd.f32 0.0, %v2247
    %2249 = vmatprep.mubr.bf16.mxu0 0
    %2250 = vmatmul.mubr.bf16.gmra.mrb[0].mxu0 %v1532
    %v2251 = vpop.f32.mrb[0].mxu0
    %v2252 = vadd.f32 0.0, %v2251
    %v2253 = vpop.f32.mrb[0].mxu0
    %v2254 = vadd.f32 0.0, %v2253
    %v2255 = vpop.f32.mrb[0].mxu0
    %v2256 = vadd.f32 0.0, %v2255
    %v2257 = vpop.f32.mrb[0].mxu0
    %v2258 = vadd.f32 0.0, %v2257
    %2259 = vmatprep.mubr.bf16.mxu0 0
    %2260 = vmatmul.mubr.bf16.gmra.mrb[0].mxu0 %v1533
    %v2261 = vpop.f32.mrb[0].mxu0
    %v2262 = vadd.f32 0.0, %v2261
    %v2263 = vpop.f32.mrb[0].mxu0
    %v2264 = vadd.f32 0.0, %v2263
    %v2265 = vpop.f32.mrb[0].mxu0
    %v2266 = vadd.f32 0.0, %v2265
    %v2267 = vpop.f32.mrb[0].mxu0
    %v2268 = vadd.f32 0.0, %v2267
    %2269 = vmatprep.mubr.bf16.mxu0 0
    %2270 = vmatmul.mubr.bf16.gmra.mrb[0].mxu0 %v1534
    %v2271 = vpop.f32.mrb[0].mxu0
    %v2272 = vadd.f32 0.0, %v2271
    %v2273 = vpop.f32.mrb[0].mxu0
    %v2274 = vadd.f32 0.0, %v2273
    %v2275 = vpop.f32.mrb[0].mxu0
    %v2276 = vadd.f32 0.0, %v2275
    %v2277 = vpop.f32.mrb[0].mxu0
    %v2278 = vadd.f32 0.0, %v2277
    %2279 = vmatprep.mubr.bf16.mxu0 0
    %2280 = vmatmul.mubr.bf16.gmra.mrb[0].mxu0 %v1535
    %v2281 = vpop.f32.mrb[0].mxu0
    %v2282 = vadd.f32 0.0, %v2281
    %v2283 = vpop.f32.mrb[0].mxu0
    %v2284 = vadd.f32 0.0, %v2283
    %v2285 = vpop.f32.mrb[0].mxu0
    %v2286 = vadd.f32 0.0, %v2285
    %v2287 = vpop.f32.mrb[0].mxu0
    %v2288 = vadd.f32 0.0, %v2287
    %2289 = vmatprep.mubr.bf16.mxu0 0
    %2290 = vmatmul.mubr.bf16.gmra.mrb[0].mxu0 %v1536
    %v2291 = vpop.f32.mrb[0].mxu0
    %v2292 = vadd.f32 0.0, %v2291
    %v2293 = vpop.f32.mrb[0].mxu0
    %v2294 = vadd.f32 0.0, %v2293
    %v2295 = vpop.f32.mrb[0].mxu0
    %v2296 = vadd.f32 0.0, %v2295
    %v2297 = vpop.f32.mrb[0].mxu0
    %v2298 = vadd.f32 0.0, %v2297
    %2299 = vmatprep.mubr.bf16.mxu0 0
    %2300 = vmatmul.mubr.bf16.gmra.mrb[0].mxu0 %v1537
    %v2301 = vpop.f32.mrb[0].mxu0
    %v2302 = vadd.f32 0.0, %v2301
    %v2303 = vpop.f32.mrb[0].mxu0
    %v2304 = vadd.f32 0.0, %v2303
    %v2305 = vpop.f32.mrb[0].mxu0
    %v2306 = vadd.f32 0.0, %v2305
    %v2307 = vpop.f32.mrb[0].mxu0
    %v2308 = vadd.f32 0.0, %v2307
    %2309 = vmatprep.mubr.bf16.mxu0 0
    %2310 = vmatmul.mubr.bf16.gmra.mrb[0].mxu0 %v1538
    %v2311 = vpop.f32.mrb[0].mxu0
    %v2312 = vadd.f32 0.0, %v2311
    %v2313 = vpop.f32.mrb[0].mxu0
    %v2314 = vadd.f32 0.0, %v2313
    %v2315 = vpop.f32.mrb[0].mxu0
    %v2316 = vadd.f32 0.0, %v2315
    %v2317 = vpop.f32.mrb[0].mxu0
    %v2318 = vadd.f32 0.0, %v2317
    %2319 = vmatprep.mubr.bf16.mxu0 0
    %2320 = vmatmul.mubr.bf16.gmra.mrb[0].mxu0 %v1539
    %v2321 = vpop.f32.mrb[0].mxu0
    %v2322 = vadd.f32 0.0, %v2321
    %v2323 = vpop.f32.mrb[0].mxu0
    %v2324 = vadd.f32 0.0, %v2323
    %v2325 = vpop.f32.mrb[0].mxu0
    %v2326 = vadd.f32 0.0, %v2325
    %v2327 = vpop.f32.mrb[0].mxu0
    %v2328 = vadd.f32 0.0, %v2327
    %2329 = vmatprep.mubr.bf16.mxu0 0
    %2330 = vmatmul.mubr.bf16.gmra.mrb[0].mxu0 %v1540
    %v2331 = vpop.f32.mrb[0].mxu0
    %v2332 = vadd.f32 0.0, %v2331
    %v2333 = vpop.f32.mrb[0].mxu0
    %v2334 = vadd.f32 0.0, %v2333
    %v2335 = vpop.f32.mrb[0].mxu0
    %v2336 = vadd.f32 0.0, %v2335
    %v2337 = vpop.f32.mrb[0].mxu0
    %v2338 = vadd.f32 0.0, %v2337
    %2339 = vmatprep.mubr.bf16.mxu0 0
    %2340 = vmatmul.mubr.bf16.gmra.mrb[0].mxu0 %v1541
    %v2341 = vpop.f32.mrb[0].mxu0
    %v2342 = vadd.f32 0.0, %v2341
    %v2343 = vpop.f32.mrb[0].mxu0
    %v2344 = vadd.f32 0.0, %v2343
    %v2345 = vpop.f32.mrb[0].mxu0
    %v2346 = vadd.f32 0.0, %v2345
    %v2347 = vpop.f32.mrb[0].mxu0
    %v2348 = vadd.f32 0.0, %v2347
    %2349 = vmatprep.mubr.bf16.mxu0 0
    %2350 = vmatmul.mubr.bf16.gmra.mrb[0].mxu0 %v1542
    %v2351 = vpop.f32.mrb[0].mxu0
    %v2352 = vadd.f32 0.0, %v2351
    %v2353 = vpop.f32.mrb[0].mxu0
    %v2354 = vadd.f32 0.0, %v2353
    %v2355 = vpop.f32.mrb[0].mxu0
    %v2356 = vadd.f32 0.0, %v2355
    %v2357 = vpop.f32.mrb[0].mxu0
    %v2358 = vadd.f32 0.0, %v2357
    %2359 = vmatprep.mubr.bf16.mxu0 0
    %2360 = vmatmul.mubr.bf16.gmra.mrb[0].mxu0 %v1543
    %v2361 = vpop.f32.mrb[0].mxu0
    %v2362 = vadd.f32 0.0, %v2361
    %v2363 = vpop.f32.mrb[0].mxu0
    %v2364 = vadd.f32 0.0, %v2363
    %v2365 = vpop.f32.mrb[0].mxu0
    %v2366 = vadd.f32 0.0, %v2365
    %v2367 = vpop.f32.mrb[0].mxu0
    %v2368 = vadd.f32 0.0, %v2367
    %2369 = vmatprep.mubr.bf16.mxu0 0
    %2370 = vmatmul.mubr.bf16.gmra.mrb[0].mxu0 %v1544
    %v2371 = vpop.f32.mrb[0].mxu0
    %v2372 = vadd.f32 0.0, %v2371
    %v2373 = vpop.f32.mrb[0].mxu0
    %v2374 = vadd.f32 0.0, %v2373
    %v2375 = vpop.f32.mrb[0].mxu0
    %v2376 = vadd.f32 0.0, %v2375
    %v2377 = vpop.f32.mrb[0].mxu0
    %v2378 = vadd.f32 0.0, %v2377
    %2379 = vmatprep.mubr.bf16.mxu0 0
    %2380 = vmatmul.mubr.bf16.gmra.mrb[0].mxu0 %v1545
    %v2381 = vpop.f32.mrb[0].mxu0
    %v2382 = vadd.f32 0.0, %v2381
    %v2383 = vpop.f32.mrb[0].mxu0
    %v2384 = vadd.f32 0.0, %v2383
    %v2385 = vpop.f32.mrb[0].mxu0
    %v2386 = vadd.f32 0.0, %v2385
    %v2387 = vpop.f32.mrb[0].mxu0
    %v2388 = vadd.f32 0.0, %v2387
    %2389 = vmatprep.mubr.bf16.mxu0 0
    %2390 = vmatmul.mubr.bf16.gmra.mrb[0].mxu0 %v1546
    %v2391 = vpop.f32.mrb[0].mxu0
    %v2392 = vadd.f32 0.0, %v2391
    %v2393 = vpop.f32.mrb[0].mxu0
    %v2394 = vadd.f32 0.0, %v2393
    %v2395 = vpop.f32.mrb[0].mxu0
    %v2396 = vadd.f32 0.0, %v2395
    %v2397 = vpop.f32.mrb[0].mxu0
    %v2398 = vadd.f32 0.0, %v2397
    %2399 = vmatprep.mubr.bf16.mxu0 0
    %2400 = vmatmul.mubr.bf16.gmra.mrb[0].mxu0 %v1547
    %v2401 = vpop.f32.mrb[0].mxu0
    %v2402 = vadd.f32 0.0, %v2401
    %v2403 = vpop.f32.mrb[0].mxu0
    %v2404 = vadd.f32 0.0, %v2403
    %v2405 = vpop.f32.mrb[0].mxu0
    %v2406 = vadd.f32 0.0, %v2405
    %v2407 = vpop.f32.mrb[0].mxu0
    %v2408 = vadd.f32 0.0, %v2407
    %2409 = vmatprep.mubr.bf16.mxu0 0
    %2410 = vmatmul.mubr.bf16.gmra.mrb[0].mxu0 %v1548
    %v2411 = vpop.f32.mrb[0].mxu0
    %v2412 = vadd.f32 0.0, %v2411
    %v2413 = vpop.f32.mrb[0].mxu0
    %v2414 = vadd.f32 0.0, %v2413
    %v2415 = vpop.f32.mrb[0].mxu0
    %v2416 = vadd.f32 0.0, %v2415
    %v2417 = vpop.f32.mrb[0].mxu0
    %v2418 = vadd.f32 0.0, %v2417
    %2419 = vmatprep.mubr.bf16.mxu0 0
    %2420 = vmatmul.mubr.bf16.gmra.mrb[0].mxu0 %v1549
    %v2421 = vpop.f32.mrb[0].mxu0
    %v2422 = vadd.f32 0.0, %v2421
    %v2423 = vpop.f32.mrb[0].mxu0
    %v2424 = vadd.f32 0.0, %v2423
    %v2425 = vpop.f32.mrb[0].mxu0
    %v2426 = vadd.f32 0.0, %v2425
    %v2427 = vpop.f32.mrb[0].mxu0
    %v2428 = vadd.f32 0.0, %v2427
    %2429 = vmatprep.mubr.bf16.mxu0 0
    %2430 = vmatmul.mubr.bf16.gmra.mrb[0].mxu0 %v1550
    %v2431 = vpop.f32.mrb[0].mxu0
    %v2432 = vadd.f32 0.0, %v2431
    %v2433 = vpop.f32.mrb[0].mxu0
    %v2434 = vadd.f32 0.0, %v2433
    %v2435 = vpop.f32.mrb[0].mxu0
    %v2436 = vadd.f32 0.0, %v2435
    %v2437 = vpop.f32.mrb[0].mxu0
    %v2438 = vadd.f32 0.0, %v2437
    %2439 = vmatprep.mubr.bf16.mxu0 0
    %2440 = vmatmul.mubr.bf16.gmra.mrb[0].mxu0 %v1551
    %v2441 = vpop.f32.mrb[0].mxu0
    %v2442 = vadd.f32 0.0, %v2441
    %v2443 = vpop.f32.mrb[0].mxu0
    %v2444 = vadd.f32 0.0, %v2443
    %v2445 = vpop.f32.mrb[0].mxu0
    %v2446 = vadd.f32 0.0, %v2445
    %v2447 = vpop.f32.mrb[0].mxu0
    %v2448 = vadd.f32 0.0, %v2447
    %2449 = vdwg.mxu0
    %v2450 = vmax.f32 %v1779, 0.0
    %v2451 = vmax.f32 %v1781, 0.0
    %v2452 = vmax.f32 %v2132, 0.0
    %v2453 = vmax.f32 %v2134, 0.0
    %v2454 = vmax.f32 %v1783, 0.0
    %v2455 = vmax.f32 %v1785, 0.0
    %v2456 = vmax.f32 %v2136, 0.0
    %v2457 = vmax.f32 %v2138, 0.0
    %v2458 = vmax.f32 %v1789, 0.0
    %v2459 = vmax.f32 %v1791, 0.0
    %v2460 = vmax.f32 %v2142, 0.0
    %v2461 = vmax.f32 %v2144, 0.0
    %v2462 = vmax.f32 %v1793, 0.0
    %v2463 = vmax.f32 %v1795, 0.0
    %v2464 = vmax.f32 %v2146, 0.0
    %v2465 = vmax.f32 %v2148, 0.0
    %v2466 = vmax.f32 %v1799, 0.0
    %v2467 = vmax.f32 %v1801, 0.0
    %v2468 = vmax.f32 %v2152, 0.0
    %v2469 = vmax.f32 %v2154, 0.0
    %v2470 = vmax.f32 %v1803, 0.0
    %v2471 = vmax.f32 %v1805, 0.0
    %v2472 = vmax.f32 %v2156, 0.0
    %v2473 = vmax.f32 %v2158, 0.0
    %v2474 = vmax.f32 %v1809, 0.0
    %v2475 = vmax.f32 %v1811, 0.0
    %v2476 = vmax.f32 %v2162, 0.0
    %v2477 = vmax.f32 %v2164, 0.0
    %v2478 = vmax.f32 %v1813, 0.0
    %v2479 = vmax.f32 %v1815, 0.0
    %v2480 = vmax.f32 %v2166, 0.0
    %v2481 = vmax.f32 %v2168, 0.0
    %v2482 = vmax.f32 %v1819, 0.0
    %v2483 = vmax.f32 %v1821, 0.0
    %v2484 = vmax.f32 %v2172, 0.0
    %v2485 = vmax.f32 %v2174, 0.0
    %v2486 = vmax.f32 %v1823, 0.0
    %v2487 = vmax.f32 %v1825, 0.0
    %v2488 = vmax.f32 %v2176, 0.0
    %v2489 = vmax.f32 %v2178, 0.0
    %v2490 = vmax.f32 %v1829, 0.0
    %v2491 = vmax.f32 %v1831, 0.0
    %v2492 = vmax.f32 %v2182, 0.0
    %v2493 = vmax.f32 %v2184, 0.0
    %v2494 = vmax.f32 %v1833, 0.0
    %v2495 = vmax.f32 %v1835, 0.0
    %v2496 = vmax.f32 %v2186, 0.0
    %v2497 = vmax.f32 %v2188, 0.0
    %v2498 = vmax.f32 %v1839, 0.0
    %v2499 = vmax.f32 %v1841, 0.0
    %v2500 = vmax.f32 %v2192, 0.0
    %v2501 = vmax.f32 %v2194, 0.0
    %v2502 = vmax.f32 %v1843, 0.0
    %v2503 = vmax.f32 %v1845, 0.0
    %v2504 = vmax.f32 %v2196, 0.0
    %v2505 = vmax.f32 %v2198, 0.0
    %v2506 = vmax.f32 %v1849, 0.0
    %v2507 = vmax.f32 %v1851, 0.0
    %v2508 = vmax.f32 %v2202, 0.0
    %v2509 = vmax.f32 %v2204, 0.0
    %v2510 = vmax.f32 %v1853, 0.0
    %v2511 = vmax.f32 %v1855, 0.0
    %v2512 = vmax.f32 %v2206, 0.0
    %v2513 = vmax.f32 %v2208, 0.0
    %v2514 = vmax.f32 %v1859, 0.0
    %v2515 = vmax.f32 %v1861, 0.0
    %v2516 = vmax.f32 %v2212, 0.0
    %v2517 = vmax.f32 %v2214, 0.0
    %v2518 = vmax.f32 %v1863, 0.0
    %v2519 = vmax.f32 %v1865, 0.0
    %v2520 = vmax.f32 %v2216, 0.0
    %v2521 = vmax.f32 %v2218, 0.0
    %v2522 = vmax.f32 %v1869, 0.0
    %v2523 = vmax.f32 %v1871, 0.0
    %v2524 = vmax.f32 %v2222, 0.0
    %v2525 = vmax.f32 %v2224, 0.0
    %v2526 = vmax.f32 %v1873, 0.0
    %v2527 = vmax.f32 %v1875, 0.0
    %v2528 = vmax.f32 %v2226, 0.0
    %v2529 = vmax.f32 %v2228, 0.0
    %v2530 = vmax.f32 %v1879, 0.0
    %v2531 = vmax.f32 %v1881, 0.0
    %v2532 = vmax.f32 %v2232, 0.0
    %v2533 = vmax.f32 %v2234, 0.0
    %v2534 = vmax.f32 %v1883, 0.0
    %v2535 = vmax.f32 %v1885, 0.0
    %v2536 = vmax.f32 %v2236, 0.0
    %v2537 = vmax.f32 %v2238, 0.0
    %v2538 = vmax.f32 %v1889, 0.0
    %v2539 = vmax.f32 %v1891, 0.0
    %v2540 = vmax.f32 %v2242, 0.0
    %v2541 = vmax.f32 %v2244, 0.0
    %v2542 = vmax.f32 %v1893, 0.0
    %v2543 = vmax.f32 %v1895, 0.0
    %v2544 = vmax.f32 %v2246, 0.0
    %v2545 = vmax.f32 %v2248, 0.0
    %v2546 = vmax.f32 %v1899, 0.0
    %v2547 = vmax.f32 %v1901, 0.0
    %v2548 = vmax.f32 %v2252, 0.0
    %v2549 = vmax.f32 %v2254, 0.0
    %v2550 = vmax.f32 %v1903, 0.0
    %v2551 = vmax.f32 %v1905, 0.0
    %v2552 = vmax.f32 %v2256, 0.0
    %v2553 = vmax.f32 %v2258, 0.0
    %v2554 = vmax.f32 %v1909, 0.0
    %v2555 = vmax.f32 %v1911, 0.0
    %v2556 = vmax.f32 %v2262, 0.0
    %v2557 = vmax.f32 %v2264, 0.0
    %v2558 = vmax.f32 %v1913, 0.0
    %v2559 = vmax.f32 %v1915, 0.0
    %v2560 = vmax.f32 %v2266, 0.0
    %v2561 = vmax.f32 %v2268, 0.0
    %v2562 = vmax.f32 %v1919, 0.0
    %v2563 = vmax.f32 %v1921, 0.0
    %v2564 = vmax.f32 %v2272, 0.0
    %v2565 = vmax.f32 %v2274, 0.0
    %v2566 = vmax.f32 %v1923, 0.0
    %v2567 = vmax.f32 %v1925, 0.0
    %v2568 = vmax.f32 %v2276, 0.0
    %v2569 = vmax.f32 %v2278, 0.0
    %v2570 = vmax.f32 %v1929, 0.0
    %v2571 = vmax.f32 %v1931, 0.0
    %v2572 = vmax.f32 %v2282, 0.0
    %v2573 = vmax.f32 %v2284, 0.0
    %v2574 = vmax.f32 %v1933, 0.0
    %v2575 = vmax.f32 %v1935, 0.0
    %v2576 = vmax.f32 %v2286, 0.0
    %v2577 = vmax.f32 %v2288, 0.0
    %v2578 = vmax.f32 %v1939, 0.0
    %v2579 = vmax.f32 %v1941, 0.0
    %v2580 = vmax.f32 %v2292, 0.0
    %v2581 = vmax.f32 %v2294, 0.0
    %v2582 = vmax.f32 %v1943, 0.0
    %v2583 = vmax.f32 %v1945, 0.0
    %v2584 = vmax.f32 %v2296, 0.0
    %v2585 = vmax.f32 %v2298, 0.0
    %v2586 = vmax.f32 %v1949, 0.0
    %v2587 = vmax.f32 %v1951, 0.0
    %v2588 = vmax.f32 %v2302, 0.0
    %v2589 = vmax.f32 %v2304, 0.0
    %v2590 = vmax.f32 %v1953, 0.0
    %v2591 = vmax.f32 %v1955, 0.0
    %v2592 = vmax.f32 %v2306, 0.0
    %v2593 = vmax.f32 %v2308, 0.0
    %v2594 = vmax.f32 %v1959, 0.0
    %v2595 = vmax.f32 %v1961, 0.0
    %v2596 = vmax.f32 %v2312, 0.0
    %v2597 = vmax.f32 %v2314, 0.0
    %v2598 = vmax.f32 %v1963, 0.0
    %v2599 = vmax.f32 %v1965, 0.0
    %v2600 = vmax.f32 %v2316, 0.0
    %v2601 = vmax.f32 %v2318, 0.0
    %v2602 = vmax.f32 %v1969, 0.0
    %v2603 = vmax.f32 %v1971, 0.0
    %v2604 = vmax.f32 %v2322, 0.0
    %v2605 = vmax.f32 %v2324, 0.0
    %v2606 = vmax.f32 %v1973, 0.0
    %v2607 = vmax.f32 %v1975, 0.0
    %v2608 = vmax.f32 %v2326, 0.0
    %v2609 = vmax.f32 %v2328, 0.0
    %v2610 = vmax.f32 %v1979, 0.0
    %v2611 = vmax.f32 %v1981, 0.0
    %v2612 = vmax.f32 %v2332, 0.0
    %v2613 = vmax.f32 %v2334, 0.0
    %v2614 = vmax.f32 %v1983, 0.0
    %v2615 = vmax.f32 %v1985, 0.0
    %v2616 = vmax.f32 %v2336, 0.0
    %v2617 = vmax.f32 %v2338, 0.0
    %v2618 = vmax.f32 %v1989, 0.0
    %v2619 = vmax.f32 %v1991, 0.0
    %v2620 = vmax.f32 %v2342, 0.0
    %v2621 = vmax.f32 %v2344, 0.0
    %v2622 = vmax.f32 %v1993, 0.0
    %v2623 = vmax.f32 %v1995, 0.0
    %v2624 = vmax.f32 %v2346, 0.0
    %v2625 = vmax.f32 %v2348, 0.0
    %v2626 = vmax.f32 %v1999, 0.0
    %v2627 = vmax.f32 %v2001, 0.0
    %v2628 = vmax.f32 %v2352, 0.0
    %v2629 = vmax.f32 %v2354, 0.0
    %v2630 = vmax.f32 %v2003, 0.0
    %v2631 = vmax.f32 %v2005, 0.0
    %v2632 = vmax.f32 %v2356, 0.0
    %v2633 = vmax.f32 %v2358, 0.0
    %v2634 = vmax.f32 %v2009, 0.0
    %v2635 = vmax.f32 %v2011, 0.0
    %v2636 = vmax.f32 %v2362, 0.0
    %v2637 = vmax.f32 %v2364, 0.0
    %v2638 = vmax.f32 %v2013, 0.0
    %v2639 = vmax.f32 %v2015, 0.0
    %v2640 = vmax.f32 %v2366, 0.0
    %v2641 = vmax.f32 %v2368, 0.0
    %v2642 = vmax.f32 %v2019, 0.0
    %v2643 = vmax.f32 %v2021, 0.0
    %v2644 = vmax.f32 %v2372, 0.0
    %v2645 = vmax.f32 %v2374, 0.0
    %v2646 = vmax.f32 %v2023, 0.0
    %v2647 = vmax.f32 %v2025, 0.0
    %v2648 = vmax.f32 %v2376, 0.0
    %v2649 = vmax.f32 %v2378, 0.0
    %v2650 = vmax.f32 %v2029, 0.0
    %v2651 = vmax.f32 %v2031, 0.0
    %v2652 = vmax.f32 %v2382, 0.0
    %v2653 = vmax.f32 %v2384, 0.0
    %v2654 = vmax.f32 %v2033, 0.0
    %v2655 = vmax.f32 %v2035, 0.0
    %v2656 = vmax.f32 %v2386, 0.0
    %v2657 = vmax.f32 %v2388, 0.0
    %v2658 = vmax.f32 %v2039, 0.0
    %v2659 = vmax.f32 %v2041, 0.0
    %v2660 = vmax.f32 %v2392, 0.0
    %v2661 = vmax.f32 %v2394, 0.0
    %v2662 = vmax.f32 %v2043, 0.0
    %v2663 = vmax.f32 %v2045, 0.0
    %v2664 = vmax.f32 %v2396, 0.0
    %v2665 = vmax.f32 %v2398, 0.0
    %v2666 = vmax.f32 %v2049, 0.0
    %v2667 = vmax.f32 %v2051, 0.0
    %v2668 = vmax.f32 %v2402, 0.0
    %v2669 = vmax.f32 %v2404, 0.0
    %v2670 = vmax.f32 %v2053, 0.0
    %v2671 = vmax.f32 %v2055, 0.0
    %v2672 = vmax.f32 %v2406, 0.0
    %v2673 = vmax.f32 %v2408, 0.0
    %v2674 = vmax.f32 %v2059, 0.0
    %v2675 = vmax.f32 %v2061, 0.0
    %v2676 = vmax.f32 %v2412, 0.0
    %v2677 = vmax.f32 %v2414, 0.0
    %v2678 = vmax.f32 %v2063, 0.0
    %v2679 = vmax.f32 %v2065, 0.0
    %v2680 = vmax.f32 %v2416, 0.0
    %v2681 = vmax.f32 %v2418, 0.0
    %v2682 = vmax.f32 %v2069, 0.0
    %v2683 = vmax.f32 %v2071, 0.0
    %v2684 = vmax.f32 %v2422, 0.0
    %v2685 = vmax.f32 %v2424, 0.0
    %v2686 = vmax.f32 %v2073, 0.0
    %v2687 = vmax.f32 %v2075, 0.0
    %v2688 = vmax.f32 %v2426, 0.0
    %v2689 = vmax.f32 %v2428, 0.0
    %v2690 = vmax.f32 %v2079, 0.0
    %v2691 = vmax.f32 %v2081, 0.0
    %v2692 = vmax.f32 %v2432, 0.0
    %v2693 = vmax.f32 %v2434, 0.0
    %v2694 = vmax.f32 %v2083, 0.0
    %v2695 = vmax.f32 %v2085, 0.0
    %v2696 = vmax.f32 %v2436, 0.0
    %v2697 = vmax.f32 %v2438, 0.0
    %v2698 = vmax.f32 %v2089, 0.0
    %v2699 = vmax.f32 %v2091, 0.0
    %v2700 = vmax.f32 %v2442, 0.0
    %v2701 = vmax.f32 %v2444, 0.0
    %v2702 = vmax.f32 %v2093, 0.0
    %v2703 = vmax.f32 %v2095, 0.0
    %v2704 = vmax.f32 %v2446, 0.0
    %v2705 = vmax.f32 %v2448, 0.0
    %v2706 = vld [vmem:[%s1] sm:$0xff]
    %v2707 = vld [vmem:[%s1 + $0x8] sm:$0xff]
    %v2708 = vld [vmem:[%s1 + $0x10] sm:$0xff]
    %v2709 = vld [vmem:[%s1 + $0x18] sm:$0xff]
    %v2710 = vld [vmem:[%s1 + $0x20] sm:$0xff]
    %v2711 = vld [vmem:[%s1 + $0x28] sm:$0xff]
    %v2712 = vld [vmem:[%s1 + $0x30] sm:$0xff]
    %v2713 = vld [vmem:[%s1 + $0x38] sm:$0xff]
    %v2714 = vld [vmem:[%s1 + $0x40] sm:$0xff]
    %v2715 = vld [vmem:[%s1 + $0x48] sm:$0xff]
    %v2716 = vld [vmem:[%s1 + $0x50] sm:$0xff]
    %v2717 = vld [vmem:[%s1 + $0x58] sm:$0xff]
    %v2718 = vld [vmem:[%s1 + $0x60] sm:$0xff]
    %v2719 = vld [vmem:[%s1 + $0x68] sm:$0xff]
    %v2720 = vld [vmem:[%s1 + $0x70] sm:$0xff]
    %v2721 = vld [vmem:[%s1 + $0x78] sm:$0xff]
    %v2722 = vld [vmem:[%s1 + $0x80] sm:$0xff]
    %v2723 = vld [vmem:[%s1 + $0x88] sm:$0xff]
    %v2724 = vld [vmem:[%s1 + $0x90] sm:$0xff]
    %v2725 = vld [vmem:[%s1 + $0x98] sm:$0xff]
    %v2726 = vld [vmem:[%s1 + $0xa0] sm:$0xff]
    %v2727 = vld [vmem:[%s1 + $0xa8] sm:$0xff]
    %v2728 = vld [vmem:[%s1 + $0xb0] sm:$0xff]
    %v2729 = vld [vmem:[%s1 + $0xb8] sm:$0xff]
    %v2730 = vld [vmem:[%s1 + $0xc0] sm:$0xff]
    %v2731 = vld [vmem:[%s1 + $0xc8] sm:$0xff]
    %v2732 = vld [vmem:[%s1 + $0xd0] sm:$0xff]
    %v2733 = vld [vmem:[%s1 + $0xd8] sm:$0xff]
    %v2734 = vld [vmem:[%s1 + $0xe0] sm:$0xff]
    %v2735 = vld [vmem:[%s1 + $0xe8] sm:$0xff]
    %v2736 = vld [vmem:[%s1 + $0xf0] sm:$0xff]
    %v2737 = vld [vmem:[%s1 + $0xf8] sm:$0xff]
    %v2738 = vld [vmem:[%s1 + $0x100] sm:$0xff]
    %v2739 = vld [vmem:[%s1 + $0x108] sm:$0xff]
    %v2740 = vld [vmem:[%s1 + $0x110] sm:$0xff]
    %v2741 = vld [vmem:[%s1 + $0x118] sm:$0xff]
    %v2742 = vld [vmem:[%s1 + $0x120] sm:$0xff]
    %v2743 = vld [vmem:[%s1 + $0x128] sm:$0xff]
    %v2744 = vld [vmem:[%s1 + $0x130] sm:$0xff]
    %v2745 = vld [vmem:[%s1 + $0x138] sm:$0xff]
    %v2746 = vld [vmem:[%s1 + $0x140] sm:$0xff]
    %v2747 = vld [vmem:[%s1 + $0x148] sm:$0xff]
    %v2748 = vld [vmem:[%s1 + $0x150] sm:$0xff]
    %v2749 = vld [vmem:[%s1 + $0x158] sm:$0xff]
    %v2750 = vld [vmem:[%s1 + $0x160] sm:$0xff]
    %v2751 = vld [vmem:[%s1 + $0x168] sm:$0xff]
    %v2752 = vld [vmem:[%s1 + $0x170] sm:$0xff]
    %v2753 = vld [vmem:[%s1 + $0x178] sm:$0xff]
    %v2754 = vld [vmem:[%s1 + $0x180] sm:$0xff]
    %v2755 = vld [vmem:[%s1 + $0x188] sm:$0xff]
    %v2756 = vld [vmem:[%s1 + $0x190] sm:$0xff]
    %v2757 = vld [vmem:[%s1 + $0x198] sm:$0xff]
    %v2758 = vld [vmem:[%s1 + $0x1a0] sm:$0xff]
    %v2759 = vld [vmem:[%s1 + $0x1a8] sm:$0xff]
    %v2760 = vld [vmem:[%s1 + $0x1b0] sm:$0xff]
    %v2761 = vld [vmem:[%s1 + $0x1b8] sm:$0xff]
    %v2762 = vld [vmem:[%s1 + $0x1c0] sm:$0xff]
    %v2763 = vld [vmem:[%s1 + $0x1c8] sm:$0xff]
    %v2764 = vld [vmem:[%s1 + $0x1d0] sm:$0xff]
    %v2765 = vld [vmem:[%s1 + $0x1d8] sm:$0xff]
    %v2766 = vld [vmem:[%s1 + $0x1e0] sm:$0xff]
    %v2767 = vld [vmem:[%s1 + $0x1e8] sm:$0xff]
    %v2768 = vld [vmem:[%s1 + $0x1f0] sm:$0xff]
    %v2769 = vld [vmem:[%s1 + $0x1f8] sm:$0xff]
    %v2770 = vpack.c.bf16 %v2454, %v2450
    %v2771 = vpack.c.bf16 %v2455, %v2451
    %v2772 = vpack.c.bf16 %v2456, %v2452
    %v2773 = vpack.c.bf16 %v2457, %v2453
    %v2774 = vpack.c.bf16 %v2462, %v2458
    %v2775 = vpack.c.bf16 %v2463, %v2459
    %v2776 = vpack.c.bf16 %v2464, %v2460
    %v2777 = vpack.c.bf16 %v2465, %v2461
    %v2778 = vpack.c.bf16 %v2470, %v2466
    %v2779 = vpack.c.bf16 %v2471, %v2467
    %v2780 = vpack.c.bf16 %v2472, %v2468
    %v2781 = vpack.c.bf16 %v2473, %v2469
    %v2782 = vpack.c.bf16 %v2478, %v2474
    %v2783 = vpack.c.bf16 %v2479, %v2475
    %v2784 = vpack.c.bf16 %v2480, %v2476
    %v2785 = vpack.c.bf16 %v2481, %v2477
    %v2786 = vpack.c.bf16 %v2486, %v2482
    %v2787 = vpack.c.bf16 %v2487, %v2483
    %v2788 = vpack.c.bf16 %v2488, %v2484
    %v2789 = vpack.c.bf16 %v2489, %v2485
    %v2790 = vpack.c.bf16 %v2494, %v2490
    %v2791 = vpack.c.bf16 %v2495, %v2491
    %v2792 = vpack.c.bf16 %v2496, %v2492
    %v2793 = vpack.c.bf16 %v2497, %v2493
    %v2794 = vpack.c.bf16 %v2502, %v2498
    %v2795 = vpack.c.bf16 %v2503, %v2499
    %v2796 = vpack.c.bf16 %v2504, %v2500
    %v2797 = vpack.c.bf16 %v2505, %v2501
    %v2798 = vpack.c.bf16 %v2510, %v2506
    %v2799 = vpack.c.bf16 %v2511, %v2507
    %v2800 = vpack.c.bf16 %v2512, %v2508
    %v2801 = vpack.c.bf16 %v2513, %v2509
    %v2802 = vpack.c.bf16 %v2518, %v2514
    %v2803 = vpack.c.bf16 %v2519, %v2515
    %v2804 = vpack.c.bf16 %v2520, %v2516
    %v2805 = vpack.c.bf16 %v2521, %v2517
    %v2806 = vpack.c.bf16 %v2526, %v2522
    %v2807 = vpack.c.bf16 %v2527, %v2523
    %v2808 = vpack.c.bf16 %v2528, %v2524
    %v2809 = vpack.c.bf16 %v2529, %v2525
    %v2810 = vpack.c.bf16 %v2534, %v2530
    %v2811 = vpack.c.bf16 %v2535, %v2531
    %v2812 = vpack.c.bf16 %v2536, %v2532
    %v2813 = vpack.c.bf16 %v2537, %v2533
    %v2814 = vpack.c.bf16 %v2542, %v2538
    %v2815 = vpack.c.bf16 %v2543, %v2539
    %v2816 = vpack.c.bf16 %v2544, %v2540
    %v2817 = vpack.c.bf16 %v2545, %v2541
    %v2818 = vpack.c.bf16 %v2550, %v2546
    %v2819 = vpack.c.bf16 %v2551, %v2547
    %v2820 = vpack.c.bf16 %v2552, %v2548
    %v2821 = vpack.c.bf16 %v2553, %v2549
    %v2822 = vpack.c.bf16 %v2558, %v2554
    %v2823 = vpack.c.bf16 %v2559, %v2555
    %v2824 = vpack.c.bf16 %v2560, %v2556
    %v2825 = vpack.c.bf16 %v2561, %v2557
    %v2826 = vpack.c.bf16 %v2566, %v2562
    %v2827 = vpack.c.bf16 %v2567, %v2563
    %v2828 = vpack.c.bf16 %v2568, %v2564
    %v2829 = vpack.c.bf16 %v2569, %v2565
    %v2830 = vpack.c.bf16 %v2574, %v2570
    %v2831 = vpack.c.bf16 %v2575, %v2571
    %v2832 = vpack.c.bf16 %v2576, %v2572
    %v2833 = vpack.c.bf16 %v2577, %v2573
    %v2834 = vpack.c.bf16 %v2582, %v2578
    %v2835 = vpack.c.bf16 %v2583, %v2579
    %v2836 = vpack.c.bf16 %v2584, %v2580
    %v2837 = vpack.c.bf16 %v2585, %v2581
    %v2838 = vpack.c.bf16 %v2590, %v2586
    %v2839 = vpack.c.bf16 %v2591, %v2587
    %v2840 = vpack.c.bf16 %v2592, %v2588
    %v2841 = vpack.c.bf16 %v2593, %v2589
    %v2842 = vpack.c.bf16 %v2598, %v2594
    %v2843 = vpack.c.bf16 %v2599, %v2595
    %v2844 = vpack.c.bf16 %v2600, %v2596
    %v2845 = vpack.c.bf16 %v2601, %v2597
    %v2846 = vpack.c.bf16 %v2606, %v2602
    %v2847 = vpack.c.bf16 %v2607, %v2603
    %v2848 = vpack.c.bf16 %v2608, %v2604
    %v2849 = vpack.c.bf16 %v2609, %v2605
    %v2850 = vpack.c.bf16 %v2614, %v2610
    %v2851 = vpack.c.bf16 %v2615, %v2611
    %v2852 = vpack.c.bf16 %v2616, %v2612
    %v2853 = vpack.c.bf16 %v2617, %v2613
    %v2854 = vpack.c.bf16 %v2622, %v2618
    %v2855 = vpack.c.bf16 %v2623, %v2619
    %v2856 = vpack.c.bf16 %v2624, %v2620
    %v2857 = vpack.c.bf16 %v2625, %v2621
    %v2858 = vpack.c.bf16 %v2630, %v2626
    %v2859 = vpack.c.bf16 %v2631, %v2627
    %v2860 = vpack.c.bf16 %v2632, %v2628
    %v2861 = vpack.c.bf16 %v2633, %v2629
    %v2862 = vpack.c.bf16 %v2638, %v2634
    %v2863 = vpack.c.bf16 %v2639, %v2635
    %v2864 = vpack.c.bf16 %v2640, %v2636
    %v2865 = vpack.c.bf16 %v2641, %v2637
    %v2866 = vpack.c.bf16 %v2646, %v2642
    %v2867 = vpack.c.bf16 %v2647, %v2643
    %v2868 = vpack.c.bf16 %v2648, %v2644
    %v2869 = vpack.c.bf16 %v2649, %v2645
    %v2870 = vpack.c.bf16 %v2654, %v2650
    %v2871 = vpack.c.bf16 %v2655, %v2651
    %v2872 = vpack.c.bf16 %v2656, %v2652
    %v2873 = vpack.c.bf16 %v2657, %v2653
    %v2874 = vpack.c.bf16 %v2662, %v2658
    %v2875 = vpack.c.bf16 %v2663, %v2659
    %v2876 = vpack.c.bf16 %v2664, %v2660
    %v2877 = vpack.c.bf16 %v2665, %v2661
    %v2878 = vpack.c.bf16 %v2670, %v2666
    %v2879 = vpack.c.bf16 %v2671, %v2667
    %v2880 = vpack.c.bf16 %v2672, %v2668
    %v2881 = vpack.c.bf16 %v2673, %v2669
    %v2882 = vpack.c.bf16 %v2678, %v2674
    %v2883 = vpack.c.bf16 %v2679, %v2675
    %v2884 = vpack.c.bf16 %v2680, %v2676
    %v2885 = vpack.c.bf16 %v2681, %v2677
    %v2886 = vpack.c.bf16 %v2686, %v2682
    %v2887 = vpack.c.bf16 %v2687, %v2683
    %v2888 = vpack.c.bf16 %v2688, %v2684
    %v2889 = vpack.c.bf16 %v2689, %v2685
    %v2890 = vpack.c.bf16 %v2694, %v2690
    %v2891 = vpack.c.bf16 %v2695, %v2691
    %v2892 = vpack.c.bf16 %v2696, %v2692
    %v2893 = vpack.c.bf16 %v2697, %v2693
    %v2894 = vpack.c.bf16 %v2702, %v2698
    %v2895 = vpack.c.bf16 %v2703, %v2699
    %v2896 = vpack.c.bf16 %v2704, %v2700
    %v2897 = vpack.c.bf16 %v2705, %v2701
    %v2898 = vld [vmem:[%s2] sm:$0xff]
    %v2899 = vld [vmem:[%s2 + $0x8] sm:$0xff]
    %v2900 = vld [vmem:[%s2 + $0x10] sm:$0xff]
    %v2901 = vld [vmem:[%s2 + $0x18] sm:$0xff]
    %v2902 = vld [vmem:[%s2 + $0x20] sm:$0xff]
    %v2903 = vld [vmem:[%s2 + $0x28] sm:$0xff]
    %v2904 = vld [vmem:[%s2 + $0x30] sm:$0xff]
    %v2905 = vld [vmem:[%s2 + $0x38] sm:$0xff]
    %v2906 = vld [vmem:[%s2 + $0x40] sm:$0xff]
    %v2907 = vld [vmem:[%s2 + $0x48] sm:$0xff]
    %v2908 = vld [vmem:[%s2 + $0x50] sm:$0xff]
    %v2909 = vld [vmem:[%s2 + $0x58] sm:$0xff]
    %v2910 = vld [vmem:[%s2 + $0x60] sm:$0xff]
    %v2911 = vld [vmem:[%s2 + $0x68] sm:$0xff]
    %v2912 = vld [vmem:[%s2 + $0x70] sm:$0xff]
    %v2913 = vld [vmem:[%s2 + $0x78] sm:$0xff]
    %v2914 = vld [vmem:[%s2 + $0x80] sm:$0xff]
    %v2915 = vld [vmem:[%s2 + $0x88] sm:$0xff]
    %v2916 = vld [vmem:[%s2 + $0x90] sm:$0xff]
    %v2917 = vld [vmem:[%s2 + $0x98] sm:$0xff]
    %v2918 = vld [vmem:[%s2 + $0xa0] sm:$0xff]
    %v2919 = vld [vmem:[%s2 + $0xa8] sm:$0xff]
    %v2920 = vld [vmem:[%s2 + $0xb0] sm:$0xff]
    %v2921 = vld [vmem:[%s2 + $0xb8] sm:$0xff]
    %v2922 = vld [vmem:[%s2 + $0xc0] sm:$0xff]
    %v2923 = vld [vmem:[%s2 + $0xc8] sm:$0xff]
    %v2924 = vld [vmem:[%s2 + $0xd0] sm:$0xff]
    %v2925 = vld [vmem:[%s2 + $0xd8] sm:$0xff]
    %v2926 = vld [vmem:[%s2 + $0xe0] sm:$0xff]
    %v2927 = vld [vmem:[%s2 + $0xe8] sm:$0xff]
    %v2928 = vld [vmem:[%s2 + $0xf0] sm:$0xff]
    %v2929 = vld [vmem:[%s2 + $0xf8] sm:$0xff]
    %2931 = vset.pattern.permute.xlu0 0
    %2932 = vperm.xlu0 %2931, %v2898
    %v2933 = vpop.permute.xlu0 %2932
    %2936 = vset.pattern.permute.xlu0 0
    %2937 = vperm.xlu0 %2936, %v2899
    %v2938 = vpop.permute.xlu0 %2937
    %2941 = vset.pattern.permute.xlu0 0
    %2942 = vperm.xlu0 %2941, %v2900
    %v2943 = vpop.permute.xlu0 %2942
    %2946 = vset.pattern.permute.xlu0 0
    %2947 = vperm.xlu0 %2946, %v2901
    %v2948 = vpop.permute.xlu0 %2947
    %2951 = vset.pattern.permute.xlu0 0
    %2952 = vperm.xlu0 %2951, %v2902
    %v2953 = vpop.permute.xlu0 %2952
    %2956 = vset.pattern.permute.xlu0 0
    %2957 = vperm.xlu0 %2956, %v2903
    %v2958 = vpop.permute.xlu0 %2957
    %2961 = vset.pattern.permute.xlu0 0
    %2962 = vperm.xlu0 %2961, %v2904
    %v2963 = vpop.permute.xlu0 %2962
    %2966 = vset.pattern.permute.xlu0 0
    %2967 = vperm.xlu0 %2966, %v2905
    %v2968 = vpop.permute.xlu0 %2967
    %2971 = vset.pattern.permute.xlu0 0
    %2972 = vperm.xlu0 %2971, %v2906
    %v2973 = vpop.permute.xlu0 %2972
    %2976 = vset.pattern.permute.xlu0 0
    %2977 = vperm.xlu0 %2976, %v2907
    %v2978 = vpop.permute.xlu0 %2977
    %2981 = vset.pattern.permute.xlu0 0
    %2982 = vperm.xlu0 %2981, %v2908
    %v2983 = vpop.permute.xlu0 %2982
    %2986 = vset.pattern.permute.xlu0 0
    %2987 = vperm.xlu0 %2986, %v2909
    %v2988 = vpop.permute.xlu0 %2987
    %2991 = vset.pattern.permute.xlu0 0
    %2992 = vperm.xlu0 %2991, %v2910
    %v2993 = vpop.permute.xlu0 %2992
    %2996 = vset.pattern.permute.xlu0 0
    %2997 = vperm.xlu0 %2996, %v2911
    %v2998 = vpop.permute.xlu0 %2997
    %3001 = vset.pattern.permute.xlu0 0
    %3002 = vperm.xlu0 %3001, %v2912
    %v3003 = vpop.permute.xlu0 %3002
    %3006 = vset.pattern.permute.xlu0 0
    %3007 = vperm.xlu0 %3006, %v2913
    %v3008 = vpop.permute.xlu0 %3007
    %3011 = vset.pattern.permute.xlu0 0
    %3012 = vperm.xlu0 %3011, %v2914
    %v3013 = vpop.permute.xlu0 %3012
    %3016 = vset.pattern.permute.xlu0 0
    %3017 = vperm.xlu0 %3016, %v2915
    %v3018 = vpop.permute.xlu0 %3017
    %3021 = vset.pattern.permute.xlu0 0
    %3022 = vperm.xlu0 %3021, %v2916
    %v3023 = vpop.permute.xlu0 %3022
    %3026 = vset.pattern.permute.xlu0 0
    %3027 = vperm.xlu0 %3026, %v2917
    %v3028 = vpop.permute.xlu0 %3027
    %3031 = vset.pattern.permute.xlu0 0
    %3032 = vperm.xlu0 %3031, %v2918
    %v3033 = vpop.permute.xlu0 %3032
    %3036 = vset.pattern.permute.xlu0 0
    %3037 = vperm.xlu0 %3036, %v2919
    %v3038 = vpop.permute.xlu0 %3037
    %3041 = vset.pattern.permute.xlu0 0
    %3042 = vperm.xlu0 %3041, %v2920
    %v3043 = vpop.permute.xlu0 %3042
    %3046 = vset.pattern.permute.xlu0 0
    %3047 = vperm.xlu0 %3046, %v2921
    %v3048 = vpop.permute.xlu0 %3047
    %3051 = vset.pattern.permute.xlu0 0
    %3052 = vperm.xlu0 %3051, %v2922
    %v3053 = vpop.permute.xlu0 %3052
    %3056 = vset.pattern.permute.xlu0 0
    %3057 = vperm.xlu0 %3056, %v2923
    %v3058 = vpop.permute.xlu0 %3057
    %3061 = vset.pattern.permute.xlu0 0
    %3062 = vperm.xlu0 %3061, %v2924
    %v3063 = vpop.permute.xlu0 %3062
    %3066 = vset.pattern.permute.xlu0 0
    %3067 = vperm.xlu0 %3066, %v2925
    %v3068 = vpop.permute.xlu0 %3067
    %3071 = vset.pattern.permute.xlu0 0
    %3072 = vperm.xlu0 %3071, %v2926
    %v3073 = vpop.permute.xlu0 %3072
    %3076 = vset.pattern.permute.xlu0 0
    %3077 = vperm.xlu0 %3076, %v2927
    %v3078 = vpop.permute.xlu0 %3077
    %3081 = vset.pattern.permute.xlu0 0
    %3082 = vperm.xlu0 %3081, %v2928
    %v3083 = vpop.permute.xlu0 %3082
    %3086 = vset.pattern.permute.xlu0 0
    %3087 = vperm.xlu0 %3086, %v2929
    %v3088 = vpop.permute.xlu0 %3087
    %v3154 = vunpack.c.l.b16 %v2706
    %v3155 = vunpack.c.h.b16 %v2706
    %v3156 = vunpack.c.l.b16 %v2707
    %v3157 = vunpack.c.h.b16 %v2707
    %v3158 = vunpack.c.l.b16 %v2708
    %v3159 = vunpack.c.h.b16 %v2708
    %v3160 = vunpack.c.l.b16 %v2709
    %v3161 = vunpack.c.h.b16 %v2709
    %v3162 = vunpack.c.l.b16 %v2710
    %v3163 = vunpack.c.h.b16 %v2710
    %v3164 = vunpack.c.l.b16 %v2711
    %v3165 = vunpack.c.h.b16 %v2711
    %v3166 = vunpack.c.l.b16 %v2712
    %v3167 = vunpack.c.h.b16 %v2712
    %v3168 = vunpack.c.l.b16 %v2713
    %v3169 = vunpack.c.h.b16 %v2713
    %v3170 = vunpack.c.l.b16 %v2714
    %v3171 = vunpack.c.h.b16 %v2714
    %v3172 = vunpack.c.l.b16 %v2715
    %v3173 = vunpack.c.h.b16 %v2715
    %v3174 = vunpack.c.l.b16 %v2716
    %v3175 = vunpack.c.h.b16 %v2716
    %v3176 = vunpack.c.l.b16 %v2717
    %v3177 = vunpack.c.h.b16 %v2717
    %v3178 = vunpack.c.l.b16 %v2718
    %v3179 = vunpack.c.h.b16 %v2718
    %v3180 = vunpack.c.l.b16 %v2719
    %v3181 = vunpack.c.h.b16 %v2719
    %v3182 = vunpack.c.l.b16 %v2720
    %v3183 = vunpack.c.h.b16 %v2720
    %v3184 = vunpack.c.l.b16 %v2721
    %v3185 = vunpack.c.h.b16 %v2721
    %v3186 = vunpack.c.l.b16 %v2722
    %v3187 = vunpack.c.h.b16 %v2722
    %v3188 = vunpack.c.l.b16 %v2723
    %v3189 = vunpack.c.h.b16 %v2723
    %v3190 = vunpack.c.l.b16 %v2724
    %v3191 = vunpack.c.h.b16 %v2724
    %v3192 = vunpack.c.l.b16 %v2725
    %v3193 = vunpack.c.h.b16 %v2725
    %v3194 = vunpack.c.l.b16 %v2726
    %v3195 = vunpack.c.h.b16 %v2726
    %v3196 = vunpack.c.l.b16 %v2727
    %v3197 = vunpack.c.h.b16 %v2727
    %v3198 = vunpack.c.l.b16 %v2728
    %v3199 = vunpack.c.h.b16 %v2728
    %v3200 = vunpack.c.l.b16 %v2729
    %v3201 = vunpack.c.h.b16 %v2729
    %v3202 = vunpack.c.l.b16 %v2730
    %v3203 = vunpack.c.h.b16 %v2730
    %v3204 = vunpack.c.l.b16 %v2731
    %v3205 = vunpack.c.h.b16 %v2731
    %v3206 = vunpack.c.l.b16 %v2732
    %v3207 = vunpack.c.h.b16 %v2732
    %v3208 = vunpack.c.l.b16 %v2733
    %v3209 = vunpack.c.h.b16 %v2733
    %v3210 = vunpack.c.l.b16 %v2734
    %v3211 = vunpack.c.h.b16 %v2734
    %v3212 = vunpack.c.l.b16 %v2735
    %v3213 = vunpack.c.h.b16 %v2735
    %v3214 = vunpack.c.l.b16 %v2736
    %v3215 = vunpack.c.h.b16 %v2736
    %v3216 = vunpack.c.l.b16 %v2737
    %v3217 = vunpack.c.h.b16 %v2737
    %v3218 = vunpack.c.l.b16 %v2738
    %v3219 = vunpack.c.h.b16 %v2738
    %v3220 = vunpack.c.l.b16 %v2739
    %v3221 = vunpack.c.h.b16 %v2739
    %v3222 = vunpack.c.l.b16 %v2740
    %v3223 = vunpack.c.h.b16 %v2740
    %v3224 = vunpack.c.l.b16 %v2741
    %v3225 = vunpack.c.h.b16 %v2741
    %v3226 = vunpack.c.l.b16 %v2742
    %v3227 = vunpack.c.h.b16 %v2742
    %v3228 = vunpack.c.l.b16 %v2743
    %v3229 = vunpack.c.h.b16 %v2743
    %v3230 = vunpack.c.l.b16 %v2744
    %v3231 = vunpack.c.h.b16 %v2744
    %v3232 = vunpack.c.l.b16 %v2745
    %v3233 = vunpack.c.h.b16 %v2745
    %v3234 = vunpack.c.l.b16 %v2746
    %v3235 = vunpack.c.h.b16 %v2746
    %v3236 = vunpack.c.l.b16 %v2747
    %v3237 = vunpack.c.h.b16 %v2747
    %v3238 = vunpack.c.l.b16 %v2748
    %v3239 = vunpack.c.h.b16 %v2748
    %v3240 = vunpack.c.l.b16 %v2749
    %v3241 = vunpack.c.h.b16 %v2749
    %v3242 = vunpack.c.l.b16 %v2750
    %v3243 = vunpack.c.h.b16 %v2750
    %v3244 = vunpack.c.l.b16 %v2751
    %v3245 = vunpack.c.h.b16 %v2751
    %v3246 = vunpack.c.l.b16 %v2752
    %v3247 = vunpack.c.h.b16 %v2752
    %v3248 = vunpack.c.l.b16 %v2753
    %v3249 = vunpack.c.h.b16 %v2753
    %v3250 = vunpack.c.l.b16 %v2754
    %v3251 = vunpack.c.h.b16 %v2754
    %v3252 = vunpack.c.l.b16 %v2755
    %v3253 = vunpack.c.h.b16 %v2755
    %v3254 = vunpack.c.l.b16 %v2756
    %v3255 = vunpack.c.h.b16 %v2756
    %v3256 = vunpack.c.l.b16 %v2757
    %v3257 = vunpack.c.h.b16 %v2757
    %v3258 = vunpack.c.l.b16 %v2758
    %v3259 = vunpack.c.h.b16 %v2758
    %v3260 = vunpack.c.l.b16 %v2759
    %v3261 = vunpack.c.h.b16 %v2759
    %v3262 = vunpack.c.l.b16 %v2760
    %v3263 = vunpack.c.h.b16 %v2760
    %v3264 = vunpack.c.l.b16 %v2761
    %v3265 = vunpack.c.h.b16 %v2761
    %v3266 = vunpack.c.l.b16 %v2762
    %v3267 = vunpack.c.h.b16 %v2762
    %v3268 = vunpack.c.l.b16 %v2763
    %v3269 = vunpack.c.h.b16 %v2763
    %v3270 = vunpack.c.l.b16 %v2764
    %v3271 = vunpack.c.h.b16 %v2764
    %v3272 = vunpack.c.l.b16 %v2765
    %v3273 = vunpack.c.h.b16 %v2765
    %v3274 = vunpack.c.l.b16 %v2766
    %v3275 = vunpack.c.h.b16 %v2766
    %v3276 = vunpack.c.l.b16 %v2767
    %v3277 = vunpack.c.h.b16 %v2767
    %v3278 = vunpack.c.l.b16 %v2768
    %v3279 = vunpack.c.h.b16 %v2768
    %v3280 = vunpack.c.l.b16 %v2769
    %v3281 = vunpack.c.h.b16 %v2769
    %v3282 = vpack.c.b16 %v3158, %v3154
    %v3283 = vpack.c.b16 %v3159, %v3155
    %v3284 = vpack.c.b16 %v3160, %v3156
    %v3285 = vpack.c.b16 %v3161, %v3157
    %v3286 = vpack.c.b16 %v3166, %v3162
    %v3287 = vpack.c.b16 %v3167, %v3163
    %v3288 = vpack.c.b16 %v3168, %v3164
    %v3289 = vpack.c.b16 %v3169, %v3165
    %v3290 = vpack.c.b16 %v3174, %v3170
    %v3291 = vpack.c.b16 %v3175, %v3171
    %v3292 = vpack.c.b16 %v3176, %v3172
    %v3293 = vpack.c.b16 %v3177, %v3173
    %v3294 = vpack.c.b16 %v3182, %v3178
    %v3295 = vpack.c.b16 %v3183, %v3179
    %v3296 = vpack.c.b16 %v3184, %v3180
    %v3297 = vpack.c.b16 %v3185, %v3181
    %v3298 = vpack.c.b16 %v3190, %v3186
    %v3299 = vpack.c.b16 %v3191, %v3187
    %v3300 = vpack.c.b16 %v3192, %v3188
    %v3301 = vpack.c.b16 %v3193, %v3189
    %v3302 = vpack.c.b16 %v3198, %v3194
    %v3303 = vpack.c.b16 %v3199, %v3195
    %v3304 = vpack.c.b16 %v3200, %v3196
    %v3305 = vpack.c.b16 %v3201, %v3197
    %v3306 = vpack.c.b16 %v3206, %v3202
    %v3307 = vpack.c.b16 %v3207, %v3203
    %v3308 = vpack.c.b16 %v3208, %v3204
    %v3309 = vpack.c.b16 %v3209, %v3205
    %v3310 = vpack.c.b16 %v3214, %v3210
    %v3311 = vpack.c.b16 %v3215, %v3211
    %v3312 = vpack.c.b16 %v3216, %v3212
    %v3313 = vpack.c.b16 %v3217, %v3213
    %v3314 = vpack.c.b16 %v3222, %v3218
    %v3315 = vpack.c.b16 %v3223, %v3219
    %v3316 = vpack.c.b16 %v3224, %v3220
    %v3317 = vpack.c.b16 %v3225, %v3221
    %v3318 = vpack.c.b16 %v3230, %v3226
    %v3319 = vpack.c.b16 %v3231, %v3227
    %v3320 = vpack.c.b16 %v3232, %v3228
    %v3321 = vpack.c.b16 %v3233, %v3229
    %v3322 = vpack.c.b16 %v3238, %v3234
    %v3323 = vpack.c.b16 %v3239, %v3235
    %v3324 = vpack.c.b16 %v3240, %v3236
    %v3325 = vpack.c.b16 %v3241, %v3237
    %v3326 = vpack.c.b16 %v3246, %v3242
    %v3327 = vpack.c.b16 %v3247, %v3243
    %v3328 = vpack.c.b16 %v3248, %v3244
    %v3329 = vpack.c.b16 %v3249, %v3245
    %v3330 = vpack.c.b16 %v3254, %v3250
    %v3331 = vpack.c.b16 %v3255, %v3251
    %v3332 = vpack.c.b16 %v3256, %v3252
    %v3333 = vpack.c.b16 %v3257, %v3253
    %v3334 = vpack.c.b16 %v3262, %v3258
    %v3335 = vpack.c.b16 %v3263, %v3259
    %v3336 = vpack.c.b16 %v3264, %v3260
    %v3337 = vpack.c.b16 %v3265, %v3261
    %v3338 = vpack.c.b16 %v3270, %v3266
    %v3339 = vpack.c.b16 %v3271, %v3267
    %v3340 = vpack.c.b16 %v3272, %v3268
    %v3341 = vpack.c.b16 %v3273, %v3269
    %v3342 = vpack.c.b16 %v3278, %v3274
    %v3343 = vpack.c.b16 %v3279, %v3275
    %v3344 = vpack.c.b16 %v3280, %v3276
    %v3345 = vpack.c.b16 %v3281, %v3277
    %3410 = vmatprep.subr.bf16.mxu0 %v2771
    %3411 = vmatpush1.bf16.msra.mxu0 %v2770
    %3412 = vmatprep.subr.bf16.mxu0 %v2775
    %3413 = vmatpush1.bf16.msra.mxu0 %v2774
    %3414 = vmatprep.subr.bf16.mxu0 %v2779
    %3415 = vmatpush1.bf16.msra.mxu0 %v2778
    %3416 = vmatprep.subr.bf16.mxu0 %v2783
    %3417 = vmatpush1.bf16.msra.mxu0 %v2782
    %3418 = vmatprep.subr.bf16.mxu0 %v2787
    %3419 = vmatpush1.bf16.msra.mxu0 %v2786
    %3420 = vmatprep.subr.bf16.mxu0 %v2791
    %3421 = vmatpush1.bf16.msra.mxu0 %v2790
    %3422 = vmatprep.subr.bf16.mxu0 %v2795
    %3423 = vmatpush1.bf16.msra.mxu0 %v2794
    %3424 = vmatprep.subr.bf16.mxu0 %v2799
    %3425 = vmatpush1.bf16.msra.mxu0 %v2798
    %3426 = vmatprep.subr.bf16.mxu0 %v2803
    %3427 = vmatpush1.bf16.msra.mxu0 %v2802
    %3428 = vmatprep.subr.bf16.mxu0 %v2807
    %3429 = vmatpush1.bf16.msra.mxu0 %v2806
    %3430 = vmatprep.subr.bf16.mxu0 %v2811
    %3431 = vmatpush1.bf16.msra.mxu0 %v2810
    %3432 = vmatprep.subr.bf16.mxu0 %v2815
    %3433 = vmatpush1.bf16.msra.mxu0 %v2814
    %3434 = vmatprep.subr.bf16.mxu0 %v2819
    %3435 = vmatpush1.bf16.msra.mxu0 %v2818
    %3436 = vmatprep.subr.bf16.mxu0 %v2823
    %3437 = vmatpush1.bf16.msra.mxu0 %v2822
    %3438 = vmatprep.subr.bf16.mxu0 %v2827
    %3439 = vmatpush1.bf16.msra.mxu0 %v2826
    %3440 = vmatprep.subr.bf16.mxu0 %v2831
    %3441 = vmatpush1.bf16.msra.mxu0 %v2830
    %3442 = vmatprep.mubr.bf16.mxu0 %v3283
    %3443 = vmatmul.mubr.bf16.gmra.mrb[0].mxu0 %v3282
    %v3444 = vpop.f32.mrb[0].mxu0
    %v3445 = vadd.f32 %v2933, %v3444
    %v3446 = vpop.f32.mrb[0].mxu0
    %v3447 = vadd.f32 %v2933, %v3446
    %v3448 = vpop.f32.mrb[0].mxu0
    %v3449 = vadd.f32 %v2938, %v3448
    %v3450 = vpop.f32.mrb[0].mxu0
    %v3451 = vadd.f32 %v2938, %v3450
    %3452 = vmatprep.mubr.bf16.mxu0 %v3287
    %3453 = vmatmul.mubr.bf16.gmra.mrb[0].mxu0 %v3286
    %v3454 = vpop.f32.mrb[0].mxu0
    %v3455 = vadd.f32 %v2943, %v3454
    %v3456 = vpop.f32.mrb[0].mxu0
    %v3457 = vadd.f32 %v2943, %v3456
    %v3458 = vpop.f32.mrb[0].mxu0
    %v3459 = vadd.f32 %v2948, %v3458
    %v3460 = vpop.f32.mrb[0].mxu0
    %v3461 = vadd.f32 %v2948, %v3460
    %3462 = vmatprep.mubr.bf16.mxu0 %v3291
    %3463 = vmatmul.mubr.bf16.gmra.mrb[0].mxu0 %v3290
    %v3464 = vpop.f32.mrb[0].mxu0
    %v3465 = vadd.f32 %v2953, %v3464
    %v3466 = vpop.f32.mrb[0].mxu0
    %v3467 = vadd.f32 %v2953, %v3466
    %v3468 = vpop.f32.mrb[0].mxu0
    %v3469 = vadd.f32 %v2958, %v3468
    %v3470 = vpop.f32.mrb[0].mxu0
    %v3471 = vadd.f32 %v2958, %v3470
    %3472 = vmatprep.mubr.bf16.mxu0 %v3295
    %3473 = vmatmul.mubr.bf16.gmra.mrb[0].mxu0 %v3294
    %v3474 = vpop.f32.mrb[0].mxu0
    %v3475 = vadd.f32 %v2963, %v3474
    %v3476 = vpop.f32.mrb[0].mxu0
    %v3477 = vadd.f32 %v2963, %v3476
    %v3478 = vpop.f32.mrb[0].mxu0
    %v3479 = vadd.f32 %v2968, %v3478
    %v3480 = vpop.f32.mrb[0].mxu0
    %v3481 = vadd.f32 %v2968, %v3480
    %3482 = vmatprep.mubr.bf16.mxu0 %v3299
    %3483 = vmatmul.mubr.bf16.gmra.mrb[0].mxu0 %v3298
    %v3484 = vpop.f32.mrb[0].mxu0
    %v3485 = vadd.f32 %v2973, %v3484
    %v3486 = vpop.f32.mrb[0].mxu0
    %v3487 = vadd.f32 %v2973, %v3486
    %v3488 = vpop.f32.mrb[0].mxu0
    %v3489 = vadd.f32 %v2978, %v3488
    %v3490 = vpop.f32.mrb[0].mxu0
    %v3491 = vadd.f32 %v2978, %v3490
    %3492 = vmatprep.mubr.bf16.mxu0 %v3303
    %3493 = vmatmul.mubr.bf16.gmra.mrb[0].mxu0 %v3302
    %v3494 = vpop.f32.mrb[0].mxu0
    %v3495 = vadd.f32 %v2983, %v3494
    %v3496 = vpop.f32.mrb[0].mxu0
    %v3497 = vadd.f32 %v2983, %v3496
    %v3498 = vpop.f32.mrb[0].mxu0
    %v3499 = vadd.f32 %v2988, %v3498
    %v3500 = vpop.f32.mrb[0].mxu0
    %v3501 = vadd.f32 %v2988, %v3500
    %3502 = vmatprep.mubr.bf16.mxu0 %v3307
    %3503 = vmatmul.mubr.bf16.gmra.mrb[0].mxu0 %v3306
    %v3504 = vpop.f32.mrb[0].mxu0
    %v3505 = vadd.f32 %v2993, %v3504
    %v3506 = vpop.f32.mrb[0].mxu0
    %v3507 = vadd.f32 %v2993, %v3506
    %v3508 = vpop.f32.mrb[0].mxu0
    %v3509 = vadd.f32 %v2998, %v3508
    %v3510 = vpop.f32.mrb[0].mxu0
    %v3511 = vadd.f32 %v2998, %v3510
    %3512 = vmatprep.mubr.bf16.mxu0 %v3311
    %3513 = vmatmul.mubr.bf16.gmra.mrb[0].mxu0 %v3310
    %v3514 = vpop.f32.mrb[0].mxu0
    %v3515 = vadd.f32 %v3003, %v3514
    %v3516 = vpop.f32.mrb[0].mxu0
    %v3517 = vadd.f32 %v3003, %v3516
    %v3518 = vpop.f32.mrb[0].mxu0
    %v3519 = vadd.f32 %v3008, %v3518
    %v3520 = vpop.f32.mrb[0].mxu0
    %v3521 = vadd.f32 %v3008, %v3520
    %3522 = vmatprep.mubr.bf16.mxu0 %v3315
    %3523 = vmatmul.mubr.bf16.gmra.mrb[0].mxu0 %v3314
    %v3524 = vpop.f32.mrb[0].mxu0
    %v3525 = vadd.f32 %v3013, %v3524
    %v3526 = vpop.f32.mrb[0].mxu0
    %v3527 = vadd.f32 %v3013, %v3526
    %v3528 = vpop.f32.mrb[0].mxu0
    %v3529 = vadd.f32 %v3018, %v3528
    %v3530 = vpop.f32.mrb[0].mxu0
    %v3531 = vadd.f32 %v3018, %v3530
    %3532 = vmatprep.mubr.bf16.mxu0 %v3319
    %3533 = vmatmul.mubr.bf16.gmra.mrb[0].mxu0 %v3318
    %v3534 = vpop.f32.mrb[0].mxu0
    %v3535 = vadd.f32 %v3023, %v3534
    %v3536 = vpop.f32.mrb[0].mxu0
    %v3537 = vadd.f32 %v3023, %v3536
    %v3538 = vpop.f32.mrb[0].mxu0
    %v3539 = vadd.f32 %v3028, %v3538
    %v3540 = vpop.f32.mrb[0].mxu0
    %v3541 = vadd.f32 %v3028, %v3540
    %3542 = vmatprep.mubr.bf16.mxu0 %v3323
    %3543 = vmatmul.mubr.bf16.gmra.mrb[0].mxu0 %v3322
    %v3544 = vpop.f32.mrb[0].mxu0
    %v3545 = vadd.f32 %v3033, %v3544
    %v3546 = vpop.f32.mrb[0].mxu0
    %v3547 = vadd.f32 %v3033, %v3546
    %v3548 = vpop.f32.mrb[0].mxu0
    %v3549 = vadd.f32 %v3038, %v3548
    %v3550 = vpop.f32.mrb[0].mxu0
    %v3551 = vadd.f32 %v3038, %v3550
    %3552 = vmatprep.mubr.bf16.mxu0 %v3327
    %3553 = vmatmul.mubr.bf16.gmra.mrb[0].mxu0 %v3326
    %v3554 = vpop.f32.mrb[0].mxu0
    %v3555 = vadd.f32 %v3043, %v3554
    %v3556 = vpop.f32.mrb[0].mxu0
    %v3557 = vadd.f32 %v3043, %v3556
    %v3558 = vpop.f32.mrb[0].mxu0
    %v3559 = vadd.f32 %v3048, %v3558
    %v3560 = vpop.f32.mrb[0].mxu0
    %v3561 = vadd.f32 %v3048, %v3560
    %3562 = vmatprep.mubr.bf16.mxu0 %v3331
    %3563 = vmatmul.mubr.bf16.gmra.mrb[0].mxu0 %v3330
    %v3564 = vpop.f32.mrb[0].mxu0
    %v3565 = vadd.f32 %v3053, %v3564
    %v3566 = vpop.f32.mrb[0].mxu0
    %v3567 = vadd.f32 %v3053, %v3566
    %v3568 = vpop.f32.mrb[0].mxu0
    %v3569 = vadd.f32 %v3058, %v3568
    %v3570 = vpop.f32.mrb[0].mxu0
    %v3571 = vadd.f32 %v3058, %v3570
    %3572 = vmatprep.mubr.bf16.mxu0 %v3335
    %3573 = vmatmul.mubr.bf16.gmra.mrb[0].mxu0 %v3334
    %v3574 = vpop.f32.mrb[0].mxu0
    %v3575 = vadd.f32 %v3063, %v3574
    %v3576 = vpop.f32.mrb[0].mxu0
    %v3577 = vadd.f32 %v3063, %v3576
    %v3578 = vpop.f32.mrb[0].mxu0
    %v3579 = vadd.f32 %v3068, %v3578
    %v3580 = vpop.f32.mrb[0].mxu0
    %v3581 = vadd.f32 %v3068, %v3580
    %3582 = vmatprep.mubr.bf16.mxu0 %v3339
    %3583 = vmatmul.mubr.bf16.gmra.mrb[0].mxu0 %v3338
    %v3584 = vpop.f32.mrb[0].mxu0
    %v3585 = vadd.f32 %v3073, %v3584
    %v3586 = vpop.f32.mrb[0].mxu0
    %v3587 = vadd.f32 %v3073, %v3586
    %v3588 = vpop.f32.mrb[0].mxu0
    %v3589 = vadd.f32 %v3078, %v3588
    %v3590 = vpop.f32.mrb[0].mxu0
    %v3591 = vadd.f32 %v3078, %v3590
    %3592 = vmatprep.mubr.bf16.mxu0 %v3343
    %3593 = vmatmul.mubr.bf16.gmra.mrb[0].mxu0 %v3342
    %v3594 = vpop.f32.mrb[0].mxu0
    %v3595 = vadd.f32 %v3083, %v3594
    %v3596 = vpop.f32.mrb[0].mxu0
    %v3597 = vadd.f32 %v3083, %v3596
    %v3598 = vpop.f32.mrb[0].mxu0
    %v3599 = vadd.f32 %v3088, %v3598
    %v3600 = vpop.f32.mrb[0].mxu0
    %v3601 = vadd.f32 %v3088, %v3600
    %3602 = vdwg.mxu0
    %3603 = vmatprep.subr.bf16.mxu0 %v2835
    %3604 = vmatpush1.bf16.msra.mxu0 %v2834
    %3605 = vmatprep.subr.bf16.mxu0 %v2839
    %3606 = vmatpush1.bf16.msra.mxu0 %v2838
    %3607 = vmatprep.subr.bf16.mxu0 %v2843
    %3608 = vmatpush1.bf16.msra.mxu0 %v2842
    %3609 = vmatprep.subr.bf16.mxu0 %v2847
    %3610 = vmatpush1.bf16.msra.mxu0 %v2846
    %3611 = vmatprep.subr.bf16.mxu0 %v2851
    %3612 = vmatpush1.bf16.msra.mxu0 %v2850
    %3613 = vmatprep.subr.bf16.mxu0 %v2855
    %3614 = vmatpush1.bf16.msra.mxu0 %v2854
    %3615 = vmatprep.subr.bf16.mxu0 %v2859
    %3616 = vmatpush1.bf16.msra.mxu0 %v2858
    %3617 = vmatprep.subr.bf16.mxu0 %v2863
    %3618 = vmatpush1.bf16.msra.mxu0 %v2862
    %3619 = vmatprep.subr.bf16.mxu0 %v2867
    %3620 = vmatpush1.bf16.msra.mxu0 %v2866
    %3621 = vmatprep.subr.bf16.mxu0 %v2871
    %3622 = vmatpush1.bf16.msra.mxu0 %v2870
    %3623 = vmatprep.subr.bf16.mxu0 %v2875
    %3624 = vmatpush1.bf16.msra.mxu0 %v2874
    %3625 = vmatprep.subr.bf16.mxu0 %v2879
    %3626 = vmatpush1.bf16.msra.mxu0 %v2878
    %3627 = vmatprep.subr.bf16.mxu0 %v2883
    %3628 = vmatpush1.bf16.msra.mxu0 %v2882
    %3629 = vmatprep.subr.bf16.mxu0 %v2887
    %3630 = vmatpush1.bf16.msra.mxu0 %v2886
    %3631 = vmatprep.subr.bf16.mxu0 %v2891
    %3632 = vmatpush1.bf16.msra.mxu0 %v2890
    %3633 = vmatprep.subr.bf16.mxu0 %v2895
    %3634 = vmatpush1.bf16.msra.mxu0 %v2894
    %3635 = vmatprep.mubr.bf16.mxu0 %v3285
    %3636 = vmatmul.mubr.bf16.gmra.mrb[0].mxu0 %v3284
    %v3637 = vpop.f32.mrb[0].mxu0
    %v3638 = vadd.f32 %v3445, %v3637
    %v3639 = vpop.f32.mrb[0].mxu0
    %v3640 = vadd.f32 %v3447, %v3639
    %v3641 = vpop.f32.mrb[0].mxu0
    %v3642 = vadd.f32 %v3449, %v3641
    %v3643 = vpop.f32.mrb[0].mxu0
    %v3644 = vadd.f32 %v3451, %v3643
    %3645 = vmatprep.mubr.bf16.mxu0 %v3289
    %3646 = vmatmul.mubr.bf16.gmra.mrb[0].mxu0 %v3288
    %v3647 = vpop.f32.mrb[0].mxu0
    %v3648 = vadd.f32 %v3455, %v3647
    %v3649 = vpop.f32.mrb[0].mxu0
    %v3650 = vadd.f32 %v3457, %v3649
    %v3651 = vpop.f32.mrb[0].mxu0
    %v3652 = vadd.f32 %v3459, %v3651
    %v3653 = vpop.f32.mrb[0].mxu0
    %v3654 = vadd.f32 %v3461, %v3653
    %3655 = vmatprep.mubr.bf16.mxu0 %v3293
    %3656 = vmatmul.mubr.bf16.gmra.mrb[0].mxu0 %v3292
    %v3657 = vpop.f32.mrb[0].mxu0
    %v3658 = vadd.f32 %v3465, %v3657
    %v3659 = vpop.f32.mrb[0].mxu0
    %v3660 = vadd.f32 %v3467, %v3659
    %v3661 = vpop.f32.mrb[0].mxu0
    %v3662 = vadd.f32 %v3469, %v3661
    %v3663 = vpop.f32.mrb[0].mxu0
    %v3664 = vadd.f32 %v3471, %v3663
    %3665 = vmatprep.mubr.bf16.mxu0 %v3297
    %3666 = vmatmul.mubr.bf16.gmra.mrb[0].mxu0 %v3296
    %v3667 = vpop.f32.mrb[0].mxu0
    %v3668 = vadd.f32 %v3475, %v3667
    %v3669 = vpop.f32.mrb[0].mxu0
    %v3670 = vadd.f32 %v3477, %v3669
    %v3671 = vpop.f32.mrb[0].mxu0
    %v3672 = vadd.f32 %v3479, %v3671
    %v3673 = vpop.f32.mrb[0].mxu0
    %v3674 = vadd.f32 %v3481, %v3673
    %3675 = vmatprep.mubr.bf16.mxu0 %v3301
    %3676 = vmatmul.mubr.bf16.gmra.mrb[0].mxu0 %v3300
    %v3677 = vpop.f32.mrb[0].mxu0
    %v3678 = vadd.f32 %v3485, %v3677
    %v3679 = vpop.f32.mrb[0].mxu0
    %v3680 = vadd.f32 %v3487, %v3679
    %v3681 = vpop.f32.mrb[0].mxu0
    %v3682 = vadd.f32 %v3489, %v3681
    %v3683 = vpop.f32.mrb[0].mxu0
    %v3684 = vadd.f32 %v3491, %v3683
    %3685 = vmatprep.mubr.bf16.mxu0 %v3305
    %3686 = vmatmul.mubr.bf16.gmra.mrb[0].mxu0 %v3304
    %v3687 = vpop.f32.mrb[0].mxu0
    %v3688 = vadd.f32 %v3495, %v3687
    %v3689 = vpop.f32.mrb[0].mxu0
    %v3690 = vadd.f32 %v3497, %v3689
    %v3691 = vpop.f32.mrb[0].mxu0
    %v3692 = vadd.f32 %v3499, %v3691
    %v3693 = vpop.f32.mrb[0].mxu0
    %v3694 = vadd.f32 %v3501, %v3693
    %3695 = vmatprep.mubr.bf16.mxu0 %v3309
    %3696 = vmatmul.mubr.bf16.gmra.mrb[0].mxu0 %v3308
    %v3697 = vpop.f32.mrb[0].mxu0
    %v3698 = vadd.f32 %v3505, %v3697
    %v3699 = vpop.f32.mrb[0].mxu0
    %v3700 = vadd.f32 %v3507, %v3699
    %v3701 = vpop.f32.mrb[0].mxu0
    %v3702 = vadd.f32 %v3509, %v3701
    %v3703 = vpop.f32.mrb[0].mxu0
    %v3704 = vadd.f32 %v3511, %v3703
    %3705 = vmatprep.mubr.bf16.mxu0 %v3313
    %3706 = vmatmul.mubr.bf16.gmra.mrb[0].mxu0 %v3312
    %v3707 = vpop.f32.mrb[0].mxu0
    %v3708 = vadd.f32 %v3515, %v3707
    %v3709 = vpop.f32.mrb[0].mxu0
    %v3710 = vadd.f32 %v3517, %v3709
    %v3711 = vpop.f32.mrb[0].mxu0
    %v3712 = vadd.f32 %v3519, %v3711
    %v3713 = vpop.f32.mrb[0].mxu0
    %v3714 = vadd.f32 %v3521, %v3713
    %3715 = vmatprep.mubr.bf16.mxu0 %v3317
    %3716 = vmatmul.mubr.bf16.gmra.mrb[0].mxu0 %v3316
    %v3717 = vpop.f32.mrb[0].mxu0
    %v3718 = vadd.f32 %v3525, %v3717
    %v3719 = vpop.f32.mrb[0].mxu0
    %v3720 = vadd.f32 %v3527, %v3719
    %v3721 = vpop.f32.mrb[0].mxu0
    %v3722 = vadd.f32 %v3529, %v3721
    %v3723 = vpop.f32.mrb[0].mxu0
    %v3724 = vadd.f32 %v3531, %v3723
    %3725 = vmatprep.mubr.bf16.mxu0 %v3321
    %3726 = vmatmul.mubr.bf16.gmra.mrb[0].mxu0 %v3320
    %v3727 = vpop.f32.mrb[0].mxu0
    %v3728 = vadd.f32 %v3535, %v3727
    %v3729 = vpop.f32.mrb[0].mxu0
    %v3730 = vadd.f32 %v3537, %v3729
    %v3731 = vpop.f32.mrb[0].mxu0
    %v3732 = vadd.f32 %v3539, %v3731
    %v3733 = vpop.f32.mrb[0].mxu0
    %v3734 = vadd.f32 %v3541, %v3733
    %3735 = vmatprep.mubr.bf16.mxu0 %v3325
    %3736 = vmatmul.mubr.bf16.gmra.mrb[0].mxu0 %v3324
    %v3737 = vpop.f32.mrb[0].mxu0
    %v3738 = vadd.f32 %v3545, %v3737
    %v3739 = vpop.f32.mrb[0].mxu0
    %v3740 = vadd.f32 %v3547, %v3739
    %v3741 = vpop.f32.mrb[0].mxu0
    %v3742 = vadd.f32 %v3549, %v3741
    %v3743 = vpop.f32.mrb[0].mxu0
    %v3744 = vadd.f32 %v3551, %v3743
    %3745 = vmatprep.mubr.bf16.mxu0 %v3329
    %3746 = vmatmul.mubr.bf16.gmra.mrb[0].mxu0 %v3328
    %v3747 = vpop.f32.mrb[0].mxu0
    %v3748 = vadd.f32 %v3555, %v3747
    %v3749 = vpop.f32.mrb[0].mxu0
    %v3750 = vadd.f32 %v3557, %v3749
    %v3751 = vpop.f32.mrb[0].mxu0
    %v3752 = vadd.f32 %v3559, %v3751
    %v3753 = vpop.f32.mrb[0].mxu0
    %v3754 = vadd.f32 %v3561, %v3753
    %3755 = vmatprep.mubr.bf16.mxu0 %v3333
    %3756 = vmatmul.mubr.bf16.gmra.mrb[0].mxu0 %v3332
    %v3757 = vpop.f32.mrb[0].mxu0
    %v3758 = vadd.f32 %v3565, %v3757
    %v3759 = vpop.f32.mrb[0].mxu0
    %v3760 = vadd.f32 %v3567, %v3759
    %v3761 = vpop.f32.mrb[0].mxu0
    %v3762 = vadd.f32 %v3569, %v3761
    %v3763 = vpop.f32.mrb[0].mxu0
    %v3764 = vadd.f32 %v3571, %v3763
    %3765 = vmatprep.mubr.bf16.mxu0 %v3337
    %3766 = vmatmul.mubr.bf16.gmra.mrb[0].mxu0 %v3336
    %v3767 = vpop.f32.mrb[0].mxu0
    %v3768 = vadd.f32 %v3575, %v3767
    %v3769 = vpop.f32.mrb[0].mxu0
    %v3770 = vadd.f32 %v3577, %v3769
    %v3771 = vpop.f32.mrb[0].mxu0
    %v3772 = vadd.f32 %v3579, %v3771
    %v3773 = vpop.f32.mrb[0].mxu0
    %v3774 = vadd.f32 %v3581, %v3773
    %3775 = vmatprep.mubr.bf16.mxu0 %v3341
    %3776 = vmatmul.mubr.bf16.gmra.mrb[0].mxu0 %v3340
    %v3777 = vpop.f32.mrb[0].mxu0
    %v3778 = vadd.f32 %v3585, %v3777
    %v3779 = vpop.f32.mrb[0].mxu0
    %v3780 = vadd.f32 %v3587, %v3779
    %v3781 = vpop.f32.mrb[0].mxu0
    %v3782 = vadd.f32 %v3589, %v3781
    %v3783 = vpop.f32.mrb[0].mxu0
    %v3784 = vadd.f32 %v3591, %v3783
    %3785 = vmatprep.mubr.bf16.mxu0 %v3345
    %3786 = vmatmul.mubr.bf16.gmra.mrb[0].mxu0 %v3344
    %v3787 = vpop.f32.mrb[0].mxu0
    %v3788 = vadd.f32 %v3595, %v3787
    %v3789 = vpop.f32.mrb[0].mxu0
    %v3790 = vadd.f32 %v3597, %v3789
    %v3791 = vpop.f32.mrb[0].mxu0
    %v3792 = vadd.f32 %v3599, %v3791
    %v3793 = vpop.f32.mrb[0].mxu0
    %v3794 = vadd.f32 %v3601, %v3793
    %3795 = vdwg.mxu0
    %3796 = vmatprep.subr.bf16.mxu0 %v2773
    %3797 = vmatpush1.bf16.msra.mxu0 %v2772
    %3798 = vmatprep.subr.bf16.mxu0 %v2777
    %3799 = vmatpush1.bf16.msra.mxu0 %v2776
    %3800 = vmatprep.subr.bf16.mxu0 %v2781
    %3801 = vmatpush1.bf16.msra.mxu0 %v2780
    %3802 = vmatprep.subr.bf16.mxu0 %v2785
    %3803 = vmatpush1.bf16.msra.mxu0 %v2784
    %3804 = vmatprep.subr.bf16.mxu0 %v2789
    %3805 = vmatpush1.bf16.msra.mxu0 %v2788
    %3806 = vmatprep.subr.bf16.mxu0 %v2793
    %3807 = vmatpush1.bf16.msra.mxu0 %v2792
    %3808 = vmatprep.subr.bf16.mxu0 %v2797
    %3809 = vmatpush1.bf16.msra.mxu0 %v2796
    %3810 = vmatprep.subr.bf16.mxu0 %v2801
    %3811 = vmatpush1.bf16.msra.mxu0 %v2800
    %3812 = vmatprep.subr.bf16.mxu0 %v2805
    %3813 = vmatpush1.bf16.msra.mxu0 %v2804
    %3814 = vmatprep.subr.bf16.mxu0 %v2809
    %3815 = vmatpush1.bf16.msra.mxu0 %v2808
    %3816 = vmatprep.subr.bf16.mxu0 %v2813
    %3817 = vmatpush1.bf16.msra.mxu0 %v2812
    %3818 = vmatprep.subr.bf16.mxu0 %v2817
    %3819 = vmatpush1.bf16.msra.mxu0 %v2816
    %3820 = vmatprep.subr.bf16.mxu0 %v2821
    %3821 = vmatpush1.bf16.msra.mxu0 %v2820
    %3822 = vmatprep.subr.bf16.mxu0 %v2825
    %3823 = vmatpush1.bf16.msra.mxu0 %v2824
    %3824 = vmatprep.subr.bf16.mxu0 %v2829
    %3825 = vmatpush1.bf16.msra.mxu0 %v2828
    %3826 = vmatprep.subr.bf16.mxu0 %v2833
    %3827 = vmatpush1.bf16.msra.mxu0 %v2832
    %3828 = vmatprep.mubr.bf16.mxu0 %v3283
    %3829 = vmatmul.mubr.bf16.gmra.mrb[0].mxu0 %v3282
    %v3830 = vpop.f32.mrb[0].mxu0
    %v3831 = vadd.f32 %v2933, %v3830
    %v3832 = vpop.f32.mrb[0].mxu0
    %v3833 = vadd.f32 %v2933, %v3832
    %v3834 = vpop.f32.mrb[0].mxu0
    %v3835 = vadd.f32 %v2938, %v3834
    %v3836 = vpop.f32.mrb[0].mxu0
    %v3837 = vadd.f32 %v2938, %v3836
    %3838 = vmatprep.mubr.bf16.mxu0 %v3287
    %3839 = vmatmul.mubr.bf16.gmra.mrb[0].mxu0 %v3286
    %v3840 = vpop.f32.mrb[0].mxu0
    %v3841 = vadd.f32 %v2943, %v3840
    %v3842 = vpop.f32.mrb[0].mxu0
    %v3843 = vadd.f32 %v2943, %v3842
    %v3844 = vpop.f32.mrb[0].mxu0
    %v3845 = vadd.f32 %v2948, %v3844
    %v3846 = vpop.f32.mrb[0].mxu0
    %v3847 = vadd.f32 %v2948, %v3846
    %3848 = vmatprep.mubr.bf16.mxu0 %v3291
    %3849 = vmatmul.mubr.bf16.gmra.mrb[0].mxu0 %v3290
    %v3850 = vpop.f32.mrb[0].mxu0
    %v3851 = vadd.f32 %v2953, %v3850
    %v3852 = vpop.f32.mrb[0].mxu0
    %v3853 = vadd.f32 %v2953, %v3852
    %v3854 = vpop.f32.mrb[0].mxu0
    %v3855 = vadd.f32 %v2958, %v3854
    %v3856 = vpop.f32.mrb[0].mxu0
    %v3857 = vadd.f32 %v2958, %v3856
    %3858 = vmatprep.mubr.bf16.mxu0 %v3295
    %3859 = vmatmul.mubr.bf16.gmra.mrb[0].mxu0 %v3294
    %v3860 = vpop.f32.mrb[0].mxu0
    %v3861 = vadd.f32 %v2963, %v3860
    %v3862 = vpop.f32.mrb[0].mxu0
    %v3863 = vadd.f32 %v2963, %v3862
    %v3864 = vpop.f32.mrb[0].mxu0
    %v3865 = vadd.f32 %v2968, %v3864
    %v3866 = vpop.f32.mrb[0].mxu0
    %v3867 = vadd.f32 %v2968, %v3866
    %3868 = vmatprep.mubr.bf16.mxu0 %v3299
    %3869 = vmatmul.mubr.bf16.gmra.mrb[0].mxu0 %v3298
    %v3870 = vpop.f32.mrb[0].mxu0
    %v3871 = vadd.f32 %v2973, %v3870
    %v3872 = vpop.f32.mrb[0].mxu0
    %v3873 = vadd.f32 %v2973, %v3872
    %v3874 = vpop.f32.mrb[0].mxu0
    %v3875 = vadd.f32 %v2978, %v3874
    %v3876 = vpop.f32.mrb[0].mxu0
    %v3877 = vadd.f32 %v2978, %v3876
    %3878 = vmatprep.mubr.bf16.mxu0 %v3303
    %3879 = vmatmul.mubr.bf16.gmra.mrb[0].mxu0 %v3302
    %v3880 = vpop.f32.mrb[0].mxu0
    %v3881 = vadd.f32 %v2983, %v3880
    %v3882 = vpop.f32.mrb[0].mxu0
    %v3883 = vadd.f32 %v2983, %v3882
    %v3884 = vpop.f32.mrb[0].mxu0
    %v3885 = vadd.f32 %v2988, %v3884
    %v3886 = vpop.f32.mrb[0].mxu0
    %v3887 = vadd.f32 %v2988, %v3886
    %3888 = vmatprep.mubr.bf16.mxu0 %v3307
    %3889 = vmatmul.mubr.bf16.gmra.mrb[0].mxu0 %v3306
    %v3890 = vpop.f32.mrb[0].mxu0
    %v3891 = vadd.f32 %v2993, %v3890
    %v3892 = vpop.f32.mrb[0].mxu0
    %v3893 = vadd.f32 %v2993, %v3892
    %v3894 = vpop.f32.mrb[0].mxu0
    %v3895 = vadd.f32 %v2998, %v3894
    %v3896 = vpop.f32.mrb[0].mxu0
    %v3897 = vadd.f32 %v2998, %v3896
    %3898 = vmatprep.mubr.bf16.mxu0 %v3311
    %3899 = vmatmul.mubr.bf16.gmra.mrb[0].mxu0 %v3310
    %v3900 = vpop.f32.mrb[0].mxu0
    %v3901 = vadd.f32 %v3003, %v3900
    %v3902 = vpop.f32.mrb[0].mxu0
    %v3903 = vadd.f32 %v3003, %v3902
    %v3904 = vpop.f32.mrb[0].mxu0
    %v3905 = vadd.f32 %v3008, %v3904
    %v3906 = vpop.f32.mrb[0].mxu0
    %v3907 = vadd.f32 %v3008, %v3906
    %3908 = vmatprep.mubr.bf16.mxu0 %v3315
    %3909 = vmatmul.mubr.bf16.gmra.mrb[0].mxu0 %v3314
    %v3910 = vpop.f32.mrb[0].mxu0
    %v3911 = vadd.f32 %v3013, %v3910
    %v3912 = vpop.f32.mrb[0].mxu0
    %v3913 = vadd.f32 %v3013, %v3912
    %v3914 = vpop.f32.mrb[0].mxu0
    %v3915 = vadd.f32 %v3018, %v3914
    %v3916 = vpop.f32.mrb[0].mxu0
    %v3917 = vadd.f32 %v3018, %v3916
    %3918 = vmatprep.mubr.bf16.mxu0 %v3319
    %3919 = vmatmul.mubr.bf16.gmra.mrb[0].mxu0 %v3318
    %v3920 = vpop.f32.mrb[0].mxu0
    %v3921 = vadd.f32 %v3023, %v3920
    %v3922 = vpop.f32.mrb[0].mxu0
    %v3923 = vadd.f32 %v3023, %v3922
    %v3924 = vpop.f32.mrb[0].mxu0
    %v3925 = vadd.f32 %v3028, %v3924
    %v3926 = vpop.f32.mrb[0].mxu0
    %v3927 = vadd.f32 %v3028, %v3926
    %3928 = vmatprep.mubr.bf16.mxu0 %v3323
    %3929 = vmatmul.mubr.bf16.gmra.mrb[0].mxu0 %v3322
    %v3930 = vpop.f32.mrb[0].mxu0
    %v3931 = vadd.f32 %v3033, %v3930
    %v3932 = vpop.f32.mrb[0].mxu0
    %v3933 = vadd.f32 %v3033, %v3932
    %v3934 = vpop.f32.mrb[0].mxu0
    %v3935 = vadd.f32 %v3038, %v3934
    %v3936 = vpop.f32.mrb[0].mxu0
    %v3937 = vadd.f32 %v3038, %v3936
    %3938 = vmatprep.mubr.bf16.mxu0 %v3327
    %3939 = vmatmul.mubr.bf16.gmra.mrb[0].mxu0 %v3326
    %v3940 = vpop.f32.mrb[0].mxu0
    %v3941 = vadd.f32 %v3043, %v3940
    %v3942 = vpop.f32.mrb[0].mxu0
    %v3943 = vadd.f32 %v3043, %v3942
    %v3944 = vpop.f32.mrb[0].mxu0
    %v3945 = vadd.f32 %v3048, %v3944
    %v3946 = vpop.f32.mrb[0].mxu0
    %v3947 = vadd.f32 %v3048, %v3946
    %3948 = vmatprep.mubr.bf16.mxu0 %v3331
    %3949 = vmatmul.mubr.bf16.gmra.mrb[0].mxu0 %v3330
    %v3950 = vpop.f32.mrb[0].mxu0
    %v3951 = vadd.f32 %v3053, %v3950
    %v3952 = vpop.f32.mrb[0].mxu0
    %v3953 = vadd.f32 %v3053, %v3952
    %v3954 = vpop.f32.mrb[0].mxu0
    %v3955 = vadd.f32 %v3058, %v3954
    %v3956 = vpop.f32.mrb[0].mxu0
    %v3957 = vadd.f32 %v3058, %v3956
    %3958 = vmatprep.mubr.bf16.mxu0 %v3335
    %3959 = vmatmul.mubr.bf16.gmra.mrb[0].mxu0 %v3334
    %v3960 = vpop.f32.mrb[0].mxu0
    %v3961 = vadd.f32 %v3063, %v3960
    %v3962 = vpop.f32.mrb[0].mxu0
    %v3963 = vadd.f32 %v3063, %v3962
    %v3964 = vpop.f32.mrb[0].mxu0
    %v3965 = vadd.f32 %v3068, %v3964
    %v3966 = vpop.f32.mrb[0].mxu0
    %v3967 = vadd.f32 %v3068, %v3966
    %3968 = vmatprep.mubr.bf16.mxu0 %v3339
    %3969 = vmatmul.mubr.bf16.gmra.mrb[0].mxu0 %v3338
    %v3970 = vpop.f32.mrb[0].mxu0
    %v3971 = vadd.f32 %v3073, %v3970
    %v3972 = vpop.f32.mrb[0].mxu0
    %v3973 = vadd.f32 %v3073, %v3972
    %v3974 = vpop.f32.mrb[0].mxu0
    %v3975 = vadd.f32 %v3078, %v3974
    %v3976 = vpop.f32.mrb[0].mxu0
    %v3977 = vadd.f32 %v3078, %v3976
    %3978 = vmatprep.mubr.bf16.mxu0 %v3343
    %3979 = vmatmul.mubr.bf16.gmra.mrb[0].mxu0 %v3342
    %v3980 = vpop.f32.mrb[0].mxu0
    %v3981 = vadd.f32 %v3083, %v3980
    %v3982 = vpop.f32.mrb[0].mxu0
    %v3983 = vadd.f32 %v3083, %v3982
    %v3984 = vpop.f32.mrb[0].mxu0
    %v3985 = vadd.f32 %v3088, %v3984
    %v3986 = vpop.f32.mrb[0].mxu0
    %v3987 = vadd.f32 %v3088, %v3986
    %3988 = vdwg.mxu0
    %3989 = vmatprep.subr.bf16.mxu0 %v2837
    %3990 = vmatpush1.bf16.msra.mxu0 %v2836
    %3991 = vmatprep.subr.bf16.mxu0 %v2841
    %3992 = vmatpush1.bf16.msra.mxu0 %v2840
    %3993 = vmatprep.subr.bf16.mxu0 %v2845
    %3994 = vmatpush1.bf16.msra.mxu0 %v2844
    %3995 = vmatprep.subr.bf16.mxu0 %v2849
    %3996 = vmatpush1.bf16.msra.mxu0 %v2848
    %3997 = vmatprep.subr.bf16.mxu0 %v2853
    %3998 = vmatpush1.bf16.msra.mxu0 %v2852
    %3999 = vmatprep.subr.bf16.mxu0 %v2857
    %4000 = vmatpush1.bf16.msra.mxu0 %v2856
    %4001 = vmatprep.subr.bf16.mxu0 %v2861
    %4002 = vmatpush1.bf16.msra.mxu0 %v2860
    %4003 = vmatprep.subr.bf16.mxu0 %v2865
    %4004 = vmatpush1.bf16.msra.mxu0 %v2864
    %4005 = vmatprep.subr.bf16.mxu0 %v2869
    %4006 = vmatpush1.bf16.msra.mxu0 %v2868
    %4007 = vmatprep.subr.bf16.mxu0 %v2873
    %4008 = vmatpush1.bf16.msra.mxu0 %v2872
    %4009 = vmatprep.subr.bf16.mxu0 %v2877
    %4010 = vmatpush1.bf16.msra.mxu0 %v2876
    %4011 = vmatprep.subr.bf16.mxu0 %v2881
    %4012 = vmatpush1.bf16.msra.mxu0 %v2880
    %4013 = vmatprep.subr.bf16.mxu0 %v2885
    %4014 = vmatpush1.bf16.msra.mxu0 %v2884
    %4015 = vmatprep.subr.bf16.mxu0 %v2889
    %4016 = vmatpush1.bf16.msra.mxu0 %v2888
    %4017 = vmatprep.subr.bf16.mxu0 %v2893
    %4018 = vmatpush1.bf16.msra.mxu0 %v2892
    %4019 = vmatprep.subr.bf16.mxu0 %v2897
    %4020 = vmatpush1.bf16.msra.mxu0 %v2896
    %4021 = vmatprep.mubr.bf16.mxu0 %v3285
    %4022 = vmatmul.mubr.bf16.gmra.mrb[0].mxu0 %v3284
    %v4023 = vpop.f32.mrb[0].mxu0
    %v4024 = vadd.f32 %v3831, %v4023
    %v4025 = vpop.f32.mrb[0].mxu0
    %v4026 = vadd.f32 %v3833, %v4025
    %v4027 = vpop.f32.mrb[0].mxu0
    %v4028 = vadd.f32 %v3835, %v4027
    %v4029 = vpop.f32.mrb[0].mxu0
    %v4030 = vadd.f32 %v3837, %v4029
    %4031 = vmatprep.mubr.bf16.mxu0 %v3289
    %4032 = vmatmul.mubr.bf16.gmra.mrb[0].mxu0 %v3288
    %v4033 = vpop.f32.mrb[0].mxu0
    %v4034 = vadd.f32 %v3841, %v4033
    %v4035 = vpop.f32.mrb[0].mxu0
    %v4036 = vadd.f32 %v3843, %v4035
    %v4037 = vpop.f32.mrb[0].mxu0
    %v4038 = vadd.f32 %v3845, %v4037
    %v4039 = vpop.f32.mrb[0].mxu0
    %v4040 = vadd.f32 %v3847, %v4039
    %4041 = vmatprep.mubr.bf16.mxu0 %v3293
    %4042 = vmatmul.mubr.bf16.gmra.mrb[0].mxu0 %v3292
    %v4043 = vpop.f32.mrb[0].mxu0
    %v4044 = vadd.f32 %v3851, %v4043
    %v4045 = vpop.f32.mrb[0].mxu0
    %v4046 = vadd.f32 %v3853, %v4045
    %v4047 = vpop.f32.mrb[0].mxu0
    %v4048 = vadd.f32 %v3855, %v4047
    %v4049 = vpop.f32.mrb[0].mxu0
    %v4050 = vadd.f32 %v3857, %v4049
    %4051 = vmatprep.mubr.bf16.mxu0 %v3297
    %4052 = vmatmul.mubr.bf16.gmra.mrb[0].mxu0 %v3296
    %v4053 = vpop.f32.mrb[0].mxu0
    %v4054 = vadd.f32 %v3861, %v4053
    %v4055 = vpop.f32.mrb[0].mxu0
    %v4056 = vadd.f32 %v3863, %v4055
    %v4057 = vpop.f32.mrb[0].mxu0
    %v4058 = vadd.f32 %v3865, %v4057
    %v4059 = vpop.f32.mrb[0].mxu0
    %v4060 = vadd.f32 %v3867, %v4059
    %4061 = vmatprep.mubr.bf16.mxu0 %v3301
    %4062 = vmatmul.mubr.bf16.gmra.mrb[0].mxu0 %v3300
    %v4063 = vpop.f32.mrb[0].mxu0
    %v4064 = vadd.f32 %v3871, %v4063
    %v4065 = vpop.f32.mrb[0].mxu0
    %v4066 = vadd.f32 %v3873, %v4065
    %v4067 = vpop.f32.mrb[0].mxu0
    %v4068 = vadd.f32 %v3875, %v4067
    %v4069 = vpop.f32.mrb[0].mxu0
    %v4070 = vadd.f32 %v3877, %v4069
    %4071 = vmatprep.mubr.bf16.mxu0 %v3305
    %4072 = vmatmul.mubr.bf16.gmra.mrb[0].mxu0 %v3304
    %v4073 = vpop.f32.mrb[0].mxu0
    %v4074 = vadd.f32 %v3881, %v4073
    %v4075 = vpop.f32.mrb[0].mxu0
    %v4076 = vadd.f32 %v3883, %v4075
    %v4077 = vpop.f32.mrb[0].mxu0
    %v4078 = vadd.f32 %v3885, %v4077
    %v4079 = vpop.f32.mrb[0].mxu0
    %v4080 = vadd.f32 %v3887, %v4079
    %4081 = vmatprep.mubr.bf16.mxu0 %v3309
    %4082 = vmatmul.mubr.bf16.gmra.mrb[0].mxu0 %v3308
    %v4083 = vpop.f32.mrb[0].mxu0
    %v4084 = vadd.f32 %v3891, %v4083
    %v4085 = vpop.f32.mrb[0].mxu0
    %v4086 = vadd.f32 %v3893, %v4085
    %v4087 = vpop.f32.mrb[0].mxu0
    %v4088 = vadd.f32 %v3895, %v4087
    %v4089 = vpop.f32.mrb[0].mxu0
    %v4090 = vadd.f32 %v3897, %v4089
    %4091 = vmatprep.mubr.bf16.mxu0 %v3313
    %4092 = vmatmul.mubr.bf16.gmra.mrb[0].mxu0 %v3312
    %v4093 = vpop.f32.mrb[0].mxu0
    %v4094 = vadd.f32 %v3901, %v4093
    %v4095 = vpop.f32.mrb[0].mxu0
    %v4096 = vadd.f32 %v3903, %v4095
    %v4097 = vpop.f32.mrb[0].mxu0
    %v4098 = vadd.f32 %v3905, %v4097
    %v4099 = vpop.f32.mrb[0].mxu0
    %v4100 = vadd.f32 %v3907, %v4099
    %4101 = vmatprep.mubr.bf16.mxu0 %v3317
    %4102 = vmatmul.mubr.bf16.gmra.mrb[0].mxu0 %v3316
    %v4103 = vpop.f32.mrb[0].mxu0
    %v4104 = vadd.f32 %v3911, %v4103
    %v4105 = vpop.f32.mrb[0].mxu0
    %v4106 = vadd.f32 %v3913, %v4105
    %v4107 = vpop.f32.mrb[0].mxu0
    %v4108 = vadd.f32 %v3915, %v4107
    %v4109 = vpop.f32.mrb[0].mxu0
    %v4110 = vadd.f32 %v3917, %v4109
    %4111 = vmatprep.mubr.bf16.mxu0 %v3321
    %4112 = vmatmul.mubr.bf16.gmra.mrb[0].mxu0 %v3320
    %v4113 = vpop.f32.mrb[0].mxu0
    %v4114 = vadd.f32 %v3921, %v4113
    %v4115 = vpop.f32.mrb[0].mxu0
    %v4116 = vadd.f32 %v3923, %v4115
    %v4117 = vpop.f32.mrb[0].mxu0
    %v4118 = vadd.f32 %v3925, %v4117
    %v4119 = vpop.f32.mrb[0].mxu0
    %v4120 = vadd.f32 %v3927, %v4119
    %4121 = vmatprep.mubr.bf16.mxu0 %v3325
    %4122 = vmatmul.mubr.bf16.gmra.mrb[0].mxu0 %v3324
    %v4123 = vpop.f32.mrb[0].mxu0
    %v4124 = vadd.f32 %v3931, %v4123
    %v4125 = vpop.f32.mrb[0].mxu0
    %v4126 = vadd.f32 %v3933, %v4125
    %v4127 = vpop.f32.mrb[0].mxu0
    %v4128 = vadd.f32 %v3935, %v4127
    %v4129 = vpop.f32.mrb[0].mxu0
    %v4130 = vadd.f32 %v3937, %v4129
    %4131 = vmatprep.mubr.bf16.mxu0 %v3329
    %4132 = vmatmul.mubr.bf16.gmra.mrb[0].mxu0 %v3328
    %v4133 = vpop.f32.mrb[0].mxu0
    %v4134 = vadd.f32 %v3941, %v4133
    %v4135 = vpop.f32.mrb[0].mxu0
    %v4136 = vadd.f32 %v3943, %v4135
    %v4137 = vpop.f32.mrb[0].mxu0
    %v4138 = vadd.f32 %v3945, %v4137
    %v4139 = vpop.f32.mrb[0].mxu0
    %v4140 = vadd.f32 %v3947, %v4139
    %4141 = vmatprep.mubr.bf16.mxu0 %v3333
    %4142 = vmatmul.mubr.bf16.gmra.mrb[0].mxu0 %v3332
    %v4143 = vpop.f32.mrb[0].mxu0
    %v4144 = vadd.f32 %v3951, %v4143
    %v4145 = vpop.f32.mrb[0].mxu0
    %v4146 = vadd.f32 %v3953, %v4145
    %v4147 = vpop.f32.mrb[0].mxu0
    %v4148 = vadd.f32 %v3955, %v4147
    %v4149 = vpop.f32.mrb[0].mxu0
    %v4150 = vadd.f32 %v3957, %v4149
    %4151 = vmatprep.mubr.bf16.mxu0 %v3337
    %4152 = vmatmul.mubr.bf16.gmra.mrb[0].mxu0 %v3336
    %v4153 = vpop.f32.mrb[0].mxu0
    %v4154 = vadd.f32 %v3961, %v4153
    %v4155 = vpop.f32.mrb[0].mxu0
    %v4156 = vadd.f32 %v3963, %v4155
    %v4157 = vpop.f32.mrb[0].mxu0
    %v4158 = vadd.f32 %v3965, %v4157
    %v4159 = vpop.f32.mrb[0].mxu0
    %v4160 = vadd.f32 %v3967, %v4159
    %4161 = vmatprep.mubr.bf16.mxu0 %v3341
    %4162 = vmatmul.mubr.bf16.gmra.mrb[0].mxu0 %v3340
    %v4163 = vpop.f32.mrb[0].mxu0
    %v4164 = vadd.f32 %v3971, %v4163
    %v4165 = vpop.f32.mrb[0].mxu0
    %v4166 = vadd.f32 %v3973, %v4165
    %v4167 = vpop.f32.mrb[0].mxu0
    %v4168 = vadd.f32 %v3975, %v4167
    %v4169 = vpop.f32.mrb[0].mxu0
    %v4170 = vadd.f32 %v3977, %v4169
    %4171 = vmatprep.mubr.bf16.mxu0 %v3345
    %4172 = vmatmul.mubr.bf16.gmra.mrb[0].mxu0 %v3344
    %v4173 = vpop.f32.mrb[0].mxu0
    %v4174 = vadd.f32 %v3981, %v4173
    %v4175 = vpop.f32.mrb[0].mxu0
    %v4176 = vadd.f32 %v3983, %v4175
    %v4177 = vpop.f32.mrb[0].mxu0
    %v4178 = vadd.f32 %v3985, %v4177
    %v4179 = vpop.f32.mrb[0].mxu0
    %v4180 = vadd.f32 %v3987, %v4179
    %4181 = vdwg.mxu0
    %v4182 = vmax.f32 %v3638, 0.0
    %v4183 = vmax.f32 %v3640, 0.0
    %v4184 = vmax.f32 %v4024, 0.0
    %v4185 = vmax.f32 %v4026, 0.0
    %v4186 = vmax.f32 %v3642, 0.0
    %v4187 = vmax.f32 %v3644, 0.0
    %v4188 = vmax.f32 %v4028, 0.0
    %v4189 = vmax.f32 %v4030, 0.0
    %v4190 = vmax.f32 %v3648, 0.0
    %v4191 = vmax.f32 %v3650, 0.0
    %v4192 = vmax.f32 %v4034, 0.0
    %v4193 = vmax.f32 %v4036, 0.0
    %v4194 = vmax.f32 %v3652, 0.0
    %v4195 = vmax.f32 %v3654, 0.0
    %v4196 = vmax.f32 %v4038, 0.0
    %v4197 = vmax.f32 %v4040, 0.0
    %v4198 = vmax.f32 %v3658, 0.0
    %v4199 = vmax.f32 %v3660, 0.0
    %v4200 = vmax.f32 %v4044, 0.0
    %v4201 = vmax.f32 %v4046, 0.0
    %v4202 = vmax.f32 %v3662, 0.0
    %v4203 = vmax.f32 %v3664, 0.0
    %v4204 = vmax.f32 %v4048, 0.0
    %v4205 = vmax.f32 %v4050, 0.0
    %v4206 = vmax.f32 %v3668, 0.0
    %v4207 = vmax.f32 %v3670, 0.0
    %v4208 = vmax.f32 %v4054, 0.0
    %v4209 = vmax.f32 %v4056, 0.0
    %v4210 = vmax.f32 %v3672, 0.0
    %v4211 = vmax.f32 %v3674, 0.0
    %v4212 = vmax.f32 %v4058, 0.0
    %v4213 = vmax.f32 %v4060, 0.0
    %v4214 = vmax.f32 %v3678, 0.0
    %v4215 = vmax.f32 %v3680, 0.0
    %v4216 = vmax.f32 %v4064, 0.0
    %v4217 = vmax.f32 %v4066, 0.0
    %v4218 = vmax.f32 %v3682, 0.0
    %v4219 = vmax.f32 %v3684, 0.0
    %v4220 = vmax.f32 %v4068, 0.0
    %v4221 = vmax.f32 %v4070, 0.0
    %v4222 = vmax.f32 %v3688, 0.0
    %v4223 = vmax.f32 %v3690, 0.0
    %v4224 = vmax.f32 %v4074, 0.0
    %v4225 = vmax.f32 %v4076, 0.0
    %v4226 = vmax.f32 %v3692, 0.0
    %v4227 = vmax.f32 %v3694, 0.0
    %v4228 = vmax.f32 %v4078, 0.0
    %v4229 = vmax.f32 %v4080, 0.0
    %v4230 = vmax.f32 %v3698, 0.0
    %v4231 = vmax.f32 %v3700, 0.0
    %v4232 = vmax.f32 %v4084, 0.0
    %v4233 = vmax.f32 %v4086, 0.0
    %v4234 = vmax.f32 %v3702, 0.0
    %v4235 = vmax.f32 %v3704, 0.0
    %v4236 = vmax.f32 %v4088, 0.0
    %v4237 = vmax.f32 %v4090, 0.0
    %v4238 = vmax.f32 %v3708, 0.0
    %v4239 = vmax.f32 %v3710, 0.0
    %v4240 = vmax.f32 %v4094, 0.0
    %v4241 = vmax.f32 %v4096, 0.0
    %v4242 = vmax.f32 %v3712, 0.0
    %v4243 = vmax.f32 %v3714, 0.0
    %v4244 = vmax.f32 %v4098, 0.0
    %v4245 = vmax.f32 %v4100, 0.0
    %v4246 = vmax.f32 %v3718, 0.0
    %v4247 = vmax.f32 %v3720, 0.0
    %v4248 = vmax.f32 %v4104, 0.0
    %v4249 = vmax.f32 %v4106, 0.0
    %v4250 = vmax.f32 %v3722, 0.0
    %v4251 = vmax.f32 %v3724, 0.0
    %v4252 = vmax.f32 %v4108, 0.0
    %v4253 = vmax.f32 %v4110, 0.0
    %v4254 = vmax.f32 %v3728, 0.0
    %v4255 = vmax.f32 %v3730, 0.0
    %v4256 = vmax.f32 %v4114, 0.0
    %v4257 = vmax.f32 %v4116, 0.0
    %v4258 = vmax.f32 %v3732, 0.0
    %v4259 = vmax.f32 %v3734, 0.0
    %v4260 = vmax.f32 %v4118, 0.0
    %v4261 = vmax.f32 %v4120, 0.0
    %v4262 = vmax.f32 %v3738, 0.0
    %v4263 = vmax.f32 %v3740, 0.0
    %v4264 = vmax.f32 %v4124, 0.0
    %v4265 = vmax.f32 %v4126, 0.0
    %v4266 = vmax.f32 %v3742, 0.0
    %v4267 = vmax.f32 %v3744, 0.0
    %v4268 = vmax.f32 %v4128, 0.0
    %v4269 = vmax.f32 %v4130, 0.0
    %v4270 = vmax.f32 %v3748, 0.0
    %v4271 = vmax.f32 %v3750, 0.0
    %v4272 = vmax.f32 %v4134, 0.0
    %v4273 = vmax.f32 %v4136, 0.0
    %v4274 = vmax.f32 %v3752, 0.0
    %v4275 = vmax.f32 %v3754, 0.0
    %v4276 = vmax.f32 %v4138, 0.0
    %v4277 = vmax.f32 %v4140, 0.0
    %v4278 = vmax.f32 %v3758, 0.0
    %v4279 = vmax.f32 %v3760, 0.0
    %v4280 = vmax.f32 %v4144, 0.0
    %v4281 = vmax.f32 %v4146, 0.0
    %v4282 = vmax.f32 %v3762, 0.0
    %v4283 = vmax.f32 %v3764, 0.0
    %v4284 = vmax.f32 %v4148, 0.0
    %v4285 = vmax.f32 %v4150, 0.0
    %v4286 = vmax.f32 %v3768, 0.0
    %v4287 = vmax.f32 %v3770, 0.0
    %v4288 = vmax.f32 %v4154, 0.0
    %v4289 = vmax.f32 %v4156, 0.0
    %v4290 = vmax.f32 %v3772, 0.0
    %v4291 = vmax.f32 %v3774, 0.0
    %v4292 = vmax.f32 %v4158, 0.0
    %v4293 = vmax.f32 %v4160, 0.0
    %v4294 = vmax.f32 %v3778, 0.0
    %v4295 = vmax.f32 %v3780, 0.0
    %v4296 = vmax.f32 %v4164, 0.0
    %v4297 = vmax.f32 %v4166, 0.0
    %v4298 = vmax.f32 %v3782, 0.0
    %v4299 = vmax.f32 %v3784, 0.0
    %v4300 = vmax.f32 %v4168, 0.0
    %v4301 = vmax.f32 %v4170, 0.0
    %v4302 = vmax.f32 %v3788, 0.0
    %v4303 = vmax.f32 %v3790, 0.0
    %v4304 = vmax.f32 %v4174, 0.0
    %v4305 = vmax.f32 %v4176, 0.0
    %v4306 = vmax.f32 %v3792, 0.0
    %v4307 = vmax.f32 %v3794, 0.0
    %v4308 = vmax.f32 %v4178, 0.0
    %v4309 = vmax.f32 %v4180, 0.0
    %v4310 = vld [vmem:[%s3] sm:$0xff]
    %v4311 = vpack.c.bf16 %v4186, %v4182
    %v4312 = vpack.c.bf16 %v4187, %v4183
    %v4313 = vpack.c.bf16 %v4188, %v4184
    %v4314 = vpack.c.bf16 %v4189, %v4185
    %v4315 = vpack.c.bf16 %v4194, %v4190
    %v4316 = vpack.c.bf16 %v4195, %v4191
    %v4317 = vpack.c.bf16 %v4196, %v4192
    %v4318 = vpack.c.bf16 %v4197, %v4193
    %v4319 = vpack.c.bf16 %v4202, %v4198
    %v4320 = vpack.c.bf16 %v4203, %v4199
    %v4321 = vpack.c.bf16 %v4204, %v4200
    %v4322 = vpack.c.bf16 %v4205, %v4201
    %v4323 = vpack.c.bf16 %v4210, %v4206
    %v4324 = vpack.c.bf16 %v4211, %v4207
    %v4325 = vpack.c.bf16 %v4212, %v4208
    %v4326 = vpack.c.bf16 %v4213, %v4209
    %v4327 = vpack.c.bf16 %v4218, %v4214
    %v4328 = vpack.c.bf16 %v4219, %v4215
    %v4329 = vpack.c.bf16 %v4220, %v4216
    %v4330 = vpack.c.bf16 %v4221, %v4217
    %v4331 = vpack.c.bf16 %v4226, %v4222
    %v4332 = vpack.c.bf16 %v4227, %v4223
    %v4333 = vpack.c.bf16 %v4228, %v4224
    %v4334 = vpack.c.bf16 %v4229, %v4225
    %v4335 = vpack.c.bf16 %v4234, %v4230
    %v4336 = vpack.c.bf16 %v4235, %v4231
    %v4337 = vpack.c.bf16 %v4236, %v4232
    %v4338 = vpack.c.bf16 %v4237, %v4233
    %v4339 = vpack.c.bf16 %v4242, %v4238
    %v4340 = vpack.c.bf16 %v4243, %v4239
    %v4341 = vpack.c.bf16 %v4244, %v4240
    %v4342 = vpack.c.bf16 %v4245, %v4241
    %v4343 = vpack.c.bf16 %v4250, %v4246
    %v4344 = vpack.c.bf16 %v4251, %v4247
    %v4345 = vpack.c.bf16 %v4252, %v4248
    %v4346 = vpack.c.bf16 %v4253, %v4249
    %v4347 = vpack.c.bf16 %v4258, %v4254
    %v4348 = vpack.c.bf16 %v4259, %v4255
    %v4349 = vpack.c.bf16 %v4260, %v4256
    %v4350 = vpack.c.bf16 %v4261, %v4257
    %v4351 = vpack.c.bf16 %v4266, %v4262
    %v4352 = vpack.c.bf16 %v4267, %v4263
    %v4353 = vpack.c.bf16 %v4268, %v4264
    %v4354 = vpack.c.bf16 %v4269, %v4265
    %v4355 = vpack.c.bf16 %v4274, %v4270
    %v4356 = vpack.c.bf16 %v4275, %v4271
    %v4357 = vpack.c.bf16 %v4276, %v4272
    %v4358 = vpack.c.bf16 %v4277, %v4273
    %v4359 = vpack.c.bf16 %v4282, %v4278
    %v4360 = vpack.c.bf16 %v4283, %v4279
    %v4361 = vpack.c.bf16 %v4284, %v4280
    %v4362 = vpack.c.bf16 %v4285, %v4281
    %v4363 = vpack.c.bf16 %v4290, %v4286
    %v4364 = vpack.c.bf16 %v4291, %v4287
    %v4365 = vpack.c.bf16 %v4292, %v4288
    %v4366 = vpack.c.bf16 %v4293, %v4289
    %v4367 = vpack.c.bf16 %v4298, %v4294
    %v4368 = vpack.c.bf16 %v4299, %v4295
    %v4369 = vpack.c.bf16 %v4300, %v4296
    %v4370 = vpack.c.bf16 %v4301, %v4297
    %v4371 = vpack.c.bf16 %v4306, %v4302
    %v4372 = vpack.c.bf16 %v4307, %v4303
    %v4373 = vpack.c.bf16 %v4308, %v4304
    %v4374 = vpack.c.bf16 %v4309, %v4305
    %v4375 = vld [vmem:[%s4] sm:$0xff]
    %4377 = vset.pattern.permute.xlu0 0
    %4378 = vperm.xlu0 %4377, %v4375
    %v4379 = vpop.permute.xlu0 %4378
    %v4382 = vunpack.c.l.b16 %v4310
    %v4383 = vunpack.c.h.b16 %v4310
    %v4384 = vpack.c.b16 %v4382, %v4382
    %v4385 = vpack.c.b16 %v4383, %v4383
    %4388 = vmatprep.subr.bf16.mxu0 %v4312
    %4389 = vmatpush1.bf16.msra.mxu0 %v4311
    %4390 = vmatprep.subr.bf16.mxu0 %v4316
    %4391 = vmatpush1.bf16.msra.mxu0 %v4315
    %4392 = vmatprep.subr.bf16.mxu0 %v4320
    %4393 = vmatpush1.bf16.msra.mxu0 %v4319
    %4394 = vmatprep.subr.bf16.mxu0 %v4324
    %4395 = vmatpush1.bf16.msra.mxu0 %v4323
    %4396 = vmatprep.subr.bf16.mxu0 %v4328
    %4397 = vmatpush1.bf16.msra.mxu0 %v4327
    %4398 = vmatprep.subr.bf16.mxu0 %v4332
    %4399 = vmatpush1.bf16.msra.mxu0 %v4331
    %4400 = vmatprep.subr.bf16.mxu0 %v4336
    %4401 = vmatpush1.bf16.msra.mxu0 %v4335
    %4402 = vmatprep.subr.bf16.mxu0 %v4340
    %4403 = vmatpush1.bf16.msra.mxu0 %v4339
    %4404 = vmatprep.subr.bf16.mxu0 %v4344
    %4405 = vmatpush1.bf16.msra.mxu0 %v4343
    %4406 = vmatprep.subr.bf16.mxu0 %v4348
    %4407 = vmatpush1.bf16.msra.mxu0 %v4347
    %4408 = vmatprep.subr.bf16.mxu0 %v4352
    %4409 = vmatpush1.bf16.msra.mxu0 %v4351
    %4410 = vmatprep.subr.bf16.mxu0 %v4356
    %4411 = vmatpush1.bf16.msra.mxu0 %v4355
    %4412 = vmatprep.subr.bf16.mxu0 %v4360
    %4413 = vmatpush1.bf16.msra.mxu0 %v4359
    %4414 = vmatprep.subr.bf16.mxu0 %v4364
    %4415 = vmatpush1.bf16.msra.mxu0 %v4363
    %4416 = vmatprep.subr.bf16.mxu0 %v4368
    %4417 = vmatpush1.bf16.msra.mxu0 %v4367
    %4418 = vmatprep.subr.bf16.mxu0 %v4372
    %4419 = vmatpush1.bf16.msra.mxu0 %v4371
    %4420 = vmatprep.mubr.bf16.mxu0 %v4385
    %4421 = vmatmul.mubr.bf16.gmra.mrb[0].mxu0 %v4384
    %v4422 = vpop.f32.mrb[0].mxu0
    %v4423 = vadd.f32 %v4379, %v4422
    %v4424 = vpop.f32.mrb[0].mxu0
    %v4425 = vadd.f32 %v4379, %v4424
    %v4426 = vpop.f32.mrb[0].mxu0
    %v4427 = vpop.f32.mrb[0].mxu0
    %4428 = vdwg.mxu0
    %4429 = vmatprep.subr.bf16.mxu0 %v4314
    %4430 = vmatpush1.bf16.msra.mxu0 %v4313
    %4431 = vmatprep.subr.bf16.mxu0 %v4318
    %4432 = vmatpush1.bf16.msra.mxu0 %v4317
    %4433 = vmatprep.subr.bf16.mxu0 %v4322
    %4434 = vmatpush1.bf16.msra.mxu0 %v4321
    %4435 = vmatprep.subr.bf16.mxu0 %v4326
    %4436 = vmatpush1.bf16.msra.mxu0 %v4325
    %4437 = vmatprep.subr.bf16.mxu0 %v4330
    %4438 = vmatpush1.bf16.msra.mxu0 %v4329
    %4439 = vmatprep.subr.bf16.mxu0 %v4334
    %4440 = vmatpush1.bf16.msra.mxu0 %v4333
    %4441 = vmatprep.subr.bf16.mxu0 %v4338
    %4442 = vmatpush1.bf16.msra.mxu0 %v4337
    %4443 = vmatprep.subr.bf16.mxu0 %v4342
    %4444 = vmatpush1.bf16.msra.mxu0 %v4341
    %4445 = vmatprep.subr.bf16.mxu0 %v4346
    %4446 = vmatpush1.bf16.msra.mxu0 %v4345
    %4447 = vmatprep.subr.bf16.mxu0 %v4350
    %4448 = vmatpush1.bf16.msra.mxu0 %v4349
    %4449 = vmatprep.subr.bf16.mxu0 %v4354
    %4450 = vmatpush1.bf16.msra.mxu0 %v4353
    %4451 = vmatprep.subr.bf16.mxu0 %v4358
    %4452 = vmatpush1.bf16.msra.mxu0 %v4357
    %4453 = vmatprep.subr.bf16.mxu0 %v4362
    %4454 = vmatpush1.bf16.msra.mxu0 %v4361
    %4455 = vmatprep.subr.bf16.mxu0 %v4366
    %4456 = vmatpush1.bf16.msra.mxu0 %v4365
    %4457 = vmatprep.subr.bf16.mxu0 %v4370
    %4458 = vmatpush1.bf16.msra.mxu0 %v4369
    %4459 = vmatprep.subr.bf16.mxu0 %v4374
    %4460 = vmatpush1.bf16.msra.mxu0 %v4373
    %4461 = vmatprep.mubr.bf16.mxu0 %v4385
    %4462 = vmatmul.mubr.bf16.gmra.mrb[0].mxu0 %v4384
    %v4463 = vpop.f32.mrb[0].mxu0
    %v4464 = vadd.f32 %v4379, %v4463
    %v4465 = vpop.f32.mrb[0].mxu0
    %v4466 = vadd.f32 %v4379, %v4465
    %v4467 = vpop.f32.mrb[0].mxu0
    %v4468 = vpop.f32.mrb[0].mxu0
    %4469 = vdwg.mxu0
    %v4474 = vrot.slane %v4423, 1
    %v4475 = vrot.slane %v4425, 1
    %v4476 = vrot.slane %v4464, 1
    %v4477 = vrot.slane %v4466, 1
    %v4482 = vmul.f32 %v4423, %v4474
    %v4483 = vmul.f32 %v4425, %v4475
    %v4484 = vmul.f32 %v4464, %v4476
    %v4485 = vmul.f32 %v4466, %v4477
    %v4490 = vcombine.low %v4482, %v4483
    %v4491 = vcombine.low %v4484, %v4485
    %v4493 = vunpack.c.l.s4 1966171168
    %v4494 = vunpack.c.0.s8 %v4493
    %v4495 = vlaneseq
    %v4496 = vshrl.u32 %v4495, 7
    %v4497 = vsub.s32 %v4494, %v4496
    %v4498 = vrot.slane %v4490, %v4497
    %v4500 = vunpack.c.l.s4 1966171168
    %v4501 = vunpack.c.0.s8 %v4500
    %v4502 = vlaneseq
    %v4503 = vshrl.u32 %v4502, 7
    %v4504 = vsub.s32 %v4501, %v4503
    %v4505 = vrot.slane %v4491, %v4504
    %v4506 = vcombine.low %v4498, %v4505
    %v4508 = vunpack.c.l.s4 1966171168
    %v4509 = vunpack.c.0.s8 %v4508
    %v4510 = vlaneseq
    %v4511 = vshrl.u32 %v4510, 7
    %v4512 = vsub.s32 %v4509, %v4511
    %v4513 = vrot.slane %v4506, %v4512
    %v4515 = vlaneseq
    %vm4516 = vcmp.ge.s32.totalorder %v4515, 0
    %vm4517 = vcmp.lt.s32.totalorder %v4515, 512
    %vm4518 = vmand %vm4516, %vm4517
    %4519 = vst.msk [vmem:[%s9] sm:$0xf] %vm4518, %v4513
    // Predicated region
    $region34: #{att_pool_forward.2} parent=1 // pred_check
      _
    $region35: #{att_pool_forward.2} parent=1 // pred_check_branch
      %4521 = sbr.rel (0) target = $region37
    $region36: #{att_pool_forward.2} parent=1 // pred_region
      _
    $region37: #{att_pool_forward.2} parent=1 // pred_fallthru
      _
    // Predicated region
    $region38: #{att_pool_forward.2} parent=1 // pred_check
      _
    $region39: #{att_pool_forward.2} parent=1 // pred_check_branch
      %4523 = sbr.rel (0) target = $region41
    $region40: #{att_pool_forward.2} parent=1 // pred_region
      _
    $region41: #{att_pool_forward.2} parent=1 // pred_fallthru
      _

// kernel: att_pool_forward.1
$region0: #{att_pool_forward.1}
  #allocation0 [shape = 'u32[]', space=smem, size = 0x4, offset = 0x4, fixed_abs, tag = 'smem constant byte address 0x4 - core index']
  #allocation1 [shape = 'u32[144,128]{1,0:T(1,128)}', space=vmem, size = 0x12000, scoped, tag = 'internal scratch']
  %s0 = inlined_call_operand.vmem [shape: bf16[128,512], index: 0, kind: input, shape index: {}]
  %s1 = inlined_call_operand.vmem [shape: bf16[512,128], index: 1, kind: input, shape index: {}]
  %s2 = inlined_call_operand.vmem [shape: bf16[256,512], index: 2, kind: input, shape index: {}]
  %s3 = inlined_call_operand.vmem [shape: f32[256,1], index: 3, kind: input, shape index: {}]
  %s4 = inlined_call_operand.vmem [shape: bf16[8,256], index: 4, kind: input, shape index: {}]
  %s5 = inlined_call_operand.vmem [shape: f32[8,1], index: 5, kind: input, shape index: {}]
  %s6 = inlined_call_operand.vmem [shape: f32[1,512], index: 6, kind: output, shape index: {}]
  %s7 = sld [smem:[#allocation0]]
  $region34: #{att_pool_forward.1} parent=0
    _
  %s9 = ssub.s32 1, %s7
  %s10 = scalar_select 0, %s9, %s7
  // Predicated region
  $region2: #{att_pool_forward.1} parent=0 // pred_check
    _
  $region3: #{att_pool_forward.1} parent=0 // pred_check_branch
    %12 = sbr.rel (0) target = $region5
  $region4: #{att_pool_forward.1} parent=0 // pred_region
    _
  $region5: #{att_pool_forward.1} parent=0 // pred_fallthru
    _
  // Predicated region
  $region6: #{att_pool_forward.1} parent=0 // pred_check
    _
  $region7: #{att_pool_forward.1} parent=0 // pred_check_branch
    %14 = sbr.rel (0) target = $region9
  $region8: #{att_pool_forward.1} parent=0 // pred_region
    _
  $region9: #{att_pool_forward.1} parent=0 // pred_fallthru
    _
  // Predicated region
  $region10: #{att_pool_forward.1} parent=0 // pred_check
    _
  $region11: #{att_pool_forward.1} parent=0 // pred_check_branch
    %16 = sbr.rel (0) target = $region13
  $region12: #{att_pool_forward.1} parent=0 // pred_region
    _
  $region13: #{att_pool_forward.1} parent=0 // pred_fallthru
    _
  // Predicated region
  $region14: #{att_pool_forward.1} parent=0 // pred_check
    _
  $region15: #{att_pool_forward.1} parent=0 // pred_check_branch
    %18 = sbr.rel (0) target = $region17
  $region16: #{att_pool_forward.1} parent=0 // pred_region
    _
  $region17: #{att_pool_forward.1} parent=0 // pred_fallthru
    _
  // Predicated region
  $region18: #{att_pool_forward.1} parent=0 // pred_check
    _
  $region19: #{att_pool_forward.1} parent=0 // pred_check_branch
    %20 = sbr.rel (0) target = $region21
  $region20: #{att_pool_forward.1} parent=0 // pred_region
    _
  $region21: #{att_pool_forward.1} parent=0 // pred_fallthru
    _
  // Predicated region
  $region22: #{att_pool_forward.1} parent=0 // pred_check
    _
  $region23: #{att_pool_forward.1} parent=0 // pred_check_branch
    %22 = sbr.rel (0) target = $region25
  $region24: #{att_pool_forward.1} parent=0 // pred_region
    _
  $region25: #{att_pool_forward.1} parent=0 // pred_fallthru
    _
  %v24 = vld [vmem:[%s1] sm:$0xf]
  %v25 = vld [vmem:[%s1 + $0x4] sm:$0xf]
  %v26 = vld [vmem:[%s1 + $0x8] sm:$0xf]
  %v27 = vld [vmem:[%s1 + $0xc] sm:$0xf]
  %v28 = vld [vmem:[%s1 + $0x10] sm:$0xf]
  %v29 = vld [vmem:[%s1 + $0x14] sm:$0xf]
  %v30 = vld [vmem:[%s1 + $0x18] sm:$0xf]
  %v31 = vld [vmem:[%s1 + $0x1c] sm:$0xf]
  %v32 = vld [vmem:[%s1 + $0x20] sm:$0xf]
  %v33 = vld [vmem:[%s1 + $0x24] sm:$0xf]
  %v34 = vld [vmem:[%s1 + $0x28] sm:$0xf]
  %v35 = vld [vmem:[%s1 + $0x2c] sm:$0xf]
  %v36 = vld [vmem:[%s1 + $0x30] sm:$0xf]
  %v37 = vld [vmem:[%s1 + $0x34] sm:$0xf]
  %v38 = vld [vmem:[%s1 + $0x38] sm:$0xf]
  %v39 = vld [vmem:[%s1 + $0x3c] sm:$0xf]
  %v40 = vld [vmem:[%s1 + $0x40] sm:$0xf]
  %v41 = vld [vmem:[%s1 + $0x44] sm:$0xf]
  %v42 = vld [vmem:[%s1 + $0x48] sm:$0xf]
  %v43 = vld [vmem:[%s1 + $0x4c] sm:$0xf]
  %v44 = vld [vmem:[%s1 + $0x50] sm:$0xf]
  %v45 = vld [vmem:[%s1 + $0x54] sm:$0xf]
  %v46 = vld [vmem:[%s1 + $0x58] sm:$0xf]
  %v47 = vld [vmem:[%s1 + $0x5c] sm:$0xf]
  %v48 = vld [vmem:[%s1 + $0x60] sm:$0xf]
  %v49 = vld [vmem:[%s1 + $0x64] sm:$0xf]
  %v50 = vld [vmem:[%s1 + $0x68] sm:$0xf]
  %v51 = vld [vmem:[%s1 + $0x6c] sm:$0xf]
  %v52 = vld [vmem:[%s1 + $0x70] sm:$0xf]
  %v53 = vld [vmem:[%s1 + $0x74] sm:$0xf]
  %v54 = vld [vmem:[%s1 + $0x78] sm:$0xf]
  %v55 = vld [vmem:[%s1 + $0x7c] sm:$0xf]
  %v56 = vld [vmem:[%s1 + $0x80] sm:$0xf]
  %v57 = vld [vmem:[%s1 + $0x84] sm:$0xf]
  %v58 = vld [vmem:[%s1 + $0x88] sm:$0xf]
  %v59 = vld [vmem:[%s1 + $0x8c] sm:$0xf]
  %v60 = vld [vmem:[%s1 + $0x90] sm:$0xf]
  %v61 = vld [vmem:[%s1 + $0x94] sm:$0xf]
  %v62 = vld [vmem:[%s1 + $0x98] sm:$0xf]
  %v63 = vld [vmem:[%s1 + $0x9c] sm:$0xf]
  %v64 = vld [vmem:[%s1 + $0xa0] sm:$0xf]
  %v65 = vld [vmem:[%s1 + $0xa4] sm:$0xf]
  %v66 = vld [vmem:[%s1 + $0xa8] sm:$0xf]
  %v67 = vld [vmem:[%s1 + $0xac] sm:$0xf]
  %v68 = vld [vmem:[%s1 + $0xb0] sm:$0xf]
  %v69 = vld [vmem:[%s1 + $0xb4] sm:$0xf]
  %v70 = vld [vmem:[%s1 + $0xb8] sm:$0xf]
  %v71 = vld [vmem:[%s1 + $0xbc] sm:$0xf]
  %v72 = vld [vmem:[%s1 + $0xc0] sm:$0xf]
  %v73 = vld [vmem:[%s1 + $0xc4] sm:$0xf]
  %v74 = vld [vmem:[%s1 + $0xc8] sm:$0xf]
  %v75 = vld [vmem:[%s1 + $0xcc] sm:$0xf]
  %v76 = vld [vmem:[%s1 + $0xd0] sm:$0xf]
  %v77 = vld [vmem:[%s1 + $0xd4] sm:$0xf]
  %v78 = vld [vmem:[%s1 + $0xd8] sm:$0xf]
  %v79 = vld [vmem:[%s1 + $0xdc] sm:$0xf]
  %v80 = vld [vmem:[%s1 + $0xe0] sm:$0xf]
  %v81 = vld [vmem:[%s1 + $0xe4] sm:$0xf]
  %v82 = vld [vmem:[%s1 + $0xe8] sm:$0xf]
  %v83 = vld [vmem:[%s1 + $0xec] sm:$0xf]
  %v84 = vld [vmem:[%s1 + $0xf0] sm:$0xf]
  %v85 = vld [vmem:[%s1 + $0xf4] sm:$0xf]
  %v86 = vld [vmem:[%s1 + $0xf8] sm:$0xf]
  %v87 = vld [vmem:[%s1 + $0xfc] sm:$0xf]
  %v88 = vld [vmem:[%s0] sm:$0xff]
  %v89 = vld [vmem:[%s0 + $0x8] sm:$0xff]
  %v90 = vld [vmem:[%s0 + $0x10] sm:$0xff]
  %v91 = vld [vmem:[%s0 + $0x18] sm:$0xff]
  %v92 = vld [vmem:[%s0 + $0x20] sm:$0xff]
  %v93 = vld [vmem:[%s0 + $0x28] sm:$0xff]
  %v94 = vld [vmem:[%s0 + $0x30] sm:$0xff]
  %v95 = vld [vmem:[%s0 + $0x38] sm:$0xff]
  %v96 = vld [vmem:[%s0 + $0x40] sm:$0xff]
  %v97 = vld [vmem:[%s0 + $0x48] sm:$0xff]
  %v98 = vld [vmem:[%s0 + $0x50] sm:$0xff]
  %v99 = vld [vmem:[%s0 + $0x58] sm:$0xff]
  %v100 = vld [vmem:[%s0 + $0x60] sm:$0xff]
  %v101 = vld [vmem:[%s0 + $0x68] sm:$0xff]
  %v102 = vld [vmem:[%s0 + $0x70] sm:$0xff]
  %v103 = vld [vmem:[%s0 + $0x78] sm:$0xff]
  %v104 = vld [vmem:[%s0 + $0x80] sm:$0xff]
  %v105 = vld [vmem:[%s0 + $0x88] sm:$0xff]
  %v106 = vld [vmem:[%s0 + $0x90] sm:$0xff]
  %v107 = vld [vmem:[%s0 + $0x98] sm:$0xff]
  %v108 = vld [vmem:[%s0 + $0xa0] sm:$0xff]
  %v109 = vld [vmem:[%s0 + $0xa8] sm:$0xff]
  %v110 = vld [vmem:[%s0 + $0xb0] sm:$0xff]
  %v111 = vld [vmem:[%s0 + $0xb8] sm:$0xff]
  %v112 = vld [vmem:[%s0 + $0xc0] sm:$0xff]
  %v113 = vld [vmem:[%s0 + $0xc8] sm:$0xff]
  %v114 = vld [vmem:[%s0 + $0xd0] sm:$0xff]
  %v115 = vld [vmem:[%s0 + $0xd8] sm:$0xff]
  %v116 = vld [vmem:[%s0 + $0xe0] sm:$0xff]
  %v117 = vld [vmem:[%s0 + $0xe8] sm:$0xff]
  %v118 = vld [vmem:[%s0 + $0xf0] sm:$0xff]
  %v119 = vld [vmem:[%s0 + $0xf8] sm:$0xff]
  %v184 = vunpack.c.l.b16 %v24
  %v185 = vunpack.c.l.b16 %v25
  %v186 = vunpack.c.l.b16 %v26
  %v187 = vunpack.c.l.b16 %v27
  %v188 = vunpack.c.l.b16 %v28
  %v189 = vunpack.c.l.b16 %v29
  %v190 = vunpack.c.l.b16 %v30
  %v191 = vunpack.c.l.b16 %v31
  %v192 = vunpack.c.l.b16 %v32
  %v193 = vunpack.c.l.b16 %v33
  %v194 = vunpack.c.l.b16 %v34
  %v195 = vunpack.c.l.b16 %v35
  %v196 = vunpack.c.l.b16 %v36
  %v197 = vunpack.c.l.b16 %v37
  %v198 = vunpack.c.l.b16 %v38
  %v199 = vunpack.c.l.b16 %v39
  %v200 = vunpack.c.l.b16 %v40
  %v201 = vunpack.c.l.b16 %v41
  %v202 = vunpack.c.l.b16 %v42
  %v203 = vunpack.c.l.b16 %v43
  %v204 = vunpack.c.l.b16 %v44
  %v205 = vunpack.c.l.b16 %v45
  %v206 = vunpack.c.l.b16 %v46
  %v207 = vunpack.c.l.b16 %v47
  %v208 = vunpack.c.l.b16 %v48
  %v209 = vunpack.c.l.b16 %v49
  %v210 = vunpack.c.l.b16 %v50
  %v211 = vunpack.c.l.b16 %v51
  %v212 = vunpack.c.l.b16 %v52
  %v213 = vunpack.c.l.b16 %v53
  %v214 = vunpack.c.l.b16 %v54
  %v215 = vunpack.c.l.b16 %v55
  %v216 = vunpack.c.l.b16 %v56
  %v217 = vunpack.c.l.b16 %v57
  %v218 = vunpack.c.l.b16 %v58
  %v219 = vunpack.c.l.b16 %v59
  %v220 = vunpack.c.l.b16 %v60
  %v221 = vunpack.c.l.b16 %v61
  %v222 = vunpack.c.l.b16 %v62
  %v223 = vunpack.c.l.b16 %v63
  %v224 = vunpack.c.l.b16 %v64
  %v225 = vunpack.c.l.b16 %v65
  %v226 = vunpack.c.l.b16 %v66
  %v227 = vunpack.c.l.b16 %v67
  %v228 = vunpack.c.l.b16 %v68
  %v229 = vunpack.c.l.b16 %v69
  %v230 = vunpack.c.l.b16 %v70
  %v231 = vunpack.c.l.b16 %v71
  %v232 = vunpack.c.l.b16 %v72
  %v233 = vunpack.c.l.b16 %v73
  %v234 = vunpack.c.l.b16 %v74
  %v235 = vunpack.c.l.b16 %v75
  %v236 = vunpack.c.l.b16 %v76
  %v237 = vunpack.c.l.b16 %v77
  %v238 = vunpack.c.l.b16 %v78
  %v239 = vunpack.c.l.b16 %v79
  %v240 = vunpack.c.l.b16 %v80
  %v241 = vunpack.c.l.b16 %v81
  %v242 = vunpack.c.l.b16 %v82
  %v243 = vunpack.c.l.b16 %v83
  %v244 = vunpack.c.l.b16 %v84
  %v245 = vunpack.c.l.b16 %v85
  %v246 = vunpack.c.l.b16 %v86
  %v247 = vunpack.c.l.b16 %v87
  %v248 = vpack.c.b16 %v185, %v184
  %v249 = vpack.c.b16 %v187, %v186
  %v250 = vpack.c.b16 %v189, %v188
  %v251 = vpack.c.b16 %v191, %v190
  %v252 = vpack.c.b16 %v193, %v192
  %v253 = vpack.c.b16 %v195, %v194
  %v254 = vpack.c.b16 %v197, %v196
  %v255 = vpack.c.b16 %v199, %v198
  %v256 = vpack.c.b16 %v201, %v200
  %v257 = vpack.c.b16 %v203, %v202
  %v258 = vpack.c.b16 %v205, %v204
  %v259 = vpack.c.b16 %v207, %v206
  %v260 = vpack.c.b16 %v209, %v208
  %v261 = vpack.c.b16 %v211, %v210
  %v262 = vpack.c.b16 %v213, %v212
  %v263 = vpack.c.b16 %v215, %v214
  %v264 = vpack.c.b16 %v217, %v216
  %v265 = vpack.c.b16 %v219, %v218
  %v266 = vpack.c.b16 %v221, %v220
  %v267 = vpack.c.b16 %v223, %v222
  %v268 = vpack.c.b16 %v225, %v224
  %v269 = vpack.c.b16 %v227, %v226
  %v270 = vpack.c.b16 %v229, %v228
  %v271 = vpack.c.b16 %v231, %v230
  %v272 = vpack.c.b16 %v233, %v232
  %v273 = vpack.c.b16 %v235, %v234
  %v274 = vpack.c.b16 %v237, %v236
  %v275 = vpack.c.b16 %v239, %v238
  %v276 = vpack.c.b16 %v241, %v240
  %v277 = vpack.c.b16 %v243, %v242
  %v278 = vpack.c.b16 %v245, %v244
  %v279 = vpack.c.b16 %v247, %v246
  %v344 = vunpack.c.l.b16 %v88
  %v345 = vunpack.c.h.b16 %v88
  %v346 = vunpack.c.l.b16 %v89
  %v347 = vunpack.c.h.b16 %v89
  %v348 = vunpack.c.l.b16 %v90
  %v349 = vunpack.c.h.b16 %v90
  %v350 = vunpack.c.l.b16 %v91
  %v351 = vunpack.c.h.b16 %v91
  %v352 = vunpack.c.l.b16 %v92
  %v353 = vunpack.c.h.b16 %v92
  %v354 = vunpack.c.l.b16 %v93
  %v355 = vunpack.c.h.b16 %v93
  %v356 = vunpack.c.l.b16 %v94
  %v357 = vunpack.c.h.b16 %v94
  %v358 = vunpack.c.l.b16 %v95
  %v359 = vunpack.c.h.b16 %v95
  %v360 = vunpack.c.l.b16 %v96
  %v361 = vunpack.c.h.b16 %v96
  %v362 = vunpack.c.l.b16 %v97
  %v363 = vunpack.c.h.b16 %v97
  %v364 = vunpack.c.l.b16 %v98
  %v365 = vunpack.c.h.b16 %v98
  %v366 = vunpack.c.l.b16 %v99
  %v367 = vunpack.c.h.b16 %v99
  %v368 = vunpack.c.l.b16 %v100
  %v369 = vunpack.c.h.b16 %v100
  %v370 = vunpack.c.l.b16 %v101
  %v371 = vunpack.c.h.b16 %v101
  %v372 = vunpack.c.l.b16 %v102
  %v373 = vunpack.c.h.b16 %v102
  %v374 = vunpack.c.l.b16 %v103
  %v375 = vunpack.c.h.b16 %v103
  %v376 = vunpack.c.l.b16 %v104
  %v377 = vunpack.c.h.b16 %v104
  %v378 = vunpack.c.l.b16 %v105
  %v379 = vunpack.c.h.b16 %v105
  %v380 = vunpack.c.l.b16 %v106
  %v381 = vunpack.c.h.b16 %v106
  %v382 = vunpack.c.l.b16 %v107
  %v383 = vunpack.c.h.b16 %v107
  %v384 = vunpack.c.l.b16 %v108
  %v385 = vunpack.c.h.b16 %v108
  %v386 = vunpack.c.l.b16 %v109
  %v387 = vunpack.c.h.b16 %v109
  %v388 = vunpack.c.l.b16 %v110
  %v389 = vunpack.c.h.b16 %v110
  %v390 = vunpack.c.l.b16 %v111
  %v391 = vunpack.c.h.b16 %v111
  %v392 = vunpack.c.l.b16 %v112
  %v393 = vunpack.c.h.b16 %v112
  %v394 = vunpack.c.l.b16 %v113
  %v395 = vunpack.c.h.b16 %v113
  %v396 = vunpack.c.l.b16 %v114
  %v397 = vunpack.c.h.b16 %v114
  %v398 = vunpack.c.l.b16 %v115
  %v399 = vunpack.c.h.b16 %v115
  %v400 = vunpack.c.l.b16 %v116
  %v401 = vunpack.c.h.b16 %v116
  %v402 = vunpack.c.l.b16 %v117
  %v403 = vunpack.c.h.b16 %v117
  %v404 = vunpack.c.l.b16 %v118
  %v405 = vunpack.c.h.b16 %v118
  %v406 = vunpack.c.l.b16 %v119
  %v407 = vunpack.c.h.b16 %v119
  %v408 = vpack.c.b16 %v348, %v344
  %v409 = vpack.c.b16 %v349, %v345
  %v410 = vpack.c.b16 %v350, %v346
  %v411 = vpack.c.b16 %v351, %v347
  %v412 = vpack.c.b16 %v356, %v352
  %v413 = vpack.c.b16 %v357, %v353
  %v414 = vpack.c.b16 %v358, %v354
  %v415 = vpack.c.b16 %v359, %v355
  %v416 = vpack.c.b16 %v364, %v360
  %v417 = vpack.c.b16 %v365, %v361
  %v418 = vpack.c.b16 %v366, %v362
  %v419 = vpack.c.b16 %v367, %v363
  %v420 = vpack.c.b16 %v372, %v368
  %v421 = vpack.c.b16 %v373, %v369
  %v422 = vpack.c.b16 %v374, %v370
  %v423 = vpack.c.b16 %v375, %v371
  %v424 = vpack.c.b16 %v380, %v376
  %v425 = vpack.c.b16 %v381, %v377
  %v426 = vpack.c.b16 %v382, %v378
  %v427 = vpack.c.b16 %v383, %v379
  %v428 = vpack.c.b16 %v388, %v384
  %v429 = vpack.c.b16 %v389, %v385
  %v430 = vpack.c.b16 %v390, %v386
  %v431 = vpack.c.b16 %v391, %v387
  %v432 = vpack.c.b16 %v396, %v392
  %v433 = vpack.c.b16 %v397, %v393
  %v434 = vpack.c.b16 %v398, %v394
  %v435 = vpack.c.b16 %v399, %v395
  %v436 = vpack.c.b16 %v404, %v400
  %v437 = vpack.c.b16 %v405, %v401
  %v438 = vpack.c.b16 %v406, %v402
  %v439 = vpack.c.b16 %v407, %v403
  %472 = vmatprep.subr.bf16.mxu0 %v409
  %473 = vmatpush1.bf16.msra.mxu0 %v408
  %474 = vmatprep.subr.bf16.mxu0 %v413
  %475 = vmatpush1.bf16.msra.mxu0 %v412
  %476 = vmatprep.subr.bf16.mxu0 %v417
  %477 = vmatpush1.bf16.msra.mxu0 %v416
  %478 = vmatprep.subr.bf16.mxu0 %v421
  %479 = vmatpush1.bf16.msra.mxu0 %v420
  %480 = vmatprep.subr.bf16.mxu0 %v425
  %481 = vmatpush1.bf16.msra.mxu0 %v424
  %482 = vmatprep.subr.bf16.mxu0 %v429
  %483 = vmatpush1.bf16.msra.mxu0 %v428
  %484 = vmatprep.subr.bf16.mxu0 %v433
  %485 = vmatpush1.bf16.msra.mxu0 %v432
  %486 = vmatprep.subr.bf16.mxu0 %v437
  %487 = vmatpush1.bf16.msra.mxu0 %v436
  %488 = vmatprep.subr.bf16.mxu0 0
  %489 = vmatpush1.bf16.msra.mxu0 0
  %490 = vmatprep.subr.bf16.mxu0 0
  %491 = vmatpush1.bf16.msra.mxu0 0
  %492 = vmatprep.subr.bf16.mxu0 0
  %493 = vmatpush1.bf16.msra.mxu0 0
  %494 = vmatprep.subr.bf16.mxu0 0
  %495 = vmatpush1.bf16.msra.mxu0 0
  %496 = vmatprep.subr.bf16.mxu0 0
  %497 = vmatpush1.bf16.msra.mxu0 0
  %498 = vmatprep.subr.bf16.mxu0 0
  %499 = vmatpush1.bf16.msra.mxu0 0
  %500 = vmatprep.subr.bf16.mxu0 0
  %501 = vmatpush1.bf16.msra.mxu0 0
  %502 = vmatprep.subr.bf16.mxu0 0
  %503 = vmatpush1.bf16.msra.mxu0 0
  %504 = vmatprep.mubr.bf16.mxu0 0
  %505 = vmatmul.mubr.bf16.gmra.mrb[0].mxu0 %v248
  %v506 = vpop.f32.mrb[0].mxu0
  %v507 = vadd.f32 0.0, %v506
  %v508 = vpop.f32.mrb[0].mxu0
  %v509 = vadd.f32 0.0, %v508
  %v510 = vpop.f32.mrb[0].mxu0
  %v511 = vadd.f32 0.0, %v510
  %v512 = vpop.f32.mrb[0].mxu0
  %v513 = vadd.f32 0.0, %v512
  %514 = vmatprep.mubr.bf16.mxu0 0
  %515 = vmatmul.mubr.bf16.gmra.mrb[0].mxu0 %v249
  %v516 = vpop.f32.mrb[0].mxu0
  %v517 = vadd.f32 0.0, %v516
  %v518 = vpop.f32.mrb[0].mxu0
  %v519 = vadd.f32 0.0, %v518
  %v520 = vpop.f32.mrb[0].mxu0
  %v521 = vadd.f32 0.0, %v520
  %v522 = vpop.f32.mrb[0].mxu0
  %v523 = vadd.f32 0.0, %v522
  %524 = vmatprep.mubr.bf16.mxu0 0
  %525 = vmatmul.mubr.bf16.gmra.mrb[0].mxu0 %v250
  %v526 = vpop.f32.mrb[0].mxu0
  %v527 = vadd.f32 0.0, %v526
  %v528 = vpop.f32.mrb[0].mxu0
  %v529 = vadd.f32 0.0, %v528
  %v530 = vpop.f32.mrb[0].mxu0
  %v531 = vadd.f32 0.0, %v530
  %v532 = vpop.f32.mrb[0].mxu0
  %v533 = vadd.f32 0.0, %v532
  %534 = vmatprep.mubr.bf16.mxu0 0
  %535 = vmatmul.mubr.bf16.gmra.mrb[0].mxu0 %v251
  %v536 = vpop.f32.mrb[0].mxu0
  %v537 = vadd.f32 0.0, %v536
  %v538 = vpop.f32.mrb[0].mxu0
  %v539 = vadd.f32 0.0, %v538
  %v540 = vpop.f32.mrb[0].mxu0
  %v541 = vadd.f32 0.0, %v540
  %v542 = vpop.f32.mrb[0].mxu0
  %v543 = vadd.f32 0.0, %v542
  %544 = vmatprep.mubr.bf16.mxu0 0
  %545 = vmatmul.mubr.bf16.gmra.mrb[0].mxu0 %v252
  %v546 = vpop.f32.mrb[0].mxu0
  %v547 = vadd.f32 0.0, %v546
  %v548 = vpop.f32.mrb[0].mxu0
  %v549 = vadd.f32 0.0, %v548
  %v550 = vpop.f32.mrb[0].mxu0
  %v551 = vadd.f32 0.0, %v550
  %v552 = vpop.f32.mrb[0].mxu0
  %v553 = vadd.f32 0.0, %v552
  %554 = vmatprep.mubr.bf16.mxu0 0
  %555 = vmatmul.mubr.bf16.gmra.mrb[0].mxu0 %v253
  %v556 = vpop.f32.mrb[0].mxu0
  %v557 = vadd.f32 0.0, %v556
  %v558 = vpop.f32.mrb[0].mxu0
  %v559 = vadd.f32 0.0, %v558
  %v560 = vpop.f32.mrb[0].mxu0
  %v561 = vadd.f32 0.0, %v560
  %v562 = vpop.f32.mrb[0].mxu0
  %v563 = vadd.f32 0.0, %v562
  %564 = vmatprep.mubr.bf16.mxu0 0
  %565 = vmatmul.mubr.bf16.gmra.mrb[0].mxu0 %v254
  %v566 = vpop.f32.mrb[0].mxu0
  %v567 = vadd.f32 0.0, %v566
  %v568 = vpop.f32.mrb[0].mxu0
  %v569 = vadd.f32 0.0, %v568
  %v570 = vpop.f32.mrb[0].mxu0
  %v571 = vadd.f32 0.0, %v570
  %v572 = vpop.f32.mrb[0].mxu0
  %v573 = vadd.f32 0.0, %v572
  %574 = vmatprep.mubr.bf16.mxu0 0
  %575 = vmatmul.mubr.bf16.gmra.mrb[0].mxu0 %v255
  %v576 = vpop.f32.mrb[0].mxu0
  %v577 = vadd.f32 0.0, %v576
  %v578 = vpop.f32.mrb[0].mxu0
  %v579 = vadd.f32 0.0, %v578
  %v580 = vpop.f32.mrb[0].mxu0
  %v581 = vadd.f32 0.0, %v580
  %v582 = vpop.f32.mrb[0].mxu0
  %v583 = vadd.f32 0.0, %v582
  %584 = vmatprep.mubr.bf16.mxu0 0
  %585 = vmatmul.mubr.bf16.gmra.mrb[0].mxu0 %v256
  %v586 = vpop.f32.mrb[0].mxu0
  %v587 = vadd.f32 0.0, %v586
  %v588 = vpop.f32.mrb[0].mxu0
  %v589 = vadd.f32 0.0, %v588
  %v590 = vpop.f32.mrb[0].mxu0
  %v591 = vadd.f32 0.0, %v590
  %v592 = vpop.f32.mrb[0].mxu0
  %v593 = vadd.f32 0.0, %v592
  %594 = vmatprep.mubr.bf16.mxu0 0
  %595 = vmatmul.mubr.bf16.gmra.mrb[0].mxu0 %v257
  %v596 = vpop.f32.mrb[0].mxu0
  %v597 = vadd.f32 0.0, %v596
  %v598 = vpop.f32.mrb[0].mxu0
  %v599 = vadd.f32 0.0, %v598
  %v600 = vpop.f32.mrb[0].mxu0
  %v601 = vadd.f32 0.0, %v600
  %v602 = vpop.f32.mrb[0].mxu0
  %v603 = vadd.f32 0.0, %v602
  %604 = vmatprep.mubr.bf16.mxu0 0
  %605 = vmatmul.mubr.bf16.gmra.mrb[0].mxu0 %v258
  %v606 = vpop.f32.mrb[0].mxu0
  %v607 = vadd.f32 0.0, %v606
  %v608 = vpop.f32.mrb[0].mxu0
  %v609 = vadd.f32 0.0, %v608
  %v610 = vpop.f32.mrb[0].mxu0
  %v611 = vadd.f32 0.0, %v610
  %v612 = vpop.f32.mrb[0].mxu0
  %v613 = vadd.f32 0.0, %v612
  %614 = vmatprep.mubr.bf16.mxu0 0
  %615 = vmatmul.mubr.bf16.gmra.mrb[0].mxu0 %v259
  %v616 = vpop.f32.mrb[0].mxu0
  %v617 = vadd.f32 0.0, %v616
  %v618 = vpop.f32.mrb[0].mxu0
  %v619 = vadd.f32 0.0, %v618
  %v620 = vpop.f32.mrb[0].mxu0
  %v621 = vadd.f32 0.0, %v620
  %v622 = vpop.f32.mrb[0].mxu0
  %v623 = vadd.f32 0.0, %v622
  %624 = vmatprep.mubr.bf16.mxu0 0
  %625 = vmatmul.mubr.bf16.gmra.mrb[0].mxu0 %v260
  %v626 = vpop.f32.mrb[0].mxu0
  %v627 = vadd.f32 0.0, %v626
  %v628 = vpop.f32.mrb[0].mxu0
  %v629 = vadd.f32 0.0, %v628
  %v630 = vpop.f32.mrb[0].mxu0
  %v631 = vadd.f32 0.0, %v630
  %v632 = vpop.f32.mrb[0].mxu0
  %v633 = vadd.f32 0.0, %v632
  %634 = vmatprep.mubr.bf16.mxu0 0
  %635 = vmatmul.mubr.bf16.gmra.mrb[0].mxu0 %v261
  %v636 = vpop.f32.mrb[0].mxu0
  %v637 = vadd.f32 0.0, %v636
  %v638 = vpop.f32.mrb[0].mxu0
  %v639 = vadd.f32 0.0, %v638
  %v640 = vpop.f32.mrb[0].mxu0
  %v641 = vadd.f32 0.0, %v640
  %v642 = vpop.f32.mrb[0].mxu0
  %v643 = vadd.f32 0.0, %v642
  %644 = vmatprep.mubr.bf16.mxu0 0
  %645 = vmatmul.mubr.bf16.gmra.mrb[0].mxu0 %v262
  %v646 = vpop.f32.mrb[0].mxu0
  %v647 = vadd.f32 0.0, %v646
  %v648 = vpop.f32.mrb[0].mxu0
  %v649 = vadd.f32 0.0, %v648
  %v650 = vpop.f32.mrb[0].mxu0
  %v651 = vadd.f32 0.0, %v650
  %v652 = vpop.f32.mrb[0].mxu0
  %v653 = vadd.f32 0.0, %v652
  %654 = vmatprep.mubr.bf16.mxu0 0
  %655 = vmatmul.mubr.bf16.gmra.mrb[0].mxu0 %v263
  %v656 = vpop.f32.mrb[0].mxu0
  %v657 = vadd.f32 0.0, %v656
  %v658 = vpop.f32.mrb[0].mxu0
  %v659 = vadd.f32 0.0, %v658
  %v660 = vpop.f32.mrb[0].mxu0
  %v661 = vadd.f32 0.0, %v660
  %v662 = vpop.f32.mrb[0].mxu0
  %v663 = vadd.f32 0.0, %v662
  %664 = vmatprep.mubr.bf16.mxu0 0
  %665 = vmatmul.mubr.bf16.gmra.mrb[0].mxu0 %v264
  %v666 = vpop.f32.mrb[0].mxu0
  %v667 = vadd.f32 0.0, %v666
  %v668 = vpop.f32.mrb[0].mxu0
  %v669 = vadd.f32 0.0, %v668
  %v670 = vpop.f32.mrb[0].mxu0
  %v671 = vadd.f32 0.0, %v670
  %v672 = vpop.f32.mrb[0].mxu0
  %v673 = vadd.f32 0.0, %v672
  %674 = vmatprep.mubr.bf16.mxu0 0
  %675 = vmatmul.mubr.bf16.gmra.mrb[0].mxu0 %v265
  %v676 = vpop.f32.mrb[0].mxu0
  %v677 = vadd.f32 0.0, %v676
  %v678 = vpop.f32.mrb[0].mxu0
  %v679 = vadd.f32 0.0, %v678
  %v680 = vpop.f32.mrb[0].mxu0
  %v681 = vadd.f32 0.0, %v680
  %v682 = vpop.f32.mrb[0].mxu0
  %v683 = vadd.f32 0.0, %v682
  %684 = vmatprep.mubr.bf16.mxu0 0
  %685 = vmatmul.mubr.bf16.gmra.mrb[0].mxu0 %v266
  %v686 = vpop.f32.mrb[0].mxu0
  %v687 = vadd.f32 0.0, %v686
  %v688 = vpop.f32.mrb[0].mxu0
  %v689 = vadd.f32 0.0, %v688
  %v690 = vpop.f32.mrb[0].mxu0
  %v691 = vadd.f32 0.0, %v690
  %v692 = vpop.f32.mrb[0].mxu0
  %v693 = vadd.f32 0.0, %v692
  %694 = vmatprep.mubr.bf16.mxu0 0
  %695 = vmatmul.mubr.bf16.gmra.mrb[0].mxu0 %v267
  %v696 = vpop.f32.mrb[0].mxu0
  %v697 = vadd.f32 0.0, %v696
  %v698 = vpop.f32.mrb[0].mxu0
  %v699 = vadd.f32 0.0, %v698
  %v700 = vpop.f32.mrb[0].mxu0
  %v701 = vadd.f32 0.0, %v700
  %v702 = vpop.f32.mrb[0].mxu0
  %v703 = vadd.f32 0.0, %v702
  %704 = vmatprep.mubr.bf16.mxu0 0
  %705 = vmatmul.mubr.bf16.gmra.mrb[0].mxu0 %v268
  %v706 = vpop.f32.mrb[0].mxu0
  %v707 = vadd.f32 0.0, %v706
  %v708 = vpop.f32.mrb[0].mxu0
  %v709 = vadd.f32 0.0, %v708
  %v710 = vpop.f32.mrb[0].mxu0
  %v711 = vadd.f32 0.0, %v710
  %v712 = vpop.f32.mrb[0].mxu0
  %v713 = vadd.f32 0.0, %v712
  %714 = vmatprep.mubr.bf16.mxu0 0
  %715 = vmatmul.mubr.bf16.gmra.mrb[0].mxu0 %v269
  %v716 = vpop.f32.mrb[0].mxu0
  %v717 = vadd.f32 0.0, %v716
  %v718 = vpop.f32.mrb[0].mxu0
  %v719 = vadd.f32 0.0, %v718
  %v720 = vpop.f32.mrb[0].mxu0
  %v721 = vadd.f32 0.0, %v720
  %v722 = vpop.f32.mrb[0].mxu0
  %v723 = vadd.f32 0.0, %v722
  %724 = vmatprep.mubr.bf16.mxu0 0
  %725 = vmatmul.mubr.bf16.gmra.mrb[0].mxu0 %v270
  %v726 = vpop.f32.mrb[0].mxu0
  %v727 = vadd.f32 0.0, %v726
  %v728 = vpop.f32.mrb[0].mxu0
  %v729 = vadd.f32 0.0, %v728
  %v730 = vpop.f32.mrb[0].mxu0
  %v731 = vadd.f32 0.0, %v730
  %v732 = vpop.f32.mrb[0].mxu0
  %v733 = vadd.f32 0.0, %v732
  %734 = vmatprep.mubr.bf16.mxu0 0
  %735 = vmatmul.mubr.bf16.gmra.mrb[0].mxu0 %v271
  %v736 = vpop.f32.mrb[0].mxu0
  %v737 = vadd.f32 0.0, %v736
  %v738 = vpop.f32.mrb[0].mxu0
  %v739 = vadd.f32 0.0, %v738
  %v740 = vpop.f32.mrb[0].mxu0
  %v741 = vadd.f32 0.0, %v740
  %v742 = vpop.f32.mrb[0].mxu0
  %v743 = vadd.f32 0.0, %v742
  %744 = vmatprep.mubr.bf16.mxu0 0
  %745 = vmatmul.mubr.bf16.gmra.mrb[0].mxu0 %v272
  %v746 = vpop.f32.mrb[0].mxu0
  %v747 = vadd.f32 0.0, %v746
  %v748 = vpop.f32.mrb[0].mxu0
  %v749 = vadd.f32 0.0, %v748
  %v750 = vpop.f32.mrb[0].mxu0
  %v751 = vadd.f32 0.0, %v750
  %v752 = vpop.f32.mrb[0].mxu0
  %v753 = vadd.f32 0.0, %v752
  %754 = vmatprep.mubr.bf16.mxu0 0
  %755 = vmatmul.mubr.bf16.gmra.mrb[0].mxu0 %v273
  %v756 = vpop.f32.mrb[0].mxu0
  %v757 = vadd.f32 0.0, %v756
  %v758 = vpop.f32.mrb[0].mxu0
  %v759 = vadd.f32 0.0, %v758
  %v760 = vpop.f32.mrb[0].mxu0
  %v761 = vadd.f32 0.0, %v760
  %v762 = vpop.f32.mrb[0].mxu0
  %v763 = vadd.f32 0.0, %v762
  %764 = vmatprep.mubr.bf16.mxu0 0
  %765 = vmatmul.mubr.bf16.gmra.mrb[0].mxu0 %v274
  %v766 = vpop.f32.mrb[0].mxu0
  %v767 = vadd.f32 0.0, %v766
  %v768 = vpop.f32.mrb[0].mxu0
  %v769 = vadd.f32 0.0, %v768
  %v770 = vpop.f32.mrb[0].mxu0
  %v771 = vadd.f32 0.0, %v770
  %v772 = vpop.f32.mrb[0].mxu0
  %v773 = vadd.f32 0.0, %v772
  %774 = vmatprep.mubr.bf16.mxu0 0
  %775 = vmatmul.mubr.bf16.gmra.mrb[0].mxu0 %v275
  %v776 = vpop.f32.mrb[0].mxu0
  %v777 = vadd.f32 0.0, %v776
  %v778 = vpop.f32.mrb[0].mxu0
  %v779 = vadd.f32 0.0, %v778
  %v780 = vpop.f32.mrb[0].mxu0
  %v781 = vadd.f32 0.0, %v780
  %v782 = vpop.f32.mrb[0].mxu0
  %v783 = vadd.f32 0.0, %v782
  %784 = vmatprep.mubr.bf16.mxu0 0
  %785 = vmatmul.mubr.bf16.gmra.mrb[0].mxu0 %v276
  %v786 = vpop.f32.mrb[0].mxu0
  %v787 = vadd.f32 0.0, %v786
  %v788 = vpop.f32.mrb[0].mxu0
  %v789 = vadd.f32 0.0, %v788
  %v790 = vpop.f32.mrb[0].mxu0
  %v791 = vadd.f32 0.0, %v790
  %v792 = vpop.f32.mrb[0].mxu0
  %v793 = vadd.f32 0.0, %v792
  %794 = vmatprep.mubr.bf16.mxu0 0
  %795 = vmatmul.mubr.bf16.gmra.mrb[0].mxu0 %v277
  %v796 = vpop.f32.mrb[0].mxu0
  %v797 = vadd.f32 0.0, %v796
  %v798 = vpop.f32.mrb[0].mxu0
  %v799 = vadd.f32 0.0, %v798
  %v800 = vpop.f32.mrb[0].mxu0
  %v801 = vadd.f32 0.0, %v800
  %v802 = vpop.f32.mrb[0].mxu0
  %v803 = vadd.f32 0.0, %v802
  %804 = vmatprep.mubr.bf16.mxu0 0
  %805 = vmatmul.mubr.bf16.gmra.mrb[0].mxu0 %v278
  %v806 = vpop.f32.mrb[0].mxu0
  %v807 = vadd.f32 0.0, %v806
  %v808 = vpop.f32.mrb[0].mxu0
  %v809 = vadd.f32 0.0, %v808
  %v810 = vpop.f32.mrb[0].mxu0
  %v811 = vadd.f32 0.0, %v810
  %v812 = vpop.f32.mrb[0].mxu0
  %v813 = vadd.f32 0.0, %v812
  %814 = vmatprep.mubr.bf16.mxu0 0
  %815 = vmatmul.mubr.bf16.gmra.mrb[0].mxu0 %v279
  %v816 = vpop.f32.mrb[0].mxu0
  %v817 = vadd.f32 0.0, %v816
  %v818 = vpop.f32.mrb[0].mxu0
  %v819 = vadd.f32 0.0, %v818
  %v820 = vpop.f32.mrb[0].mxu0
  %v821 = vadd.f32 0.0, %v820
  %v822 = vpop.f32.mrb[0].mxu0
  %v823 = vadd.f32 0.0, %v822
  %824 = vdwg.mxu0
  %825 = vmatprep.subr.bf16.mxu0 %v411
  %826 = vmatpush1.bf16.msra.mxu0 %v410
  %827 = vmatprep.subr.bf16.mxu0 %v415
  %828 = vmatpush1.bf16.msra.mxu0 %v414
  %829 = vmatprep.subr.bf16.mxu0 %v419
  %830 = vmatpush1.bf16.msra.mxu0 %v418
  %831 = vmatprep.subr.bf16.mxu0 %v423
  %832 = vmatpush1.bf16.msra.mxu0 %v422
  %833 = vmatprep.subr.bf16.mxu0 %v427
  %834 = vmatpush1.bf16.msra.mxu0 %v426
  %835 = vmatprep.subr.bf16.mxu0 %v431
  %836 = vmatpush1.bf16.msra.mxu0 %v430
  %837 = vmatprep.subr.bf16.mxu0 %v435
  %838 = vmatpush1.bf16.msra.mxu0 %v434
  %839 = vmatprep.subr.bf16.mxu0 %v439
  %840 = vmatpush1.bf16.msra.mxu0 %v438
  %841 = vmatprep.subr.bf16.mxu0 0
  %842 = vmatpush1.bf16.msra.mxu0 0
  %843 = vmatprep.subr.bf16.mxu0 0
  %844 = vmatpush1.bf16.msra.mxu0 0
  %845 = vmatprep.subr.bf16.mxu0 0
  %846 = vmatpush1.bf16.msra.mxu0 0
  %847 = vmatprep.subr.bf16.mxu0 0
  %848 = vmatpush1.bf16.msra.mxu0 0
  %849 = vmatprep.subr.bf16.mxu0 0
  %850 = vmatpush1.bf16.msra.mxu0 0
  %851 = vmatprep.subr.bf16.mxu0 0
  %852 = vmatpush1.bf16.msra.mxu0 0
  %853 = vmatprep.subr.bf16.mxu0 0
  %854 = vmatpush1.bf16.msra.mxu0 0
  %855 = vmatprep.subr.bf16.mxu0 0
  %856 = vmatpush1.bf16.msra.mxu0 0
  %857 = vmatprep.mubr.bf16.mxu0 0
  %858 = vmatmul.mubr.bf16.gmra.mrb[0].mxu0 %v248
  %v859 = vpop.f32.mrb[0].mxu0
  %v860 = vadd.f32 0.0, %v859
  %v861 = vpop.f32.mrb[0].mxu0
  %v862 = vadd.f32 0.0, %v861
  %v863 = vpop.f32.mrb[0].mxu0
  %v864 = vadd.f32 0.0, %v863
  %v865 = vpop.f32.mrb[0].mxu0
  %v866 = vadd.f32 0.0, %v865
  %867 = vmatprep.mubr.bf16.mxu0 0
  %868 = vmatmul.mubr.bf16.gmra.mrb[0].mxu0 %v249
  %v869 = vpop.f32.mrb[0].mxu0
  %v870 = vadd.f32 0.0, %v869
  %v871 = vpop.f32.mrb[0].mxu0
  %v872 = vadd.f32 0.0, %v871
  %v873 = vpop.f32.mrb[0].mxu0
  %v874 = vadd.f32 0.0, %v873
  %v875 = vpop.f32.mrb[0].mxu0
  %v876 = vadd.f32 0.0, %v875
  %877 = vmatprep.mubr.bf16.mxu0 0
  %878 = vmatmul.mubr.bf16.gmra.mrb[0].mxu0 %v250
  %v879 = vpop.f32.mrb[0].mxu0
  %v880 = vadd.f32 0.0, %v879
  %v881 = vpop.f32.mrb[0].mxu0
  %v882 = vadd.f32 0.0, %v881
  %v883 = vpop.f32.mrb[0].mxu0
  %v884 = vadd.f32 0.0, %v883
  %v885 = vpop.f32.mrb[0].mxu0
  %v886 = vadd.f32 0.0, %v885
  %887 = vmatprep.mubr.bf16.mxu0 0
  %888 = vmatmul.mubr.bf16.gmra.mrb[0].mxu0 %v251
  %v889 = vpop.f32.mrb[0].mxu0
  %v890 = vadd.f32 0.0, %v889
  %v891 = vpop.f32.mrb[0].mxu0
  %v892 = vadd.f32 0.0, %v891
  %v893 = vpop.f32.mrb[0].mxu0
  %v894 = vadd.f32 0.0, %v893
  %v895 = vpop.f32.mrb[0].mxu0
  %v896 = vadd.f32 0.0, %v895
  %897 = vmatprep.mubr.bf16.mxu0 0
  %898 = vmatmul.mubr.bf16.gmra.mrb[0].mxu0 %v252
  %v899 = vpop.f32.mrb[0].mxu0
  %v900 = vadd.f32 0.0, %v899
  %v901 = vpop.f32.mrb[0].mxu0
  %v902 = vadd.f32 0.0, %v901
  %v903 = vpop.f32.mrb[0].mxu0
  %v904 = vadd.f32 0.0, %v903
  %v905 = vpop.f32.mrb[0].mxu0
  %v906 = vadd.f32 0.0, %v905
  %907 = vmatprep.mubr.bf16.mxu0 0
  %908 = vmatmul.mubr.bf16.gmra.mrb[0].mxu0 %v253
  %v909 = vpop.f32.mrb[0].mxu0
  %v910 = vadd.f32 0.0, %v909
  %v911 = vpop.f32.mrb[0].mxu0
  %v912 = vadd.f32 0.0, %v911
  %v913 = vpop.f32.mrb[0].mxu0
  %v914 = vadd.f32 0.0, %v913
  %v915 = vpop.f32.mrb[0].mxu0
  %v916 = vadd.f32 0.0, %v915
  %917 = vmatprep.mubr.bf16.mxu0 0
  %918 = vmatmul.mubr.bf16.gmra.mrb[0].mxu0 %v254
  %v919 = vpop.f32.mrb[0].mxu0
  %v920 = vadd.f32 0.0, %v919
  %v921 = vpop.f32.mrb[0].mxu0
  %v922 = vadd.f32 0.0, %v921
  %v923 = vpop.f32.mrb[0].mxu0
  %v924 = vadd.f32 0.0, %v923
  %v925 = vpop.f32.mrb[0].mxu0
  %v926 = vadd.f32 0.0, %v925
  %927 = vmatprep.mubr.bf16.mxu0 0
  %928 = vmatmul.mubr.bf16.gmra.mrb[0].mxu0 %v255
  %v929 = vpop.f32.mrb[0].mxu0
  %v930 = vadd.f32 0.0, %v929
  %v931 = vpop.f32.mrb[0].mxu0
  %v932 = vadd.f32 0.0, %v931
  %v933 = vpop.f32.mrb[0].mxu0
  %v934 = vadd.f32 0.0, %v933
  %v935 = vpop.f32.mrb[0].mxu0
  %v936 = vadd.f32 0.0, %v935
  %937 = vmatprep.mubr.bf16.mxu0 0
  %938 = vmatmul.mubr.bf16.gmra.mrb[0].mxu0 %v256
  %v939 = vpop.f32.mrb[0].mxu0
  %v940 = vadd.f32 0.0, %v939
  %v941 = vpop.f32.mrb[0].mxu0
  %v942 = vadd.f32 0.0, %v941
  %v943 = vpop.f32.mrb[0].mxu0
  %v944 = vadd.f32 0.0, %v943
  %v945 = vpop.f32.mrb[0].mxu0
  %v946 = vadd.f32 0.0, %v945
  %947 = vmatprep.mubr.bf16.mxu0 0
  %948 = vmatmul.mubr.bf16.gmra.mrb[0].mxu0 %v257
  %v949 = vpop.f32.mrb[0].mxu0
  %v950 = vadd.f32 0.0, %v949
  %v951 = vpop.f32.mrb[0].mxu0
  %v952 = vadd.f32 0.0, %v951
  %v953 = vpop.f32.mrb[0].mxu0
  %v954 = vadd.f32 0.0, %v953
  %v955 = vpop.f32.mrb[0].mxu0
  %v956 = vadd.f32 0.0, %v955
  %957 = vmatprep.mubr.bf16.mxu0 0
  %958 = vmatmul.mubr.bf16.gmra.mrb[0].mxu0 %v258
  %v959 = vpop.f32.mrb[0].mxu0
  %v960 = vadd.f32 0.0, %v959
  %v961 = vpop.f32.mrb[0].mxu0
  %v962 = vadd.f32 0.0, %v961
  %v963 = vpop.f32.mrb[0].mxu0
  %v964 = vadd.f32 0.0, %v963
  %v965 = vpop.f32.mrb[0].mxu0
  %v966 = vadd.f32 0.0, %v965
  %967 = vmatprep.mubr.bf16.mxu0 0
  %968 = vmatmul.mubr.bf16.gmra.mrb[0].mxu0 %v259
  %v969 = vpop.f32.mrb[0].mxu0
  %v970 = vadd.f32 0.0, %v969
  %v971 = vpop.f32.mrb[0].mxu0
  %v972 = vadd.f32 0.0, %v971
  %v973 = vpop.f32.mrb[0].mxu0
  %v974 = vadd.f32 0.0, %v973
  %v975 = vpop.f32.mrb[0].mxu0
  %v976 = vadd.f32 0.0, %v975
  %977 = vmatprep.mubr.bf16.mxu0 0
  %978 = vmatmul.mubr.bf16.gmra.mrb[0].mxu0 %v260
  %v979 = vpop.f32.mrb[0].mxu0
  %v980 = vadd.f32 0.0, %v979
  %v981 = vpop.f32.mrb[0].mxu0
  %v982 = vadd.f32 0.0, %v981
  %v983 = vpop.f32.mrb[0].mxu0
  %v984 = vadd.f32 0.0, %v983
  %v985 = vpop.f32.mrb[0].mxu0
  %v986 = vadd.f32 0.0, %v985
  %987 = vmatprep.mubr.bf16.mxu0 0
  %988 = vmatmul.mubr.bf16.gmra.mrb[0].mxu0 %v261
  %v989 = vpop.f32.mrb[0].mxu0
  %v990 = vadd.f32 0.0, %v989
  %v991 = vpop.f32.mrb[0].mxu0
  %v992 = vadd.f32 0.0, %v991
  %v993 = vpop.f32.mrb[0].mxu0
  %v994 = vadd.f32 0.0, %v993
  %v995 = vpop.f32.mrb[0].mxu0
  %v996 = vadd.f32 0.0, %v995
  %997 = vmatprep.mubr.bf16.mxu0 0
  %998 = vmatmul.mubr.bf16.gmra.mrb[0].mxu0 %v262
  %v999 = vpop.f32.mrb[0].mxu0
  %v1000 = vadd.f32 0.0, %v999
  %v1001 = vpop.f32.mrb[0].mxu0
  %v1002 = vadd.f32 0.0, %v1001
  %v1003 = vpop.f32.mrb[0].mxu0
  %v1004 = vadd.f32 0.0, %v1003
  %v1005 = vpop.f32.mrb[0].mxu0
  %v1006 = vadd.f32 0.0, %v1005
  %1007 = vmatprep.mubr.bf16.mxu0 0
  %1008 = vmatmul.mubr.bf16.gmra.mrb[0].mxu0 %v263
  %v1009 = vpop.f32.mrb[0].mxu0
  %v1010 = vadd.f32 0.0, %v1009
  %v1011 = vpop.f32.mrb[0].mxu0
  %v1012 = vadd.f32 0.0, %v1011
  %v1013 = vpop.f32.mrb[0].mxu0
  %v1014 = vadd.f32 0.0, %v1013
  %v1015 = vpop.f32.mrb[0].mxu0
  %v1016 = vadd.f32 0.0, %v1015
  %1017 = vmatprep.mubr.bf16.mxu0 0
  %1018 = vmatmul.mubr.bf16.gmra.mrb[0].mxu0 %v264
  %v1019 = vpop.f32.mrb[0].mxu0
  %v1020 = vadd.f32 0.0, %v1019
  %v1021 = vpop.f32.mrb[0].mxu0
  %v1022 = vadd.f32 0.0, %v1021
  %v1023 = vpop.f32.mrb[0].mxu0
  %v1024 = vadd.f32 0.0, %v1023
  %v1025 = vpop.f32.mrb[0].mxu0
  %v1026 = vadd.f32 0.0, %v1025
  %1027 = vmatprep.mubr.bf16.mxu0 0
  %1028 = vmatmul.mubr.bf16.gmra.mrb[0].mxu0 %v265
  %v1029 = vpop.f32.mrb[0].mxu0
  %v1030 = vadd.f32 0.0, %v1029
  %v1031 = vpop.f32.mrb[0].mxu0
  %v1032 = vadd.f32 0.0, %v1031
  %v1033 = vpop.f32.mrb[0].mxu0
  %v1034 = vadd.f32 0.0, %v1033
  %v1035 = vpop.f32.mrb[0].mxu0
  %v1036 = vadd.f32 0.0, %v1035
  %1037 = vmatprep.mubr.bf16.mxu0 0
  %1038 = vmatmul.mubr.bf16.gmra.mrb[0].mxu0 %v266
  %v1039 = vpop.f32.mrb[0].mxu0
  %v1040 = vadd.f32 0.0, %v1039
  %v1041 = vpop.f32.mrb[0].mxu0
  %v1042 = vadd.f32 0.0, %v1041
  %v1043 = vpop.f32.mrb[0].mxu0
  %v1044 = vadd.f32 0.0, %v1043
  %v1045 = vpop.f32.mrb[0].mxu0
  %v1046 = vadd.f32 0.0, %v1045
  %1047 = vmatprep.mubr.bf16.mxu0 0
  %1048 = vmatmul.mubr.bf16.gmra.mrb[0].mxu0 %v267
  %v1049 = vpop.f32.mrb[0].mxu0
  %v1050 = vadd.f32 0.0, %v1049
  %v1051 = vpop.f32.mrb[0].mxu0
  %v1052 = vadd.f32 0.0, %v1051
  %v1053 = vpop.f32.mrb[0].mxu0
  %v1054 = vadd.f32 0.0, %v1053
  %v1055 = vpop.f32.mrb[0].mxu0
  %v1056 = vadd.f32 0.0, %v1055
  %1057 = vmatprep.mubr.bf16.mxu0 0
  %1058 = vmatmul.mubr.bf16.gmra.mrb[0].mxu0 %v268
  %v1059 = vpop.f32.mrb[0].mxu0
  %v1060 = vadd.f32 0.0, %v1059
  %v1061 = vpop.f32.mrb[0].mxu0
  %v1062 = vadd.f32 0.0, %v1061
  %v1063 = vpop.f32.mrb[0].mxu0
  %v1064 = vadd.f32 0.0, %v1063
  %v1065 = vpop.f32.mrb[0].mxu0
  %v1066 = vadd.f32 0.0, %v1065
  %1067 = vmatprep.mubr.bf16.mxu0 0
  %1068 = vmatmul.mubr.bf16.gmra.mrb[0].mxu0 %v269
  %v1069 = vpop.f32.mrb[0].mxu0
  %v1070 = vadd.f32 0.0, %v1069
  %v1071 = vpop.f32.mrb[0].mxu0
  %v1072 = vadd.f32 0.0, %v1071
  %v1073 = vpop.f32.mrb[0].mxu0
  %v1074 = vadd.f32 0.0, %v1073
  %v1075 = vpop.f32.mrb[0].mxu0
  %v1076 = vadd.f32 0.0, %v1075
  %1077 = vmatprep.mubr.bf16.mxu0 0
  %1078 = vmatmul.mubr.bf16.gmra.mrb[0].mxu0 %v270
  %v1079 = vpop.f32.mrb[0].mxu0
  %v1080 = vadd.f32 0.0, %v1079
  %v1081 = vpop.f32.mrb[0].mxu0
  %v1082 = vadd.f32 0.0, %v1081
  %v1083 = vpop.f32.mrb[0].mxu0
  %v1084 = vadd.f32 0.0, %v1083
  %v1085 = vpop.f32.mrb[0].mxu0
  %v1086 = vadd.f32 0.0, %v1085
  %1087 = vmatprep.mubr.bf16.mxu0 0
  %1088 = vmatmul.mubr.bf16.gmra.mrb[0].mxu0 %v271
  %v1089 = vpop.f32.mrb[0].mxu0
  %v1090 = vadd.f32 0.0, %v1089
  %v1091 = vpop.f32.mrb[0].mxu0
  %v1092 = vadd.f32 0.0, %v1091
  %v1093 = vpop.f32.mrb[0].mxu0
  %v1094 = vadd.f32 0.0, %v1093
  %v1095 = vpop.f32.mrb[0].mxu0
  %v1096 = vadd.f32 0.0, %v1095
  %1097 = vmatprep.mubr.bf16.mxu0 0
  %1098 = vmatmul.mubr.bf16.gmra.mrb[0].mxu0 %v272
  %v1099 = vpop.f32.mrb[0].mxu0
  %v1100 = vadd.f32 0.0, %v1099
  %v1101 = vpop.f32.mrb[0].mxu0
  %v1102 = vadd.f32 0.0, %v1101
  %v1103 = vpop.f32.mrb[0].mxu0
  %v1104 = vadd.f32 0.0, %v1103
  %v1105 = vpop.f32.mrb[0].mxu0
  %v1106 = vadd.f32 0.0, %v1105
  %1107 = vmatprep.mubr.bf16.mxu0 0
  %1108 = vmatmul.mubr.bf16.gmra.mrb[0].mxu0 %v273
  %v1109 = vpop.f32.mrb[0].mxu0
  %v1110 = vadd.f32 0.0, %v1109
  %v1111 = vpop.f32.mrb[0].mxu0
  %v1112 = vadd.f32 0.0, %v1111
  %v1113 = vpop.f32.mrb[0].mxu0
  %v1114 = vadd.f32 0.0, %v1113
  %v1115 = vpop.f32.mrb[0].mxu0
  %v1116 = vadd.f32 0.0, %v1115
  %1117 = vmatprep.mubr.bf16.mxu0 0
  %1118 = vmatmul.mubr.bf16.gmra.mrb[0].mxu0 %v274
  %v1119 = vpop.f32.mrb[0].mxu0
  %v1120 = vadd.f32 0.0, %v1119
  %v1121 = vpop.f32.mrb[0].mxu0
  %v1122 = vadd.f32 0.0, %v1121
  %v1123 = vpop.f32.mrb[0].mxu0
  %v1124 = vadd.f32 0.0, %v1123
  %v1125 = vpop.f32.mrb[0].mxu0
  %v1126 = vadd.f32 0.0, %v1125
  %1127 = vmatprep.mubr.bf16.mxu0 0
  %1128 = vmatmul.mubr.bf16.gmra.mrb[0].mxu0 %v275
  %v1129 = vpop.f32.mrb[0].mxu0
  %v1130 = vadd.f32 0.0, %v1129
  %v1131 = vpop.f32.mrb[0].mxu0
  %v1132 = vadd.f32 0.0, %v1131
  %v1133 = vpop.f32.mrb[0].mxu0
  %v1134 = vadd.f32 0.0, %v1133
  %v1135 = vpop.f32.mrb[0].mxu0
  %v1136 = vadd.f32 0.0, %v1135
  %1137 = vmatprep.mubr.bf16.mxu0 0
  %1138 = vmatmul.mubr.bf16.gmra.mrb[0].mxu0 %v276
  %v1139 = vpop.f32.mrb[0].mxu0
  %v1140 = vadd.f32 0.0, %v1139
  %v1141 = vpop.f32.mrb[0].mxu0
  %v1142 = vadd.f32 0.0, %v1141
  %v1143 = vpop.f32.mrb[0].mxu0
  %v1144 = vadd.f32 0.0, %v1143
  %v1145 = vpop.f32.mrb[0].mxu0
  %v1146 = vadd.f32 0.0, %v1145
  %1147 = vmatprep.mubr.bf16.mxu0 0
  %1148 = vmatmul.mubr.bf16.gmra.mrb[0].mxu0 %v277
  %v1149 = vpop.f32.mrb[0].mxu0
  %v1150 = vadd.f32 0.0, %v1149
  %v1151 = vpop.f32.mrb[0].mxu0
  %v1152 = vadd.f32 0.0, %v1151
  %v1153 = vpop.f32.mrb[0].mxu0
  %v1154 = vadd.f32 0.0, %v1153
  %v1155 = vpop.f32.mrb[0].mxu0
  %v1156 = vadd.f32 0.0, %v1155
  %1157 = vmatprep.mubr.bf16.mxu0 0
  %1158 = vmatmul.mubr.bf16.gmra.mrb[0].mxu0 %v278
  %v1159 = vpop.f32.mrb[0].mxu0
  %v1160 = vadd.f32 0.0, %v1159
  %v1161 = vpop.f32.mrb[0].mxu0
  %v1162 = vadd.f32 0.0, %v1161
  %v1163 = vpop.f32.mrb[0].mxu0
  %v1164 = vadd.f32 0.0, %v1163
  %v1165 = vpop.f32.mrb[0].mxu0
  %v1166 = vadd.f32 0.0, %v1165
  %1167 = vmatprep.mubr.bf16.mxu0 0
  %1168 = vmatmul.mubr.bf16.gmra.mrb[0].mxu0 %v279
  %v1169 = vpop.f32.mrb[0].mxu0
  %v1170 = vadd.f32 0.0, %v1169
  %v1171 = vpop.f32.mrb[0].mxu0
  %v1172 = vadd.f32 0.0, %v1171
  %v1173 = vpop.f32.mrb[0].mxu0
  %v1174 = vadd.f32 0.0, %v1173
  %v1175 = vpop.f32.mrb[0].mxu0
  %v1176 = vadd.f32 0.0, %v1175
  %1177 = vdwg.mxu0
  %v1178 = vmax.f32 %v507, 0.0
  %v1179 = vmax.f32 %v509, 0.0
  %v1180 = vmax.f32 %v860, 0.0
  %v1181 = vmax.f32 %v862, 0.0
  %v1182 = vmax.f32 %v511, 0.0
  %v1183 = vmax.f32 %v513, 0.0
  %v1184 = vmax.f32 %v864, 0.0
  %v1185 = vmax.f32 %v866, 0.0
  %v1186 = vmax.f32 %v517, 0.0
  %v1187 = vmax.f32 %v519, 0.0
  %v1188 = vmax.f32 %v870, 0.0
  %v1189 = vmax.f32 %v872, 0.0
  %v1190 = vmax.f32 %v521, 0.0
  %v1191 = vmax.f32 %v523, 0.0
  %v1192 = vmax.f32 %v874, 0.0
  %v1193 = vmax.f32 %v876, 0.0
  %v1194 = vmax.f32 %v527, 0.0
  %v1195 = vmax.f32 %v529, 0.0
  %v1196 = vmax.f32 %v880, 0.0
  %v1197 = vmax.f32 %v882, 0.0
  %v1198 = vmax.f32 %v531, 0.0
  %v1199 = vmax.f32 %v533, 0.0
  %v1200 = vmax.f32 %v884, 0.0
  %v1201 = vmax.f32 %v886, 0.0
  %v1202 = vmax.f32 %v537, 0.0
  %v1203 = vmax.f32 %v539, 0.0
  %v1204 = vmax.f32 %v890, 0.0
  %v1205 = vmax.f32 %v892, 0.0
  %v1206 = vmax.f32 %v541, 0.0
  %v1207 = vmax.f32 %v543, 0.0
  %v1208 = vmax.f32 %v894, 0.0
  %v1209 = vmax.f32 %v896, 0.0
  %v1210 = vmax.f32 %v547, 0.0
  %v1211 = vmax.f32 %v549, 0.0
  %v1212 = vmax.f32 %v900, 0.0
  %v1213 = vmax.f32 %v902, 0.0
  %v1214 = vmax.f32 %v551, 0.0
  %v1215 = vmax.f32 %v553, 0.0
  %v1216 = vmax.f32 %v904, 0.0
  %v1217 = vmax.f32 %v906, 0.0
  %v1218 = vmax.f32 %v557, 0.0
  %v1219 = vmax.f32 %v559, 0.0
  %v1220 = vmax.f32 %v910, 0.0
  %v1221 = vmax.f32 %v912, 0.0
  %v1222 = vmax.f32 %v561, 0.0
  %v1223 = vmax.f32 %v563, 0.0
  %v1224 = vmax.f32 %v914, 0.0
  %v1225 = vmax.f32 %v916, 0.0
  %v1226 = vmax.f32 %v567, 0.0
  %v1227 = vmax.f32 %v569, 0.0
  %v1228 = vmax.f32 %v920, 0.0
  %v1229 = vmax.f32 %v922, 0.0
  %v1230 = vmax.f32 %v571, 0.0
  %v1231 = vmax.f32 %v573, 0.0
  %v1232 = vmax.f32 %v924, 0.0
  %v1233 = vmax.f32 %v926, 0.0
  %v1234 = vmax.f32 %v577, 0.0
  %v1235 = vmax.f32 %v579, 0.0
  %v1236 = vmax.f32 %v930, 0.0
  %v1237 = vmax.f32 %v932, 0.0
  %v1238 = vmax.f32 %v581, 0.0
  %v1239 = vmax.f32 %v583, 0.0
  %v1240 = vmax.f32 %v934, 0.0
  %v1241 = vmax.f32 %v936, 0.0
  %v1242 = vmax.f32 %v587, 0.0
  %v1243 = vmax.f32 %v589, 0.0
  %v1244 = vmax.f32 %v940, 0.0
  %v1245 = vmax.f32 %v942, 0.0
  %v1246 = vmax.f32 %v591, 0.0
  %v1247 = vmax.f32 %v593, 0.0
  %v1248 = vmax.f32 %v944, 0.0
  %v1249 = vmax.f32 %v946, 0.0
  %v1250 = vmax.f32 %v597, 0.0
  %v1251 = vmax.f32 %v599, 0.0
  %v1252 = vmax.f32 %v950, 0.0
  %v1253 = vmax.f32 %v952, 0.0
  %v1254 = vmax.f32 %v601, 0.0
  %v1255 = vmax.f32 %v603, 0.0
  %v1256 = vmax.f32 %v954, 0.0
  %v1257 = vmax.f32 %v956, 0.0
  %v1258 = vmax.f32 %v607, 0.0
  %v1259 = vmax.f32 %v609, 0.0
  %v1260 = vmax.f32 %v960, 0.0
  %v1261 = vmax.f32 %v962, 0.0
  %v1262 = vmax.f32 %v611, 0.0
  %v1263 = vmax.f32 %v613, 0.0
  %v1264 = vmax.f32 %v964, 0.0
  %v1265 = vmax.f32 %v966, 0.0
  %v1266 = vmax.f32 %v617, 0.0
  %v1267 = vmax.f32 %v619, 0.0
  %v1268 = vmax.f32 %v970, 0.0
  %v1269 = vmax.f32 %v972, 0.0
  %v1270 = vmax.f32 %v621, 0.0
  %v1271 = vmax.f32 %v623, 0.0
  %v1272 = vmax.f32 %v974, 0.0
  %v1273 = vmax.f32 %v976, 0.0
  %v1274 = vmax.f32 %v627, 0.0
  %v1275 = vmax.f32 %v629, 0.0
  %v1276 = vmax.f32 %v980, 0.0
  %v1277 = vmax.f32 %v982, 0.0
  %v1278 = vmax.f32 %v631, 0.0
  %v1279 = vmax.f32 %v633, 0.0
  %v1280 = vmax.f32 %v984, 0.0
  %v1281 = vmax.f32 %v986, 0.0
  %v1282 = vmax.f32 %v637, 0.0
  %v1283 = vmax.f32 %v639, 0.0
  %v1284 = vmax.f32 %v990, 0.0
  %v1285 = vmax.f32 %v992, 0.0
  %v1286 = vmax.f32 %v641, 0.0
  %v1287 = vmax.f32 %v643, 0.0
  %v1288 = vmax.f32 %v994, 0.0
  %v1289 = vmax.f32 %v996, 0.0
  %v1290 = vmax.f32 %v647, 0.0
  %v1291 = vmax.f32 %v649, 0.0
  %v1292 = vmax.f32 %v1000, 0.0
  %v1293 = vmax.f32 %v1002, 0.0
  %v1294 = vmax.f32 %v651, 0.0
  %v1295 = vmax.f32 %v653, 0.0
  %v1296 = vmax.f32 %v1004, 0.0
  %v1297 = vmax.f32 %v1006, 0.0
  %v1298 = vmax.f32 %v657, 0.0
  %v1299 = vmax.f32 %v659, 0.0
  %v1300 = vmax.f32 %v1010, 0.0
  %v1301 = vmax.f32 %v1012, 0.0
  %v1302 = vmax.f32 %v661, 0.0
  %v1303 = vmax.f32 %v663, 0.0
  %v1304 = vmax.f32 %v1014, 0.0
  %v1305 = vmax.f32 %v1016, 0.0
  %v1306 = vmax.f32 %v667, 0.0
  %v1307 = vmax.f32 %v669, 0.0
  %v1308 = vmax.f32 %v1020, 0.0
  %v1309 = vmax.f32 %v1022, 0.0
  %v1310 = vmax.f32 %v671, 0.0
  %v1311 = vmax.f32 %v673, 0.0
  %v1312 = vmax.f32 %v1024, 0.0
  %v1313 = vmax.f32 %v1026, 0.0
  %v1314 = vmax.f32 %v677, 0.0
  %v1315 = vmax.f32 %v679, 0.0
  %v1316 = vmax.f32 %v1030, 0.0
  %v1317 = vmax.f32 %v1032, 0.0
  %v1318 = vmax.f32 %v681, 0.0
  %v1319 = vmax.f32 %v683, 0.0
  %v1320 = vmax.f32 %v1034, 0.0
  %v1321 = vmax.f32 %v1036, 0.0
  %v1322 = vmax.f32 %v687, 0.0
  %v1323 = vmax.f32 %v689, 0.0
  %v1324 = vmax.f32 %v1040, 0.0
  %v1325 = vmax.f32 %v1042, 0.0
  %v1326 = vmax.f32 %v691, 0.0
  %v1327 = vmax.f32 %v693, 0.0
  %v1328 = vmax.f32 %v1044, 0.0
  %v1329 = vmax.f32 %v1046, 0.0
  %v1330 = vmax.f32 %v697, 0.0
  %v1331 = vmax.f32 %v699, 0.0
  %v1332 = vmax.f32 %v1050, 0.0
  %v1333 = vmax.f32 %v1052, 0.0
  %v1334 = vmax.f32 %v701, 0.0
  %v1335 = vmax.f32 %v703, 0.0
  %v1336 = vmax.f32 %v1054, 0.0
  %v1337 = vmax.f32 %v1056, 0.0
  %v1338 = vmax.f32 %v707, 0.0
  %v1339 = vmax.f32 %v709, 0.0
  %v1340 = vmax.f32 %v1060, 0.0
  %v1341 = vmax.f32 %v1062, 0.0
  %v1342 = vmax.f32 %v711, 0.0
  %v1343 = vmax.f32 %v713, 0.0
  %v1344 = vmax.f32 %v1064, 0.0
  %v1345 = vmax.f32 %v1066, 0.0
  %v1346 = vmax.f32 %v717, 0.0
  %v1347 = vmax.f32 %v719, 0.0
  %v1348 = vmax.f32 %v1070, 0.0
  %v1349 = vmax.f32 %v1072, 0.0
  %v1350 = vmax.f32 %v721, 0.0
  %v1351 = vmax.f32 %v723, 0.0
  %v1352 = vmax.f32 %v1074, 0.0
  %v1353 = vmax.f32 %v1076, 0.0
  %v1354 = vmax.f32 %v727, 0.0
  %v1355 = vmax.f32 %v729, 0.0
  %v1356 = vmax.f32 %v1080, 0.0
  %v1357 = vmax.f32 %v1082, 0.0
  %v1358 = vmax.f32 %v731, 0.0
  %v1359 = vmax.f32 %v733, 0.0
  %v1360 = vmax.f32 %v1084, 0.0
  %v1361 = vmax.f32 %v1086, 0.0
  %v1362 = vmax.f32 %v737, 0.0
  %v1363 = vmax.f32 %v739, 0.0
  %v1364 = vmax.f32 %v1090, 0.0
  %v1365 = vmax.f32 %v1092, 0.0
  %v1366 = vmax.f32 %v741, 0.0
  %v1367 = vmax.f32 %v743, 0.0
  %v1368 = vmax.f32 %v1094, 0.0
  %v1369 = vmax.f32 %v1096, 0.0
  %v1370 = vmax.f32 %v747, 0.0
  %v1371 = vmax.f32 %v749, 0.0
  %v1372 = vmax.f32 %v1100, 0.0
  %v1373 = vmax.f32 %v1102, 0.0
  %v1374 = vmax.f32 %v751, 0.0
  %v1375 = vmax.f32 %v753, 0.0
  %v1376 = vmax.f32 %v1104, 0.0
  %v1377 = vmax.f32 %v1106, 0.0
  %v1378 = vmax.f32 %v757, 0.0
  %v1379 = vmax.f32 %v759, 0.0
  %v1380 = vmax.f32 %v1110, 0.0
  %v1381 = vmax.f32 %v1112, 0.0
  %v1382 = vmax.f32 %v761, 0.0
  %v1383 = vmax.f32 %v763, 0.0
  %v1384 = vmax.f32 %v1114, 0.0
  %v1385 = vmax.f32 %v1116, 0.0
  %v1386 = vmax.f32 %v767, 0.0
  %v1387 = vmax.f32 %v769, 0.0
  %v1388 = vmax.f32 %v1120, 0.0
  %v1389 = vmax.f32 %v1122, 0.0
  %v1390 = vmax.f32 %v771, 0.0
  %v1391 = vmax.f32 %v773, 0.0
  %v1392 = vmax.f32 %v1124, 0.0
  %v1393 = vmax.f32 %v1126, 0.0
  %v1394 = vmax.f32 %v777, 0.0
  %v1395 = vmax.f32 %v779, 0.0
  %v1396 = vmax.f32 %v1130, 0.0
  %v1397 = vmax.f32 %v1132, 0.0
  %v1398 = vmax.f32 %v781, 0.0
  %v1399 = vmax.f32 %v783, 0.0
  %v1400 = vmax.f32 %v1134, 0.0
  %v1401 = vmax.f32 %v1136, 0.0
  %v1402 = vmax.f32 %v787, 0.0
  %v1403 = vmax.f32 %v789, 0.0
  %v1404 = vmax.f32 %v1140, 0.0
  %v1405 = vmax.f32 %v1142, 0.0
  %v1406 = vmax.f32 %v791, 0.0
  %v1407 = vmax.f32 %v793, 0.0
  %v1408 = vmax.f32 %v1144, 0.0
  %v1409 = vmax.f32 %v1146, 0.0
  %v1410 = vmax.f32 %v797, 0.0
  %v1411 = vmax.f32 %v799, 0.0
  %v1412 = vmax.f32 %v1150, 0.0
  %v1413 = vmax.f32 %v1152, 0.0
  %v1414 = vmax.f32 %v801, 0.0
  %v1415 = vmax.f32 %v803, 0.0
  %v1416 = vmax.f32 %v1154, 0.0
  %v1417 = vmax.f32 %v1156, 0.0
  %v1418 = vmax.f32 %v807, 0.0
  %v1419 = vmax.f32 %v809, 0.0
  %v1420 = vmax.f32 %v1160, 0.0
  %v1421 = vmax.f32 %v1162, 0.0
  %v1422 = vmax.f32 %v811, 0.0
  %v1423 = vmax.f32 %v813, 0.0
  %v1424 = vmax.f32 %v1164, 0.0
  %v1425 = vmax.f32 %v1166, 0.0
  %v1426 = vmax.f32 %v817, 0.0
  %v1427 = vmax.f32 %v819, 0.0
  %v1428 = vmax.f32 %v1170, 0.0
  %v1429 = vmax.f32 %v1172, 0.0
  %v1430 = vmax.f32 %v821, 0.0
  %v1431 = vmax.f32 %v823, 0.0
  %v1432 = vmax.f32 %v1174, 0.0
  %v1433 = vmax.f32 %v1176, 0.0
  %v1434 = vld [vmem:[%s2] sm:$0xff]
  %v1435 = vld [vmem:[%s2 + $0x8] sm:$0xff]
  %v1436 = vld [vmem:[%s2 + $0x10] sm:$0xff]
  %v1437 = vld [vmem:[%s2 + $0x18] sm:$0xff]
  %v1438 = vld [vmem:[%s2 + $0x20] sm:$0xff]
  %v1439 = vld [vmem:[%s2 + $0x28] sm:$0xff]
  %v1440 = vld [vmem:[%s2 + $0x30] sm:$0xff]
  %v1441 = vld [vmem:[%s2 + $0x38] sm:$0xff]
  %v1442 = vld [vmem:[%s2 + $0x40] sm:$0xff]
  %v1443 = vld [vmem:[%s2 + $0x48] sm:$0xff]
  %v1444 = vld [vmem:[%s2 + $0x50] sm:$0xff]
  %v1445 = vld [vmem:[%s2 + $0x58] sm:$0xff]
  %v1446 = vld [vmem:[%s2 + $0x60] sm:$0xff]
  %v1447 = vld [vmem:[%s2 + $0x68] sm:$0xff]
  %v1448 = vld [vmem:[%s2 + $0x70] sm:$0xff]
  %v1449 = vld [vmem:[%s2 + $0x78] sm:$0xff]
  %v1450 = vld [vmem:[%s2 + $0x80] sm:$0xff]
  %v1451 = vld [vmem:[%s2 + $0x88] sm:$0xff]
  %v1452 = vld [vmem:[%s2 + $0x90] sm:$0xff]
  %v1453 = vld [vmem:[%s2 + $0x98] sm:$0xff]
  %v1454 = vld [vmem:[%s2 + $0xa0] sm:$0xff]
  %v1455 = vld [vmem:[%s2 + $0xa8] sm:$0xff]
  %v1456 = vld [vmem:[%s2 + $0xb0] sm:$0xff]
  %v1457 = vld [vmem:[%s2 + $0xb8] sm:$0xff]
  %v1458 = vld [vmem:[%s2 + $0xc0] sm:$0xff]
  %v1459 = vld [vmem:[%s2 + $0xc8] sm:$0xff]
  %v1460 = vld [vmem:[%s2 + $0xd0] sm:$0xff]
  %v1461 = vld [vmem:[%s2 + $0xd8] sm:$0xff]
  %v1462 = vld [vmem:[%s2 + $0xe0] sm:$0xff]
  %v1463 = vld [vmem:[%s2 + $0xe8] sm:$0xff]
  %v1464 = vld [vmem:[%s2 + $0xf0] sm:$0xff]
  %v1465 = vld [vmem:[%s2 + $0xf8] sm:$0xff]
  %v1466 = vld [vmem:[%s2 + $0x100] sm:$0xff]
  %v1467 = vld [vmem:[%s2 + $0x108] sm:$0xff]
  %v1468 = vld [vmem:[%s2 + $0x110] sm:$0xff]
  %v1469 = vld [vmem:[%s2 + $0x118] sm:$0xff]
  %v1470 = vld [vmem:[%s2 + $0x120] sm:$0xff]
  %v1471 = vld [vmem:[%s2 + $0x128] sm:$0xff]
  %v1472 = vld [vmem:[%s2 + $0x130] sm:$0xff]
  %v1473 = vld [vmem:[%s2 + $0x138] sm:$0xff]
  %v1474 = vld [vmem:[%s2 + $0x140] sm:$0xff]
  %v1475 = vld [vmem:[%s2 + $0x148] sm:$0xff]
  %v1476 = vld [vmem:[%s2 + $0x150] sm:$0xff]
  %v1477 = vld [vmem:[%s2 + $0x158] sm:$0xff]
  %v1478 = vld [vmem:[%s2 + $0x160] sm:$0xff]
  %v1479 = vld [vmem:[%s2 + $0x168] sm:$0xff]
  %v1480 = vld [vmem:[%s2 + $0x170] sm:$0xff]
  %v1481 = vld [vmem:[%s2 + $0x178] sm:$0xff]
  %v1482 = vld [vmem:[%s2 + $0x180] sm:$0xff]
  %v1483 = vld [vmem:[%s2 + $0x188] sm:$0xff]
  %v1484 = vld [vmem:[%s2 + $0x190] sm:$0xff]
  %v1485 = vld [vmem:[%s2 + $0x198] sm:$0xff]
  %v1486 = vld [vmem:[%s2 + $0x1a0] sm:$0xff]
  %v1487 = vld [vmem:[%s2 + $0x1a8] sm:$0xff]
  %v1488 = vld [vmem:[%s2 + $0x1b0] sm:$0xff]
  %v1489 = vld [vmem:[%s2 + $0x1b8] sm:$0xff]
  %v1490 = vld [vmem:[%s2 + $0x1c0] sm:$0xff]
  %v1491 = vld [vmem:[%s2 + $0x1c8] sm:$0xff]
  %v1492 = vld [vmem:[%s2 + $0x1d0] sm:$0xff]
  %v1493 = vld [vmem:[%s2 + $0x1d8] sm:$0xff]
  %v1494 = vld [vmem:[%s2 + $0x1e0] sm:$0xff]
  %v1495 = vld [vmem:[%s2 + $0x1e8] sm:$0xff]
  %v1496 = vld [vmem:[%s2 + $0x1f0] sm:$0xff]
  %v1497 = vld [vmem:[%s2 + $0x1f8] sm:$0xff]
  %v1498 = vpack.c.bf16 %v1182, %v1178
  %v1499 = vpack.c.bf16 %v1183, %v1179
  %v1500 = vpack.c.bf16 %v1184, %v1180
  %v1501 = vpack.c.bf16 %v1185, %v1181
  %v1502 = vpack.c.bf16 %v1190, %v1186
  %v1503 = vpack.c.bf16 %v1191, %v1187
  %v1504 = vpack.c.bf16 %v1192, %v1188
  %v1505 = vpack.c.bf16 %v1193, %v1189
  %v1506 = vpack.c.bf16 %v1198, %v1194
  %v1507 = vpack.c.bf16 %v1199, %v1195
  %v1508 = vpack.c.bf16 %v1200, %v1196
  %v1509 = vpack.c.bf16 %v1201, %v1197
  %v1510 = vpack.c.bf16 %v1206, %v1202
  %v1511 = vpack.c.bf16 %v1207, %v1203
  %v1512 = vpack.c.bf16 %v1208, %v1204
  %v1513 = vpack.c.bf16 %v1209, %v1205
  %v1514 = vpack.c.bf16 %v1214, %v1210
  %v1515 = vpack.c.bf16 %v1215, %v1211
  %v1516 = vpack.c.bf16 %v1216, %v1212
  %v1517 = vpack.c.bf16 %v1217, %v1213
  %v1518 = vpack.c.bf16 %v1222, %v1218
  %v1519 = vpack.c.bf16 %v1223, %v1219
  %v1520 = vpack.c.bf16 %v1224, %v1220
  %v1521 = vpack.c.bf16 %v1225, %v1221
  %v1522 = vpack.c.bf16 %v1230, %v1226
  %v1523 = vpack.c.bf16 %v1231, %v1227
  %v1524 = vpack.c.bf16 %v1232, %v1228
  %v1525 = vpack.c.bf16 %v1233, %v1229
  %v1526 = vpack.c.bf16 %v1238, %v1234
  %v1527 = vpack.c.bf16 %v1239, %v1235
  %v1528 = vpack.c.bf16 %v1240, %v1236
  %v1529 = vpack.c.bf16 %v1241, %v1237
  %v1530 = vpack.c.bf16 %v1246, %v1242
  %v1531 = vpack.c.bf16 %v1247, %v1243
  %v1532 = vpack.c.bf16 %v1248, %v1244
  %v1533 = vpack.c.bf16 %v1249, %v1245
  %v1534 = vpack.c.bf16 %v1254, %v1250
  %v1535 = vpack.c.bf16 %v1255, %v1251
  %v1536 = vpack.c.bf16 %v1256, %v1252
  %v1537 = vpack.c.bf16 %v1257, %v1253
  %v1538 = vpack.c.bf16 %v1262, %v1258
  %v1539 = vpack.c.bf16 %v1263, %v1259
  %v1540 = vpack.c.bf16 %v1264, %v1260
  %v1541 = vpack.c.bf16 %v1265, %v1261
  %v1542 = vpack.c.bf16 %v1270, %v1266
  %v1543 = vpack.c.bf16 %v1271, %v1267
  %v1544 = vpack.c.bf16 %v1272, %v1268
  %v1545 = vpack.c.bf16 %v1273, %v1269
  %v1546 = vpack.c.bf16 %v1278, %v1274
  %v1547 = vpack.c.bf16 %v1279, %v1275
  %v1548 = vpack.c.bf16 %v1280, %v1276
  %v1549 = vpack.c.bf16 %v1281, %v1277
  %v1550 = vpack.c.bf16 %v1286, %v1282
  %v1551 = vpack.c.bf16 %v1287, %v1283
  %v1552 = vpack.c.bf16 %v1288, %v1284
  %v1553 = vpack.c.bf16 %v1289, %v1285
  %v1554 = vpack.c.bf16 %v1294, %v1290
  %v1555 = vpack.c.bf16 %v1295, %v1291
  %v1556 = vpack.c.bf16 %v1296, %v1292
  %v1557 = vpack.c.bf16 %v1297, %v1293
  %v1558 = vpack.c.bf16 %v1302, %v1298
  %v1559 = vpack.c.bf16 %v1303, %v1299
  %v1560 = vpack.c.bf16 %v1304, %v1300
  %v1561 = vpack.c.bf16 %v1305, %v1301
  %v1562 = vpack.c.bf16 %v1310, %v1306
  %v1563 = vpack.c.bf16 %v1311, %v1307
  %v1564 = vpack.c.bf16 %v1312, %v1308
  %v1565 = vpack.c.bf16 %v1313, %v1309
  %v1566 = vpack.c.bf16 %v1318, %v1314
  %v1567 = vpack.c.bf16 %v1319, %v1315
  %v1568 = vpack.c.bf16 %v1320, %v1316
  %v1569 = vpack.c.bf16 %v1321, %v1317
  %v1570 = vpack.c.bf16 %v1326, %v1322
  %v1571 = vpack.c.bf16 %v1327, %v1323
  %v1572 = vpack.c.bf16 %v1328, %v1324
  %v1573 = vpack.c.bf16 %v1329, %v1325
  %v1574 = vpack.c.bf16 %v1334, %v1330
  %v1575 = vpack.c.bf16 %v1335, %v1331
  %v1576 = vpack.c.bf16 %v1336, %v1332
  %v1577 = vpack.c.bf16 %v1337, %v1333
  %v1578 = vpack.c.bf16 %v1342, %v1338
  %v1579 = vpack.c.bf16 %v1343, %v1339
  %v1580 = vpack.c.bf16 %v1344, %v1340
  %v1581 = vpack.c.bf16 %v1345, %v1341
  %v1582 = vpack.c.bf16 %v1350, %v1346
  %v1583 = vpack.c.bf16 %v1351, %v1347
  %v1584 = vpack.c.bf16 %v1352, %v1348
  %v1585 = vpack.c.bf16 %v1353, %v1349
  %v1586 = vpack.c.bf16 %v1358, %v1354
  %v1587 = vpack.c.bf16 %v1359, %v1355
  %v1588 = vpack.c.bf16 %v1360, %v1356
  %v1589 = vpack.c.bf16 %v1361, %v1357
  %v1590 = vpack.c.bf16 %v1366, %v1362
  %v1591 = vpack.c.bf16 %v1367, %v1363
  %v1592 = vpack.c.bf16 %v1368, %v1364
  %v1593 = vpack.c.bf16 %v1369, %v1365
  %v1594 = vpack.c.bf16 %v1374, %v1370
  %v1595 = vpack.c.bf16 %v1375, %v1371
  %v1596 = vpack.c.bf16 %v1376, %v1372
  %v1597 = vpack.c.bf16 %v1377, %v1373
  %v1598 = vpack.c.bf16 %v1382, %v1378
  %v1599 = vpack.c.bf16 %v1383, %v1379
  %v1600 = vpack.c.bf16 %v1384, %v1380
  %v1601 = vpack.c.bf16 %v1385, %v1381
  %v1602 = vpack.c.bf16 %v1390, %v1386
  %v1603 = vpack.c.bf16 %v1391, %v1387
  %v1604 = vpack.c.bf16 %v1392, %v1388
  %v1605 = vpack.c.bf16 %v1393, %v1389
  %v1606 = vpack.c.bf16 %v1398, %v1394
  %v1607 = vpack.c.bf16 %v1399, %v1395
  %v1608 = vpack.c.bf16 %v1400, %v1396
  %v1609 = vpack.c.bf16 %v1401, %v1397
  %v1610 = vpack.c.bf16 %v1406, %v1402
  %v1611 = vpack.c.bf16 %v1407, %v1403
  %v1612 = vpack.c.bf16 %v1408, %v1404
  %v1613 = vpack.c.bf16 %v1409, %v1405
  %v1614 = vpack.c.bf16 %v1414, %v1410
  %v1615 = vpack.c.bf16 %v1415, %v1411
  %v1616 = vpack.c.bf16 %v1416, %v1412
  %v1617 = vpack.c.bf16 %v1417, %v1413
  %v1618 = vpack.c.bf16 %v1422, %v1418
  %v1619 = vpack.c.bf16 %v1423, %v1419
  %v1620 = vpack.c.bf16 %v1424, %v1420
  %v1621 = vpack.c.bf16 %v1425, %v1421
  %v1622 = vpack.c.bf16 %v1430, %v1426
  %v1623 = vpack.c.bf16 %v1431, %v1427
  %v1624 = vpack.c.bf16 %v1432, %v1428
  %v1625 = vpack.c.bf16 %v1433, %v1429
  %v1626 = vld [vmem:[%s3] sm:$0xff]
  %v1627 = vld [vmem:[%s3 + $0x8] sm:$0xff]
  %v1628 = vld [vmem:[%s3 + $0x10] sm:$0xff]
  %v1629 = vld [vmem:[%s3 + $0x18] sm:$0xff]
  %v1630 = vld [vmem:[%s3 + $0x20] sm:$0xff]
  %v1631 = vld [vmem:[%s3 + $0x28] sm:$0xff]
  %v1632 = vld [vmem:[%s3 + $0x30] sm:$0xff]
  %v1633 = vld [vmem:[%s3 + $0x38] sm:$0xff]
  %v1634 = vld [vmem:[%s3 + $0x40] sm:$0xff]
  %v1635 = vld [vmem:[%s3 + $0x48] sm:$0xff]
  %v1636 = vld [vmem:[%s3 + $0x50] sm:$0xff]
  %v1637 = vld [vmem:[%s3 + $0x58] sm:$0xff]
  %v1638 = vld [vmem:[%s3 + $0x60] sm:$0xff]
  %v1639 = vld [vmem:[%s3 + $0x68] sm:$0xff]
  %v1640 = vld [vmem:[%s3 + $0x70] sm:$0xff]
  %v1641 = vld [vmem:[%s3 + $0x78] sm:$0xff]
  %v1642 = vld [vmem:[%s3 + $0x80] sm:$0xff]
  %v1643 = vld [vmem:[%s3 + $0x88] sm:$0xff]
  %v1644 = vld [vmem:[%s3 + $0x90] sm:$0xff]
  %v1645 = vld [vmem:[%s3 + $0x98] sm:$0xff]
  %v1646 = vld [vmem:[%s3 + $0xa0] sm:$0xff]
  %v1647 = vld [vmem:[%s3 + $0xa8] sm:$0xff]
  %v1648 = vld [vmem:[%s3 + $0xb0] sm:$0xff]
  %v1649 = vld [vmem:[%s3 + $0xb8] sm:$0xff]
  %v1650 = vld [vmem:[%s3 + $0xc0] sm:$0xff]
  %v1651 = vld [vmem:[%s3 + $0xc8] sm:$0xff]
  %v1652 = vld [vmem:[%s3 + $0xd0] sm:$0xff]
  %v1653 = vld [vmem:[%s3 + $0xd8] sm:$0xff]
  %v1654 = vld [vmem:[%s3 + $0xe0] sm:$0xff]
  %v1655 = vld [vmem:[%s3 + $0xe8] sm:$0xff]
  %v1656 = vld [vmem:[%s3 + $0xf0] sm:$0xff]
  %v1657 = vld [vmem:[%s3 + $0xf8] sm:$0xff]
  %1659 = vset.pattern.permute.xlu0 0
  %1660 = vperm.xlu0 %1659, %v1626
  %v1661 = vpop.permute.xlu0 %1660
  %1664 = vset.pattern.permute.xlu0 0
  %1665 = vperm.xlu0 %1664, %v1627
  %v1666 = vpop.permute.xlu0 %1665
  %1669 = vset.pattern.permute.xlu0 0
  %1670 = vperm.xlu0 %1669, %v1628
  %v1671 = vpop.permute.xlu0 %1670
  %1674 = vset.pattern.permute.xlu0 0
  %1675 = vperm.xlu0 %1674, %v1629
  %v1676 = vpop.permute.xlu0 %1675
  %1679 = vset.pattern.permute.xlu0 0
  %1680 = vperm.xlu0 %1679, %v1630
  %v1681 = vpop.permute.xlu0 %1680
  %1684 = vset.pattern.permute.xlu0 0
  %1685 = vperm.xlu0 %1684, %v1631
  %v1686 = vpop.permute.xlu0 %1685
  %1689 = vset.pattern.permute.xlu0 0
  %1690 = vperm.xlu0 %1689, %v1632
  %v1691 = vpop.permute.xlu0 %1690
  %1694 = vset.pattern.permute.xlu0 0
  %1695 = vperm.xlu0 %1694, %v1633
  %v1696 = vpop.permute.xlu0 %1695
  %1699 = vset.pattern.permute.xlu0 0
  %1700 = vperm.xlu0 %1699, %v1634
  %v1701 = vpop.permute.xlu0 %1700
  %1704 = vset.pattern.permute.xlu0 0
  %1705 = vperm.xlu0 %1704, %v1635
  %v1706 = vpop.permute.xlu0 %1705
  %1709 = vset.pattern.permute.xlu0 0
  %1710 = vperm.xlu0 %1709, %v1636
  %v1711 = vpop.permute.xlu0 %1710
  %1714 = vset.pattern.permute.xlu0 0
  %1715 = vperm.xlu0 %1714, %v1637
  %v1716 = vpop.permute.xlu0 %1715
  %1719 = vset.pattern.permute.xlu0 0
  %1720 = vperm.xlu0 %1719, %v1638
  %v1721 = vpop.permute.xlu0 %1720
  %1724 = vset.pattern.permute.xlu0 0
  %1725 = vperm.xlu0 %1724, %v1639
  %v1726 = vpop.permute.xlu0 %1725
  %1729 = vset.pattern.permute.xlu0 0
  %1730 = vperm.xlu0 %1729, %v1640
  %v1731 = vpop.permute.xlu0 %1730
  %1734 = vset.pattern.permute.xlu0 0
  %1735 = vperm.xlu0 %1734, %v1641
  %v1736 = vpop.permute.xlu0 %1735
  %1739 = vset.pattern.permute.xlu0 0
  %1740 = vperm.xlu0 %1739, %v1642
  %v1741 = vpop.permute.xlu0 %1740
  %1744 = vset.pattern.permute.xlu0 0
  %1745 = vperm.xlu0 %1744, %v1643
  %v1746 = vpop.permute.xlu0 %1745
  %1749 = vset.pattern.permute.xlu0 0
  %1750 = vperm.xlu0 %1749, %v1644
  %v1751 = vpop.permute.xlu0 %1750
  %1754 = vset.pattern.permute.xlu0 0
  %1755 = vperm.xlu0 %1754, %v1645
  %v1756 = vpop.permute.xlu0 %1755
  %1759 = vset.pattern.permute.xlu0 0
  %1760 = vperm.xlu0 %1759, %v1646
  %v1761 = vpop.permute.xlu0 %1760
  %1764 = vset.pattern.permute.xlu0 0
  %1765 = vperm.xlu0 %1764, %v1647
  %v1766 = vpop.permute.xlu0 %1765
  %1769 = vset.pattern.permute.xlu0 0
  %1770 = vperm.xlu0 %1769, %v1648
  %v1771 = vpop.permute.xlu0 %1770
  %1774 = vset.pattern.permute.xlu0 0
  %1775 = vperm.xlu0 %1774, %v1649
  %v1776 = vpop.permute.xlu0 %1775
  %1779 = vset.pattern.permute.xlu0 0
  %1780 = vperm.xlu0 %1779, %v1650
  %v1781 = vpop.permute.xlu0 %1780
  %1784 = vset.pattern.permute.xlu0 0
  %1785 = vperm.xlu0 %1784, %v1651
  %v1786 = vpop.permute.xlu0 %1785
  %1789 = vset.pattern.permute.xlu0 0
  %1790 = vperm.xlu0 %1789, %v1652
  %v1791 = vpop.permute.xlu0 %1790
  %1794 = vset.pattern.permute.xlu0 0
  %1795 = vperm.xlu0 %1794, %v1653
  %v1796 = vpop.permute.xlu0 %1795
  %1799 = vset.pattern.permute.xlu0 0
  %1800 = vperm.xlu0 %1799, %v1654
  %v1801 = vpop.permute.xlu0 %1800
  %1804 = vset.pattern.permute.xlu0 0
  %1805 = vperm.xlu0 %1804, %v1655
  %v1806 = vpop.permute.xlu0 %1805
  %1809 = vset.pattern.permute.xlu0 0
  %1810 = vperm.xlu0 %1809, %v1656
  %v1811 = vpop.permute.xlu0 %1810
  %1814 = vset.pattern.permute.xlu0 0
  %1815 = vperm.xlu0 %1814, %v1657
  %v1816 = vpop.permute.xlu0 %1815
  %v1882 = vunpack.c.l.b16 %v1434
  %v1883 = vunpack.c.h.b16 %v1434
  %v1884 = vunpack.c.l.b16 %v1435
  %v1885 = vunpack.c.h.b16 %v1435
  %v1886 = vunpack.c.l.b16 %v1436
  %v1887 = vunpack.c.h.b16 %v1436
  %v1888 = vunpack.c.l.b16 %v1437
  %v1889 = vunpack.c.h.b16 %v1437
  %v1890 = vunpack.c.l.b16 %v1438
  %v1891 = vunpack.c.h.b16 %v1438
  %v1892 = vunpack.c.l.b16 %v1439
  %v1893 = vunpack.c.h.b16 %v1439
  %v1894 = vunpack.c.l.b16 %v1440
  %v1895 = vunpack.c.h.b16 %v1440
  %v1896 = vunpack.c.l.b16 %v1441
  %v1897 = vunpack.c.h.b16 %v1441
  %v1898 = vunpack.c.l.b16 %v1442
  %v1899 = vunpack.c.h.b16 %v1442
  %v1900 = vunpack.c.l.b16 %v1443
  %v1901 = vunpack.c.h.b16 %v1443
  %v1902 = vunpack.c.l.b16 %v1444
  %v1903 = vunpack.c.h.b16 %v1444
  %v1904 = vunpack.c.l.b16 %v1445
  %v1905 = vunpack.c.h.b16 %v1445
  %v1906 = vunpack.c.l.b16 %v1446
  %v1907 = vunpack.c.h.b16 %v1446
  %v1908 = vunpack.c.l.b16 %v1447
  %v1909 = vunpack.c.h.b16 %v1447
  %v1910 = vunpack.c.l.b16 %v1448
  %v1911 = vunpack.c.h.b16 %v1448
  %v1912 = vunpack.c.l.b16 %v1449
  %v1913 = vunpack.c.h.b16 %v1449
  %v1914 = vunpack.c.l.b16 %v1450
  %v1915 = vunpack.c.h.b16 %v1450
  %v1916 = vunpack.c.l.b16 %v1451
  %v1917 = vunpack.c.h.b16 %v1451
  %v1918 = vunpack.c.l.b16 %v1452
  %v1919 = vunpack.c.h.b16 %v1452
  %v1920 = vunpack.c.l.b16 %v1453
  %v1921 = vunpack.c.h.b16 %v1453
  %v1922 = vunpack.c.l.b16 %v1454
  %v1923 = vunpack.c.h.b16 %v1454
  %v1924 = vunpack.c.l.b16 %v1455
  %v1925 = vunpack.c.h.b16 %v1455
  %v1926 = vunpack.c.l.b16 %v1456
  %v1927 = vunpack.c.h.b16 %v1456
  %v1928 = vunpack.c.l.b16 %v1457
  %v1929 = vunpack.c.h.b16 %v1457
  %v1930 = vunpack.c.l.b16 %v1458
  %v1931 = vunpack.c.h.b16 %v1458
  %v1932 = vunpack.c.l.b16 %v1459
  %v1933 = vunpack.c.h.b16 %v1459
  %v1934 = vunpack.c.l.b16 %v1460
  %v1935 = vunpack.c.h.b16 %v1460
  %v1936 = vunpack.c.l.b16 %v1461
  %v1937 = vunpack.c.h.b16 %v1461
  %v1938 = vunpack.c.l.b16 %v1462
  %v1939 = vunpack.c.h.b16 %v1462
  %v1940 = vunpack.c.l.b16 %v1463
  %v1941 = vunpack.c.h.b16 %v1463
  %v1942 = vunpack.c.l.b16 %v1464
  %v1943 = vunpack.c.h.b16 %v1464
  %v1944 = vunpack.c.l.b16 %v1465
  %v1945 = vunpack.c.h.b16 %v1465
  %v1946 = vunpack.c.l.b16 %v1466
  %v1947 = vunpack.c.h.b16 %v1466
  %v1948 = vunpack.c.l.b16 %v1467
  %v1949 = vunpack.c.h.b16 %v1467
  %v1950 = vunpack.c.l.b16 %v1468
  %v1951 = vunpack.c.h.b16 %v1468
  %v1952 = vunpack.c.l.b16 %v1469
  %v1953 = vunpack.c.h.b16 %v1469
  %v1954 = vunpack.c.l.b16 %v1470
  %v1955 = vunpack.c.h.b16 %v1470
  %v1956 = vunpack.c.l.b16 %v1471
  %v1957 = vunpack.c.h.b16 %v1471
  %v1958 = vunpack.c.l.b16 %v1472
  %v1959 = vunpack.c.h.b16 %v1472
  %v1960 = vunpack.c.l.b16 %v1473
  %v1961 = vunpack.c.h.b16 %v1473
  %v1962 = vunpack.c.l.b16 %v1474
  %v1963 = vunpack.c.h.b16 %v1474
  %v1964 = vunpack.c.l.b16 %v1475
  %v1965 = vunpack.c.h.b16 %v1475
  %v1966 = vunpack.c.l.b16 %v1476
  %v1967 = vunpack.c.h.b16 %v1476
  %v1968 = vunpack.c.l.b16 %v1477
  %v1969 = vunpack.c.h.b16 %v1477
  %v1970 = vunpack.c.l.b16 %v1478
  %v1971 = vunpack.c.h.b16 %v1478
  %v1972 = vunpack.c.l.b16 %v1479
  %v1973 = vunpack.c.h.b16 %v1479
  %v1974 = vunpack.c.l.b16 %v1480
  %v1975 = vunpack.c.h.b16 %v1480
  %v1976 = vunpack.c.l.b16 %v1481
  %v1977 = vunpack.c.h.b16 %v1481
  %v1978 = vunpack.c.l.b16 %v1482
  %v1979 = vunpack.c.h.b16 %v1482
  %v1980 = vunpack.c.l.b16 %v1483
  %v1981 = vunpack.c.h.b16 %v1483
  %v1982 = vunpack.c.l.b16 %v1484
  %v1983 = vunpack.c.h.b16 %v1484
  %v1984 = vunpack.c.l.b16 %v1485
  %v1985 = vunpack.c.h.b16 %v1485
  %v1986 = vunpack.c.l.b16 %v1486
  %v1987 = vunpack.c.h.b16 %v1486
  %v1988 = vunpack.c.l.b16 %v1487
  %v1989 = vunpack.c.h.b16 %v1487
  %v1990 = vunpack.c.l.b16 %v1488
  %v1991 = vunpack.c.h.b16 %v1488
  %v1992 = vunpack.c.l.b16 %v1489
  %v1993 = vunpack.c.h.b16 %v1489
  %v1994 = vunpack.c.l.b16 %v1490
  %v1995 = vunpack.c.h.b16 %v1490
  %v1996 = vunpack.c.l.b16 %v1491
  %v1997 = vunpack.c.h.b16 %v1491
  %v1998 = vunpack.c.l.b16 %v1492
  %v1999 = vunpack.c.h.b16 %v1492
  %v2000 = vunpack.c.l.b16 %v1493
  %v2001 = vunpack.c.h.b16 %v1493
  %v2002 = vunpack.c.l.b16 %v1494
  %v2003 = vunpack.c.h.b16 %v1494
  %v2004 = vunpack.c.l.b16 %v1495
  %v2005 = vunpack.c.h.b16 %v1495
  %v2006 = vunpack.c.l.b16 %v1496
  %v2007 = vunpack.c.h.b16 %v1496
  %v2008 = vunpack.c.l.b16 %v1497
  %v2009 = vunpack.c.h.b16 %v1497
  %v2010 = vpack.c.b16 %v1886, %v1882
  %v2011 = vpack.c.b16 %v1887, %v1883
  %v2012 = vpack.c.b16 %v1888, %v1884
  %v2013 = vpack.c.b16 %v1889, %v1885
  %v2014 = vpack.c.b16 %v1894, %v1890
  %v2015 = vpack.c.b16 %v1895, %v1891
  %v2016 = vpack.c.b16 %v1896, %v1892
  %v2017 = vpack.c.b16 %v1897, %v1893
  %v2018 = vpack.c.b16 %v1902, %v1898
  %v2019 = vpack.c.b16 %v1903, %v1899
  %v2020 = vpack.c.b16 %v1904, %v1900
  %v2021 = vpack.c.b16 %v1905, %v1901
  %v2022 = vpack.c.b16 %v1910, %v1906
  %v2023 = vpack.c.b16 %v1911, %v1907
  %v2024 = vpack.c.b16 %v1912, %v1908
  %v2025 = vpack.c.b16 %v1913, %v1909
  %v2026 = vpack.c.b16 %v1918, %v1914
  %v2027 = vpack.c.b16 %v1919, %v1915
  %v2028 = vpack.c.b16 %v1920, %v1916
  %v2029 = vpack.c.b16 %v1921, %v1917
  %v2030 = vpack.c.b16 %v1926, %v1922
  %v2031 = vpack.c.b16 %v1927, %v1923
  %v2032 = vpack.c.b16 %v1928, %v1924
  %v2033 = vpack.c.b16 %v1929, %v1925
  %v2034 = vpack.c.b16 %v1934, %v1930
  %v2035 = vpack.c.b16 %v1935, %v1931
  %v2036 = vpack.c.b16 %v1936, %v1932
  %v2037 = vpack.c.b16 %v1937, %v1933
  %v2038 = vpack.c.b16 %v1942, %v1938
  %v2039 = vpack.c.b16 %v1943, %v1939
  %v2040 = vpack.c.b16 %v1944, %v1940
  %v2041 = vpack.c.b16 %v1945, %v1941
  %v2042 = vpack.c.b16 %v1950, %v1946
  %v2043 = vpack.c.b16 %v1951, %v1947
  %v2044 = vpack.c.b16 %v1952, %v1948
  %v2045 = vpack.c.b16 %v1953, %v1949
  %v2046 = vpack.c.b16 %v1958, %v1954
  %v2047 = vpack.c.b16 %v1959, %v1955
  %v2048 = vpack.c.b16 %v1960, %v1956
  %v2049 = vpack.c.b16 %v1961, %v1957
  %v2050 = vpack.c.b16 %v1966, %v1962
  %v2051 = vpack.c.b16 %v1967, %v1963
  %v2052 = vpack.c.b16 %v1968, %v1964
  %v2053 = vpack.c.b16 %v1969, %v1965
  %v2054 = vpack.c.b16 %v1974, %v1970
  %v2055 = vpack.c.b16 %v1975, %v1971
  %v2056 = vpack.c.b16 %v1976, %v1972
  %v2057 = vpack.c.b16 %v1977, %v1973
  %v2058 = vpack.c.b16 %v1982, %v1978
  %v2059 = vpack.c.b16 %v1983, %v1979
  %v2060 = vpack.c.b16 %v1984, %v1980
  %v2061 = vpack.c.b16 %v1985, %v1981
  %v2062 = vpack.c.b16 %v1990, %v1986
  %v2063 = vpack.c.b16 %v1991, %v1987
  %v2064 = vpack.c.b16 %v1992, %v1988
  %v2065 = vpack.c.b16 %v1993, %v1989
  %v2066 = vpack.c.b16 %v1998, %v1994
  %v2067 = vpack.c.b16 %v1999, %v1995
  %v2068 = vpack.c.b16 %v2000, %v1996
  %v2069 = vpack.c.b16 %v2001, %v1997
  %v2070 = vpack.c.b16 %v2006, %v2002
  %v2071 = vpack.c.b16 %v2007, %v2003
  %v2072 = vpack.c.b16 %v2008, %v2004
  %v2073 = vpack.c.b16 %v2009, %v2005
  %2138 = vmatprep.subr.bf16.mxu0 %v1499
  %2139 = vmatpush1.bf16.msra.mxu0 %v1498
  %2140 = vmatprep.subr.bf16.mxu0 %v1503
  %2141 = vmatpush1.bf16.msra.mxu0 %v1502
  %2142 = vmatprep.subr.bf16.mxu0 %v1507
  %2143 = vmatpush1.bf16.msra.mxu0 %v1506
  %2144 = vmatprep.subr.bf16.mxu0 %v1511
  %2145 = vmatpush1.bf16.msra.mxu0 %v1510
  %2146 = vmatprep.subr.bf16.mxu0 %v1515
  %2147 = vmatpush1.bf16.msra.mxu0 %v1514
  %2148 = vmatprep.subr.bf16.mxu0 %v1519
  %2149 = vmatpush1.bf16.msra.mxu0 %v1518
  %2150 = vmatprep.subr.bf16.mxu0 %v1523
  %2151 = vmatpush1.bf16.msra.mxu0 %v1522
  %2152 = vmatprep.subr.bf16.mxu0 %v1527
  %2153 = vmatpush1.bf16.msra.mxu0 %v1526
  %2154 = vmatprep.subr.bf16.mxu0 %v1531
  %2155 = vmatpush1.bf16.msra.mxu0 %v1530
  %2156 = vmatprep.subr.bf16.mxu0 %v1535
  %2157 = vmatpush1.bf16.msra.mxu0 %v1534
  %2158 = vmatprep.subr.bf16.mxu0 %v1539
  %2159 = vmatpush1.bf16.msra.mxu0 %v1538
  %2160 = vmatprep.subr.bf16.mxu0 %v1543
  %2161 = vmatpush1.bf16.msra.mxu0 %v1542
  %2162 = vmatprep.subr.bf16.mxu0 %v1547
  %2163 = vmatpush1.bf16.msra.mxu0 %v1546
  %2164 = vmatprep.subr.bf16.mxu0 %v1551
  %2165 = vmatpush1.bf16.msra.mxu0 %v1550
  %2166 = vmatprep.subr.bf16.mxu0 %v1555
  %2167 = vmatpush1.bf16.msra.mxu0 %v1554
  %2168 = vmatprep.subr.bf16.mxu0 %v1559
  %2169 = vmatpush1.bf16.msra.mxu0 %v1558
  %2170 = vmatprep.mubr.bf16.mxu0 %v2011
  %2171 = vmatmul.mubr.bf16.gmra.mrb[0].mxu0 %v2010
  %v2172 = vpop.f32.mrb[0].mxu0
  %v2173 = vadd.f32 %v1661, %v2172
  %v2174 = vpop.f32.mrb[0].mxu0
  %v2175 = vadd.f32 %v1661, %v2174
  %v2176 = vpop.f32.mrb[0].mxu0
  %v2177 = vadd.f32 %v1666, %v2176
  %v2178 = vpop.f32.mrb[0].mxu0
  %v2179 = vadd.f32 %v1666, %v2178
  %2180 = vmatprep.mubr.bf16.mxu0 %v2015
  %2181 = vmatmul.mubr.bf16.gmra.mrb[0].mxu0 %v2014
  %v2182 = vpop.f32.mrb[0].mxu0
  %v2183 = vadd.f32 %v1671, %v2182
  %v2184 = vpop.f32.mrb[0].mxu0
  %v2185 = vadd.f32 %v1671, %v2184
  %v2186 = vpop.f32.mrb[0].mxu0
  %v2187 = vadd.f32 %v1676, %v2186
  %v2188 = vpop.f32.mrb[0].mxu0
  %v2189 = vadd.f32 %v1676, %v2188
  %2190 = vmatprep.mubr.bf16.mxu0 %v2019
  %2191 = vmatmul.mubr.bf16.gmra.mrb[0].mxu0 %v2018
  %v2192 = vpop.f32.mrb[0].mxu0
  %v2193 = vadd.f32 %v1681, %v2192
  %v2194 = vpop.f32.mrb[0].mxu0
  %v2195 = vadd.f32 %v1681, %v2194
  %v2196 = vpop.f32.mrb[0].mxu0
  %v2197 = vadd.f32 %v1686, %v2196
  %v2198 = vpop.f32.mrb[0].mxu0
  %v2199 = vadd.f32 %v1686, %v2198
  %2200 = vmatprep.mubr.bf16.mxu0 %v2023
  %2201 = vmatmul.mubr.bf16.gmra.mrb[0].mxu0 %v2022
  %v2202 = vpop.f32.mrb[0].mxu0
  %v2203 = vadd.f32 %v1691, %v2202
  %v2204 = vpop.f32.mrb[0].mxu0
  %v2205 = vadd.f32 %v1691, %v2204
  %v2206 = vpop.f32.mrb[0].mxu0
  %v2207 = vadd.f32 %v1696, %v2206
  %v2208 = vpop.f32.mrb[0].mxu0
  %v2209 = vadd.f32 %v1696, %v2208
  %2210 = vmatprep.mubr.bf16.mxu0 %v2027
  %2211 = vmatmul.mubr.bf16.gmra.mrb[0].mxu0 %v2026
  %v2212 = vpop.f32.mrb[0].mxu0
  %v2213 = vadd.f32 %v1701, %v2212
  %v2214 = vpop.f32.mrb[0].mxu0
  %v2215 = vadd.f32 %v1701, %v2214
  %v2216 = vpop.f32.mrb[0].mxu0
  %v2217 = vadd.f32 %v1706, %v2216
  %v2218 = vpop.f32.mrb[0].mxu0
  %v2219 = vadd.f32 %v1706, %v2218
  %2220 = vmatprep.mubr.bf16.mxu0 %v2031
  %2221 = vmatmul.mubr.bf16.gmra.mrb[0].mxu0 %v2030
  %v2222 = vpop.f32.mrb[0].mxu0
  %v2223 = vadd.f32 %v1711, %v2222
  %v2224 = vpop.f32.mrb[0].mxu0
  %v2225 = vadd.f32 %v1711, %v2224
  %v2226 = vpop.f32.mrb[0].mxu0
  %v2227 = vadd.f32 %v1716, %v2226
  %v2228 = vpop.f32.mrb[0].mxu0
  %v2229 = vadd.f32 %v1716, %v2228
  %2230 = vmatprep.mubr.bf16.mxu0 %v2035
  %2231 = vmatmul.mubr.bf16.gmra.mrb[0].mxu0 %v2034
  %v2232 = vpop.f32.mrb[0].mxu0
  %v2233 = vadd.f32 %v1721, %v2232
  %v2234 = vpop.f32.mrb[0].mxu0
  %v2235 = vadd.f32 %v1721, %v2234
  %v2236 = vpop.f32.mrb[0].mxu0
  %v2237 = vadd.f32 %v1726, %v2236
  %v2238 = vpop.f32.mrb[0].mxu0
  %v2239 = vadd.f32 %v1726, %v2238
  %2240 = vmatprep.mubr.bf16.mxu0 %v2039
  %2241 = vmatmul.mubr.bf16.gmra.mrb[0].mxu0 %v2038
  %v2242 = vpop.f32.mrb[0].mxu0
  %v2243 = vadd.f32 %v1731, %v2242
  %v2244 = vpop.f32.mrb[0].mxu0
  %v2245 = vadd.f32 %v1731, %v2244
  %v2246 = vpop.f32.mrb[0].mxu0
  %v2247 = vadd.f32 %v1736, %v2246
  %v2248 = vpop.f32.mrb[0].mxu0
  %v2249 = vadd.f32 %v1736, %v2248
  %2250 = vmatprep.mubr.bf16.mxu0 %v2043
  %2251 = vmatmul.mubr.bf16.gmra.mrb[0].mxu0 %v2042
  %v2252 = vpop.f32.mrb[0].mxu0
  %v2253 = vadd.f32 %v1741, %v2252
  %v2254 = vpop.f32.mrb[0].mxu0
  %v2255 = vadd.f32 %v1741, %v2254
  %v2256 = vpop.f32.mrb[0].mxu0
  %v2257 = vadd.f32 %v1746, %v2256
  %v2258 = vpop.f32.mrb[0].mxu0
  %v2259 = vadd.f32 %v1746, %v2258
  %2260 = vmatprep.mubr.bf16.mxu0 %v2047
  %2261 = vmatmul.mubr.bf16.gmra.mrb[0].mxu0 %v2046
  %v2262 = vpop.f32.mrb[0].mxu0
  %v2263 = vadd.f32 %v1751, %v2262
  %v2264 = vpop.f32.mrb[0].mxu0
  %v2265 = vadd.f32 %v1751, %v2264
  %v2266 = vpop.f32.mrb[0].mxu0
  %v2267 = vadd.f32 %v1756, %v2266
  %v2268 = vpop.f32.mrb[0].mxu0
  %v2269 = vadd.f32 %v1756, %v2268
  %2270 = vmatprep.mubr.bf16.mxu0 %v2051
  %2271 = vmatmul.mubr.bf16.gmra.mrb[0].mxu0 %v2050
  %v2272 = vpop.f32.mrb[0].mxu0
  %v2273 = vadd.f32 %v1761, %v2272
  %v2274 = vpop.f32.mrb[0].mxu0
  %v2275 = vadd.f32 %v1761, %v2274
  %v2276 = vpop.f32.mrb[0].mxu0
  %v2277 = vadd.f32 %v1766, %v2276
  %v2278 = vpop.f32.mrb[0].mxu0
  %v2279 = vadd.f32 %v1766, %v2278
  %2280 = vmatprep.mubr.bf16.mxu0 %v2055
  %2281 = vmatmul.mubr.bf16.gmra.mrb[0].mxu0 %v2054
  %v2282 = vpop.f32.mrb[0].mxu0
  %v2283 = vadd.f32 %v1771, %v2282
  %v2284 = vpop.f32.mrb[0].mxu0
  %v2285 = vadd.f32 %v1771, %v2284
  %v2286 = vpop.f32.mrb[0].mxu0
  %v2287 = vadd.f32 %v1776, %v2286
  %v2288 = vpop.f32.mrb[0].mxu0
  %v2289 = vadd.f32 %v1776, %v2288
  %2290 = vmatprep.mubr.bf16.mxu0 %v2059
  %2291 = vmatmul.mubr.bf16.gmra.mrb[0].mxu0 %v2058
  %v2292 = vpop.f32.mrb[0].mxu0
  %v2293 = vadd.f32 %v1781, %v2292
  %v2294 = vpop.f32.mrb[0].mxu0
  %v2295 = vadd.f32 %v1781, %v2294
  %v2296 = vpop.f32.mrb[0].mxu0
  %v2297 = vadd.f32 %v1786, %v2296
  %v2298 = vpop.f32.mrb[0].mxu0
  %v2299 = vadd.f32 %v1786, %v2298
  %2300 = vmatprep.mubr.bf16.mxu0 %v2063
  %2301 = vmatmul.mubr.bf16.gmra.mrb[0].mxu0 %v2062
  %v2302 = vpop.f32.mrb[0].mxu0
  %v2303 = vadd.f32 %v1791, %v2302
  %v2304 = vpop.f32.mrb[0].mxu0
  %v2305 = vadd.f32 %v1791, %v2304
  %v2306 = vpop.f32.mrb[0].mxu0
  %v2307 = vadd.f32 %v1796, %v2306
  %v2308 = vpop.f32.mrb[0].mxu0
  %v2309 = vadd.f32 %v1796, %v2308
  %2310 = vmatprep.mubr.bf16.mxu0 %v2067
  %2311 = vmatmul.mubr.bf16.gmra.mrb[0].mxu0 %v2066
  %v2312 = vpop.f32.mrb[0].mxu0
  %v2313 = vadd.f32 %v1801, %v2312
  %v2314 = vpop.f32.mrb[0].mxu0
  %v2315 = vadd.f32 %v1801, %v2314
  %v2316 = vpop.f32.mrb[0].mxu0
  %v2317 = vadd.f32 %v1806, %v2316
  %v2318 = vpop.f32.mrb[0].mxu0
  %v2319 = vadd.f32 %v1806, %v2318
  %2320 = vmatprep.mubr.bf16.mxu0 %v2071
  %2321 = vmatmul.mubr.bf16.gmra.mrb[0].mxu0 %v2070
  %v2322 = vpop.f32.mrb[0].mxu0
  %v2323 = vadd.f32 %v1811, %v2322
  %v2324 = vpop.f32.mrb[0].mxu0
  %v2325 = vadd.f32 %v1811, %v2324
  %v2326 = vpop.f32.mrb[0].mxu0
  %v2327 = vadd.f32 %v1816, %v2326
  %v2328 = vpop.f32.mrb[0].mxu0
  %v2329 = vadd.f32 %v1816, %v2328
  %2330 = vdwg.mxu0
  %2331 = vmatprep.subr.bf16.mxu0 %v1563
  %2332 = vmatpush1.bf16.msra.mxu0 %v1562
  %2333 = vmatprep.subr.bf16.mxu0 %v1567
  %2334 = vmatpush1.bf16.msra.mxu0 %v1566
  %2335 = vmatprep.subr.bf16.mxu0 %v1571
  %2336 = vmatpush1.bf16.msra.mxu0 %v1570
  %2337 = vmatprep.subr.bf16.mxu0 %v1575
  %2338 = vmatpush1.bf16.msra.mxu0 %v1574
  %2339 = vmatprep.subr.bf16.mxu0 %v1579
  %2340 = vmatpush1.bf16.msra.mxu0 %v1578
  %2341 = vmatprep.subr.bf16.mxu0 %v1583
  %2342 = vmatpush1.bf16.msra.mxu0 %v1582
  %2343 = vmatprep.subr.bf16.mxu0 %v1587
  %2344 = vmatpush1.bf16.msra.mxu0 %v1586
  %2345 = vmatprep.subr.bf16.mxu0 %v1591
  %2346 = vmatpush1.bf16.msra.mxu0 %v1590
  %2347 = vmatprep.subr.bf16.mxu0 %v1595
  %2348 = vmatpush1.bf16.msra.mxu0 %v1594
  %2349 = vmatprep.subr.bf16.mxu0 %v1599
  %2350 = vmatpush1.bf16.msra.mxu0 %v1598
  %2351 = vmatprep.subr.bf16.mxu0 %v1603
  %2352 = vmatpush1.bf16.msra.mxu0 %v1602
  %2353 = vmatprep.subr.bf16.mxu0 %v1607
  %2354 = vmatpush1.bf16.msra.mxu0 %v1606
  %2355 = vmatprep.subr.bf16.mxu0 %v1611
  %2356 = vmatpush1.bf16.msra.mxu0 %v1610
  %2357 = vmatprep.subr.bf16.mxu0 %v1615
  %2358 = vmatpush1.bf16.msra.mxu0 %v1614
  %2359 = vmatprep.subr.bf16.mxu0 %v1619
  %2360 = vmatpush1.bf16.msra.mxu0 %v1618
  %2361 = vmatprep.subr.bf16.mxu0 %v1623
  %2362 = vmatpush1.bf16.msra.mxu0 %v1622
  %2363 = vmatprep.mubr.bf16.mxu0 %v2013
  %2364 = vmatmul.mubr.bf16.gmra.mrb[0].mxu0 %v2012
  %v2365 = vpop.f32.mrb[0].mxu0
  %v2366 = vadd.f32 %v2173, %v2365
  %v2367 = vpop.f32.mrb[0].mxu0
  %v2368 = vadd.f32 %v2175, %v2367
  %v2369 = vpop.f32.mrb[0].mxu0
  %v2370 = vadd.f32 %v2177, %v2369
  %v2371 = vpop.f32.mrb[0].mxu0
  %v2372 = vadd.f32 %v2179, %v2371
  %2373 = vmatprep.mubr.bf16.mxu0 %v2017
  %2374 = vmatmul.mubr.bf16.gmra.mrb[0].mxu0 %v2016
  %v2375 = vpop.f32.mrb[0].mxu0
  %v2376 = vadd.f32 %v2183, %v2375
  %v2377 = vpop.f32.mrb[0].mxu0
  %v2378 = vadd.f32 %v2185, %v2377
  %v2379 = vpop.f32.mrb[0].mxu0
  %v2380 = vadd.f32 %v2187, %v2379
  %v2381 = vpop.f32.mrb[0].mxu0
  %v2382 = vadd.f32 %v2189, %v2381
  %2383 = vmatprep.mubr.bf16.mxu0 %v2021
  %2384 = vmatmul.mubr.bf16.gmra.mrb[0].mxu0 %v2020
  %v2385 = vpop.f32.mrb[0].mxu0
  %v2386 = vadd.f32 %v2193, %v2385
  %v2387 = vpop.f32.mrb[0].mxu0
  %v2388 = vadd.f32 %v2195, %v2387
  %v2389 = vpop.f32.mrb[0].mxu0
  %v2390 = vadd.f32 %v2197, %v2389
  %v2391 = vpop.f32.mrb[0].mxu0
  %v2392 = vadd.f32 %v2199, %v2391
  %2393 = vmatprep.mubr.bf16.mxu0 %v2025
  %2394 = vmatmul.mubr.bf16.gmra.mrb[0].mxu0 %v2024
  %v2395 = vpop.f32.mrb[0].mxu0
  %v2396 = vadd.f32 %v2203, %v2395
  %v2397 = vpop.f32.mrb[0].mxu0
  %v2398 = vadd.f32 %v2205, %v2397
  %v2399 = vpop.f32.mrb[0].mxu0
  %v2400 = vadd.f32 %v2207, %v2399
  %v2401 = vpop.f32.mrb[0].mxu0
  %v2402 = vadd.f32 %v2209, %v2401
  %2403 = vmatprep.mubr.bf16.mxu0 %v2029
  %2404 = vmatmul.mubr.bf16.gmra.mrb[0].mxu0 %v2028
  %v2405 = vpop.f32.mrb[0].mxu0
  %v2406 = vadd.f32 %v2213, %v2405
  %v2407 = vpop.f32.mrb[0].mxu0
  %v2408 = vadd.f32 %v2215, %v2407
  %v2409 = vpop.f32.mrb[0].mxu0
  %v2410 = vadd.f32 %v2217, %v2409
  %v2411 = vpop.f32.mrb[0].mxu0
  %v2412 = vadd.f32 %v2219, %v2411
  %2413 = vmatprep.mubr.bf16.mxu0 %v2033
  %2414 = vmatmul.mubr.bf16.gmra.mrb[0].mxu0 %v2032
  %v2415 = vpop.f32.mrb[0].mxu0
  %v2416 = vadd.f32 %v2223, %v2415
  %v2417 = vpop.f32.mrb[0].mxu0
  %v2418 = vadd.f32 %v2225, %v2417
  %v2419 = vpop.f32.mrb[0].mxu0
  %v2420 = vadd.f32 %v2227, %v2419
  %v2421 = vpop.f32.mrb[0].mxu0
  %v2422 = vadd.f32 %v2229, %v2421
  %2423 = vmatprep.mubr.bf16.mxu0 %v2037
  %2424 = vmatmul.mubr.bf16.gmra.mrb[0].mxu0 %v2036
  %v2425 = vpop.f32.mrb[0].mxu0
  %v2426 = vadd.f32 %v2233, %v2425
  %v2427 = vpop.f32.mrb[0].mxu0
  %v2428 = vadd.f32 %v2235, %v2427
  %v2429 = vpop.f32.mrb[0].mxu0
  %v2430 = vadd.f32 %v2237, %v2429
  %v2431 = vpop.f32.mrb[0].mxu0
  %v2432 = vadd.f32 %v2239, %v2431
  %2433 = vmatprep.mubr.bf16.mxu0 %v2041
  %2434 = vmatmul.mubr.bf16.gmra.mrb[0].mxu0 %v2040
  %v2435 = vpop.f32.mrb[0].mxu0
  %v2436 = vadd.f32 %v2243, %v2435
  %v2437 = vpop.f32.mrb[0].mxu0
  %v2438 = vadd.f32 %v2245, %v2437
  %v2439 = vpop.f32.mrb[0].mxu0
  %v2440 = vadd.f32 %v2247, %v2439
  %v2441 = vpop.f32.mrb[0].mxu0
  %v2442 = vadd.f32 %v2249, %v2441
  %2443 = vmatprep.mubr.bf16.mxu0 %v2045
  %2444 = vmatmul.mubr.bf16.gmra.mrb[0].mxu0 %v2044
  %v2445 = vpop.f32.mrb[0].mxu0
  %v2446 = vadd.f32 %v2253, %v2445
  %v2447 = vpop.f32.mrb[0].mxu0
  %v2448 = vadd.f32 %v2255, %v2447
  %v2449 = vpop.f32.mrb[0].mxu0
  %v2450 = vadd.f32 %v2257, %v2449
  %v2451 = vpop.f32.mrb[0].mxu0
  %v2452 = vadd.f32 %v2259, %v2451
  %2453 = vmatprep.mubr.bf16.mxu0 %v2049
  %2454 = vmatmul.mubr.bf16.gmra.mrb[0].mxu0 %v2048
  %v2455 = vpop.f32.mrb[0].mxu0
  %v2456 = vadd.f32 %v2263, %v2455
  %v2457 = vpop.f32.mrb[0].mxu0
  %v2458 = vadd.f32 %v2265, %v2457
  %v2459 = vpop.f32.mrb[0].mxu0
  %v2460 = vadd.f32 %v2267, %v2459
  %v2461 = vpop.f32.mrb[0].mxu0
  %v2462 = vadd.f32 %v2269, %v2461
  %2463 = vmatprep.mubr.bf16.mxu0 %v2053
  %2464 = vmatmul.mubr.bf16.gmra.mrb[0].mxu0 %v2052
  %v2465 = vpop.f32.mrb[0].mxu0
  %v2466 = vadd.f32 %v2273, %v2465
  %v2467 = vpop.f32.mrb[0].mxu0
  %v2468 = vadd.f32 %v2275, %v2467
  %v2469 = vpop.f32.mrb[0].mxu0
  %v2470 = vadd.f32 %v2277, %v2469
  %v2471 = vpop.f32.mrb[0].mxu0
  %v2472 = vadd.f32 %v2279, %v2471
  %2473 = vmatprep.mubr.bf16.mxu0 %v2057
  %2474 = vmatmul.mubr.bf16.gmra.mrb[0].mxu0 %v2056
  %v2475 = vpop.f32.mrb[0].mxu0
  %v2476 = vadd.f32 %v2283, %v2475
  %v2477 = vpop.f32.mrb[0].mxu0
  %v2478 = vadd.f32 %v2285, %v2477
  %v2479 = vpop.f32.mrb[0].mxu0
  %v2480 = vadd.f32 %v2287, %v2479
  %v2481 = vpop.f32.mrb[0].mxu0
  %v2482 = vadd.f32 %v2289, %v2481
  %2483 = vmatprep.mubr.bf16.mxu0 %v2061
  %2484 = vmatmul.mubr.bf16.gmra.mrb[0].mxu0 %v2060
  %v2485 = vpop.f32.mrb[0].mxu0
  %v2486 = vadd.f32 %v2293, %v2485
  %v2487 = vpop.f32.mrb[0].mxu0
  %v2488 = vadd.f32 %v2295, %v2487
  %v2489 = vpop.f32.mrb[0].mxu0
  %v2490 = vadd.f32 %v2297, %v2489
  %v2491 = vpop.f32.mrb[0].mxu0
  %v2492 = vadd.f32 %v2299, %v2491
  %2493 = vmatprep.mubr.bf16.mxu0 %v2065
  %2494 = vmatmul.mubr.bf16.gmra.mrb[0].mxu0 %v2064
  %v2495 = vpop.f32.mrb[0].mxu0
  %v2496 = vadd.f32 %v2303, %v2495
  %v2497 = vpop.f32.mrb[0].mxu0
  %v2498 = vadd.f32 %v2305, %v2497
  %v2499 = vpop.f32.mrb[0].mxu0
  %v2500 = vadd.f32 %v2307, %v2499
  %v2501 = vpop.f32.mrb[0].mxu0
  %v2502 = vadd.f32 %v2309, %v2501
  %2503 = vmatprep.mubr.bf16.mxu0 %v2069
  %2504 = vmatmul.mubr.bf16.gmra.mrb[0].mxu0 %v2068
  %v2505 = vpop.f32.mrb[0].mxu0
  %v2506 = vadd.f32 %v2313, %v2505
  %v2507 = vpop.f32.mrb[0].mxu0
  %v2508 = vadd.f32 %v2315, %v2507
  %v2509 = vpop.f32.mrb[0].mxu0
  %v2510 = vadd.f32 %v2317, %v2509
  %v2511 = vpop.f32.mrb[0].mxu0
  %v2512 = vadd.f32 %v2319, %v2511
  %2513 = vmatprep.mubr.bf16.mxu0 %v2073
  %2514 = vmatmul.mubr.bf16.gmra.mrb[0].mxu0 %v2072
  %v2515 = vpop.f32.mrb[0].mxu0
  %v2516 = vadd.f32 %v2323, %v2515
  %v2517 = vpop.f32.mrb[0].mxu0
  %v2518 = vadd.f32 %v2325, %v2517
  %v2519 = vpop.f32.mrb[0].mxu0
  %v2520 = vadd.f32 %v2327, %v2519
  %v2521 = vpop.f32.mrb[0].mxu0
  %v2522 = vadd.f32 %v2329, %v2521
  %2523 = vdwg.mxu0
  %2524 = vmatprep.subr.bf16.mxu0 %v1501
  %2525 = vmatpush1.bf16.msra.mxu0 %v1500
  %2526 = vmatprep.subr.bf16.mxu0 %v1505
  %2527 = vmatpush1.bf16.msra.mxu0 %v1504
  %2528 = vmatprep.subr.bf16.mxu0 %v1509
  %2529 = vmatpush1.bf16.msra.mxu0 %v1508
  %2530 = vmatprep.subr.bf16.mxu0 %v1513
  %2531 = vmatpush1.bf16.msra.mxu0 %v1512
  %2532 = vmatprep.subr.bf16.mxu0 %v1517
  %2533 = vmatpush1.bf16.msra.mxu0 %v1516
  %2534 = vmatprep.subr.bf16.mxu0 %v1521
  %2535 = vmatpush1.bf16.msra.mxu0 %v1520
  %2536 = vmatprep.subr.bf16.mxu0 %v1525
  %2537 = vmatpush1.bf16.msra.mxu0 %v1524
  %2538 = vmatprep.subr.bf16.mxu0 %v1529
  %2539 = vmatpush1.bf16.msra.mxu0 %v1528
  %2540 = vmatprep.subr.bf16.mxu0 %v1533
  %2541 = vmatpush1.bf16.msra.mxu0 %v1532
  %2542 = vmatprep.subr.bf16.mxu0 %v1537
  %2543 = vmatpush1.bf16.msra.mxu0 %v1536
  %2544 = vmatprep.subr.bf16.mxu0 %v1541
  %2545 = vmatpush1.bf16.msra.mxu0 %v1540
  %2546 = vmatprep.subr.bf16.mxu0 %v1545
  %2547 = vmatpush1.bf16.msra.mxu0 %v1544
  %2548 = vmatprep.subr.bf16.mxu0 %v1549
  %2549 = vmatpush1.bf16.msra.mxu0 %v1548
  %2550 = vmatprep.subr.bf16.mxu0 %v1553
  %2551 = vmatpush1.bf16.msra.mxu0 %v1552
  %2552 = vmatprep.subr.bf16.mxu0 %v1557
  %2553 = vmatpush1.bf16.msra.mxu0 %v1556
  %2554 = vmatprep.subr.bf16.mxu0 %v1561
  %2555 = vmatpush1.bf16.msra.mxu0 %v1560
  %2556 = vmatprep.mubr.bf16.mxu0 %v2011
  %2557 = vmatmul.mubr.bf16.gmra.mrb[0].mxu0 %v2010
  %v2558 = vpop.f32.mrb[0].mxu0
  %v2559 = vadd.f32 %v1661, %v2558
  %v2560 = vpop.f32.mrb[0].mxu0
  %v2561 = vadd.f32 %v1661, %v2560
  %v2562 = vpop.f32.mrb[0].mxu0
  %v2563 = vadd.f32 %v1666, %v2562
  %v2564 = vpop.f32.mrb[0].mxu0
  %v2565 = vadd.f32 %v1666, %v2564
  %2566 = vmatprep.mubr.bf16.mxu0 %v2015
  %2567 = vmatmul.mubr.bf16.gmra.mrb[0].mxu0 %v2014
  %v2568 = vpop.f32.mrb[0].mxu0
  %v2569 = vadd.f32 %v1671, %v2568
  %v2570 = vpop.f32.mrb[0].mxu0
  %v2571 = vadd.f32 %v1671, %v2570
  %v2572 = vpop.f32.mrb[0].mxu0
  %v2573 = vadd.f32 %v1676, %v2572
  %v2574 = vpop.f32.mrb[0].mxu0
  %v2575 = vadd.f32 %v1676, %v2574
  %2576 = vmatprep.mubr.bf16.mxu0 %v2019
  %2577 = vmatmul.mubr.bf16.gmra.mrb[0].mxu0 %v2018
  %v2578 = vpop.f32.mrb[0].mxu0
  %v2579 = vadd.f32 %v1681, %v2578
  %v2580 = vpop.f32.mrb[0].mxu0
  %v2581 = vadd.f32 %v1681, %v2580
  %v2582 = vpop.f32.mrb[0].mxu0
  %v2583 = vadd.f32 %v1686, %v2582
  %v2584 = vpop.f32.mrb[0].mxu0
  %v2585 = vadd.f32 %v1686, %v2584
  %2586 = vmatprep.mubr.bf16.mxu0 %v2023
  %2587 = vmatmul.mubr.bf16.gmra.mrb[0].mxu0 %v2022
  %v2588 = vpop.f32.mrb[0].mxu0
  %v2589 = vadd.f32 %v1691, %v2588
  %v2590 = vpop.f32.mrb[0].mxu0
  %v2591 = vadd.f32 %v1691, %v2590
  %v2592 = vpop.f32.mrb[0].mxu0
  %v2593 = vadd.f32 %v1696, %v2592
  %v2594 = vpop.f32.mrb[0].mxu0
  %v2595 = vadd.f32 %v1696, %v2594
  %2596 = vmatprep.mubr.bf16.mxu0 %v2027
  %2597 = vmatmul.mubr.bf16.gmra.mrb[0].mxu0 %v2026
  %v2598 = vpop.f32.mrb[0].mxu0
  %v2599 = vadd.f32 %v1701, %v2598
  %v2600 = vpop.f32.mrb[0].mxu0
  %v2601 = vadd.f32 %v1701, %v2600
  %v2602 = vpop.f32.mrb[0].mxu0
  %v2603 = vadd.f32 %v1706, %v2602
  %v2604 = vpop.f32.mrb[0].mxu0
  %v2605 = vadd.f32 %v1706, %v2604
  %2606 = vmatprep.mubr.bf16.mxu0 %v2031
  %2607 = vmatmul.mubr.bf16.gmra.mrb[0].mxu0 %v2030
  %v2608 = vpop.f32.mrb[0].mxu0
  %v2609 = vadd.f32 %v1711, %v2608
  %v2610 = vpop.f32.mrb[0].mxu0
  %v2611 = vadd.f32 %v1711, %v2610
  %v2612 = vpop.f32.mrb[0].mxu0
  %v2613 = vadd.f32 %v1716, %v2612
  %v2614 = vpop.f32.mrb[0].mxu0
  %v2615 = vadd.f32 %v1716, %v2614
  %2616 = vmatprep.mubr.bf16.mxu0 %v2035
  %2617 = vmatmul.mubr.bf16.gmra.mrb[0].mxu0 %v2034
  %v2618 = vpop.f32.mrb[0].mxu0
  %v2619 = vadd.f32 %v1721, %v2618
  %v2620 = vpop.f32.mrb[0].mxu0
  %v2621 = vadd.f32 %v1721, %v2620
  %v2622 = vpop.f32.mrb[0].mxu0
  %v2623 = vadd.f32 %v1726, %v2622
  %v2624 = vpop.f32.mrb[0].mxu0
  %v2625 = vadd.f32 %v1726, %v2624
  %2626 = vmatprep.mubr.bf16.mxu0 %v2039
  %2627 = vmatmul.mubr.bf16.gmra.mrb[0].mxu0 %v2038
  %v2628 = vpop.f32.mrb[0].mxu0
  %v2629 = vadd.f32 %v1731, %v2628
  %v2630 = vpop.f32.mrb[0].mxu0
  %v2631 = vadd.f32 %v1731, %v2630
  %v2632 = vpop.f32.mrb[0].mxu0
  %v2633 = vadd.f32 %v1736, %v2632
  %v2634 = vpop.f32.mrb[0].mxu0
  %v2635 = vadd.f32 %v1736, %v2634
  %2636 = vmatprep.mubr.bf16.mxu0 %v2043
  %2637 = vmatmul.mubr.bf16.gmra.mrb[0].mxu0 %v2042
  %v2638 = vpop.f32.mrb[0].mxu0
  %v2639 = vadd.f32 %v1741, %v2638
  %v2640 = vpop.f32.mrb[0].mxu0
  %v2641 = vadd.f32 %v1741, %v2640
  %v2642 = vpop.f32.mrb[0].mxu0
  %v2643 = vadd.f32 %v1746, %v2642
  %v2644 = vpop.f32.mrb[0].mxu0
  %v2645 = vadd.f32 %v1746, %v2644
  %2646 = vmatprep.mubr.bf16.mxu0 %v2047
  %2647 = vmatmul.mubr.bf16.gmra.mrb[0].mxu0 %v2046
  %v2648 = vpop.f32.mrb[0].mxu0
  %v2649 = vadd.f32 %v1751, %v2648
  %v2650 = vpop.f32.mrb[0].mxu0
  %v2651 = vadd.f32 %v1751, %v2650
  %v2652 = vpop.f32.mrb[0].mxu0
  %v2653 = vadd.f32 %v1756, %v2652
  %v2654 = vpop.f32.mrb[0].mxu0
  %v2655 = vadd.f32 %v1756, %v2654
  %2656 = vmatprep.mubr.bf16.mxu0 %v2051
  %2657 = vmatmul.mubr.bf16.gmra.mrb[0].mxu0 %v2050
  %v2658 = vpop.f32.mrb[0].mxu0
  %v2659 = vadd.f32 %v1761, %v2658
  %v2660 = vpop.f32.mrb[0].mxu0
  %v2661 = vadd.f32 %v1761, %v2660
  %v2662 = vpop.f32.mrb[0].mxu0
  %v2663 = vadd.f32 %v1766, %v2662
  %v2664 = vpop.f32.mrb[0].mxu0
  %v2665 = vadd.f32 %v1766, %v2664
  %2666 = vmatprep.mubr.bf16.mxu0 %v2055
  %2667 = vmatmul.mubr.bf16.gmra.mrb[0].mxu0 %v2054
  %v2668 = vpop.f32.mrb[0].mxu0
  %v2669 = vadd.f32 %v1771, %v2668
  %v2670 = vpop.f32.mrb[0].mxu0
  %v2671 = vadd.f32 %v1771, %v2670
  %v2672 = vpop.f32.mrb[0].mxu0
  %v2673 = vadd.f32 %v1776, %v2672
  %v2674 = vpop.f32.mrb[0].mxu0
  %v2675 = vadd.f32 %v1776, %v2674
  %2676 = vmatprep.mubr.bf16.mxu0 %v2059
  %2677 = vmatmul.mubr.bf16.gmra.mrb[0].mxu0 %v2058
  %v2678 = vpop.f32.mrb[0].mxu0
  %v2679 = vadd.f32 %v1781, %v2678
  %v2680 = vpop.f32.mrb[0].mxu0
  %v2681 = vadd.f32 %v1781, %v2680
  %v2682 = vpop.f32.mrb[0].mxu0
  %v2683 = vadd.f32 %v1786, %v2682
  %v2684 = vpop.f32.mrb[0].mxu0
  %v2685 = vadd.f32 %v1786, %v2684
  %2686 = vmatprep.mubr.bf16.mxu0 %v2063
  %2687 = vmatmul.mubr.bf16.gmra.mrb[0].mxu0 %v2062
  %v2688 = vpop.f32.mrb[0].mxu0
  %v2689 = vadd.f32 %v1791, %v2688
  %v2690 = vpop.f32.mrb[0].mxu0
  %v2691 = vadd.f32 %v1791, %v2690
  %v2692 = vpop.f32.mrb[0].mxu0
  %v2693 = vadd.f32 %v1796, %v2692
  %v2694 = vpop.f32.mrb[0].mxu0
  %v2695 = vadd.f32 %v1796, %v2694
  %2696 = vmatprep.mubr.bf16.mxu0 %v2067
  %2697 = vmatmul.mubr.bf16.gmra.mrb[0].mxu0 %v2066
  %v2698 = vpop.f32.mrb[0].mxu0
  %v2699 = vadd.f32 %v1801, %v2698
  %v2700 = vpop.f32.mrb[0].mxu0
  %v2701 = vadd.f32 %v1801, %v2700
  %v2702 = vpop.f32.mrb[0].mxu0
  %v2703 = vadd.f32 %v1806, %v2702
  %v2704 = vpop.f32.mrb[0].mxu0
  %v2705 = vadd.f32 %v1806, %v2704
  %2706 = vmatprep.mubr.bf16.mxu0 %v2071
  %2707 = vmatmul.mubr.bf16.gmra.mrb[0].mxu0 %v2070
  %v2708 = vpop.f32.mrb[0].mxu0
  %v2709 = vadd.f32 %v1811, %v2708
  %v2710 = vpop.f32.mrb[0].mxu0
  %v2711 = vadd.f32 %v1811, %v2710
  %v2712 = vpop.f32.mrb[0].mxu0
  %v2713 = vadd.f32 %v1816, %v2712
  %v2714 = vpop.f32.mrb[0].mxu0
  %v2715 = vadd.f32 %v1816, %v2714
  %2716 = vdwg.mxu0
  %2717 = vmatprep.subr.bf16.mxu0 %v1565
  %2718 = vmatpush1.bf16.msra.mxu0 %v1564
  %2719 = vmatprep.subr.bf16.mxu0 %v1569
  %2720 = vmatpush1.bf16.msra.mxu0 %v1568
  %2721 = vmatprep.subr.bf16.mxu0 %v1573
  %2722 = vmatpush1.bf16.msra.mxu0 %v1572
  %2723 = vmatprep.subr.bf16.mxu0 %v1577
  %2724 = vmatpush1.bf16.msra.mxu0 %v1576
  %2725 = vmatprep.subr.bf16.mxu0 %v1581
  %2726 = vmatpush1.bf16.msra.mxu0 %v1580
  %2727 = vmatprep.subr.bf16.mxu0 %v1585
  %2728 = vmatpush1.bf16.msra.mxu0 %v1584
  %2729 = vmatprep.subr.bf16.mxu0 %v1589
  %2730 = vmatpush1.bf16.msra.mxu0 %v1588
  %2731 = vmatprep.subr.bf16.mxu0 %v1593
  %2732 = vmatpush1.bf16.msra.mxu0 %v1592
  %2733 = vmatprep.subr.bf16.mxu0 %v1597
  %2734 = vmatpush1.bf16.msra.mxu0 %v1596
  %2735 = vmatprep.subr.bf16.mxu0 %v1601
  %2736 = vmatpush1.bf16.msra.mxu0 %v1600
  %2737 = vmatprep.subr.bf16.mxu0 %v1605
  %2738 = vmatpush1.bf16.msra.mxu0 %v1604
  %2739 = vmatprep.subr.bf16.mxu0 %v1609
  %2740 = vmatpush1.bf16.msra.mxu0 %v1608
  %2741 = vmatprep.subr.bf16.mxu0 %v1613
  %2742 = vmatpush1.bf16.msra.mxu0 %v1612
  %2743 = vmatprep.subr.bf16.mxu0 %v1617
  %2744 = vmatpush1.bf16.msra.mxu0 %v1616
  %2745 = vmatprep.subr.bf16.mxu0 %v1621
  %2746 = vmatpush1.bf16.msra.mxu0 %v1620
  %2747 = vmatprep.subr.bf16.mxu0 %v1625
  %2748 = vmatpush1.bf16.msra.mxu0 %v1624
  %2749 = vmatprep.mubr.bf16.mxu0 %v2013
  %2750 = vmatmul.mubr.bf16.gmra.mrb[0].mxu0 %v2012
  %v2751 = vpop.f32.mrb[0].mxu0
  %v2752 = vadd.f32 %v2559, %v2751
  %v2753 = vpop.f32.mrb[0].mxu0
  %v2754 = vadd.f32 %v2561, %v2753
  %v2755 = vpop.f32.mrb[0].mxu0
  %v2756 = vadd.f32 %v2563, %v2755
  %v2757 = vpop.f32.mrb[0].mxu0
  %v2758 = vadd.f32 %v2565, %v2757
  %2759 = vmatprep.mubr.bf16.mxu0 %v2017
  %2760 = vmatmul.mubr.bf16.gmra.mrb[0].mxu0 %v2016
  %v2761 = vpop.f32.mrb[0].mxu0
  %v2762 = vadd.f32 %v2569, %v2761
  %v2763 = vpop.f32.mrb[0].mxu0
  %v2764 = vadd.f32 %v2571, %v2763
  %v2765 = vpop.f32.mrb[0].mxu0
  %v2766 = vadd.f32 %v2573, %v2765
  %v2767 = vpop.f32.mrb[0].mxu0
  %v2768 = vadd.f32 %v2575, %v2767
  %2769 = vmatprep.mubr.bf16.mxu0 %v2021
  %2770 = vmatmul.mubr.bf16.gmra.mrb[0].mxu0 %v2020
  %v2771 = vpop.f32.mrb[0].mxu0
  %v2772 = vadd.f32 %v2579, %v2771
  %v2773 = vpop.f32.mrb[0].mxu0
  %v2774 = vadd.f32 %v2581, %v2773
  %v2775 = vpop.f32.mrb[0].mxu0
  %v2776 = vadd.f32 %v2583, %v2775
  %v2777 = vpop.f32.mrb[0].mxu0
  %v2778 = vadd.f32 %v2585, %v2777
  %2779 = vmatprep.mubr.bf16.mxu0 %v2025
  %2780 = vmatmul.mubr.bf16.gmra.mrb[0].mxu0 %v2024
  %v2781 = vpop.f32.mrb[0].mxu0
  %v2782 = vadd.f32 %v2589, %v2781
  %v2783 = vpop.f32.mrb[0].mxu0
  %v2784 = vadd.f32 %v2591, %v2783
  %v2785 = vpop.f32.mrb[0].mxu0
  %v2786 = vadd.f32 %v2593, %v2785
  %v2787 = vpop.f32.mrb[0].mxu0
  %v2788 = vadd.f32 %v2595, %v2787
  %2789 = vmatprep.mubr.bf16.mxu0 %v2029
  %2790 = vmatmul.mubr.bf16.gmra.mrb[0].mxu0 %v2028
  %v2791 = vpop.f32.mrb[0].mxu0
  %v2792 = vadd.f32 %v2599, %v2791
  %v2793 = vpop.f32.mrb[0].mxu0
  %v2794 = vadd.f32 %v2601, %v2793
  %v2795 = vpop.f32.mrb[0].mxu0
  %v2796 = vadd.f32 %v2603, %v2795
  %v2797 = vpop.f32.mrb[0].mxu0
  %v2798 = vadd.f32 %v2605, %v2797
  %2799 = vmatprep.mubr.bf16.mxu0 %v2033
  %2800 = vmatmul.mubr.bf16.gmra.mrb[0].mxu0 %v2032
  %v2801 = vpop.f32.mrb[0].mxu0
  %v2802 = vadd.f32 %v2609, %v2801
  %v2803 = vpop.f32.mrb[0].mxu0
  %v2804 = vadd.f32 %v2611, %v2803
  %v2805 = vpop.f32.mrb[0].mxu0
  %v2806 = vadd.f32 %v2613, %v2805
  %v2807 = vpop.f32.mrb[0].mxu0
  %v2808 = vadd.f32 %v2615, %v2807
  %2809 = vmatprep.mubr.bf16.mxu0 %v2037
  %2810 = vmatmul.mubr.bf16.gmra.mrb[0].mxu0 %v2036
  %v2811 = vpop.f32.mrb[0].mxu0
  %v2812 = vadd.f32 %v2619, %v2811
  %v2813 = vpop.f32.mrb[0].mxu0
  %v2814 = vadd.f32 %v2621, %v2813
  %v2815 = vpop.f32.mrb[0].mxu0
  %v2816 = vadd.f32 %v2623, %v2815
  %v2817 = vpop.f32.mrb[0].mxu0
  %v2818 = vadd.f32 %v2625, %v2817
  %2819 = vmatprep.mubr.bf16.mxu0 %v2041
  %2820 = vmatmul.mubr.bf16.gmra.mrb[0].mxu0 %v2040
  %v2821 = vpop.f32.mrb[0].mxu0
  %v2822 = vadd.f32 %v2629, %v2821
  %v2823 = vpop.f32.mrb[0].mxu0
  %v2824 = vadd.f32 %v2631, %v2823
  %v2825 = vpop.f32.mrb[0].mxu0
  %v2826 = vadd.f32 %v2633, %v2825
  %v2827 = vpop.f32.mrb[0].mxu0
  %v2828 = vadd.f32 %v2635, %v2827
  %2829 = vmatprep.mubr.bf16.mxu0 %v2045
  %2830 = vmatmul.mubr.bf16.gmra.mrb[0].mxu0 %v2044
  %v2831 = vpop.f32.mrb[0].mxu0
  %v2832 = vadd.f32 %v2639, %v2831
  %v2833 = vpop.f32.mrb[0].mxu0
  %v2834 = vadd.f32 %v2641, %v2833
  %v2835 = vpop.f32.mrb[0].mxu0
  %v2836 = vadd.f32 %v2643, %v2835
  %v2837 = vpop.f32.mrb[0].mxu0
  %v2838 = vadd.f32 %v2645, %v2837
  %2839 = vmatprep.mubr.bf16.mxu0 %v2049
  %2840 = vmatmul.mubr.bf16.gmra.mrb[0].mxu0 %v2048
  %v2841 = vpop.f32.mrb[0].mxu0
  %v2842 = vadd.f32 %v2649, %v2841
  %v2843 = vpop.f32.mrb[0].mxu0
  %v2844 = vadd.f32 %v2651, %v2843
  %v2845 = vpop.f32.mrb[0].mxu0
  %v2846 = vadd.f32 %v2653, %v2845
  %v2847 = vpop.f32.mrb[0].mxu0
  %v2848 = vadd.f32 %v2655, %v2847
  %2849 = vmatprep.mubr.bf16.mxu0 %v2053
  %2850 = vmatmul.mubr.bf16.gmra.mrb[0].mxu0 %v2052
  %v2851 = vpop.f32.mrb[0].mxu0
  %v2852 = vadd.f32 %v2659, %v2851
  %v2853 = vpop.f32.mrb[0].mxu0
  %v2854 = vadd.f32 %v2661, %v2853
  %v2855 = vpop.f32.mrb[0].mxu0
  %v2856 = vadd.f32 %v2663, %v2855
  %v2857 = vpop.f32.mrb[0].mxu0
  %v2858 = vadd.f32 %v2665, %v2857
  %2859 = vmatprep.mubr.bf16.mxu0 %v2057
  %2860 = vmatmul.mubr.bf16.gmra.mrb[0].mxu0 %v2056
  %v2861 = vpop.f32.mrb[0].mxu0
  %v2862 = vadd.f32 %v2669, %v2861
  %v2863 = vpop.f32.mrb[0].mxu0
  %v2864 = vadd.f32 %v2671, %v2863
  %v2865 = vpop.f32.mrb[0].mxu0
  %v2866 = vadd.f32 %v2673, %v2865
  %v2867 = vpop.f32.mrb[0].mxu0
  %v2868 = vadd.f32 %v2675, %v2867
  %2869 = vmatprep.mubr.bf16.mxu0 %v2061
  %2870 = vmatmul.mubr.bf16.gmra.mrb[0].mxu0 %v2060
  %v2871 = vpop.f32.mrb[0].mxu0
  %v2872 = vadd.f32 %v2679, %v2871
  %v2873 = vpop.f32.mrb[0].mxu0
  %v2874 = vadd.f32 %v2681, %v2873
  %v2875 = vpop.f32.mrb[0].mxu0
  %v2876 = vadd.f32 %v2683, %v2875
  %v2877 = vpop.f32.mrb[0].mxu0
  %v2878 = vadd.f32 %v2685, %v2877
  %2879 = vmatprep.mubr.bf16.mxu0 %v2065
  %2880 = vmatmul.mubr.bf16.gmra.mrb[0].mxu0 %v2064
  %v2881 = vpop.f32.mrb[0].mxu0
  %v2882 = vadd.f32 %v2689, %v2881
  %v2883 = vpop.f32.mrb[0].mxu0
  %v2884 = vadd.f32 %v2691, %v2883
  %v2885 = vpop.f32.mrb[0].mxu0
  %v2886 = vadd.f32 %v2693, %v2885
  %v2887 = vpop.f32.mrb[0].mxu0
  %v2888 = vadd.f32 %v2695, %v2887
  %2889 = vmatprep.mubr.bf16.mxu0 %v2069
  %2890 = vmatmul.mubr.bf16.gmra.mrb[0].mxu0 %v2068
  %v2891 = vpop.f32.mrb[0].mxu0
  %v2892 = vadd.f32 %v2699, %v2891
  %v2893 = vpop.f32.mrb[0].mxu0
  %v2894 = vadd.f32 %v2701, %v2893
  %v2895 = vpop.f32.mrb[0].mxu0
  %v2896 = vadd.f32 %v2703, %v2895
  %v2897 = vpop.f32.mrb[0].mxu0
  %v2898 = vadd.f32 %v2705, %v2897
  %2899 = vmatprep.mubr.bf16.mxu0 %v2073
  %2900 = vmatmul.mubr.bf16.gmra.mrb[0].mxu0 %v2072
  %v2901 = vpop.f32.mrb[0].mxu0
  %v2902 = vadd.f32 %v2709, %v2901
  %v2903 = vpop.f32.mrb[0].mxu0
  %v2904 = vadd.f32 %v2711, %v2903
  %v2905 = vpop.f32.mrb[0].mxu0
  %v2906 = vadd.f32 %v2713, %v2905
  %v2907 = vpop.f32.mrb[0].mxu0
  %v2908 = vadd.f32 %v2715, %v2907
  %2909 = vdwg.mxu0
  %v2910 = vmax.f32 %v2366, 0.0
  %v2911 = vmax.f32 %v2368, 0.0
  %v2912 = vmax.f32 %v2752, 0.0
  %v2913 = vmax.f32 %v2754, 0.0
  %v2914 = vmax.f32 %v2370, 0.0
  %v2915 = vmax.f32 %v2372, 0.0
  %v2916 = vmax.f32 %v2756, 0.0
  %v2917 = vmax.f32 %v2758, 0.0
  %v2918 = vmax.f32 %v2376, 0.0
  %v2919 = vmax.f32 %v2378, 0.0
  %v2920 = vmax.f32 %v2762, 0.0
  %v2921 = vmax.f32 %v2764, 0.0
  %v2922 = vmax.f32 %v2380, 0.0
  %v2923 = vmax.f32 %v2382, 0.0
  %v2924 = vmax.f32 %v2766, 0.0
  %v2925 = vmax.f32 %v2768, 0.0
  %v2926 = vmax.f32 %v2386, 0.0
  %v2927 = vmax.f32 %v2388, 0.0
  %v2928 = vmax.f32 %v2772, 0.0
  %v2929 = vmax.f32 %v2774, 0.0
  %v2930 = vmax.f32 %v2390, 0.0
  %v2931 = vmax.f32 %v2392, 0.0
  %v2932 = vmax.f32 %v2776, 0.0
  %v2933 = vmax.f32 %v2778, 0.0
  %v2934 = vmax.f32 %v2396, 0.0
  %v2935 = vmax.f32 %v2398, 0.0
  %v2936 = vmax.f32 %v2782, 0.0
  %v2937 = vmax.f32 %v2784, 0.0
  %v2938 = vmax.f32 %v2400, 0.0
  %v2939 = vmax.f32 %v2402, 0.0
  %v2940 = vmax.f32 %v2786, 0.0
  %v2941 = vmax.f32 %v2788, 0.0
  %v2942 = vmax.f32 %v2406, 0.0
  %v2943 = vmax.f32 %v2408, 0.0
  %v2944 = vmax.f32 %v2792, 0.0
  %v2945 = vmax.f32 %v2794, 0.0
  %v2946 = vmax.f32 %v2410, 0.0
  %v2947 = vmax.f32 %v2412, 0.0
  %v2948 = vmax.f32 %v2796, 0.0
  %v2949 = vmax.f32 %v2798, 0.0
  %v2950 = vmax.f32 %v2416, 0.0
  %v2951 = vmax.f32 %v2418, 0.0
  %v2952 = vmax.f32 %v2802, 0.0
  %v2953 = vmax.f32 %v2804, 0.0
  %v2954 = vmax.f32 %v2420, 0.0
  %v2955 = vmax.f32 %v2422, 0.0
  %v2956 = vmax.f32 %v2806, 0.0
  %v2957 = vmax.f32 %v2808, 0.0
  %v2958 = vmax.f32 %v2426, 0.0
  %v2959 = vmax.f32 %v2428, 0.0
  %v2960 = vmax.f32 %v2812, 0.0
  %v2961 = vmax.f32 %v2814, 0.0
  %v2962 = vmax.f32 %v2430, 0.0
  %v2963 = vmax.f32 %v2432, 0.0
  %v2964 = vmax.f32 %v2816, 0.0
  %v2965 = vmax.f32 %v2818, 0.0
  %v2966 = vmax.f32 %v2436, 0.0
  %v2967 = vmax.f32 %v2438, 0.0
  %v2968 = vmax.f32 %v2822, 0.0
  %v2969 = vmax.f32 %v2824, 0.0
  %v2970 = vmax.f32 %v2440, 0.0
  %v2971 = vmax.f32 %v2442, 0.0
  %v2972 = vmax.f32 %v2826, 0.0
  %v2973 = vmax.f32 %v2828, 0.0
  %v2974 = vmax.f32 %v2446, 0.0
  %v2975 = vmax.f32 %v2448, 0.0
  %v2976 = vmax.f32 %v2832, 0.0
  %v2977 = vmax.f32 %v2834, 0.0
  %v2978 = vmax.f32 %v2450, 0.0
  %v2979 = vmax.f32 %v2452, 0.0
  %v2980 = vmax.f32 %v2836, 0.0
  %v2981 = vmax.f32 %v2838, 0.0
  %v2982 = vmax.f32 %v2456, 0.0
  %v2983 = vmax.f32 %v2458, 0.0
  %v2984 = vmax.f32 %v2842, 0.0
  %v2985 = vmax.f32 %v2844, 0.0
  %v2986 = vmax.f32 %v2460, 0.0
  %v2987 = vmax.f32 %v2462, 0.0
  %v2988 = vmax.f32 %v2846, 0.0
  %v2989 = vmax.f32 %v2848, 0.0
  %v2990 = vmax.f32 %v2466, 0.0
  %v2991 = vmax.f32 %v2468, 0.0
  %v2992 = vmax.f32 %v2852, 0.0
  %v2993 = vmax.f32 %v2854, 0.0
  %v2994 = vmax.f32 %v2470, 0.0
  %v2995 = vmax.f32 %v2472, 0.0
  %v2996 = vmax.f32 %v2856, 0.0
  %v2997 = vmax.f32 %v2858, 0.0
  %v2998 = vmax.f32 %v2476, 0.0
  %v2999 = vmax.f32 %v2478, 0.0
  %v3000 = vmax.f32 %v2862, 0.0
  %v3001 = vmax.f32 %v2864, 0.0
  %v3002 = vmax.f32 %v2480, 0.0
  %v3003 = vmax.f32 %v2482, 0.0
  %v3004 = vmax.f32 %v2866, 0.0
  %v3005 = vmax.f32 %v2868, 0.0
  %v3006 = vmax.f32 %v2486, 0.0
  %v3007 = vmax.f32 %v2488, 0.0
  %v3008 = vmax.f32 %v2872, 0.0
  %v3009 = vmax.f32 %v2874, 0.0
  %v3010 = vmax.f32 %v2490, 0.0
  %v3011 = vmax.f32 %v2492, 0.0
  %v3012 = vmax.f32 %v2876, 0.0
  %v3013 = vmax.f32 %v2878, 0.0
  %v3014 = vmax.f32 %v2496, 0.0
  %v3015 = vmax.f32 %v2498, 0.0
  %v3016 = vmax.f32 %v2882, 0.0
  %v3017 = vmax.f32 %v2884, 0.0
  %v3018 = vmax.f32 %v2500, 0.0
  %v3019 = vmax.f32 %v2502, 0.0
  %v3020 = vmax.f32 %v2886, 0.0
  %v3021 = vmax.f32 %v2888, 0.0
  %v3022 = vmax.f32 %v2506, 0.0
  %v3023 = vmax.f32 %v2508, 0.0
  %v3024 = vmax.f32 %v2892, 0.0
  %v3025 = vmax.f32 %v2894, 0.0
  %v3026 = vmax.f32 %v2510, 0.0
  %v3027 = vmax.f32 %v2512, 0.0
  %v3028 = vmax.f32 %v2896, 0.0
  %v3029 = vmax.f32 %v2898, 0.0
  %v3030 = vmax.f32 %v2516, 0.0
  %v3031 = vmax.f32 %v2518, 0.0
  %v3032 = vmax.f32 %v2902, 0.0
  %v3033 = vmax.f32 %v2904, 0.0
  %v3034 = vmax.f32 %v2520, 0.0
  %v3035 = vmax.f32 %v2522, 0.0
  %v3036 = vmax.f32 %v2906, 0.0
  %v3037 = vmax.f32 %v2908, 0.0
  %v3038 = vld [vmem:[%s4] sm:$0xff]
  %v3039 = vpack.c.bf16 %v2914, %v2910
  %v3040 = vpack.c.bf16 %v2915, %v2911
  %v3041 = vpack.c.bf16 %v2916, %v2912
  %v3042 = vpack.c.bf16 %v2917, %v2913
  %v3043 = vpack.c.bf16 %v2922, %v2918
  %v3044 = vpack.c.bf16 %v2923, %v2919
  %v3045 = vpack.c.bf16 %v2924, %v2920
  %v3046 = vpack.c.bf16 %v2925, %v2921
  %v3047 = vpack.c.bf16 %v2930, %v2926
  %v3048 = vpack.c.bf16 %v2931, %v2927
  %v3049 = vpack.c.bf16 %v2932, %v2928
  %v3050 = vpack.c.bf16 %v2933, %v2929
  %v3051 = vpack.c.bf16 %v2938, %v2934
  %v3052 = vpack.c.bf16 %v2939, %v2935
  %v3053 = vpack.c.bf16 %v2940, %v2936
  %v3054 = vpack.c.bf16 %v2941, %v2937
  %v3055 = vpack.c.bf16 %v2946, %v2942
  %v3056 = vpack.c.bf16 %v2947, %v2943
  %v3057 = vpack.c.bf16 %v2948, %v2944
  %v3058 = vpack.c.bf16 %v2949, %v2945
  %v3059 = vpack.c.bf16 %v2954, %v2950
  %v3060 = vpack.c.bf16 %v2955, %v2951
  %v3061 = vpack.c.bf16 %v2956, %v2952
  %v3062 = vpack.c.bf16 %v2957, %v2953
  %v3063 = vpack.c.bf16 %v2962, %v2958
  %v3064 = vpack.c.bf16 %v2963, %v2959
  %v3065 = vpack.c.bf16 %v2964, %v2960
  %v3066 = vpack.c.bf16 %v2965, %v2961
  %v3067 = vpack.c.bf16 %v2970, %v2966
  %v3068 = vpack.c.bf16 %v2971, %v2967
  %v3069 = vpack.c.bf16 %v2972, %v2968
  %v3070 = vpack.c.bf16 %v2973, %v2969
  %v3071 = vpack.c.bf16 %v2978, %v2974
  %v3072 = vpack.c.bf16 %v2979, %v2975
  %v3073 = vpack.c.bf16 %v2980, %v2976
  %v3074 = vpack.c.bf16 %v2981, %v2977
  %v3075 = vpack.c.bf16 %v2986, %v2982
  %v3076 = vpack.c.bf16 %v2987, %v2983
  %v3077 = vpack.c.bf16 %v2988, %v2984
  %v3078 = vpack.c.bf16 %v2989, %v2985
  %v3079 = vpack.c.bf16 %v2994, %v2990
  %v3080 = vpack.c.bf16 %v2995, %v2991
  %v3081 = vpack.c.bf16 %v2996, %v2992
  %v3082 = vpack.c.bf16 %v2997, %v2993
  %v3083 = vpack.c.bf16 %v3002, %v2998
  %v3084 = vpack.c.bf16 %v3003, %v2999
  %v3085 = vpack.c.bf16 %v3004, %v3000
  %v3086 = vpack.c.bf16 %v3005, %v3001
  %v3087 = vpack.c.bf16 %v3010, %v3006
  %v3088 = vpack.c.bf16 %v3011, %v3007
  %v3089 = vpack.c.bf16 %v3012, %v3008
  %v3090 = vpack.c.bf16 %v3013, %v3009
  %v3091 = vpack.c.bf16 %v3018, %v3014
  %v3092 = vpack.c.bf16 %v3019, %v3015
  %v3093 = vpack.c.bf16 %v3020, %v3016
  %v3094 = vpack.c.bf16 %v3021, %v3017
  %v3095 = vpack.c.bf16 %v3026, %v3022
  %v3096 = vpack.c.bf16 %v3027, %v3023
  %v3097 = vpack.c.bf16 %v3028, %v3024
  %v3098 = vpack.c.bf16 %v3029, %v3025
  %v3099 = vpack.c.bf16 %v3034, %v3030
  %v3100 = vpack.c.bf16 %v3035, %v3031
  %v3101 = vpack.c.bf16 %v3036, %v3032
  %v3102 = vpack.c.bf16 %v3037, %v3033
  %v3103 = vld [vmem:[%s5] sm:$0xff]
  %3105 = vset.pattern.permute.xlu0 0
  %3106 = vperm.xlu0 %3105, %v3103
  %v3107 = vpop.permute.xlu0 %3106
  %v3110 = vunpack.c.l.b16 %v3038
  %v3111 = vunpack.c.h.b16 %v3038
  %v3112 = vpack.c.b16 %v3110, %v3110
  %v3113 = vpack.c.b16 %v3111, %v3111
  %3116 = vmatprep.subr.bf16.mxu0 %v3040
  %3117 = vmatpush1.bf16.msra.mxu0 %v3039
  %3118 = vmatprep.subr.bf16.mxu0 %v3044
  %3119 = vmatpush1.bf16.msra.mxu0 %v3043
  %3120 = vmatprep.subr.bf16.mxu0 %v3048
  %3121 = vmatpush1.bf16.msra.mxu0 %v3047
  %3122 = vmatprep.subr.bf16.mxu0 %v3052
  %3123 = vmatpush1.bf16.msra.mxu0 %v3051
  %3124 = vmatprep.subr.bf16.mxu0 %v3056
  %3125 = vmatpush1.bf16.msra.mxu0 %v3055
  %3126 = vmatprep.subr.bf16.mxu0 %v3060
  %3127 = vmatpush1.bf16.msra.mxu0 %v3059
  %3128 = vmatprep.subr.bf16.mxu0 %v3064
  %3129 = vmatpush1.bf16.msra.mxu0 %v3063
  %3130 = vmatprep.subr.bf16.mxu0 %v3068
  %3131 = vmatpush1.bf16.msra.mxu0 %v3067
  %3132 = vmatprep.subr.bf16.mxu0 %v3072
  %3133 = vmatpush1.bf16.msra.mxu0 %v3071
  %3134 = vmatprep.subr.bf16.mxu0 %v3076
  %3135 = vmatpush1.bf16.msra.mxu0 %v3075
  %3136 = vmatprep.subr.bf16.mxu0 %v3080
  %3137 = vmatpush1.bf16.msra.mxu0 %v3079
  %3138 = vmatprep.subr.bf16.mxu0 %v3084
  %3139 = vmatpush1.bf16.msra.mxu0 %v3083
  %3140 = vmatprep.subr.bf16.mxu0 %v3088
  %3141 = vmatpush1.bf16.msra.mxu0 %v3087
  %3142 = vmatprep.subr.bf16.mxu0 %v3092
  %3143 = vmatpush1.bf16.msra.mxu0 %v3091
  %3144 = vmatprep.subr.bf16.mxu0 %v3096
  %3145 = vmatpush1.bf16.msra.mxu0 %v3095
  %3146 = vmatprep.subr.bf16.mxu0 %v3100
  %3147 = vmatpush1.bf16.msra.mxu0 %v3099
  %3148 = vmatprep.mubr.bf16.mxu0 %v3113
  %3149 = vmatmul.mubr.bf16.gmra.mrb[0].mxu0 %v3112
  %v3150 = vpop.f32.mrb[0].mxu0
  %v3151 = vadd.f32 %v3107, %v3150
  %v3152 = vpop.f32.mrb[0].mxu0
  %v3153 = vadd.f32 %v3107, %v3152
  %v3154 = vpop.f32.mrb[0].mxu0
  %v3155 = vpop.f32.mrb[0].mxu0
  %3156 = vdwg.mxu0
  %3157 = vmatprep.subr.bf16.mxu0 %v3042
  %3158 = vmatpush1.bf16.msra.mxu0 %v3041
  %3159 = vmatprep.subr.bf16.mxu0 %v3046
  %3160 = vmatpush1.bf16.msra.mxu0 %v3045
  %3161 = vmatprep.subr.bf16.mxu0 %v3050
  %3162 = vmatpush1.bf16.msra.mxu0 %v3049
  %3163 = vmatprep.subr.bf16.mxu0 %v3054
  %3164 = vmatpush1.bf16.msra.mxu0 %v3053
  %3165 = vmatprep.subr.bf16.mxu0 %v3058
  %3166 = vmatpush1.bf16.msra.mxu0 %v3057
  %3167 = vmatprep.subr.bf16.mxu0 %v3062
  %3168 = vmatpush1.bf16.msra.mxu0 %v3061
  %3169 = vmatprep.subr.bf16.mxu0 %v3066
  %3170 = vmatpush1.bf16.msra.mxu0 %v3065
  %3171 = vmatprep.subr.bf16.mxu0 %v3070
  %3172 = vmatpush1.bf16.msra.mxu0 %v3069
  %3173 = vmatprep.subr.bf16.mxu0 %v3074
  %3174 = vmatpush1.bf16.msra.mxu0 %v3073
  %3175 = vmatprep.subr.bf16.mxu0 %v3078
  %3176 = vmatpush1.bf16.msra.mxu0 %v3077
  %3177 = vmatprep.subr.bf16.mxu0 %v3082
  %3178 = vmatpush1.bf16.msra.mxu0 %v3081
  %3179 = vmatprep.subr.bf16.mxu0 %v3086
  %3180 = vmatpush1.bf16.msra.mxu0 %v3085
  %3181 = vmatprep.subr.bf16.mxu0 %v3090
  %3182 = vmatpush1.bf16.msra.mxu0 %v3089
  %3183 = vmatprep.subr.bf16.mxu0 %v3094
  %3184 = vmatpush1.bf16.msra.mxu0 %v3093
  %3185 = vmatprep.subr.bf16.mxu0 %v3098
  %3186 = vmatpush1.bf16.msra.mxu0 %v3097
  %3187 = vmatprep.subr.bf16.mxu0 %v3102
  %3188 = vmatpush1.bf16.msra.mxu0 %v3101
  %3189 = vmatprep.mubr.bf16.mxu0 %v3113
  %3190 = vmatmul.mubr.bf16.gmra.mrb[0].mxu0 %v3112
  %v3191 = vpop.f32.mrb[0].mxu0
  %v3192 = vadd.f32 %v3107, %v3191
  %v3193 = vpop.f32.mrb[0].mxu0
  %v3194 = vadd.f32 %v3107, %v3193
  %v3195 = vpop.f32.mrb[0].mxu0
  %v3196 = vpop.f32.mrb[0].mxu0
  %3197 = vdwg.mxu0
  %v3202 = vrot.slane %v3151, 1
  %v3203 = vrot.slane %v3153, 1
  %v3204 = vrot.slane %v3192, 1
  %v3205 = vrot.slane %v3194, 1
  %v3210 = vmul.f32 %v3151, %v3202
  %v3211 = vmul.f32 %v3153, %v3203
  %v3212 = vmul.f32 %v3192, %v3204
  %v3213 = vmul.f32 %v3194, %v3205
  %v3218 = vcombine.low %v3210, %v3211
  %v3219 = vcombine.low %v3212, %v3213
  %v3221 = vunpack.c.l.s4 1966171168
  %v3222 = vunpack.c.0.s8 %v3221
  %v3223 = vlaneseq
  %v3224 = vshrl.u32 %v3223, 7
  %v3225 = vsub.s32 %v3222, %v3224
  %v3226 = vrot.slane %v3218, %v3225
  %v3228 = vunpack.c.l.s4 1966171168
  %v3229 = vunpack.c.0.s8 %v3228
  %v3230 = vlaneseq
  %v3231 = vshrl.u32 %v3230, 7
  %v3232 = vsub.s32 %v3229, %v3231
  %v3233 = vrot.slane %v3219, %v3232
  %v3234 = vcombine.low %v3226, %v3233
  %v3236 = vunpack.c.l.s4 1966171168
  %v3237 = vunpack.c.0.s8 %v3236
  %v3238 = vlaneseq
  %v3239 = vshrl.u32 %v3238, 7
  %v3240 = vsub.s32 %v3237, %v3239
  %v3241 = vrot.slane %v3234, %v3240
  %v3243 = vlaneseq
  %vm3244 = vcmp.ge.s32.totalorder %v3243, 0
  %vm3245 = vcmp.lt.s32.totalorder %v3243, 512
  %vm3246 = vmand %vm3244, %vm3245
  %3247 = vst.msk [vmem:[%s6] sm:$0xf] %vm3246, %v3241
  // Predicated region
  $region26: #{att_pool_forward.1} parent=0 // pred_check
    _
  $region27: #{att_pool_forward.1} parent=0 // pred_check_branch
    %3249 = sbr.rel (0) target = $region29
  $region28: #{att_pool_forward.1} parent=0 // pred_region
    _
  $region29: #{att_pool_forward.1} parent=0 // pred_fallthru
    _
  // Predicated region
  $region30: #{att_pool_forward.1} parent=0 // pred_check
    _
  $region31: #{att_pool_forward.1} parent=0 // pred_check_branch
    %3251 = sbr.rel (0) target = $region33
  $region32: #{att_pool_forward.1} parent=0 // pred_region
    _
  $region33: #{att_pool_forward.1} parent=0 // pred_fallthru
    _

</llo_original>
